<compile_context>
chip_gen: v6e
topology: v6e:2x2x1
jax: 0.10.0
libtpu: 0.0.40
codegen_flags: <defaults>
</compile_context>

<pallas_src>
import jax
import jax.numpy as jnp
from jax import lax
from jax.experimental import pallas as pl
from jax.experimental.pallas import tpu as pltpu

_LPAD = 8  # sublane-aligned column offset of the interior inside padded frames


def _round_up(x, m):
    return (x + m - 1) // m * m


def _double_conv_kernel(xf_ref, w1_ref, b1_ref, w2_ref, b2_ref, o_ref, yf_ref):
    # xf_ref : (H+2, WS, CP)   bf16  input frame: real pixels at rows [1:H+1],
    #                                cols [_LPAD:_LPAD+W], zero halo around them.
    # w1_ref : (9, CP,  CP2)   bf16  conv1 weights, tap index t = kh*3 + kw.
    # b1_ref : (1, CP2)        f32
    # w2_ref : (9, CP2, CP2)   bf16
    # b2_ref : (1, CP2)        f32
    # o_ref  : (H, W, CP2)     bf16  output tile (batch dim squeezed by BlockSpec).
    # yf_ref : (H+2, WS, CP2)  bf16  VMEM scratch frame for the stage-1 activation.
    H, W, CP2 = o_ref.shape
    WS = yf_ref.shape[1]

    def conv3x3_relu(frame_ref, w_ref, b_ref):
        # 9 accumulated tap matmuls on the MXU, f32 accumulation in vregs.
        cin = frame_ref.shape[-1]
        acc = None
        for kh in range(3):
            for kw in range(3):
                c0 = _LPAD - 1 + kw
                tap = frame_ref[kh:kh + H, c0:c0 + W, :].reshape(H * W, cin)
                part = jnp.dot(tap, w_ref[kh * 3 + kw],
                               preferred_element_type=jnp.float32)
                acc = part if acc is None else acc + part
        return jnp.maximum(acc + b_ref[0], 0.0)      # f32 epilogue

    # ---- stage 1: conv1 + bias + ReLU, result kept in the VMEM frame ----
    a1 = conv3x3_relu(xf_ref, w1_ref, b1_ref)

    # Zero ONLY the halo strips of the scratch frame (interior is overwritten
    # below).  Rows are the outer dim (free offset); column strips are 8-wide and
    # 8-aligned -> unmasked stores.  Done every step: safe under megacore.
    zero_row = jnp.zeros((WS, CP2), yf_ref.dtype)
    yf_ref[0, :, :] = zero_row                                   # top halo row
    yf_ref[H + 1, :, :] = zero_row                               # bottom halo row
    yf_ref[:, 0:_LPAD, :] = jnp.zeros((H + 2, _LPAD, CP2), yf_ref.dtype)
    yf_ref[:, _LPAD + W:WS, :] = jnp.zeros((H + 2, WS - _LPAD - W, CP2),
                                           yf_ref.dtype)

    # Sublane-aligned, lane-dense interior store (cols [_LPAD:_LPAD+W]).
    yf_ref[1:H + 1, _LPAD:_LPAD + W, :] = a1.reshape(H, W, CP2).astype(yf_ref.dtype)

    # ---- stage 2: conv2 + bias + ReLU straight from the VMEM frame ----
    a2 = conv3x3_relu(yf_ref, w2_ref, b2_ref)
    o_ref[...] = a2.reshape(H, W, CP2).astype(o_ref.dtype)


def double_conv(x_nchw, params):
    """DoubleConv.forward semantics. `params` use PyTorch layouts (OIHW weights)."""
    w1, b1, w2, b2 = params
    N, Cin, H, W = x_nchw.shape
    Cout = w1.shape[0]

    CP = _round_up(Cin, 128)            # lane-dense padded channel counts
    CP2 = _round_up(Cout, 128)
    WS = _round_up(_LPAD + W + 1, 8)    # aligned frame row pitch (incl. halos)

    # Glue: NCHW -> NHWC fused with the zero frame (1px halo at an aligned column
    # offset) + channel pad; bf16 operands halve the input DMA.
    x = jnp.transpose(x_nchw, (0, 2, 3, 1))
    xf = jnp.pad(
        x, ((0, 0), (1, 1), (_LPAD, WS - _LPAD - W), (0, CP - Cin))
    ).astype(jnp.bfloat16)

    # Weights: PyTorch OIHW -> (kh, kw, cin, cout), pad channels, flatten taps.
    def prep_w(w, cin, cpi):
        whwio = jnp.transpose(w, (2, 3, 1, 0))                     # (3,3,Cin,Cout)
        wp = jnp.pad(whwio, ((0, 0), (0, 0), (0, cpi - cin), (0, CP2 - Cout)))
        return wp.astype(jnp.bfloat16).reshape(9, cpi, CP2)

    w1p = prep_w(w1, Cin, CP)
    w2p = prep_w(w2, Cout, CP2)
    b1p = jnp.pad(b1, (0, CP2 - Cout)).astype(jnp.float32).reshape(1, CP2)
    b2p = jnp.pad(b2, (0, CP2 - Cout)).astype(jnp.float32).reshape(1, CP2)

    flops = 2 * N * H * W * 9 * (Cin * Cout + Cout * Cout)
    bytes_accessed = (N * H * W * Cin * 4 + N * H * W * Cout * 2
                      + (w1.size + w2.size) * 2 + (b1.size + b2.size) * 4)

    out = pl.pallas_call(
        _double_conv_kernel,
        out_shape=jax.ShapeDtypeStruct((N, H, W, CP2), jnp.bfloat16),
        grid=(N,),
        in_specs=[
            pl.BlockSpec((None, H + 2, WS, CP), lambda n: (n, 0, 0, 0)),
            pl.BlockSpec((9, CP, CP2), lambda n: (0, 0, 0)),
            pl.BlockSpec((1, CP2), lambda n: (0, 0)),
            pl.BlockSpec((9, CP2, CP2), lambda n: (0, 0, 0)),
            pl.BlockSpec((1, CP2), lambda n: (0, 0)),
        ],
        out_specs=pl.BlockSpec((None, H, W, CP2), lambda n: (n, 0, 0, 0)),
        scratch_shapes=[pltpu.VMEM((H + 2, WS, CP2), jnp.bfloat16)],
        compiler_params=pltpu.CompilerParams(
            dimension_semantics=("parallel",),
            vmem_limit_bytes=32 * 1024 * 1024),
        cost_estimate=pl.CostEstimate(
            flops=flops, transcendentals=0, bytes_accessed=bytes_accessed),
    )(xf, w1p, b1p, w2p, b2p)

    # Glue: drop channel padding, upcast, NHWC -> NCHW (one fused copy in XLA).
    return jnp.transpose(out[..., :Cout].astype(jnp.float32), (0, 3, 1, 2))


def init_params(key, in_channels, out_channels, dtype=jnp.float32):
    """PyTorch-style Conv2d params: OIHW weights, (Cout,) biases."""
    k1, k2, k3, k4 = jax.random.split(key, 4)
    lim1 = 1.0 / (in_channels * 9) ** 0.5
    lim2 = 1.0 / (out_channels * 9) ** 0.5
    w1 = jax.random.uniform(k1, (out_channels, in_channels, 3, 3), dtype, -lim1, lim1)
    b1 = jax.random.uniform(k2, (out_channels,), dtype, -lim1, lim1)
    w2 = jax.random.uniform(k3, (out_channels, out_channels, 3, 3), dtype, -lim2, lim2)
    b2 = jax.random.uniform(k4, (out_channels,), dtype, -lim2, lim2)
    return w1, b1, w2, b2


def _reference(x_nchw, params):
    """Pure-JAX reference mirroring the kernel's bf16-operand / f32-accumulate math."""
    w1, b1, w2, b2 = params
    dn = ("NCHW", "OIHW", "NCHW")
    xb = x_nchw.astype(jnp.bfloat16).astype(jnp.float32)
    w1b = w1.astype(jnp.bfloat16).astype(jnp.float32)
    w2b = w2.astype(jnp.bfloat16).astype(jnp.float32)
    y = lax.conv_general_dilated(xb, w1b, (1, 1), "SAME", dimension_numbers=dn,
                                 precision=lax.Precision.HIGHEST)
    y = jnp.maximum(y + b1[None, :, None, None].astype(jnp.float32), 0.0)
    y = y.astype(jnp.bfloat16).astype(jnp.float32)          # VMEM intermediate is bf16
    y = lax.conv_general_dilated(y, w2b, (1, 1), "SAME", dimension_numbers=dn,
                                 precision=lax.Precision.HIGHEST)
    y = jnp.maximum(y + b2[None, :, None, None].astype(jnp.float32), 0.0)
    return y.astype(jnp.bfloat16).astype(jnp.float32)       # kernel emits bf16


if __name__ == "__main__":
    key = jax.random.PRNGKey(0)
    kx, kp = jax.random.split(key)

    N, Cin, Cout, H, W = 2, 4, 8, 16, 16
    x = jax.random.normal(kx, (N, Cin, H, W), jnp.float32)   # NCHW, like PyTorch
    params = init_params(kp, Cin, Cout)

    out = jax.block_until_ready(jax.jit(double_conv)(x, params))
    ref = jax.block_until_ready(_reference(x, params))

    assert out.shape == (N, Cout, H, W)
    assert jnp.allclose(out, ref, atol=1e-2, rtol=1e-2), "mismatch vs reference"

    print("KERNEL_OK")
</pallas_src>

<mosaic_0001>
module attributes {stable_mosaic.version = 11 : i64} {
  func.func @_double_conv_kernel(%arg0: i32, %arg1: memref<1x18x32x128xbf16, #tpu.memory_space<vmem>>, %arg2: memref<9x128x128xbf16, #tpu.memory_space<vmem>>, %arg3: memref<1x128xf32, #tpu.memory_space<vmem>>, %arg4: memref<9x128x128xbf16, #tpu.memory_space<vmem>>, %arg5: memref<1x128xf32, #tpu.memory_space<vmem>>, %arg6: memref<1x16x16x128xbf16, #tpu.memory_space<vmem>>, %arg7: memref<18x32x128xbf16, #tpu.memory_space<vmem>>) attributes {dimension_semantics = [#tpu.dimension_semantics<parallel>], iteration_bounds = array<i64: 2>, scalar_prefetch = 0 : i64, scratch_operands = 1 : i64, tpu.core_type = #tpu.core_type<tc>, window_params = [{transform_indices = @transform_0, window_bounds = array<i64: 1, 18, 32, 128>}, {pipeline_mode = #tpu.pipeline_mode<synchronous>, transform_indices = @transform_1, window_bounds = array<i64: 9, 128, 128>}, {pipeline_mode = #tpu.pipeline_mode<synchronous>, transform_indices = @transform_2, window_bounds = array<i64: 1, 128>}, {pipeline_mode = #tpu.pipeline_mode<synchronous>, transform_indices = @transform_3, window_bounds = array<i64: 9, 128, 128>}, {pipeline_mode = #tpu.pipeline_mode<synchronous>, transform_indices = @transform_4, window_bounds = array<i64: 1, 128>}, {transform_indices = @transform_5, window_bounds = array<i64: 1, 16, 16, 128>}]} {
    %c0 = arith.constant 0 : index
    %c0_0 = arith.constant 0 : index
    %c7 = arith.constant 7 : index
    %c0_1 = arith.constant 0 : index
    %0 = vector.load %arg1[%c0, %c0_0, %c7, %c0_1] : memref<1x18x32x128xbf16, #tpu.memory_space<vmem>>, vector<1x16x16x128xbf16>
    %1 = vector.shape_cast %0 : vector<1x16x16x128xbf16> to vector<16x16x128xbf16>
    %2 = vector.shape_cast %1 : vector<16x16x128xbf16> to vector<256x128xbf16>
    %c0_2 = arith.constant 0 : index
    %c0_3 = arith.constant 0 : index
    %c0_4 = arith.constant 0 : index
    %3 = vector.load %arg2[%c0_2, %c0_3, %c0_4] : memref<9x128x128xbf16, #tpu.memory_space<vmem>>, vector<1x128x128xbf16>
    %4 = vector.shape_cast %3 : vector<1x128x128xbf16> to vector<128x128xbf16>
    %cst = arith.constant dense<0.000000e+00> : vector<256x128xf32>
    %5 = tpu.matmul %2, %4, %cst {dimension_numbers = #tpu.dot_dimension_numbers<[1], [0], [0], [1], [0, 0, 1, 1], [], []>} : vector<256x128xbf16>, vector<128x128xbf16>, vector<256x128xf32> -> vector<256x128xf32>
    %c0_5 = arith.constant 0 : index
    %c0_6 = arith.constant 0 : index
    %c8 = arith.constant 8 : index
    %c0_7 = arith.constant 0 : index
    %6 = vector.load %arg1[%c0_5, %c0_6, %c8, %c0_7] : memref<1x18x32x128xbf16, #tpu.memory_space<vmem>>, vector<1x16x16x128xbf16>
    %7 = vector.shape_cast %6 : vector<1x16x16x128xbf16> to vector<16x16x128xbf16>
    %8 = vector.shape_cast %7 : vector<16x16x128xbf16> to vector<256x128xbf16>
    %c1 = arith.constant 1 : index
    %c0_8 = arith.constant 0 : index
    %c0_9 = arith.constant 0 : index
    %9 = vector.load %arg2[%c1, %c0_8, %c0_9] : memref<9x128x128xbf16, #tpu.memory_space<vmem>>, vector<1x128x128xbf16>
    %10 = vector.shape_cast %9 : vector<1x128x128xbf16> to vector<128x128xbf16>
    %cst_10 = arith.constant dense<0.000000e+00> : vector<256x128xf32>
    %11 = tpu.matmul %8, %10, %cst_10 {dimension_numbers = #tpu.dot_dimension_numbers<[1], [0], [0], [1], [0, 0, 1, 1], [], []>} : vector<256x128xbf16>, vector<128x128xbf16>, vector<256x128xf32> -> vector<256x128xf32>
    %12 = arith.addf %5, %11 : vector<256x128xf32>
    %c0_11 = arith.constant 0 : index
    %c0_12 = arith.constant 0 : index
    %c9 = arith.constant 9 : index
    %c0_13 = arith.constant 0 : index
    %13 = vector.load %arg1[%c0_11, %c0_12, %c9, %c0_13] : memref<1x18x32x128xbf16, #tpu.memory_space<vmem>>, vector<1x16x16x128xbf16>
    %14 = vector.shape_cast %13 : vector<1x16x16x128xbf16> to vector<16x16x128xbf16>
    %15 = vector.shape_cast %14 : vector<16x16x128xbf16> to vector<256x128xbf16>
    %c2 = arith.constant 2 : index
    %c0_14 = arith.constant 0 : index
    %c0_15 = arith.constant 0 : index
    %16 = vector.load %arg2[%c2, %c0_14, %c0_15] : memref<9x128x128xbf16, #tpu.memory_space<vmem>>, vector<1x128x128xbf16>
    %17 = vector.shape_cast %16 : vector<1x128x128xbf16> to vector<128x128xbf16>
    %cst_16 = arith.constant dense<0.000000e+00> : vector<256x128xf32>
    %18 = tpu.matmul %15, %17, %cst_16 {dimension_numbers = #tpu.dot_dimension_numbers<[1], [0], [0], [1], [0, 0, 1, 1], [], []>} : vector<256x128xbf16>, vector<128x128xbf16>, vector<256x128xf32> -> vector<256x128xf32>
    %19 = arith.addf %12, %18 : vector<256x128xf32>
    %c0_17 = arith.constant 0 : index
    %c1_18 = arith.constant 1 : index
    %c7_19 = arith.constant 7 : index
    %c0_20 = arith.constant 0 : index
    %20 = vector.load %arg1[%c0_17, %c1_18, %c7_19, %c0_20] : memref<1x18x32x128xbf16, #tpu.memory_space<vmem>>, vector<1x16x16x128xbf16>
    %21 = vector.shape_cast %20 : vector<1x16x16x128xbf16> to vector<16x16x128xbf16>
    %22 = vector.shape_cast %21 : vector<16x16x128xbf16> to vector<256x128xbf16>
    %c3 = arith.constant 3 : index
    %c0_21 = arith.constant 0 : index
    %c0_22 = arith.constant 0 : index
    %23 = vector.load %arg2[%c3, %c0_21, %c0_22] : memref<9x128x128xbf16, #tpu.memory_space<vmem>>, vector<1x128x128xbf16>
    %24 = vector.shape_cast %23 : vector<1x128x128xbf16> to vector<128x128xbf16>
    %cst_23 = arith.constant dense<0.000000e+00> : vector<256x128xf32>
    %25 = tpu.matmul %22, %24, %cst_23 {dimension_numbers = #tpu.dot_dimension_numbers<[1], [0], [0], [1], [0, 0, 1, 1], [], []>} : vector<256x128xbf16>, vector<128x128xbf16>, vector<256x128xf32> -> vector<256x128xf32>
    %26 = arith.addf %19, %25 : vector<256x128xf32>
    %c0_24 = arith.constant 0 : index
    %c1_25 = arith.constant 1 : index
    %c8_26 = arith.constant 8 : index
    %c0_27 = arith.constant 0 : index
    %27 = vector.load %arg1[%c0_24, %c1_25, %c8_26, %c0_27] : memref<1x18x32x128xbf16, #tpu.memory_space<vmem>>, vector<1x16x16x128xbf16>
    %28 = vector.shape_cast %27 : vector<1x16x16x128xbf16> to vector<16x16x128xbf16>
    %29 = vector.shape_cast %28 : vector<16x16x128xbf16> to vector<256x128xbf16>
    %c4 = arith.constant 4 : index
    %c0_28 = arith.constant 0 : index
    %c0_29 = arith.constant 0 : index
    %30 = vector.load %arg2[%c4, %c0_28, %c0_29] : memref<9x128x128xbf16, #tpu.memory_space<vmem>>, vector<1x128x128xbf16>
    %31 = vector.shape_cast %30 : vector<1x128x128xbf16> to vector<128x128xbf16>
    %cst_30 = arith.constant dense<0.000000e+00> : vector<256x128xf32>
    %32 = tpu.matmul %29, %31, %cst_30 {dimension_numbers = #tpu.dot_dimension_numbers<[1], [0], [0], [1], [0, 0, 1, 1], [], []>} : vector<256x128xbf16>, vector<128x128xbf16>, vector<256x128xf32> -> vector<256x128xf32>
    %33 = arith.addf %26, %32 : vector<256x128xf32>
    %c0_31 = arith.constant 0 : index
    %c1_32 = arith.constant 1 : index
    %c9_33 = arith.constant 9 : index
    %c0_34 = arith.constant 0 : index
    %34 = vector.load %arg1[%c0_31, %c1_32, %c9_33, %c0_34] : memref<1x18x32x128xbf16, #tpu.memory_space<vmem>>, vector<1x16x16x128xbf16>
    %35 = vector.shape_cast %34 : vector<1x16x16x128xbf16> to vector<16x16x128xbf16>
    %36 = vector.shape_cast %35 : vector<16x16x128xbf16> to vector<256x128xbf16>
    %c5 = arith.constant 5 : index
    %c0_35 = arith.constant 0 : index
    %c0_36 = arith.constant 0 : index
    %37 = vector.load %arg2[%c5, %c0_35, %c0_36] : memref<9x128x128xbf16, #tpu.memory_space<vmem>>, vector<1x128x128xbf16>
    %38 = vector.shape_cast %37 : vector<1x128x128xbf16> to vector<128x128xbf16>
    %cst_37 = arith.constant dense<0.000000e+00> : vector<256x128xf32>
    %39 = tpu.matmul %36, %38, %cst_37 {dimension_numbers = #tpu.dot_dimension_numbers<[1], [0], [0], [1], [0, 0, 1, 1], [], []>} : vector<256x128xbf16>, vector<128x128xbf16>, vector<256x128xf32> -> vector<256x128xf32>
    %40 = arith.addf %33, %39 : vector<256x128xf32>
    %c0_38 = arith.constant 0 : index
    %c2_39 = arith.constant 2 : index
    %c7_40 = arith.constant 7 : index
    %c0_41 = arith.constant 0 : index
    %41 = vector.load %arg1[%c0_38, %c2_39, %c7_40, %c0_41] : memref<1x18x32x128xbf16, #tpu.memory_space<vmem>>, vector<1x16x16x128xbf16>
    %42 = vector.shape_cast %41 : vector<1x16x16x128xbf16> to vector<16x16x128xbf16>
    %43 = vector.shape_cast %42 : vector<16x16x128xbf16> to vector<256x128xbf16>
    %c6 = arith.constant 6 : index
    %c0_42 = arith.constant 0 : index
    %c0_43 = arith.constant 0 : index
    %44 = vector.load %arg2[%c6, %c0_42, %c0_43] : memref<9x128x128xbf16, #tpu.memory_space<vmem>>, vector<1x128x128xbf16>
    %45 = vector.shape_cast %44 : vector<1x128x128xbf16> to vector<128x128xbf16>
    %cst_44 = arith.constant dense<0.000000e+00> : vector<256x128xf32>
    %46 = tpu.matmul %43, %45, %cst_44 {dimension_numbers = #tpu.dot_dimension_numbers<[1], [0], [0], [1], [0, 0, 1, 1], [], []>} : vector<256x128xbf16>, vector<128x128xbf16>, vector<256x128xf32> -> vector<256x128xf32>
    %47 = arith.addf %40, %46 : vector<256x128xf32>
    %c0_45 = arith.constant 0 : index
    %c2_46 = arith.constant 2 : index
    %c8_47 = arith.constant 8 : index
    %c0_48 = arith.constant 0 : index
    %48 = vector.load %arg1[%c0_45, %c2_46, %c8_47, %c0_48] : memref<1x18x32x128xbf16, #tpu.memory_space<vmem>>, vector<1x16x16x128xbf16>
    %49 = vector.shape_cast %48 : vector<1x16x16x128xbf16> to vector<16x16x128xbf16>
    %50 = vector.shape_cast %49 : vector<16x16x128xbf16> to vector<256x128xbf16>
    %c7_49 = arith.constant 7 : index
    %c0_50 = arith.constant 0 : index
    %c0_51 = arith.constant 0 : index
    %51 = vector.load %arg2[%c7_49, %c0_50, %c0_51] : memref<9x128x128xbf16, #tpu.memory_space<vmem>>, vector<1x128x128xbf16>
    %52 = vector.shape_cast %51 : vector<1x128x128xbf16> to vector<128x128xbf16>
    %cst_52 = arith.constant dense<0.000000e+00> : vector<256x128xf32>
    %53 = tpu.matmul %50, %52, %cst_52 {dimension_numbers = #tpu.dot_dimension_numbers<[1], [0], [0], [1], [0, 0, 1, 1], [], []>} : vector<256x128xbf16>, vector<128x128xbf16>, vector<256x128xf32> -> vector<256x128xf32>
    %54 = arith.addf %47, %53 : vector<256x128xf32>
    %c0_53 = arith.constant 0 : index
    %c2_54 = arith.constant 2 : index
    %c9_55 = arith.constant 9 : index
    %c0_56 = arith.constant 0 : index
    %55 = vector.load %arg1[%c0_53, %c2_54, %c9_55, %c0_56] : memref<1x18x32x128xbf16, #tpu.memory_space<vmem>>, vector<1x16x16x128xbf16>
    %56 = vector.shape_cast %55 : vector<1x16x16x128xbf16> to vector<16x16x128xbf16>
    %57 = vector.shape_cast %56 : vector<16x16x128xbf16> to vector<256x128xbf16>
    %c8_57 = arith.constant 8 : index
    %c0_58 = arith.constant 0 : index
    %c0_59 = arith.constant 0 : index
    %58 = vector.load %arg2[%c8_57, %c0_58, %c0_59] : memref<9x128x128xbf16, #tpu.memory_space<vmem>>, vector<1x128x128xbf16>
    %59 = vector.shape_cast %58 : vector<1x128x128xbf16> to vector<128x128xbf16>
    %cst_60 = arith.constant dense<0.000000e+00> : vector<256x128xf32>
    %60 = tpu.matmul %57, %59, %cst_60 {dimension_numbers = #tpu.dot_dimension_numbers<[1], [0], [0], [1], [0, 0, 1, 1], [], []>} : vector<256x128xbf16>, vector<128x128xbf16>, vector<256x128xf32> -> vector<256x128xf32>
    %61 = arith.addf %54, %60 : vector<256x128xf32>
    %c0_61 = arith.constant 0 : index
    %c0_62 = arith.constant 0 : index
    %62 = vector.load %arg3[%c0_61, %c0_62] : memref<1x128xf32, #tpu.memory_space<vmem>>, vector<1x128xf32>
    %63 = vector.shape_cast %62 : vector<1x128xf32> to vector<128xf32>
    %64 = vector.shape_cast %63 : vector<128xf32> to vector<1x128xf32>
    %65 = vector.broadcast %64 : vector<1x128xf32> to vector<256x128xf32>
    %66 = arith.addf %61, %65 : vector<256x128xf32>
    %cst_63 = arith.constant 0.000000e+00 : f32
    %67 = vector.broadcast %cst_63 : f32 to vector<256x128xf32>
    %68 = arith.maximumf %66, %67 : vector<256x128xf32>
    %cst_64 = arith.constant 0.000000e+00 : bf16
    %69 = vector.broadcast %cst_64 : bf16 to vector<32x128xbf16>
    %c0_65 = arith.constant 0 : index
    %c0_66 = arith.constant 0 : index
    %c0_67 = arith.constant 0 : index
    %70 = vector.load %arg7[%c0_65, %c0_66, %c0_67] : memref<18x32x128xbf16, #tpu.memory_space<vmem>>, vector<1x32x128xbf16>
    %71 = vector.shape_cast %70 : vector<1x32x128xbf16> to vector<32x128xbf16>
    %72 = vector.shape_cast %69 : vector<32x128xbf16> to vector<1x32x128xbf16>
    tpu.vector_store %arg7[%c0_65, %c0_66, %c0_67], %72 {strides = array<i32>} : memref<18x32x128xbf16, #tpu.memory_space<vmem>>, vector<1x32x128xbf16>,
    %c17 = arith.constant 17 : index
    %c0_68 = arith.constant 0 : index
    %c0_69 = arith.constant 0 : index
    %73 = vector.load %arg7[%c17, %c0_68, %c0_69] : memref<18x32x128xbf16, #tpu.memory_space<vmem>>, vector<1x32x128xbf16>
    %74 = vector.shape_cast %73 : vector<1x32x128xbf16> to vector<32x128xbf16>
    %75 = vector.shape_cast %69 : vector<32x128xbf16> to vector<1x32x128xbf16>
    tpu.vector_store %arg7[%c17, %c0_68, %c0_69], %75 {strides = array<i32>} : memref<18x32x128xbf16, #tpu.memory_space<vmem>>, vector<1x32x128xbf16>,
    %cst_70 = arith.constant 0.000000e+00 : bf16
    %76 = vector.broadcast %cst_70 : bf16 to vector<18x8x128xbf16>
    %c0_71 = arith.constant 0 : index
    %c0_72 = arith.constant 0 : index
    %c0_73 = arith.constant 0 : index
    %77 = vector.load %arg7[%c0_71, %c0_72, %c0_73] : memref<18x32x128xbf16, #tpu.memory_space<vmem>>, vector<18x8x128xbf16>
    tpu.vector_store %arg7[%c0_71, %c0_72, %c0_73], %76 {strides = array<i32>} : memref<18x32x128xbf16, #tpu.memory_space<vmem>>, vector<18x8x128xbf16>,
    %cst_74 = arith.constant 0.000000e+00 : bf16
    %78 = vector.broadcast %cst_74 : bf16 to vector<18x8x128xbf16>
    %c0_75 = arith.constant 0 : index
    %c24 = arith.constant 24 : index
    %c0_76 = arith.constant 0 : index
    %79 = vector.load %arg7[%c0_75, %c24, %c0_76] : memref<18x32x128xbf16, #tpu.memory_space<vmem>>, vector<18x8x128xbf16>
    tpu.vector_store %arg7[%c0_75, %c24, %c0_76], %78 {strides = array<i32>} : memref<18x32x128xbf16, #tpu.memory_space<vmem>>, vector<18x8x128xbf16>,
    %80 = vector.shape_cast %68 : vector<256x128xf32> to vector<16x16x128xf32>
    %81 = arith.truncf %80 : vector<16x16x128xf32> to vector<16x16x128xbf16>
    %c1_77 = arith.constant 1 : index
    %c8_78 = arith.constant 8 : index
    %c0_79 = arith.constant 0 : index
    %82 = vector.load %arg7[%c1_77, %c8_78, %c0_79] : memref<18x32x128xbf16, #tpu.memory_space<vmem>>, vector<16x16x128xbf16>
    tpu.vector_store %arg7[%c1_77, %c8_78, %c0_79], %81 {strides = array<i32>} : memref<18x32x128xbf16, #tpu.memory_space<vmem>>, vector<16x16x128xbf16>,
    %c0_80 = arith.constant 0 : index
    %c7_81 = arith.constant 7 : index
    %c0_82 = arith.constant 0 : index
    %83 = vector.load %arg7[%c0_80, %c7_81, %c0_82] : memref<18x32x128xbf16, #tpu.memory_space<vmem>>, vector<16x16x128xbf16>
    %84 = vector.shape_cast %83 : vector<16x16x128xbf16> to vector<256x128xbf16>
    %c0_83 = arith.constant 0 : index
    %c0_84 = arith.constant 0 : index
    %c0_85 = arith.constant 0 : index
    %85 = vector.load %arg4[%c0_83, %c0_84, %c0_85] : memref<9x128x128xbf16, #tpu.memory_space<vmem>>, vector<1x128x128xbf16>
    %86 = vector.shape_cast %85 : vector<1x128x128xbf16> to vector<128x128xbf16>
    %cst_86 = arith.constant dense<0.000000e+00> : vector<256x128xf32>
    %87 = tpu.matmul %84, %86, %cst_86 {dimension_numbers = #tpu.dot_dimension_numbers<[1], [0], [0], [1], [0, 0, 1, 1], [], []>} : vector<256x128xbf16>, vector<128x128xbf16>, vector<256x128xf32> -> vector<256x128xf32>
    %c0_87 = arith.constant 0 : index
    %c8_88 = arith.constant 8 : index
    %c0_89 = arith.constant 0 : index
    %88 = vector.load %arg7[%c0_87, %c8_88, %c0_89] : memref<18x32x128xbf16, #tpu.memory_space<vmem>>, vector<16x16x128xbf16>
    %89 = vector.shape_cast %88 : vector<16x16x128xbf16> to vector<256x128xbf16>
    %c1_90 = arith.constant 1 : index
    %c0_91 = arith.constant 0 : index
    %c0_92 = arith.constant 0 : index
    %90 = vector.load %arg4[%c1_90, %c0_91, %c0_92] : memref<9x128x128xbf16, #tpu.memory_space<vmem>>, vector<1x128x128xbf16>
    %91 = vector.shape_cast %90 : vector<1x128x128xbf16> to vector<128x128xbf16>
    %cst_93 = arith.constant dense<0.000000e+00> : vector<256x128xf32>
    %92 = tpu.matmul %89, %91, %cst_93 {dimension_numbers = #tpu.dot_dimension_numbers<[1], [0], [0], [1], [0, 0, 1, 1], [], []>} : vector<256x128xbf16>, vector<128x128xbf16>, vector<256x128xf32> -> vector<256x128xf32>
    %93 = arith.addf %87, %92 : vector<256x128xf32>
    %c0_94 = arith.constant 0 : index
    %c9_95 = arith.constant 9 : index
    %c0_96 = arith.constant 0 : index
    %94 = vector.load %arg7[%c0_94, %c9_95, %c0_96] : memref<18x32x128xbf16, #tpu.memory_space<vmem>>, vector<16x16x128xbf16>
    %95 = vector.shape_cast %94 : vector<16x16x128xbf16> to vector<256x128xbf16>
    %c2_97 = arith.constant 2 : index
    %c0_98 = arith.constant 0 : index
    %c0_99 = arith.constant 0 : index
    %96 = vector.load %arg4[%c2_97, %c0_98, %c0_99] : memref<9x128x128xbf16, #tpu.memory_space<vmem>>, vector<1x128x128xbf16>
    %97 = vector.shape_cast %96 : vector<1x128x128xbf16> to vector<128x128xbf16>
    %cst_100 = arith.constant dense<0.000000e+00> : vector<256x128xf32>
    %98 = tpu.matmul %95, %97, %cst_100 {dimension_numbers = #tpu.dot_dimension_numbers<[1], [0], [0], [1], [0, 0, 1, 1], [], []>} : vector<256x128xbf16>, vector<128x128xbf16>, vector<256x128xf32> -> vector<256x128xf32>
    %99 = arith.addf %93, %98 : vector<256x128xf32>
    %c1_101 = arith.constant 1 : index
    %c7_102 = arith.constant 7 : index
    %c0_103 = arith.constant 0 : index
    %100 = vector.load %arg7[%c1_101, %c7_102, %c0_103] : memref<18x32x128xbf16, #tpu.memory_space<vmem>>, vector<16x16x128xbf16>
    %101 = vector.shape_cast %100 : vector<16x16x128xbf16> to vector<256x128xbf16>
    %c3_104 = arith.constant 3 : index
    %c0_105 = arith.constant 0 : index
    %c0_106 = arith.constant 0 : index
    %102 = vector.load %arg4[%c3_104, %c0_105, %c0_106] : memref<9x128x128xbf16, #tpu.memory_space<vmem>>, vector<1x128x128xbf16>
    %103 = vector.shape_cast %102 : vector<1x128x128xbf16> to vector<128x128xbf16>
    %cst_107 = arith.constant dense<0.000000e+00> : vector<256x128xf32>
    %104 = tpu.matmul %101, %103, %cst_107 {dimension_numbers = #tpu.dot_dimension_numbers<[1], [0], [0], [1], [0, 0, 1, 1], [], []>} : vector<256x128xbf16>, vector<128x128xbf16>, vector<256x128xf32> -> vector<256x128xf32>
    %105 = arith.addf %99, %104 : vector<256x128xf32>
    %c1_108 = arith.constant 1 : index
    %c8_109 = arith.constant 8 : index
    %c0_110 = arith.constant 0 : index
    %106 = vector.load %arg7[%c1_108, %c8_109, %c0_110] : memref<18x32x128xbf16, #tpu.memory_space<vmem>>, vector<16x16x128xbf16>
    %107 = vector.shape_cast %106 : vector<16x16x128xbf16> to vector<256x128xbf16>
    %c4_111 = arith.constant 4 : index
    %c0_112 = arith.constant 0 : index
    %c0_113 = arith.constant 0 : index
    %108 = vector.load %arg4[%c4_111, %c0_112, %c0_113] : memref<9x128x128xbf16, #tpu.memory_space<vmem>>, vector<1x128x128xbf16>
    %109 = vector.shape_cast %108 : vector<1x128x128xbf16> to vector<128x128xbf16>
    %cst_114 = arith.constant dense<0.000000e+00> : vector<256x128xf32>
    %110 = tpu.matmul %107, %109, %cst_114 {dimension_numbers = #tpu.dot_dimension_numbers<[1], [0], [0], [1], [0, 0, 1, 1], [], []>} : vector<256x128xbf16>, vector<128x128xbf16>, vector<256x128xf32> -> vector<256x128xf32>
    %111 = arith.addf %105, %110 : vector<256x128xf32>
    %c1_115 = arith.constant 1 : index
    %c9_116 = arith.constant 9 : index
    %c0_117 = arith.constant 0 : index
    %112 = vector.load %arg7[%c1_115, %c9_116, %c0_117] : memref<18x32x128xbf16, #tpu.memory_space<vmem>>, vector<16x16x128xbf16>
    %113 = vector.shape_cast %112 : vector<16x16x128xbf16> to vector<256x128xbf16>
    %c5_118 = arith.constant 5 : index
    %c0_119 = arith.constant 0 : index
    %c0_120 = arith.constant 0 : index
    %114 = vector.load %arg4[%c5_118, %c0_119, %c0_120] : memref<9x128x128xbf16, #tpu.memory_space<vmem>>, vector<1x128x128xbf16>
    %115 = vector.shape_cast %114 : vector<1x128x128xbf16> to vector<128x128xbf16>
    %cst_121 = arith.constant dense<0.000000e+00> : vector<256x128xf32>
    %116 = tpu.matmul %113, %115, %cst_121 {dimension_numbers = #tpu.dot_dimension_numbers<[1], [0], [0], [1], [0, 0, 1, 1], [], []>} : vector<256x128xbf16>, vector<128x128xbf16>, vector<256x128xf32> -> vector<256x128xf32>
    %117 = arith.addf %111, %116 : vector<256x128xf32>
    %c2_122 = arith.constant 2 : index
    %c7_123 = arith.constant 7 : index
    %c0_124 = arith.constant 0 : index
    %118 = vector.load %arg7[%c2_122, %c7_123, %c0_124] : memref<18x32x128xbf16, #tpu.memory_space<vmem>>, vector<16x16x128xbf16>
    %119 = vector.shape_cast %118 : vector<16x16x128xbf16> to vector<256x128xbf16>
    %c6_125 = arith.constant 6 : index
    %c0_126 = arith.constant 0 : index
    %c0_127 = arith.constant 0 : index
    %120 = vector.load %arg4[%c6_125, %c0_126, %c0_127] : memref<9x128x128xbf16, #tpu.memory_space<vmem>>, vector<1x128x128xbf16>
    %121 = vector.shape_cast %120 : vector<1x128x128xbf16> to vector<128x128xbf16>
    %cst_128 = arith.constant dense<0.000000e+00> : vector<256x128xf32>
    %122 = tpu.matmul %119, %121, %cst_128 {dimension_numbers = #tpu.dot_dimension_numbers<[1], [0], [0], [1], [0, 0, 1, 1], [], []>} : vector<256x128xbf16>, vector<128x128xbf16>, vector<256x128xf32> -> vector<256x128xf32>
    %123 = arith.addf %117, %122 : vector<256x128xf32>
    %c2_129 = arith.constant 2 : index
    %c8_130 = arith.constant 8 : index
    %c0_131 = arith.constant 0 : index
    %124 = vector.load %arg7[%c2_129, %c8_130, %c0_131] : memref<18x32x128xbf16, #tpu.memory_space<vmem>>, vector<16x16x128xbf16>
    %125 = vector.shape_cast %124 : vector<16x16x128xbf16> to vector<256x128xbf16>
    %c7_132 = arith.constant 7 : index
    %c0_133 = arith.constant 0 : index
    %c0_134 = arith.constant 0 : index
    %126 = vector.load %arg4[%c7_132, %c0_133, %c0_134] : memref<9x128x128xbf16, #tpu.memory_space<vmem>>, vector<1x128x128xbf16>
    %127 = vector.shape_cast %126 : vector<1x128x128xbf16> to vector<128x128xbf16>
    %cst_135 = arith.constant dense<0.000000e+00> : vector<256x128xf32>
    %128 = tpu.matmul %125, %127, %cst_135 {dimension_numbers = #tpu.dot_dimension_numbers<[1], [0], [0], [1], [0, 0, 1, 1], [], []>} : vector<256x128xbf16>, vector<128x128xbf16>, vector<256x128xf32> -> vector<256x128xf32>
    %129 = arith.addf %123, %128 : vector<256x128xf32>
    %c2_136 = arith.constant 2 : index
    %c9_137 = arith.constant 9 : index
    %c0_138 = arith.constant 0 : index
    %130 = vector.load %arg7[%c2_136, %c9_137, %c0_138] : memref<18x32x128xbf16, #tpu.memory_space<vmem>>, vector<16x16x128xbf16>
    %131 = vector.shape_cast %130 : vector<16x16x128xbf16> to vector<256x128xbf16>
    %c8_139 = arith.constant 8 : index
    %c0_140 = arith.constant 0 : index
    %c0_141 = arith.constant 0 : index
    %132 = vector.load %arg4[%c8_139, %c0_140, %c0_141] : memref<9x128x128xbf16, #tpu.memory_space<vmem>>, vector<1x128x128xbf16>
    %133 = vector.shape_cast %132 : vector<1x128x128xbf16> to vector<128x128xbf16>
    %cst_142 = arith.constant dense<0.000000e+00> : vector<256x128xf32>
    %134 = tpu.matmul %131, %133, %cst_142 {dimension_numbers = #tpu.dot_dimension_numbers<[1], [0], [0], [1], [0, 0, 1, 1], [], []>} : vector<256x128xbf16>, vector<128x128xbf16>, vector<256x128xf32> -> vector<256x128xf32>
    %135 = arith.addf %129, %134 : vector<256x128xf32>
    %c0_143 = arith.constant 0 : index
    %c0_144 = arith.constant 0 : index
    %136 = vector.load %arg5[%c0_143, %c0_144] : memref<1x128xf32, #tpu.memory_space<vmem>>, vector<1x128xf32>
    %137 = vector.shape_cast %136 : vector<1x128xf32> to vector<128xf32>
    %138 = vector.shape_cast %137 : vector<128xf32> to vector<1x128xf32>
    %139 = vector.broadcast %138 : vector<1x128xf32> to vector<256x128xf32>
    %140 = arith.addf %135, %139 : vector<256x128xf32>
    %cst_145 = arith.constant 0.000000e+00 : f32
    %141 = vector.broadcast %cst_145 : f32 to vector<256x128xf32>
    %142 = arith.maximumf %140, %141 : vector<256x128xf32>
    %143 = vector.shape_cast %142 : vector<256x128xf32> to vector<16x16x128xf32>
    %144 = arith.truncf %143 : vector<16x16x128xf32> to vector<16x16x128xbf16>
    %c0_146 = arith.constant 0 : index
    %c0_147 = arith.constant 0 : index
    %c0_148 = arith.constant 0 : index
    %c0_149 = arith.constant 0 : index
    %145 = vector.load %arg6[%c0_146, %c0_147, %c0_148, %c0_149] : memref<1x16x16x128xbf16, #tpu.memory_space<vmem>>, vector<1x16x16x128xbf16>
    %146 = vector.shape_cast %145 : vector<1x16x16x128xbf16> to vector<16x16x128xbf16>
    %147 = vector.shape_cast %144 : vector<16x16x128xbf16> to vector<1x16x16x128xbf16>
    tpu.vector_store %arg6[%c0_146, %c0_147, %c0_148, %c0_149], %147 {strides = array<i32>} : memref<1x16x16x128xbf16, #tpu.memory_space<vmem>>, vector<1x16x16x128xbf16>,
    return
  }
  func.func @transform_0(%arg0: i32) -> (i32, i32, i32, i32) {
    %c0_i32 = arith.constant 0 : i32
    %c0_i32_0 = arith.constant 0 : i32
    %c0_i32_1 = arith.constant 0 : i32
    %c0_i32_2 = arith.constant 0 : i32
    return %arg0, %c0_i32, %c0_i32_0, %c0_i32_1 : i32, i32, i32, i32
  }
  func.func @transform_1(%arg0: i32) -> (i32, i32, i32) {
    %c0_i32 = arith.constant 0 : i32
    %c0_i32_0 = arith.constant 0 : i32
    %c0_i32_1 = arith.constant 0 : i32
    %c0_i32_2 = arith.constant 0 : i32
    return %c0_i32, %c0_i32_0, %c0_i32_1 : i32, i32, i32
  }
  func.func @transform_2(%arg0: i32) -> (i32, i32) {
    %c0_i32 = arith.constant 0 : i32
    %c0_i32_0 = arith.constant 0 : i32
    %c0_i32_1 = arith.constant 0 : i32
    return %c0_i32, %c0_i32_0 : i32, i32
  }
  func.func @transform_3(%arg0: i32) -> (i32, i32, i32) {
    %c0_i32 = arith.constant 0 : i32
    %c0_i32_0 = arith.constant 0 : i32
    %c0_i32_1 = arith.constant 0 : i32
    %c0_i32_2 = arith.constant 0 : i32
    return %c0_i32, %c0_i32_0, %c0_i32_1 : i32, i32, i32
  }
  func.func @transform_4(%arg0: i32) -> (i32, i32) {
    %c0_i32 = arith.constant 0 : i32
    %c0_i32_0 = arith.constant 0 : i32
    %c0_i32_1 = arith.constant 0 : i32
    return %c0_i32, %c0_i32_0 : i32, i32
  }
  func.func @transform_5(%arg0: i32) -> (i32, i32, i32, i32) {
    %c0_i32 = arith.constant 0 : i32
    %c0_i32_0 = arith.constant 0 : i32
    %c0_i32_1 = arith.constant 0 : i32
    %c0_i32_2 = arith.constant 0 : i32
    return %arg0, %c0_i32, %c0_i32_0, %c0_i32_1 : i32, i32, i32, i32
  }
}

</mosaic_0001>

<llo_original>
// kernel: double_conv.1
$region0: #{double_conv.1}
  #allocation0 [shape = 'u32[]', space=smem, size = 0x4, offset = 0x4, fixed_abs, tag = 'smem constant byte address 0x4 - core index']
  #allocation1 [shape = 'u32[144,128]{1,0:T(1,128)}', space=vmem, size = 0x12000, scoped, tag = 'internal scratch']
  #allocation2 [shape = 'bf16[18,32,128]{2,1,0:T(8,128)(2,1)}', space=vmem, size = 0x24000, scoped, tag = 'scratch operand']
  %s0 = inlined_call_operand.vmem [shape: bf16[2,18,32,128], index: 0, kind: input, shape index: {}]
  %s1 = inlined_call_operand.vmem [shape: bf16[9,128,128], index: 1, kind: input, shape index: {}]
  %s2 = inlined_call_operand.vmem [shape: f32[1,128], index: 2, kind: input, shape index: {}]
  %s3 = inlined_call_operand.vmem [shape: bf16[9,128,128], index: 3, kind: input, shape index: {}]
  %s4 = inlined_call_operand.vmem [shape: f32[1,128], index: 4, kind: input, shape index: {}]
  %s5 = inlined_call_operand.vmem [shape: bf16[2,16,16,128], index: 5, kind: output, shape index: {}]
  %s6 = sld [smem:[#allocation0]]
  $region53: #{double_conv.1} parent=0
    _
  %s8 = ssub.s32 1, %s6
  %s9 = scalar_select 0, %s8, %s6
  loop: start=0, step=1, limit=4
  $region2: #{double_conv.1} parent=0 // loop_pre_header
    _
  $region3: #{double_conv.1} parent=0 // loop_header
    %s11 = sphi 0, %s15
    %p12 = scmp.ge.s32.totalorder %s11, 4
    %s21 = sphi 0, %s23
    %s24 = sphi 0, %s21
    %s25 = sphi 0, %s24
    %s41 = sphi 0, %s25
    %s45 = sphi 0, %s45
    %s47 = sphi 0, %s45
    %s48 = sphi 0, %s47
    %s62 = sphi 0, %s48
    %s66 = sphi 0, %s66
    %s68 = sphi 0, %s66
    %s69 = sphi 0, %s68
    %s83 = sphi 0, %s69
    %s87 = sphi 0, %s87
    %s89 = sphi 0, %s87
    %s90 = sphi 0, %s89
    %s104 = sphi 0, %s90
    %s108 = sphi 0, %s108
    %s110 = sphi 0, %s108
    %s111 = sphi 0, %s110
    %s125 = sphi 0, %s111
    %s131 = sphi 0, %s133
    %s134 = sphi 0, %s131
    %s135 = sphi 0, %s134
    %s151 = sphi 0, %s135
  $region4: #{double_conv.1} parent=0 // loop_header_branch
    %14 = sbr.rel (%p12) target = $region8
  $region5: #{double_conv.1} parent=0 // loop_body
    %s16 = ssub.s32 %s11, 1
    %s17 = ssub.s32 %s11, 2
    %s18 = sadd.s32 %s11, 1
    %s19 = ssub.s32 %s11, %s18
    %p20 = scmp.eq.s32.totalorder %s19, 0
    %s22 = sadd.s32 %s21, 1
    %s23 = scalar_select %p20, %s21, %s22
    %p26 = pneg %p20
    %p27 = scmp.eq.s32.totalorder %s11, 1
    %p28 = por %p26, %p27
    %p29 = scmp.ne.s32.totalorder %s21, %s24
    %p30 = scmp.eq.s32.totalorder %s11, 0
    %p31 = por %p29, %p30
    %p32 = scmp.ne.s32.totalorder %s21, %s24
    %p33 = scmp.eq.s32.totalorder %s16, 1
    %p34 = por %p32, %p33
    %p35 = scmp.ne.s32.totalorder %s24, %s25
    %p36 = scmp.eq.s32.totalorder %s16, 0
    %p37 = por %p35, %p36
    %p38 = scmp.ne.s32.totalorder %s24, %s25
    %p39 = scmp.eq.s32.totalorder %s17, 1
    %p40 = por %p38, %p39
    %p42 = scmp.ne.s32.totalorder %s25, %s41
    %p43 = scmp.eq.s32.totalorder %s17, 0
    %p44 = por %p42, %p43
    %s46 = sadd.s32 %s45, 1
    %p49 = scmp.eq.s32.totalorder %s11, 1
    %p50 = scmp.ne.s32.totalorder %s45, %s47
    %p51 = scmp.eq.s32.totalorder %s11, 0
    %p52 = por %p50, %p51
    %p53 = scmp.ne.s32.totalorder %s45, %s47
    %p54 = scmp.eq.s32.totalorder %s16, 1
    %p55 = por %p53, %p54
    %p56 = scmp.ne.s32.totalorder %s47, %s48
    %p57 = scmp.eq.s32.totalorder %s16, 0
    %p58 = por %p56, %p57
    %p59 = scmp.ne.s32.totalorder %s47, %s48
    %p60 = scmp.eq.s32.totalorder %s17, 1
    %p61 = por %p59, %p60
    %p63 = scmp.ne.s32.totalorder %s48, %s62
    %p64 = scmp.eq.s32.totalorder %s17, 0
    %p65 = por %p63, %p64
    %s67 = sadd.s32 %s66, 1
    %p70 = scmp.eq.s32.totalorder %s11, 1
    %p71 = scmp.ne.s32.totalorder %s66, %s68
    %p72 = scmp.eq.s32.totalorder %s11, 0
    %p73 = por %p71, %p72
    %p74 = scmp.ne.s32.totalorder %s66, %s68
    %p75 = scmp.eq.s32.totalorder %s16, 1
    %p76 = por %p74, %p75
    %p77 = scmp.ne.s32.totalorder %s68, %s69
    %p78 = scmp.eq.s32.totalorder %s16, 0
    %p79 = por %p77, %p78
    %p80 = scmp.ne.s32.totalorder %s68, %s69
    %p81 = scmp.eq.s32.totalorder %s17, 1
    %p82 = por %p80, %p81
    %p84 = scmp.ne.s32.totalorder %s69, %s83
    %p85 = scmp.eq.s32.totalorder %s17, 0
    %p86 = por %p84, %p85
    %s88 = sadd.s32 %s87, 1
    %p91 = scmp.eq.s32.totalorder %s11, 1
    %p92 = scmp.ne.s32.totalorder %s87, %s89
    %p93 = scmp.eq.s32.totalorder %s11, 0
    %p94 = por %p92, %p93
    %p95 = scmp.ne.s32.totalorder %s87, %s89
    %p96 = scmp.eq.s32.totalorder %s16, 1
    %p97 = por %p95, %p96
    %p98 = scmp.ne.s32.totalorder %s89, %s90
    %p99 = scmp.eq.s32.totalorder %s16, 0
    %p100 = por %p98, %p99
    %p101 = scmp.ne.s32.totalorder %s89, %s90
    %p102 = scmp.eq.s32.totalorder %s17, 1
    %p103 = por %p101, %p102
    %p105 = scmp.ne.s32.totalorder %s90, %s104
    %p106 = scmp.eq.s32.totalorder %s17, 0
    %p107 = por %p105, %p106
    %s109 = sadd.s32 %s108, 1
    %p112 = scmp.eq.s32.totalorder %s11, 1
    %p113 = scmp.ne.s32.totalorder %s108, %s110
    %p114 = scmp.eq.s32.totalorder %s11, 0
    %p115 = por %p113, %p114
    %p116 = scmp.ne.s32.totalorder %s108, %s110
    %p117 = scmp.eq.s32.totalorder %s16, 1
    %p118 = por %p116, %p117
    %p119 = scmp.ne.s32.totalorder %s110, %s111
    %p120 = scmp.eq.s32.totalorder %s16, 0
    %p121 = por %p119, %p120
    %p122 = scmp.ne.s32.totalorder %s110, %s111
    %p123 = scmp.eq.s32.totalorder %s17, 1
    %p124 = por %p122, %p123
    %p126 = scmp.ne.s32.totalorder %s111, %s125
    %p127 = scmp.eq.s32.totalorder %s17, 0
    %p128 = por %p126, %p127
    %s129 = ssub.s32 %s11, %s18
    %p130 = scmp.eq.s32.totalorder %s129, 0
    %s132 = sadd.s32 %s131, 1
    %s133 = scalar_select %p130, %s131, %s132
    %p136 = pneg %p130
    %p137 = scmp.eq.s32.totalorder %s11, 1
    %p138 = por %p136, %p137
    %p139 = scmp.ne.s32.totalorder %s131, %s134
    %p140 = scmp.eq.s32.totalorder %s11, 0
    %p141 = por %p139, %p140
    %p142 = scmp.ne.s32.totalorder %s131, %s134
    %p143 = scmp.eq.s32.totalorder %s16, 1
    %p144 = por %p142, %p143
    %p145 = scmp.ne.s32.totalorder %s134, %s135
    %p146 = scmp.eq.s32.totalorder %s16, 0
    %p147 = por %p145, %p146
    %p148 = scmp.ne.s32.totalorder %s134, %s135
    %p149 = scmp.eq.s32.totalorder %s17, 1
    %p150 = por %p148, %p149
    %p152 = scmp.ne.s32.totalorder %s135, %s151
    %p153 = scmp.eq.s32.totalorder %s17, 0
    %p154 = por %p152, %p153
    %p155 = scmp.le.s32.totalorder 1, %s11
    %p156 = scmp.lt.s32.totalorder %s11, 3
    %p157 = pnand %p155, %p156
    %p158 = pneg %p157
    // Predicated region
    $region9: #{double_conv.1} parent=5 // pred_check
      _
    $region10: #{double_conv.1} parent=5 // pred_check_branch
      %160 = sbr.rel (%p157) target = $region12
    $region11: #{double_conv.1} parent=5 // pred_region
      %s161 = ssub.s32 %s11, 1
      // Predicated region
      $region13: #{double_conv.1} parent=11 // pred_check
        %p162 = pneg %p58
      $region14: #{double_conv.1} parent=11 // pred_check_branch
        %164 = sbr.rel (%p162) target = $region16
      $region15: #{double_conv.1} parent=11 // pred_region
        _
      $region16: #{double_conv.1} parent=11 // pred_fallthru
        _
      // Predicated region
      $region17: #{double_conv.1} parent=11 // pred_check
        %p165 = pneg %p79
      $region18: #{double_conv.1} parent=11 // pred_check_branch
        %167 = sbr.rel (%p165) target = $region20
      $region19: #{double_conv.1} parent=11 // pred_region
        _
      $region20: #{double_conv.1} parent=11 // pred_fallthru
        _
      // Predicated region
      $region21: #{double_conv.1} parent=11 // pred_check
        %p168 = pneg %p100
      $region22: #{double_conv.1} parent=11 // pred_check_branch
        %170 = sbr.rel (%p168) target = $region24
      $region23: #{double_conv.1} parent=11 // pred_region
        _
      $region24: #{double_conv.1} parent=11 // pred_fallthru
        _
      // Predicated region
      $region25: #{double_conv.1} parent=11 // pred_check
        %p171 = pneg %p121
      $region26: #{double_conv.1} parent=11 // pred_check_branch
        %173 = sbr.rel (%p171) target = $region28
      $region27: #{double_conv.1} parent=11 // pred_region
        _
      $region28: #{double_conv.1} parent=11 // pred_fallthru
        _
    $region12: #{double_conv.1} parent=5 // pred_fallthru
      _
    %p174 = scmp.lt.s32.totalorder %s11, 2
    // Predicated region
    $region29: #{double_conv.1} parent=5 // pred_check
      %p175 = pneg %p174
    $region30: #{double_conv.1} parent=5 // pred_check_branch
      %177 = sbr.rel (%p175) target = $region32
    $region31: #{double_conv.1} parent=5 // pred_region
      // Predicated region
      $region33: #{double_conv.1} parent=31 // pred_check
        %p178 = pneg %p31
      $region34: #{double_conv.1} parent=31 // pred_check_branch
        %180 = sbr.rel (%p178) target = $region36
      $region35: #{double_conv.1} parent=31 // pred_region
        %p181 = scmp.lt.s32.totalorder %s11, 1
        %s182 = scalar_select %p181, %s11, 1
        %s183 = smul.addr %s182, 72
        %s184 = smul.addr %s183, 4
        %s185 = scalar_lea.vmem %s0, %s184
      $region36: #{double_conv.1} parent=31 // pred_fallthru
        _
    $region32: #{double_conv.1} parent=5 // pred_fallthru
      _
    %p186 = scmp.le.s32.totalorder 1, %s11
    %p187 = scmp.lt.s32.totalorder %s11, 3
    %p188 = pnand %p186, %p187
    %p189 = pneg %p188
    // Predicated region
    $region37: #{double_conv.1} parent=5 // pred_check
      _
    $region38: #{double_conv.1} parent=5 // pred_check_branch
      %191 = sbr.rel (%p188) target = $region40
    $region39: #{double_conv.1} parent=5 // pred_region
      %s192 = ssub.s32 %s11, 1
      %p193 = scmp.lt.s32.totalorder %s16, 1
      %s194 = scalar_select %p193, %s16, 1
      %s195 = smul.addr %s194, 72
      %s196 = smul.addr %s195, 4
      %s197 = scalar_lea.vmem %s0, %s196
      %p198 = pneg %p37
      %p199 = pneg %p34
      %p200 = pneg %p58
      %p201 = pneg %p55
      %p202 = pneg %p79
      %p203 = pneg %p76
      %p204 = pneg %p100
      %p205 = pneg %p97
      %p206 = pneg %p121
      %p207 = pneg %p118
      %p208 = pneg %p147
      %p209 = pneg %p144
      %p210 = scmp.lt.s32.totalorder %s16, 1
      %s211 = scalar_select %p210, %s16, 1
      %s212 = smul.addr %s211, 32
      %s213 = smul.addr %s212, 4
      %s214 = scalar_lea.vmem %s5, %s213
      %p215 = scmp.lt.s32.totalorder %s16, 1
      %s216 = scalar_select %p215, %s16, 1
      %s217 = smul.addr %s216, 72
      %s218 = smul.addr %s217, 4
      %s219 = scalar_lea.vmem %s0, %s218
      %p220 = scmp.lt.s32.totalorder %s16, 1
      %s221 = scalar_select %p220, %s16, 1
      %s222 = smul.addr %s221, 32
      %s223 = smul.addr %s222, 4
      %s224 = scalar_lea.vmem %s5, %s223
      %v226 = vld [vmem:[%s219] sm:$0x8]
      %v227 = vld [vmem:[%s219 + $0x4] sm:$0xf]
      %v228 = vld [vmem:[%s219 + $0x8] sm:$0xf]
      %v229 = vld [vmem:[%s219 + $0x10] sm:$0x8]
      %v230 = vld [vmem:[%s219 + $0x14] sm:$0xf]
      %v231 = vld [vmem:[%s219 + $0x18] sm:$0xf]
      %v232 = vld [vmem:[%s219 + $0x20] sm:$0x8]
      %v233 = vld [vmem:[%s219 + $0x24] sm:$0xf]
      %v234 = vld [vmem:[%s219 + $0x28] sm:$0xf]
      %v235 = vld [vmem:[%s219 + $0x30] sm:$0x8]
      %v236 = vld [vmem:[%s219 + $0x34] sm:$0xf]
      %v237 = vld [vmem:[%s219 + $0x38] sm:$0xf]
      %v238 = vld [vmem:[%s219 + $0x40] sm:$0x8]
      %v239 = vld [vmem:[%s219 + $0x44] sm:$0xf]
      %v240 = vld [vmem:[%s219 + $0x48] sm:$0xf]
      %v241 = vld [vmem:[%s219 + $0x50] sm:$0x8]
      %v242 = vld [vmem:[%s219 + $0x54] sm:$0xf]
      %v243 = vld [vmem:[%s219 + $0x58] sm:$0xf]
      %v244 = vld [vmem:[%s219 + $0x60] sm:$0x8]
      %v245 = vld [vmem:[%s219 + $0x64] sm:$0xf]
      %v246 = vld [vmem:[%s219 + $0x68] sm:$0xf]
      %v247 = vld [vmem:[%s219 + $0x70] sm:$0x8]
      %v248 = vld [vmem:[%s219 + $0x74] sm:$0xf]
      %v249 = vld [vmem:[%s219 + $0x78] sm:$0xf]
      %v250 = vld [vmem:[%s219 + $0x80] sm:$0x8]
      %v251 = vld [vmem:[%s219 + $0x84] sm:$0xf]
      %v252 = vld [vmem:[%s219 + $0x88] sm:$0xf]
      %v253 = vld [vmem:[%s219 + $0x90] sm:$0x8]
      %v254 = vld [vmem:[%s219 + $0x94] sm:$0xf]
      %v255 = vld [vmem:[%s219 + $0x98] sm:$0xf]
      %v256 = vld [vmem:[%s219 + $0xa0] sm:$0x8]
      %v257 = vld [vmem:[%s219 + $0xa4] sm:$0xf]
      %v258 = vld [vmem:[%s219 + $0xa8] sm:$0xf]
      %v259 = vld [vmem:[%s219 + $0xb0] sm:$0x8]
      %v260 = vld [vmem:[%s219 + $0xb4] sm:$0xf]
      %v261 = vld [vmem:[%s219 + $0xb8] sm:$0xf]
      %v262 = vld [vmem:[%s219 + $0xc0] sm:$0x8]
      %v263 = vld [vmem:[%s219 + $0xc4] sm:$0xf]
      %v264 = vld [vmem:[%s219 + $0xc8] sm:$0xf]
      %v265 = vld [vmem:[%s219 + $0xd0] sm:$0x8]
      %v266 = vld [vmem:[%s219 + $0xd4] sm:$0xf]
      %v267 = vld [vmem:[%s219 + $0xd8] sm:$0xf]
      %v268 = vld [vmem:[%s219 + $0xe0] sm:$0x8]
      %v269 = vld [vmem:[%s219 + $0xe4] sm:$0xf]
      %v270 = vld [vmem:[%s219 + $0xe8] sm:$0xf]
      %v271 = vld [vmem:[%s219 + $0xf0] sm:$0x8]
      %v272 = vld [vmem:[%s219 + $0xf4] sm:$0xf]
      %v273 = vld [vmem:[%s219 + $0xf8] sm:$0xf]
      %vm274 = vsmask.f32 256
      %vm275 = vsmask.f32 4368
      %vm276 = vmor %vm274, %vm275
      %v278 = vshrl.u32 %v226, 16
      %v280 = vrot.slane %v278, 7
      %v281 = vrot.slane %v280, 4
      %v283 = vshrl.u32 %v227, 16
      %v285 = vrot.slane %v283, 7
      %v286 = vshll.u32 %v227, 16
      %v288 = vor.u32 %v285, %v286
      %v289 = vsel %vm276, %v281, %v288
      %v290 = vrot.slane %v285, 4
      %v292 = vshrl.u32 %v228, 16
      %v294 = vrot.slane %v292, 7
      %v295 = vshll.u32 %v228, 16
      %v297 = vor.u32 %v294, %v295
      %v298 = vsel %vm276, %v290, %v297
      %v300 = vshrl.u32 %v229, 16
      %v302 = vrot.slane %v300, 7
      %v303 = vrot.slane %v302, 4
      %v305 = vshrl.u32 %v230, 16
      %v307 = vrot.slane %v305, 7
      %v308 = vshll.u32 %v230, 16
      %v310 = vor.u32 %v307, %v308
      %v311 = vsel %vm276, %v303, %v310
      %v312 = vrot.slane %v307, 4
      %v314 = vshrl.u32 %v231, 16
      %v316 = vrot.slane %v314, 7
      %v317 = vshll.u32 %v231, 16
      %v319 = vor.u32 %v316, %v317
      %v320 = vsel %vm276, %v312, %v319
      %v322 = vshrl.u32 %v232, 16
      %v324 = vrot.slane %v322, 7
      %v325 = vrot.slane %v324, 4
      %v327 = vshrl.u32 %v233, 16
      %v329 = vrot.slane %v327, 7
      %v330 = vshll.u32 %v233, 16
      %v332 = vor.u32 %v329, %v330
      %v333 = vsel %vm276, %v325, %v332
      %v334 = vrot.slane %v329, 4
      %v336 = vshrl.u32 %v234, 16
      %v338 = vrot.slane %v336, 7
      %v339 = vshll.u32 %v234, 16
      %v341 = vor.u32 %v338, %v339
      %v342 = vsel %vm276, %v334, %v341
      %v344 = vshrl.u32 %v235, 16
      %v346 = vrot.slane %v344, 7
      %v347 = vrot.slane %v346, 4
      %v349 = vshrl.u32 %v236, 16
      %v351 = vrot.slane %v349, 7
      %v352 = vshll.u32 %v236, 16
      %v354 = vor.u32 %v351, %v352
      %v355 = vsel %vm276, %v347, %v354
      %v356 = vrot.slane %v351, 4
      %v358 = vshrl.u32 %v237, 16
      %v360 = vrot.slane %v358, 7
      %v361 = vshll.u32 %v237, 16
      %v363 = vor.u32 %v360, %v361
      %v364 = vsel %vm276, %v356, %v363
      %v366 = vshrl.u32 %v238, 16
      %v368 = vrot.slane %v366, 7
      %v369 = vrot.slane %v368, 4
      %v371 = vshrl.u32 %v239, 16
      %v373 = vrot.slane %v371, 7
      %v374 = vshll.u32 %v239, 16
      %v376 = vor.u32 %v373, %v374
      %v377 = vsel %vm276, %v369, %v376
      %v378 = vrot.slane %v373, 4
      %v380 = vshrl.u32 %v240, 16
      %v382 = vrot.slane %v380, 7
      %v383 = vshll.u32 %v240, 16
      %v385 = vor.u32 %v382, %v383
      %v386 = vsel %vm276, %v378, %v385
      %v388 = vshrl.u32 %v241, 16
      %v390 = vrot.slane %v388, 7
      %v391 = vrot.slane %v390, 4
      %v393 = vshrl.u32 %v242, 16
      %v395 = vrot.slane %v393, 7
      %v396 = vshll.u32 %v242, 16
      %v398 = vor.u32 %v395, %v396
      %v399 = vsel %vm276, %v391, %v398
      %v400 = vrot.slane %v395, 4
      %v402 = vshrl.u32 %v243, 16
      %v404 = vrot.slane %v402, 7
      %v405 = vshll.u32 %v243, 16
      %v407 = vor.u32 %v404, %v405
      %v408 = vsel %vm276, %v400, %v407
      %v410 = vshrl.u32 %v244, 16
      %v412 = vrot.slane %v410, 7
      %v413 = vrot.slane %v412, 4
      %v415 = vshrl.u32 %v245, 16
      %v417 = vrot.slane %v415, 7
      %v418 = vshll.u32 %v245, 16
      %v420 = vor.u32 %v417, %v418
      %v421 = vsel %vm276, %v413, %v420
      %v422 = vrot.slane %v417, 4
      %v424 = vshrl.u32 %v246, 16
      %v426 = vrot.slane %v424, 7
      %v427 = vshll.u32 %v246, 16
      %v429 = vor.u32 %v426, %v427
      %v430 = vsel %vm276, %v422, %v429
      %v432 = vshrl.u32 %v247, 16
      %v434 = vrot.slane %v432, 7
      %v435 = vrot.slane %v434, 4
      %v437 = vshrl.u32 %v248, 16
      %v439 = vrot.slane %v437, 7
      %v440 = vshll.u32 %v248, 16
      %v442 = vor.u32 %v439, %v440
      %v443 = vsel %vm276, %v435, %v442
      %v444 = vrot.slane %v439, 4
      %v446 = vshrl.u32 %v249, 16
      %v448 = vrot.slane %v446, 7
      %v449 = vshll.u32 %v249, 16
      %v451 = vor.u32 %v448, %v449
      %v452 = vsel %vm276, %v444, %v451
      %v454 = vshrl.u32 %v250, 16
      %v456 = vrot.slane %v454, 7
      %v457 = vrot.slane %v456, 4
      %v459 = vshrl.u32 %v251, 16
      %v461 = vrot.slane %v459, 7
      %v462 = vshll.u32 %v251, 16
      %v464 = vor.u32 %v461, %v462
      %v465 = vsel %vm276, %v457, %v464
      %v466 = vrot.slane %v461, 4
      %v468 = vshrl.u32 %v252, 16
      %v470 = vrot.slane %v468, 7
      %v471 = vshll.u32 %v252, 16
      %v473 = vor.u32 %v470, %v471
      %v474 = vsel %vm276, %v466, %v473
      %v476 = vshrl.u32 %v253, 16
      %v478 = vrot.slane %v476, 7
      %v479 = vrot.slane %v478, 4
      %v481 = vshrl.u32 %v254, 16
      %v483 = vrot.slane %v481, 7
      %v484 = vshll.u32 %v254, 16
      %v486 = vor.u32 %v483, %v484
      %v487 = vsel %vm276, %v479, %v486
      %v488 = vrot.slane %v483, 4
      %v490 = vshrl.u32 %v255, 16
      %v492 = vrot.slane %v490, 7
      %v493 = vshll.u32 %v255, 16
      %v495 = vor.u32 %v492, %v493
      %v496 = vsel %vm276, %v488, %v495
      %v498 = vshrl.u32 %v256, 16
      %v500 = vrot.slane %v498, 7
      %v501 = vrot.slane %v500, 4
      %v503 = vshrl.u32 %v257, 16
      %v505 = vrot.slane %v503, 7
      %v506 = vshll.u32 %v257, 16
      %v508 = vor.u32 %v505, %v506
      %v509 = vsel %vm276, %v501, %v508
      %v510 = vrot.slane %v505, 4
      %v512 = vshrl.u32 %v258, 16
      %v514 = vrot.slane %v512, 7
      %v515 = vshll.u32 %v258, 16
      %v517 = vor.u32 %v514, %v515
      %v518 = vsel %vm276, %v510, %v517
      %v520 = vshrl.u32 %v259, 16
      %v522 = vrot.slane %v520, 7
      %v523 = vrot.slane %v522, 4
      %v525 = vshrl.u32 %v260, 16
      %v527 = vrot.slane %v525, 7
      %v528 = vshll.u32 %v260, 16
      %v530 = vor.u32 %v527, %v528
      %v531 = vsel %vm276, %v523, %v530
      %v532 = vrot.slane %v527, 4
      %v534 = vshrl.u32 %v261, 16
      %v536 = vrot.slane %v534, 7
      %v537 = vshll.u32 %v261, 16
      %v539 = vor.u32 %v536, %v537
      %v540 = vsel %vm276, %v532, %v539
      %v542 = vshrl.u32 %v262, 16
      %v544 = vrot.slane %v542, 7
      %v545 = vrot.slane %v544, 4
      %v547 = vshrl.u32 %v263, 16
      %v549 = vrot.slane %v547, 7
      %v550 = vshll.u32 %v263, 16
      %v552 = vor.u32 %v549, %v550
      %v553 = vsel %vm276, %v545, %v552
      %v554 = vrot.slane %v549, 4
      %v556 = vshrl.u32 %v264, 16
      %v558 = vrot.slane %v556, 7
      %v559 = vshll.u32 %v264, 16
      %v561 = vor.u32 %v558, %v559
      %v562 = vsel %vm276, %v554, %v561
      %v564 = vshrl.u32 %v265, 16
      %v566 = vrot.slane %v564, 7
      %v567 = vrot.slane %v566, 4
      %v569 = vshrl.u32 %v266, 16
      %v571 = vrot.slane %v569, 7
      %v572 = vshll.u32 %v266, 16
      %v574 = vor.u32 %v571, %v572
      %v575 = vsel %vm276, %v567, %v574
      %v576 = vrot.slane %v571, 4
      %v578 = vshrl.u32 %v267, 16
      %v580 = vrot.slane %v578, 7
      %v581 = vshll.u32 %v267, 16
      %v583 = vor.u32 %v580, %v581
      %v584 = vsel %vm276, %v576, %v583
      %v586 = vshrl.u32 %v268, 16
      %v588 = vrot.slane %v586, 7
      %v589 = vrot.slane %v588, 4
      %v591 = vshrl.u32 %v269, 16
      %v593 = vrot.slane %v591, 7
      %v594 = vshll.u32 %v269, 16
      %v596 = vor.u32 %v593, %v594
      %v597 = vsel %vm276, %v589, %v596
      %v598 = vrot.slane %v593, 4
      %v600 = vshrl.u32 %v270, 16
      %v602 = vrot.slane %v600, 7
      %v603 = vshll.u32 %v270, 16
      %v605 = vor.u32 %v602, %v603
      %v606 = vsel %vm276, %v598, %v605
      %v608 = vshrl.u32 %v271, 16
      %v610 = vrot.slane %v608, 7
      %v611 = vrot.slane %v610, 4
      %v613 = vshrl.u32 %v272, 16
      %v615 = vrot.slane %v613, 7
      %v616 = vshll.u32 %v272, 16
      %v618 = vor.u32 %v615, %v616
      %v619 = vsel %vm276, %v611, %v618
      %v620 = vrot.slane %v615, 4
      %v622 = vshrl.u32 %v273, 16
      %v624 = vrot.slane %v622, 7
      %v625 = vshll.u32 %v273, 16
      %v627 = vor.u32 %v624, %v625
      %v628 = vsel %vm276, %v620, %v627
      %v629 = vld [vmem:[%s1] sm:$0xf]
      %v630 = vld [vmem:[%s1 + $0x4] sm:$0xf]
      %v631 = vld [vmem:[%s1 + $0x8] sm:$0xf]
      %v632 = vld [vmem:[%s1 + $0xc] sm:$0xf]
      %v633 = vld [vmem:[%s1 + $0x10] sm:$0xf]
      %v634 = vld [vmem:[%s1 + $0x14] sm:$0xf]
      %v635 = vld [vmem:[%s1 + $0x18] sm:$0xf]
      %v636 = vld [vmem:[%s1 + $0x1c] sm:$0xf]
      %v637 = vld [vmem:[%s1 + $0x20] sm:$0xf]
      %v638 = vld [vmem:[%s1 + $0x24] sm:$0xf]
      %v639 = vld [vmem:[%s1 + $0x28] sm:$0xf]
      %v640 = vld [vmem:[%s1 + $0x2c] sm:$0xf]
      %v641 = vld [vmem:[%s1 + $0x30] sm:$0xf]
      %v642 = vld [vmem:[%s1 + $0x34] sm:$0xf]
      %v643 = vld [vmem:[%s1 + $0x38] sm:$0xf]
      %v644 = vld [vmem:[%s1 + $0x3c] sm:$0xf]
      %s645 = scalar_lea.vmem %s1, 64
      %v646 = vld [vmem:[%s645] sm:$0xf]
      %v647 = vld [vmem:[%s645 + $0x4] sm:$0xf]
      %v648 = vld [vmem:[%s645 + $0x8] sm:$0xf]
      %v649 = vld [vmem:[%s645 + $0xc] sm:$0xf]
      %v650 = vld [vmem:[%s645 + $0x10] sm:$0xf]
      %v651 = vld [vmem:[%s645 + $0x14] sm:$0xf]
      %v652 = vld [vmem:[%s645 + $0x18] sm:$0xf]
      %v653 = vld [vmem:[%s645 + $0x1c] sm:$0xf]
      %v654 = vld [vmem:[%s645 + $0x20] sm:$0xf]
      %v655 = vld [vmem:[%s645 + $0x24] sm:$0xf]
      %v656 = vld [vmem:[%s645 + $0x28] sm:$0xf]
      %v657 = vld [vmem:[%s645 + $0x2c] sm:$0xf]
      %v658 = vld [vmem:[%s645 + $0x30] sm:$0xf]
      %v659 = vld [vmem:[%s645 + $0x34] sm:$0xf]
      %v660 = vld [vmem:[%s645 + $0x38] sm:$0xf]
      %v661 = vld [vmem:[%s645 + $0x3c] sm:$0xf]
      %v694 = vunpack.c.l.b16 %v227
      %v695 = vunpack.c.l.b16 %v228
      %v696 = vunpack.c.l.b16 %v230
      %v697 = vunpack.c.l.b16 %v231
      %v698 = vunpack.c.l.b16 %v233
      %v699 = vunpack.c.l.b16 %v234
      %v700 = vunpack.c.l.b16 %v236
      %v701 = vunpack.c.l.b16 %v237
      %v702 = vunpack.c.l.b16 %v239
      %v703 = vunpack.c.l.b16 %v240
      %v704 = vunpack.c.l.b16 %v242
      %v705 = vunpack.c.l.b16 %v243
      %v706 = vunpack.c.l.b16 %v245
      %v707 = vunpack.c.l.b16 %v246
      %v708 = vunpack.c.l.b16 %v248
      %v709 = vunpack.c.l.b16 %v249
      %v710 = vunpack.c.l.b16 %v251
      %v711 = vunpack.c.l.b16 %v252
      %v712 = vunpack.c.l.b16 %v254
      %v713 = vunpack.c.l.b16 %v255
      %v714 = vunpack.c.l.b16 %v257
      %v715 = vunpack.c.l.b16 %v258
      %v716 = vunpack.c.l.b16 %v260
      %v717 = vunpack.c.l.b16 %v261
      %v718 = vunpack.c.l.b16 %v263
      %v719 = vunpack.c.l.b16 %v264
      %v720 = vunpack.c.l.b16 %v266
      %v721 = vunpack.c.l.b16 %v267
      %v722 = vunpack.c.l.b16 %v269
      %v723 = vunpack.c.l.b16 %v270
      %v724 = vunpack.c.l.b16 %v272
      %v725 = vunpack.c.l.b16 %v273
      %v726 = vpack.c.b16 %v695, %v694
      %v727 = vpack.c.b16 %v697, %v696
      %v728 = vpack.c.b16 %v699, %v698
      %v729 = vpack.c.b16 %v701, %v700
      %v730 = vpack.c.b16 %v703, %v702
      %v731 = vpack.c.b16 %v705, %v704
      %v732 = vpack.c.b16 %v707, %v706
      %v733 = vpack.c.b16 %v709, %v708
      %v734 = vpack.c.b16 %v711, %v710
      %v735 = vpack.c.b16 %v713, %v712
      %v736 = vpack.c.b16 %v715, %v714
      %v737 = vpack.c.b16 %v717, %v716
      %v738 = vpack.c.b16 %v719, %v718
      %v739 = vpack.c.b16 %v721, %v720
      %v740 = vpack.c.b16 %v723, %v722
      %v741 = vpack.c.b16 %v725, %v724
      %v774 = vunpack.c.l.b16 %v646
      %v775 = vunpack.c.l.b16 %v647
      %v776 = vunpack.c.l.b16 %v648
      %v777 = vunpack.c.l.b16 %v649
      %v778 = vunpack.c.l.b16 %v650
      %v779 = vunpack.c.l.b16 %v651
      %v780 = vunpack.c.l.b16 %v652
      %v781 = vunpack.c.l.b16 %v653
      %v782 = vunpack.c.l.b16 %v654
      %v783 = vunpack.c.l.b16 %v655
      %v784 = vunpack.c.l.b16 %v656
      %v785 = vunpack.c.l.b16 %v657
      %v786 = vunpack.c.l.b16 %v658
      %v787 = vunpack.c.l.b16 %v659
      %v788 = vunpack.c.l.b16 %v660
      %v789 = vunpack.c.l.b16 %v661
      %v790 = vpack.c.b16 %v775, %v774
      %v791 = vpack.c.b16 %v777, %v776
      %v792 = vpack.c.b16 %v779, %v778
      %v793 = vpack.c.b16 %v781, %v780
      %v794 = vpack.c.b16 %v783, %v782
      %v795 = vpack.c.b16 %v785, %v784
      %v796 = vpack.c.b16 %v787, %v786
      %v797 = vpack.c.b16 %v789, %v788
      %806 = vmatprep.subr.bf16.mxu0 0
      %807 = vmatpush1.bf16.msra.mxu0 %v797
      %808 = vmatprep.subr.bf16.mxu0 0
      %809 = vmatpush1.bf16.msra.mxu0 %v796
      %810 = vmatprep.subr.bf16.mxu0 0
      %811 = vmatpush1.bf16.msra.mxu0 %v795
      %812 = vmatprep.subr.bf16.mxu0 0
      %813 = vmatpush1.bf16.msra.mxu0 %v794
      %814 = vmatprep.subr.bf16.mxu0 0
      %815 = vmatpush1.bf16.msra.mxu0 %v793
      %816 = vmatprep.subr.bf16.mxu0 0
      %817 = vmatpush1.bf16.msra.mxu0 %v792
      %818 = vmatprep.subr.bf16.mxu0 0
      %819 = vmatpush1.bf16.msra.mxu0 %v791
      %820 = vmatprep.subr.bf16.mxu0 0
      %821 = vmatpush1.bf16.msra.mxu0 %v790
      %822 = vmatprep.subr.bf16.mxu0 0
      %823 = vmatpush2.bf16.msra.mxu0 0
      %824 = vmatprep.subr.bf16.mxu0 0
      %825 = vmatpush2.bf16.msra.mxu0 0
      %826 = vmatprep.subr.bf16.mxu0 0
      %827 = vmatpush2.bf16.msra.mxu0 0
      %828 = vmatprep.subr.bf16.mxu0 0
      %829 = vmatpush2.bf16.msra.mxu0 0
      %830 = vmatprep.subr.bf16.mxu0 0
      %831 = vmatpush2.bf16.msra.mxu0 0
      %832 = vmatprep.subr.bf16.mxu0 0
      %833 = vmatpush2.bf16.msra.mxu0 0
      %834 = vmatprep.subr.bf16.mxu0 0
      %835 = vmatpush2.bf16.msra.mxu0 0
      %836 = vmatprep.subr.bf16.mxu0 0
      %837 = vmatpush2.bf16.msra.mxu0 0
      %838 = vmatprep.mubr.bf16.mxu0 0
      %839 = vmatmul.mubr.bf16.gmra.mxu0 %v726
      %v840 = vpop.f32.mrf.mxu0
      %v841 = vadd.f32 0.0, %v840
      %v842 = vpop.f32.mrf.mxu0
      %v843 = vpop.f32.mrf.mxu0
      %v844 = vadd.f32 0.0, %v843
      %v845 = vpop.f32.mrf.mxu0
      %846 = vmatprep.mubr.bf16.mxu0 0
      %847 = vmatmul.mubr.bf16.gmra.mxu0 %v727
      %v848 = vpop.f32.mrf.mxu0
      %v849 = vadd.f32 0.0, %v848
      %v850 = vpop.f32.mrf.mxu0
      %v851 = vpop.f32.mrf.mxu0
      %v852 = vadd.f32 0.0, %v851
      %v853 = vpop.f32.mrf.mxu0
      %854 = vmatprep.mubr.bf16.mxu0 0
      %855 = vmatmul.mubr.bf16.gmra.mxu0 %v728
      %v856 = vpop.f32.mrf.mxu0
      %v857 = vadd.f32 0.0, %v856
      %v858 = vpop.f32.mrf.mxu0
      %v859 = vpop.f32.mrf.mxu0
      %v860 = vadd.f32 0.0, %v859
      %v861 = vpop.f32.mrf.mxu0
      %862 = vmatprep.mubr.bf16.mxu0 0
      %863 = vmatmul.mubr.bf16.gmra.mxu0 %v729
      %v864 = vpop.f32.mrf.mxu0
      %v865 = vadd.f32 0.0, %v864
      %v866 = vpop.f32.mrf.mxu0
      %v867 = vpop.f32.mrf.mxu0
      %v868 = vadd.f32 0.0, %v867
      %v869 = vpop.f32.mrf.mxu0
      %870 = vmatprep.mubr.bf16.mxu0 0
      %871 = vmatmul.mubr.bf16.gmra.mxu0 %v730
      %v872 = vpop.f32.mrf.mxu0
      %v873 = vadd.f32 0.0, %v872
      %v874 = vpop.f32.mrf.mxu0
      %v875 = vpop.f32.mrf.mxu0
      %v876 = vadd.f32 0.0, %v875
      %v877 = vpop.f32.mrf.mxu0
      %878 = vmatprep.mubr.bf16.mxu0 0
      %879 = vmatmul.mubr.bf16.gmra.mxu0 %v731
      %v880 = vpop.f32.mrf.mxu0
      %v881 = vadd.f32 0.0, %v880
      %v882 = vpop.f32.mrf.mxu0
      %v883 = vpop.f32.mrf.mxu0
      %v884 = vadd.f32 0.0, %v883
      %v885 = vpop.f32.mrf.mxu0
      %886 = vmatprep.mubr.bf16.mxu0 0
      %887 = vmatmul.mubr.bf16.gmra.mxu0 %v732
      %v888 = vpop.f32.mrf.mxu0
      %v889 = vadd.f32 0.0, %v888
      %v890 = vpop.f32.mrf.mxu0
      %v891 = vpop.f32.mrf.mxu0
      %v892 = vadd.f32 0.0, %v891
      %v893 = vpop.f32.mrf.mxu0
      %894 = vmatprep.mubr.bf16.mxu0 0
      %895 = vmatmul.mubr.bf16.gmra.mxu0 %v733
      %v896 = vpop.f32.mrf.mxu0
      %v897 = vadd.f32 0.0, %v896
      %v898 = vpop.f32.mrf.mxu0
      %v899 = vpop.f32.mrf.mxu0
      %v900 = vadd.f32 0.0, %v899
      %v901 = vpop.f32.mrf.mxu0
      %902 = vmatprep.mubr.bf16.mxu0 0
      %903 = vmatmul.mubr.bf16.gmra.mxu0 %v734
      %v904 = vpop.f32.mrf.mxu0
      %v905 = vadd.f32 0.0, %v904
      %v906 = vpop.f32.mrf.mxu0
      %v907 = vpop.f32.mrf.mxu0
      %v908 = vadd.f32 0.0, %v907
      %v909 = vpop.f32.mrf.mxu0
      %910 = vmatprep.mubr.bf16.mxu0 0
      %911 = vmatmul.mubr.bf16.gmra.mxu0 %v735
      %v912 = vpop.f32.mrf.mxu0
      %v913 = vadd.f32 0.0, %v912
      %v914 = vpop.f32.mrf.mxu0
      %v915 = vpop.f32.mrf.mxu0
      %v916 = vadd.f32 0.0, %v915
      %v917 = vpop.f32.mrf.mxu0
      %918 = vmatprep.mubr.bf16.mxu0 0
      %919 = vmatmul.mubr.bf16.gmra.mxu0 %v736
      %v920 = vpop.f32.mrf.mxu0
      %v921 = vadd.f32 0.0, %v920
      %v922 = vpop.f32.mrf.mxu0
      %v923 = vpop.f32.mrf.mxu0
      %v924 = vadd.f32 0.0, %v923
      %v925 = vpop.f32.mrf.mxu0
      %926 = vmatprep.mubr.bf16.mxu0 0
      %927 = vmatmul.mubr.bf16.gmra.mxu0 %v737
      %v928 = vpop.f32.mrf.mxu0
      %v929 = vadd.f32 0.0, %v928
      %v930 = vpop.f32.mrf.mxu0
      %v931 = vpop.f32.mrf.mxu0
      %v932 = vadd.f32 0.0, %v931
      %v933 = vpop.f32.mrf.mxu0
      %934 = vmatprep.mubr.bf16.mxu0 0
      %935 = vmatmul.mubr.bf16.gmra.mxu0 %v738
      %v936 = vpop.f32.mrf.mxu0
      %v937 = vadd.f32 0.0, %v936
      %v938 = vpop.f32.mrf.mxu0
      %v939 = vpop.f32.mrf.mxu0
      %v940 = vadd.f32 0.0, %v939
      %v941 = vpop.f32.mrf.mxu0
      %942 = vmatprep.mubr.bf16.mxu0 0
      %943 = vmatmul.mubr.bf16.gmra.mxu0 %v739
      %v944 = vpop.f32.mrf.mxu0
      %v945 = vadd.f32 0.0, %v944
      %v946 = vpop.f32.mrf.mxu0
      %v947 = vpop.f32.mrf.mxu0
      %v948 = vadd.f32 0.0, %v947
      %v949 = vpop.f32.mrf.mxu0
      %950 = vmatprep.mubr.bf16.mxu0 0
      %951 = vmatmul.mubr.bf16.gmra.mxu0 %v740
      %v952 = vpop.f32.mrf.mxu0
      %v953 = vadd.f32 0.0, %v952
      %v954 = vpop.f32.mrf.mxu0
      %v955 = vpop.f32.mrf.mxu0
      %v956 = vadd.f32 0.0, %v955
      %v957 = vpop.f32.mrf.mxu0
      %958 = vmatprep.mubr.bf16.mxu0 0
      %959 = vmatmul.mubr.bf16.gmra.mxu0 %v741
      %v960 = vpop.f32.mrf.mxu0
      %v961 = vadd.f32 0.0, %v960
      %v962 = vpop.f32.mrf.mxu0
      %v963 = vpop.f32.mrf.mxu0
      %v964 = vadd.f32 0.0, %v963
      %v965 = vpop.f32.mrf.mxu0
      %966 = vdwg.mxu0
      %v967 = vunpack.c.l.b16 %v289
      %v968 = vunpack.c.l.b16 %v298
      %v969 = vunpack.c.l.b16 %v311
      %v970 = vunpack.c.l.b16 %v320
      %v971 = vunpack.c.l.b16 %v333
      %v972 = vunpack.c.l.b16 %v342
      %v973 = vunpack.c.l.b16 %v355
      %v974 = vunpack.c.l.b16 %v364
      %v975 = vunpack.c.l.b16 %v377
      %v976 = vunpack.c.l.b16 %v386
      %v977 = vunpack.c.l.b16 %v399
      %v978 = vunpack.c.l.b16 %v408
      %v979 = vunpack.c.l.b16 %v421
      %v980 = vunpack.c.l.b16 %v430
      %v981 = vunpack.c.l.b16 %v443
      %v982 = vunpack.c.l.b16 %v452
      %v983 = vunpack.c.l.b16 %v465
      %v984 = vunpack.c.l.b16 %v474
      %v985 = vunpack.c.l.b16 %v487
      %v986 = vunpack.c.l.b16 %v496
      %v987 = vunpack.c.l.b16 %v509
      %v988 = vunpack.c.l.b16 %v518
      %v989 = vunpack.c.l.b16 %v531
      %v990 = vunpack.c.l.b16 %v540
      %v991 = vunpack.c.l.b16 %v553
      %v992 = vunpack.c.l.b16 %v562
      %v993 = vunpack.c.l.b16 %v575
      %v994 = vunpack.c.l.b16 %v584
      %v995 = vunpack.c.l.b16 %v597
      %v996 = vunpack.c.l.b16 %v606
      %v997 = vunpack.c.l.b16 %v619
      %v998 = vunpack.c.l.b16 %v628
      %v999 = vpack.c.b16 %v968, %v967
      %v1000 = vpack.c.b16 %v970, %v969
      %v1001 = vpack.c.b16 %v972, %v971
      %v1002 = vpack.c.b16 %v974, %v973
      %v1003 = vpack.c.b16 %v976, %v975
      %v1004 = vpack.c.b16 %v978, %v977
      %v1005 = vpack.c.b16 %v980, %v979
      %v1006 = vpack.c.b16 %v982, %v981
      %v1007 = vpack.c.b16 %v984, %v983
      %v1008 = vpack.c.b16 %v986, %v985
      %v1009 = vpack.c.b16 %v988, %v987
      %v1010 = vpack.c.b16 %v990, %v989
      %v1011 = vpack.c.b16 %v992, %v991
      %v1012 = vpack.c.b16 %v994, %v993
      %v1013 = vpack.c.b16 %v996, %v995
      %v1014 = vpack.c.b16 %v998, %v997
      %v1047 = vunpack.c.l.b16 %v629
      %v1048 = vunpack.c.l.b16 %v630
      %v1049 = vunpack.c.l.b16 %v631
      %v1050 = vunpack.c.l.b16 %v632
      %v1051 = vunpack.c.l.b16 %v633
      %v1052 = vunpack.c.l.b16 %v634
      %v1053 = vunpack.c.l.b16 %v635
      %v1054 = vunpack.c.l.b16 %v636
      %v1055 = vunpack.c.l.b16 %v637
      %v1056 = vunpack.c.l.b16 %v638
      %v1057 = vunpack.c.l.b16 %v639
      %v1058 = vunpack.c.l.b16 %v640
      %v1059 = vunpack.c.l.b16 %v641
      %v1060 = vunpack.c.l.b16 %v642
      %v1061 = vunpack.c.l.b16 %v643
      %v1062 = vunpack.c.l.b16 %v644
      %v1063 = vpack.c.b16 %v1048, %v1047
      %v1064 = vpack.c.b16 %v1050, %v1049
      %v1065 = vpack.c.b16 %v1052, %v1051
      %v1066 = vpack.c.b16 %v1054, %v1053
      %v1067 = vpack.c.b16 %v1056, %v1055
      %v1068 = vpack.c.b16 %v1058, %v1057
      %v1069 = vpack.c.b16 %v1060, %v1059
      %v1070 = vpack.c.b16 %v1062, %v1061
      %1079 = vmatprep.subr.bf16.mxu0 0
      %1080 = vmatpush1.bf16.msra.mxu0 %v1070
      %1081 = vmatprep.subr.bf16.mxu0 0
      %1082 = vmatpush1.bf16.msra.mxu0 %v1069
      %1083 = vmatprep.subr.bf16.mxu0 0
      %1084 = vmatpush1.bf16.msra.mxu0 %v1068
      %1085 = vmatprep.subr.bf16.mxu0 0
      %1086 = vmatpush1.bf16.msra.mxu0 %v1067
      %1087 = vmatprep.subr.bf16.mxu0 0
      %1088 = vmatpush1.bf16.msra.mxu0 %v1066
      %1089 = vmatprep.subr.bf16.mxu0 0
      %1090 = vmatpush1.bf16.msra.mxu0 %v1065
      %1091 = vmatprep.subr.bf16.mxu0 0
      %1092 = vmatpush1.bf16.msra.mxu0 %v1064
      %1093 = vmatprep.subr.bf16.mxu0 0
      %1094 = vmatpush1.bf16.msra.mxu0 %v1063
      %1095 = vmatprep.subr.bf16.mxu0 0
      %1096 = vmatpush2.bf16.msra.mxu0 0
      %1097 = vmatprep.subr.bf16.mxu0 0
      %1098 = vmatpush2.bf16.msra.mxu0 0
      %1099 = vmatprep.subr.bf16.mxu0 0
      %1100 = vmatpush2.bf16.msra.mxu0 0
      %1101 = vmatprep.subr.bf16.mxu0 0
      %1102 = vmatpush2.bf16.msra.mxu0 0
      %1103 = vmatprep.subr.bf16.mxu0 0
      %1104 = vmatpush2.bf16.msra.mxu0 0
      %1105 = vmatprep.subr.bf16.mxu0 0
      %1106 = vmatpush2.bf16.msra.mxu0 0
      %1107 = vmatprep.subr.bf16.mxu0 0
      %1108 = vmatpush2.bf16.msra.mxu0 0
      %1109 = vmatprep.subr.bf16.mxu0 0
      %1110 = vmatpush2.bf16.msra.mxu0 0
      %1111 = vmatprep.mubr.bf16.mxu0 0
      %1112 = vmatmul.mubr.bf16.gmra.mxu0 %v999
      %v1113 = vpop.f32.mrf.mxu0
      %v1114 = vadd.f32 %v841, %v1113
      %v1115 = vpop.f32.mrf.mxu0
      %v1116 = vpop.f32.mrf.mxu0
      %v1117 = vadd.f32 %v844, %v1116
      %v1118 = vpop.f32.mrf.mxu0
      %1119 = vmatprep.mubr.bf16.mxu0 0
      %1120 = vmatmul.mubr.bf16.gmra.mxu0 %v1000
      %v1121 = vpop.f32.mrf.mxu0
      %v1122 = vadd.f32 %v849, %v1121
      %v1123 = vpop.f32.mrf.mxu0
      %v1124 = vpop.f32.mrf.mxu0
      %v1125 = vadd.f32 %v852, %v1124
      %v1126 = vpop.f32.mrf.mxu0
      %1127 = vmatprep.mubr.bf16.mxu0 0
      %1128 = vmatmul.mubr.bf16.gmra.mxu0 %v1001
      %v1129 = vpop.f32.mrf.mxu0
      %v1130 = vadd.f32 %v857, %v1129
      %v1131 = vpop.f32.mrf.mxu0
      %v1132 = vpop.f32.mrf.mxu0
      %v1133 = vadd.f32 %v860, %v1132
      %v1134 = vpop.f32.mrf.mxu0
      %1135 = vmatprep.mubr.bf16.mxu0 0
      %1136 = vmatmul.mubr.bf16.gmra.mxu0 %v1002
      %v1137 = vpop.f32.mrf.mxu0
      %v1138 = vadd.f32 %v865, %v1137
      %v1139 = vpop.f32.mrf.mxu0
      %v1140 = vpop.f32.mrf.mxu0
      %v1141 = vadd.f32 %v868, %v1140
      %v1142 = vpop.f32.mrf.mxu0
      %1143 = vmatprep.mubr.bf16.mxu0 0
      %1144 = vmatmul.mubr.bf16.gmra.mxu0 %v1003
      %v1145 = vpop.f32.mrf.mxu0
      %v1146 = vadd.f32 %v873, %v1145
      %v1147 = vpop.f32.mrf.mxu0
      %v1148 = vpop.f32.mrf.mxu0
      %v1149 = vadd.f32 %v876, %v1148
      %v1150 = vpop.f32.mrf.mxu0
      %1151 = vmatprep.mubr.bf16.mxu0 0
      %1152 = vmatmul.mubr.bf16.gmra.mxu0 %v1004
      %v1153 = vpop.f32.mrf.mxu0
      %v1154 = vadd.f32 %v881, %v1153
      %v1155 = vpop.f32.mrf.mxu0
      %v1156 = vpop.f32.mrf.mxu0
      %v1157 = vadd.f32 %v884, %v1156
      %v1158 = vpop.f32.mrf.mxu0
      %1159 = vmatprep.mubr.bf16.mxu0 0
      %1160 = vmatmul.mubr.bf16.gmra.mxu0 %v1005
      %v1161 = vpop.f32.mrf.mxu0
      %v1162 = vadd.f32 %v889, %v1161
      %v1163 = vpop.f32.mrf.mxu0
      %v1164 = vpop.f32.mrf.mxu0
      %v1165 = vadd.f32 %v892, %v1164
      %v1166 = vpop.f32.mrf.mxu0
      %1167 = vmatprep.mubr.bf16.mxu0 0
      %1168 = vmatmul.mubr.bf16.gmra.mxu0 %v1006
      %v1169 = vpop.f32.mrf.mxu0
      %v1170 = vadd.f32 %v897, %v1169
      %v1171 = vpop.f32.mrf.mxu0
      %v1172 = vpop.f32.mrf.mxu0
      %v1173 = vadd.f32 %v900, %v1172
      %v1174 = vpop.f32.mrf.mxu0
      %1175 = vmatprep.mubr.bf16.mxu0 0
      %1176 = vmatmul.mubr.bf16.gmra.mxu0 %v1007
      %v1177 = vpop.f32.mrf.mxu0
      %v1178 = vadd.f32 %v905, %v1177
      %v1179 = vpop.f32.mrf.mxu0
      %v1180 = vpop.f32.mrf.mxu0
      %v1181 = vadd.f32 %v908, %v1180
      %v1182 = vpop.f32.mrf.mxu0
      %1183 = vmatprep.mubr.bf16.mxu0 0
      %1184 = vmatmul.mubr.bf16.gmra.mxu0 %v1008
      %v1185 = vpop.f32.mrf.mxu0
      %v1186 = vadd.f32 %v913, %v1185
      %v1187 = vpop.f32.mrf.mxu0
      %v1188 = vpop.f32.mrf.mxu0
      %v1189 = vadd.f32 %v916, %v1188
      %v1190 = vpop.f32.mrf.mxu0
      %1191 = vmatprep.mubr.bf16.mxu0 0
      %1192 = vmatmul.mubr.bf16.gmra.mxu0 %v1009
      %v1193 = vpop.f32.mrf.mxu0
      %v1194 = vadd.f32 %v921, %v1193
      %v1195 = vpop.f32.mrf.mxu0
      %v1196 = vpop.f32.mrf.mxu0
      %v1197 = vadd.f32 %v924, %v1196
      %v1198 = vpop.f32.mrf.mxu0
      %1199 = vmatprep.mubr.bf16.mxu0 0
      %1200 = vmatmul.mubr.bf16.gmra.mxu0 %v1010
      %v1201 = vpop.f32.mrf.mxu0
      %v1202 = vadd.f32 %v929, %v1201
      %v1203 = vpop.f32.mrf.mxu0
      %v1204 = vpop.f32.mrf.mxu0
      %v1205 = vadd.f32 %v932, %v1204
      %v1206 = vpop.f32.mrf.mxu0
      %1207 = vmatprep.mubr.bf16.mxu0 0
      %1208 = vmatmul.mubr.bf16.gmra.mxu0 %v1011
      %v1209 = vpop.f32.mrf.mxu0
      %v1210 = vadd.f32 %v937, %v1209
      %v1211 = vpop.f32.mrf.mxu0
      %v1212 = vpop.f32.mrf.mxu0
      %v1213 = vadd.f32 %v940, %v1212
      %v1214 = vpop.f32.mrf.mxu0
      %1215 = vmatprep.mubr.bf16.mxu0 0
      %1216 = vmatmul.mubr.bf16.gmra.mxu0 %v1012
      %v1217 = vpop.f32.mrf.mxu0
      %v1218 = vadd.f32 %v945, %v1217
      %v1219 = vpop.f32.mrf.mxu0
      %v1220 = vpop.f32.mrf.mxu0
      %v1221 = vadd.f32 %v948, %v1220
      %v1222 = vpop.f32.mrf.mxu0
      %1223 = vmatprep.mubr.bf16.mxu0 0
      %1224 = vmatmul.mubr.bf16.gmra.mxu0 %v1013
      %v1225 = vpop.f32.mrf.mxu0
      %v1226 = vadd.f32 %v953, %v1225
      %v1227 = vpop.f32.mrf.mxu0
      %v1228 = vpop.f32.mrf.mxu0
      %v1229 = vadd.f32 %v956, %v1228
      %v1230 = vpop.f32.mrf.mxu0
      %1231 = vmatprep.mubr.bf16.mxu0 0
      %1232 = vmatmul.mubr.bf16.gmra.mxu0 %v1014
      %v1233 = vpop.f32.mrf.mxu0
      %v1234 = vadd.f32 %v961, %v1233
      %v1235 = vpop.f32.mrf.mxu0
      %v1236 = vpop.f32.mrf.mxu0
      %v1237 = vadd.f32 %v964, %v1236
      %v1238 = vpop.f32.mrf.mxu0
      %1239 = vdwg.mxu0
      %v1240 = vld [vmem:[%s219 + $0x4] sm:$0xf]
      %v1241 = vld [vmem:[%s219 + $0x8] sm:$0xf]
      %v1242 = vld [vmem:[%s219 + $0xc] sm:$0x1]
      %v1243 = vld [vmem:[%s219 + $0x14] sm:$0xf]
      %v1244 = vld [vmem:[%s219 + $0x18] sm:$0xf]
      %v1245 = vld [vmem:[%s219 + $0x1c] sm:$0x1]
      %v1246 = vld [vmem:[%s219 + $0x24] sm:$0xf]
      %v1247 = vld [vmem:[%s219 + $0x28] sm:$0xf]
      %v1248 = vld [vmem:[%s219 + $0x2c] sm:$0x1]
      %v1249 = vld [vmem:[%s219 + $0x34] sm:$0xf]
      %v1250 = vld [vmem:[%s219 + $0x38] sm:$0xf]
      %v1251 = vld [vmem:[%s219 + $0x3c] sm:$0x1]
      %v1252 = vld [vmem:[%s219 + $0x44] sm:$0xf]
      %v1253 = vld [vmem:[%s219 + $0x48] sm:$0xf]
      %v1254 = vld [vmem:[%s219 + $0x4c] sm:$0x1]
      %v1255 = vld [vmem:[%s219 + $0x54] sm:$0xf]
      %v1256 = vld [vmem:[%s219 + $0x58] sm:$0xf]
      %v1257 = vld [vmem:[%s219 + $0x5c] sm:$0x1]
      %v1258 = vld [vmem:[%s219 + $0x64] sm:$0xf]
      %v1259 = vld [vmem:[%s219 + $0x68] sm:$0xf]
      %v1260 = vld [vmem:[%s219 + $0x6c] sm:$0x1]
      %v1261 = vld [vmem:[%s219 + $0x74] sm:$0xf]
      %v1262 = vld [vmem:[%s219 + $0x78] sm:$0xf]
      %v1263 = vld [vmem:[%s219 + $0x7c] sm:$0x1]
      %v1264 = vld [vmem:[%s219 + $0x84] sm:$0xf]
      %v1265 = vld [vmem:[%s219 + $0x88] sm:$0xf]
      %v1266 = vld [vmem:[%s219 + $0x8c] sm:$0x1]
      %v1267 = vld [vmem:[%s219 + $0x94] sm:$0xf]
      %v1268 = vld [vmem:[%s219 + $0x98] sm:$0xf]
      %v1269 = vld [vmem:[%s219 + $0x9c] sm:$0x1]
      %v1270 = vld [vmem:[%s219 + $0xa4] sm:$0xf]
      %v1271 = vld [vmem:[%s219 + $0xa8] sm:$0xf]
      %v1272 = vld [vmem:[%s219 + $0xac] sm:$0x1]
      %v1273 = vld [vmem:[%s219 + $0xb4] sm:$0xf]
      %v1274 = vld [vmem:[%s219 + $0xb8] sm:$0xf]
      %v1275 = vld [vmem:[%s219 + $0xbc] sm:$0x1]
      %v1276 = vld [vmem:[%s219 + $0xc4] sm:$0xf]
      %v1277 = vld [vmem:[%s219 + $0xc8] sm:$0xf]
      %v1278 = vld [vmem:[%s219 + $0xcc] sm:$0x1]
      %v1279 = vld [vmem:[%s219 + $0xd4] sm:$0xf]
      %v1280 = vld [vmem:[%s219 + $0xd8] sm:$0xf]
      %v1281 = vld [vmem:[%s219 + $0xdc] sm:$0x1]
      %v1282 = vld [vmem:[%s219 + $0xe4] sm:$0xf]
      %v1283 = vld [vmem:[%s219 + $0xe8] sm:$0xf]
      %v1284 = vld [vmem:[%s219 + $0xec] sm:$0x1]
      %v1285 = vld [vmem:[%s219 + $0xf4] sm:$0xf]
      %v1286 = vld [vmem:[%s219 + $0xf8] sm:$0xf]
      %v1287 = vld [vmem:[%s219 + $0xfc] sm:$0x1]
      %vm1288 = vsmask.f32 3328
      %vm1289 = vsmask.f32 7440
      %vm1290 = vmor %vm1288, %vm1289
      %v1292 = vshrl.u32 %v1240, 16
      %v1294 = vrot.slane %v1292, 4
      %v1295 = vshll.u32 %v1240, 16
      %v1297 = vrot.slane %v1295, 5
      %v1298 = vor.u32 %v1294, %v1297
      %v1299 = vrot.slane %v1298, 4
      %v1301 = vshll.u32 %v1241, 16
      %v1303 = vrot.slane %v1301, 5
      %v1304 = vsel %vm1290, %v1299, %v1303
      %v1305 = vshrl.u32 %v1241, 16
      %v1307 = vrot.slane %v1305, 4
      %v1308 = vor.u32 %v1307, %v1303
      %v1309 = vrot.slane %v1308, 4
      %v1311 = vshll.u32 %v1242, 16
      %v1313 = vrot.slane %v1311, 5
      %v1314 = vsel %vm1290, %v1309, %v1313
      %v1316 = vshrl.u32 %v1243, 16
      %v1318 = vrot.slane %v1316, 4
      %v1319 = vshll.u32 %v1243, 16
      %v1321 = vrot.slane %v1319, 5
      %v1322 = vor.u32 %v1318, %v1321
      %v1323 = vrot.slane %v1322, 4
      %v1325 = vshll.u32 %v1244, 16
      %v1327 = vrot.slane %v1325, 5
      %v1328 = vsel %vm1290, %v1323, %v1327
      %v1329 = vshrl.u32 %v1244, 16
      %v1331 = vrot.slane %v1329, 4
      %v1332 = vor.u32 %v1331, %v1327
      %v1333 = vrot.slane %v1332, 4
      %v1335 = vshll.u32 %v1245, 16
      %v1337 = vrot.slane %v1335, 5
      %v1338 = vsel %vm1290, %v1333, %v1337
      %v1340 = vshrl.u32 %v1246, 16
      %v1342 = vrot.slane %v1340, 4
      %v1343 = vshll.u32 %v1246, 16
      %v1345 = vrot.slane %v1343, 5
      %v1346 = vor.u32 %v1342, %v1345
      %v1347 = vrot.slane %v1346, 4
      %v1349 = vshll.u32 %v1247, 16
      %v1351 = vrot.slane %v1349, 5
      %v1352 = vsel %vm1290, %v1347, %v1351
      %v1353 = vshrl.u32 %v1247, 16
      %v1355 = vrot.slane %v1353, 4
      %v1356 = vor.u32 %v1355, %v1351
      %v1357 = vrot.slane %v1356, 4
      %v1359 = vshll.u32 %v1248, 16
      %v1361 = vrot.slane %v1359, 5
      %v1362 = vsel %vm1290, %v1357, %v1361
      %v1364 = vshrl.u32 %v1249, 16
      %v1366 = vrot.slane %v1364, 4
      %v1367 = vshll.u32 %v1249, 16
      %v1369 = vrot.slane %v1367, 5
      %v1370 = vor.u32 %v1366, %v1369
      %v1371 = vrot.slane %v1370, 4
      %v1373 = vshll.u32 %v1250, 16
      %v1375 = vrot.slane %v1373, 5
      %v1376 = vsel %vm1290, %v1371, %v1375
      %v1377 = vshrl.u32 %v1250, 16
      %v1379 = vrot.slane %v1377, 4
      %v1380 = vor.u32 %v1379, %v1375
      %v1381 = vrot.slane %v1380, 4
      %v1383 = vshll.u32 %v1251, 16
      %v1385 = vrot.slane %v1383, 5
      %v1386 = vsel %vm1290, %v1381, %v1385
      %v1388 = vshrl.u32 %v1252, 16
      %v1390 = vrot.slane %v1388, 4
      %v1391 = vshll.u32 %v1252, 16
      %v1393 = vrot.slane %v1391, 5
      %v1394 = vor.u32 %v1390, %v1393
      %v1395 = vrot.slane %v1394, 4
      %v1397 = vshll.u32 %v1253, 16
      %v1399 = vrot.slane %v1397, 5
      %v1400 = vsel %vm1290, %v1395, %v1399
      %v1401 = vshrl.u32 %v1253, 16
      %v1403 = vrot.slane %v1401, 4
      %v1404 = vor.u32 %v1403, %v1399
      %v1405 = vrot.slane %v1404, 4
      %v1407 = vshll.u32 %v1254, 16
      %v1409 = vrot.slane %v1407, 5
      %v1410 = vsel %vm1290, %v1405, %v1409
      %v1412 = vshrl.u32 %v1255, 16
      %v1414 = vrot.slane %v1412, 4
      %v1415 = vshll.u32 %v1255, 16
      %v1417 = vrot.slane %v1415, 5
      %v1418 = vor.u32 %v1414, %v1417
      %v1419 = vrot.slane %v1418, 4
      %v1421 = vshll.u32 %v1256, 16
      %v1423 = vrot.slane %v1421, 5
      %v1424 = vsel %vm1290, %v1419, %v1423
      %v1425 = vshrl.u32 %v1256, 16
      %v1427 = vrot.slane %v1425, 4
      %v1428 = vor.u32 %v1427, %v1423
      %v1429 = vrot.slane %v1428, 4
      %v1431 = vshll.u32 %v1257, 16
      %v1433 = vrot.slane %v1431, 5
      %v1434 = vsel %vm1290, %v1429, %v1433
      %v1436 = vshrl.u32 %v1258, 16
      %v1438 = vrot.slane %v1436, 4
      %v1439 = vshll.u32 %v1258, 16
      %v1441 = vrot.slane %v1439, 5
      %v1442 = vor.u32 %v1438, %v1441
      %v1443 = vrot.slane %v1442, 4
      %v1445 = vshll.u32 %v1259, 16
      %v1447 = vrot.slane %v1445, 5
      %v1448 = vsel %vm1290, %v1443, %v1447
      %v1449 = vshrl.u32 %v1259, 16
      %v1451 = vrot.slane %v1449, 4
      %v1452 = vor.u32 %v1451, %v1447
      %v1453 = vrot.slane %v1452, 4
      %v1455 = vshll.u32 %v1260, 16
      %v1457 = vrot.slane %v1455, 5
      %v1458 = vsel %vm1290, %v1453, %v1457
      %v1460 = vshrl.u32 %v1261, 16
      %v1462 = vrot.slane %v1460, 4
      %v1463 = vshll.u32 %v1261, 16
      %v1465 = vrot.slane %v1463, 5
      %v1466 = vor.u32 %v1462, %v1465
      %v1467 = vrot.slane %v1466, 4
      %v1469 = vshll.u32 %v1262, 16
      %v1471 = vrot.slane %v1469, 5
      %v1472 = vsel %vm1290, %v1467, %v1471
      %v1473 = vshrl.u32 %v1262, 16
      %v1475 = vrot.slane %v1473, 4
      %v1476 = vor.u32 %v1475, %v1471
      %v1477 = vrot.slane %v1476, 4
      %v1479 = vshll.u32 %v1263, 16
      %v1481 = vrot.slane %v1479, 5
      %v1482 = vsel %vm1290, %v1477, %v1481
      %v1484 = vshrl.u32 %v1264, 16
      %v1486 = vrot.slane %v1484, 4
      %v1487 = vshll.u32 %v1264, 16
      %v1489 = vrot.slane %v1487, 5
      %v1490 = vor.u32 %v1486, %v1489
      %v1491 = vrot.slane %v1490, 4
      %v1493 = vshll.u32 %v1265, 16
      %v1495 = vrot.slane %v1493, 5
      %v1496 = vsel %vm1290, %v1491, %v1495
      %v1497 = vshrl.u32 %v1265, 16
      %v1499 = vrot.slane %v1497, 4
      %v1500 = vor.u32 %v1499, %v1495
      %v1501 = vrot.slane %v1500, 4
      %v1503 = vshll.u32 %v1266, 16
      %v1505 = vrot.slane %v1503, 5
      %v1506 = vsel %vm1290, %v1501, %v1505
      %v1508 = vshrl.u32 %v1267, 16
      %v1510 = vrot.slane %v1508, 4
      %v1511 = vshll.u32 %v1267, 16
      %v1513 = vrot.slane %v1511, 5
      %v1514 = vor.u32 %v1510, %v1513
      %v1515 = vrot.slane %v1514, 4
      %v1517 = vshll.u32 %v1268, 16
      %v1519 = vrot.slane %v1517, 5
      %v1520 = vsel %vm1290, %v1515, %v1519
      %v1521 = vshrl.u32 %v1268, 16
      %v1523 = vrot.slane %v1521, 4
      %v1524 = vor.u32 %v1523, %v1519
      %v1525 = vrot.slane %v1524, 4
      %v1527 = vshll.u32 %v1269, 16
      %v1529 = vrot.slane %v1527, 5
      %v1530 = vsel %vm1290, %v1525, %v1529
      %v1532 = vshrl.u32 %v1270, 16
      %v1534 = vrot.slane %v1532, 4
      %v1535 = vshll.u32 %v1270, 16
      %v1537 = vrot.slane %v1535, 5
      %v1538 = vor.u32 %v1534, %v1537
      %v1539 = vrot.slane %v1538, 4
      %v1541 = vshll.u32 %v1271, 16
      %v1543 = vrot.slane %v1541, 5
      %v1544 = vsel %vm1290, %v1539, %v1543
      %v1545 = vshrl.u32 %v1271, 16
      %v1547 = vrot.slane %v1545, 4
      %v1548 = vor.u32 %v1547, %v1543
      %v1549 = vrot.slane %v1548, 4
      %v1551 = vshll.u32 %v1272, 16
      %v1553 = vrot.slane %v1551, 5
      %v1554 = vsel %vm1290, %v1549, %v1553
      %v1556 = vshrl.u32 %v1273, 16
      %v1558 = vrot.slane %v1556, 4
      %v1559 = vshll.u32 %v1273, 16
      %v1561 = vrot.slane %v1559, 5
      %v1562 = vor.u32 %v1558, %v1561
      %v1563 = vrot.slane %v1562, 4
      %v1565 = vshll.u32 %v1274, 16
      %v1567 = vrot.slane %v1565, 5
      %v1568 = vsel %vm1290, %v1563, %v1567
      %v1569 = vshrl.u32 %v1274, 16
      %v1571 = vrot.slane %v1569, 4
      %v1572 = vor.u32 %v1571, %v1567
      %v1573 = vrot.slane %v1572, 4
      %v1575 = vshll.u32 %v1275, 16
      %v1577 = vrot.slane %v1575, 5
      %v1578 = vsel %vm1290, %v1573, %v1577
      %v1580 = vshrl.u32 %v1276, 16
      %v1582 = vrot.slane %v1580, 4
      %v1583 = vshll.u32 %v1276, 16
      %v1585 = vrot.slane %v1583, 5
      %v1586 = vor.u32 %v1582, %v1585
      %v1587 = vrot.slane %v1586, 4
      %v1589 = vshll.u32 %v1277, 16
      %v1591 = vrot.slane %v1589, 5
      %v1592 = vsel %vm1290, %v1587, %v1591
      %v1593 = vshrl.u32 %v1277, 16
      %v1595 = vrot.slane %v1593, 4
      %v1596 = vor.u32 %v1595, %v1591
      %v1597 = vrot.slane %v1596, 4
      %v1599 = vshll.u32 %v1278, 16
      %v1601 = vrot.slane %v1599, 5
      %v1602 = vsel %vm1290, %v1597, %v1601
      %v1604 = vshrl.u32 %v1279, 16
      %v1606 = vrot.slane %v1604, 4
      %v1607 = vshll.u32 %v1279, 16
      %v1609 = vrot.slane %v1607, 5
      %v1610 = vor.u32 %v1606, %v1609
      %v1611 = vrot.slane %v1610, 4
      %v1613 = vshll.u32 %v1280, 16
      %v1615 = vrot.slane %v1613, 5
      %v1616 = vsel %vm1290, %v1611, %v1615
      %v1617 = vshrl.u32 %v1280, 16
      %v1619 = vrot.slane %v1617, 4
      %v1620 = vor.u32 %v1619, %v1615
      %v1621 = vrot.slane %v1620, 4
      %v1623 = vshll.u32 %v1281, 16
      %v1625 = vrot.slane %v1623, 5
      %v1626 = vsel %vm1290, %v1621, %v1625
      %v1628 = vshrl.u32 %v1282, 16
      %v1630 = vrot.slane %v1628, 4
      %v1631 = vshll.u32 %v1282, 16
      %v1633 = vrot.slane %v1631, 5
      %v1634 = vor.u32 %v1630, %v1633
      %v1635 = vrot.slane %v1634, 4
      %v1637 = vshll.u32 %v1283, 16
      %v1639 = vrot.slane %v1637, 5
      %v1640 = vsel %vm1290, %v1635, %v1639
      %v1641 = vshrl.u32 %v1283, 16
      %v1643 = vrot.slane %v1641, 4
      %v1644 = vor.u32 %v1643, %v1639
      %v1645 = vrot.slane %v1644, 4
      %v1647 = vshll.u32 %v1284, 16
      %v1649 = vrot.slane %v1647, 5
      %v1650 = vsel %vm1290, %v1645, %v1649
      %v1652 = vshrl.u32 %v1285, 16
      %v1654 = vrot.slane %v1652, 4
      %v1655 = vshll.u32 %v1285, 16
      %v1657 = vrot.slane %v1655, 5
      %v1658 = vor.u32 %v1654, %v1657
      %v1659 = vrot.slane %v1658, 4
      %v1661 = vshll.u32 %v1286, 16
      %v1663 = vrot.slane %v1661, 5
      %v1664 = vsel %vm1290, %v1659, %v1663
      %v1665 = vshrl.u32 %v1286, 16
      %v1667 = vrot.slane %v1665, 4
      %v1668 = vor.u32 %v1667, %v1663
      %v1669 = vrot.slane %v1668, 4
      %v1671 = vshll.u32 %v1287, 16
      %v1673 = vrot.slane %v1671, 5
      %v1674 = vsel %vm1290, %v1669, %v1673
      %s1675 = scalar_lea.vmem %s1, 128
      %v1676 = vld [vmem:[%s1675] sm:$0xf]
      %v1677 = vld [vmem:[%s1675 + $0x4] sm:$0xf]
      %v1678 = vld [vmem:[%s1675 + $0x8] sm:$0xf]
      %v1679 = vld [vmem:[%s1675 + $0xc] sm:$0xf]
      %v1680 = vld [vmem:[%s1675 + $0x10] sm:$0xf]
      %v1681 = vld [vmem:[%s1675 + $0x14] sm:$0xf]
      %v1682 = vld [vmem:[%s1675 + $0x18] sm:$0xf]
      %v1683 = vld [vmem:[%s1675 + $0x1c] sm:$0xf]
      %v1684 = vld [vmem:[%s1675 + $0x20] sm:$0xf]
      %v1685 = vld [vmem:[%s1675 + $0x24] sm:$0xf]
      %v1686 = vld [vmem:[%s1675 + $0x28] sm:$0xf]
      %v1687 = vld [vmem:[%s1675 + $0x2c] sm:$0xf]
      %v1688 = vld [vmem:[%s1675 + $0x30] sm:$0xf]
      %v1689 = vld [vmem:[%s1675 + $0x34] sm:$0xf]
      %v1690 = vld [vmem:[%s1675 + $0x38] sm:$0xf]
      %v1691 = vld [vmem:[%s1675 + $0x3c] sm:$0xf]
      %v1692 = vunpack.c.l.b16 %v1304
      %v1693 = vunpack.c.l.b16 %v1314
      %v1694 = vunpack.c.l.b16 %v1328
      %v1695 = vunpack.c.l.b16 %v1338
      %v1696 = vunpack.c.l.b16 %v1352
      %v1697 = vunpack.c.l.b16 %v1362
      %v1698 = vunpack.c.l.b16 %v1376
      %v1699 = vunpack.c.l.b16 %v1386
      %v1700 = vunpack.c.l.b16 %v1400
      %v1701 = vunpack.c.l.b16 %v1410
      %v1702 = vunpack.c.l.b16 %v1424
      %v1703 = vunpack.c.l.b16 %v1434
      %v1704 = vunpack.c.l.b16 %v1448
      %v1705 = vunpack.c.l.b16 %v1458
      %v1706 = vunpack.c.l.b16 %v1472
      %v1707 = vunpack.c.l.b16 %v1482
      %v1708 = vunpack.c.l.b16 %v1496
      %v1709 = vunpack.c.l.b16 %v1506
      %v1710 = vunpack.c.l.b16 %v1520
      %v1711 = vunpack.c.l.b16 %v1530
      %v1712 = vunpack.c.l.b16 %v1544
      %v1713 = vunpack.c.l.b16 %v1554
      %v1714 = vunpack.c.l.b16 %v1568
      %v1715 = vunpack.c.l.b16 %v1578
      %v1716 = vunpack.c.l.b16 %v1592
      %v1717 = vunpack.c.l.b16 %v1602
      %v1718 = vunpack.c.l.b16 %v1616
      %v1719 = vunpack.c.l.b16 %v1626
      %v1720 = vunpack.c.l.b16 %v1640
      %v1721 = vunpack.c.l.b16 %v1650
      %v1722 = vunpack.c.l.b16 %v1664
      %v1723 = vunpack.c.l.b16 %v1674
      %v1724 = vpack.c.b16 %v1693, %v1692
      %v1725 = vpack.c.b16 %v1695, %v1694
      %v1726 = vpack.c.b16 %v1697, %v1696
      %v1727 = vpack.c.b16 %v1699, %v1698
      %v1728 = vpack.c.b16 %v1701, %v1700
      %v1729 = vpack.c.b16 %v1703, %v1702
      %v1730 = vpack.c.b16 %v1705, %v1704
      %v1731 = vpack.c.b16 %v1707, %v1706
      %v1732 = vpack.c.b16 %v1709, %v1708
      %v1733 = vpack.c.b16 %v1711, %v1710
      %v1734 = vpack.c.b16 %v1713, %v1712
      %v1735 = vpack.c.b16 %v1715, %v1714
      %v1736 = vpack.c.b16 %v1717, %v1716
      %v1737 = vpack.c.b16 %v1719, %v1718
      %v1738 = vpack.c.b16 %v1721, %v1720
      %v1739 = vpack.c.b16 %v1723, %v1722
      %v1772 = vunpack.c.l.b16 %v1676
      %v1773 = vunpack.c.l.b16 %v1677
      %v1774 = vunpack.c.l.b16 %v1678
      %v1775 = vunpack.c.l.b16 %v1679
      %v1776 = vunpack.c.l.b16 %v1680
      %v1777 = vunpack.c.l.b16 %v1681
      %v1778 = vunpack.c.l.b16 %v1682
      %v1779 = vunpack.c.l.b16 %v1683
      %v1780 = vunpack.c.l.b16 %v1684
      %v1781 = vunpack.c.l.b16 %v1685
      %v1782 = vunpack.c.l.b16 %v1686
      %v1783 = vunpack.c.l.b16 %v1687
      %v1784 = vunpack.c.l.b16 %v1688
      %v1785 = vunpack.c.l.b16 %v1689
      %v1786 = vunpack.c.l.b16 %v1690
      %v1787 = vunpack.c.l.b16 %v1691
      %v1788 = vpack.c.b16 %v1773, %v1772
      %v1789 = vpack.c.b16 %v1775, %v1774
      %v1790 = vpack.c.b16 %v1777, %v1776
      %v1791 = vpack.c.b16 %v1779, %v1778
      %v1792 = vpack.c.b16 %v1781, %v1780
      %v1793 = vpack.c.b16 %v1783, %v1782
      %v1794 = vpack.c.b16 %v1785, %v1784
      %v1795 = vpack.c.b16 %v1787, %v1786
      %1804 = vmatprep.subr.bf16.mxu0 0
      %1805 = vmatpush1.bf16.msra.mxu0 %v1795
      %1806 = vmatprep.subr.bf16.mxu0 0
      %1807 = vmatpush1.bf16.msra.mxu0 %v1794
      %1808 = vmatprep.subr.bf16.mxu0 0
      %1809 = vmatpush1.bf16.msra.mxu0 %v1793
      %1810 = vmatprep.subr.bf16.mxu0 0
      %1811 = vmatpush1.bf16.msra.mxu0 %v1792
      %1812 = vmatprep.subr.bf16.mxu0 0
      %1813 = vmatpush1.bf16.msra.mxu0 %v1791
      %1814 = vmatprep.subr.bf16.mxu0 0
      %1815 = vmatpush1.bf16.msra.mxu0 %v1790
      %1816 = vmatprep.subr.bf16.mxu0 0
      %1817 = vmatpush1.bf16.msra.mxu0 %v1789
      %1818 = vmatprep.subr.bf16.mxu0 0
      %1819 = vmatpush1.bf16.msra.mxu0 %v1788
      %1820 = vmatprep.subr.bf16.mxu0 0
      %1821 = vmatpush2.bf16.msra.mxu0 0
      %1822 = vmatprep.subr.bf16.mxu0 0
      %1823 = vmatpush2.bf16.msra.mxu0 0
      %1824 = vmatprep.subr.bf16.mxu0 0
      %1825 = vmatpush2.bf16.msra.mxu0 0
      %1826 = vmatprep.subr.bf16.mxu0 0
      %1827 = vmatpush2.bf16.msra.mxu0 0
      %1828 = vmatprep.subr.bf16.mxu0 0
      %1829 = vmatpush2.bf16.msra.mxu0 0
      %1830 = vmatprep.subr.bf16.mxu0 0
      %1831 = vmatpush2.bf16.msra.mxu0 0
      %1832 = vmatprep.subr.bf16.mxu0 0
      %1833 = vmatpush2.bf16.msra.mxu0 0
      %1834 = vmatprep.subr.bf16.mxu0 0
      %1835 = vmatpush2.bf16.msra.mxu0 0
      %1836 = vmatprep.mubr.bf16.mxu0 0
      %1837 = vmatmul.mubr.bf16.gmra.mxu0 %v1724
      %v1838 = vpop.f32.mrf.mxu0
      %v1839 = vadd.f32 0.0, %v1838
      %v1840 = vpop.f32.mrf.mxu0
      %v1841 = vpop.f32.mrf.mxu0
      %v1842 = vadd.f32 0.0, %v1841
      %v1843 = vpop.f32.mrf.mxu0
      %1844 = vmatprep.mubr.bf16.mxu0 0
      %1845 = vmatmul.mubr.bf16.gmra.mxu0 %v1725
      %v1846 = vpop.f32.mrf.mxu0
      %v1847 = vadd.f32 0.0, %v1846
      %v1848 = vpop.f32.mrf.mxu0
      %v1849 = vpop.f32.mrf.mxu0
      %v1850 = vadd.f32 0.0, %v1849
      %v1851 = vpop.f32.mrf.mxu0
      %1852 = vmatprep.mubr.bf16.mxu0 0
      %1853 = vmatmul.mubr.bf16.gmra.mxu0 %v1726
      %v1854 = vpop.f32.mrf.mxu0
      %v1855 = vadd.f32 0.0, %v1854
      %v1856 = vpop.f32.mrf.mxu0
      %v1857 = vpop.f32.mrf.mxu0
      %v1858 = vadd.f32 0.0, %v1857
      %v1859 = vpop.f32.mrf.mxu0
      %1860 = vmatprep.mubr.bf16.mxu0 0
      %1861 = vmatmul.mubr.bf16.gmra.mxu0 %v1727
      %v1862 = vpop.f32.mrf.mxu0
      %v1863 = vadd.f32 0.0, %v1862
      %v1864 = vpop.f32.mrf.mxu0
      %v1865 = vpop.f32.mrf.mxu0
      %v1866 = vadd.f32 0.0, %v1865
      %v1867 = vpop.f32.mrf.mxu0
      %1868 = vmatprep.mubr.bf16.mxu0 0
      %1869 = vmatmul.mubr.bf16.gmra.mxu0 %v1728
      %v1870 = vpop.f32.mrf.mxu0
      %v1871 = vadd.f32 0.0, %v1870
      %v1872 = vpop.f32.mrf.mxu0
      %v1873 = vpop.f32.mrf.mxu0
      %v1874 = vadd.f32 0.0, %v1873
      %v1875 = vpop.f32.mrf.mxu0
      %1876 = vmatprep.mubr.bf16.mxu0 0
      %1877 = vmatmul.mubr.bf16.gmra.mxu0 %v1729
      %v1878 = vpop.f32.mrf.mxu0
      %v1879 = vadd.f32 0.0, %v1878
      %v1880 = vpop.f32.mrf.mxu0
      %v1881 = vpop.f32.mrf.mxu0
      %v1882 = vadd.f32 0.0, %v1881
      %v1883 = vpop.f32.mrf.mxu0
      %1884 = vmatprep.mubr.bf16.mxu0 0
      %1885 = vmatmul.mubr.bf16.gmra.mxu0 %v1730
      %v1886 = vpop.f32.mrf.mxu0
      %v1887 = vadd.f32 0.0, %v1886
      %v1888 = vpop.f32.mrf.mxu0
      %v1889 = vpop.f32.mrf.mxu0
      %v1890 = vadd.f32 0.0, %v1889
      %v1891 = vpop.f32.mrf.mxu0
      %1892 = vmatprep.mubr.bf16.mxu0 0
      %1893 = vmatmul.mubr.bf16.gmra.mxu0 %v1731
      %v1894 = vpop.f32.mrf.mxu0
      %v1895 = vadd.f32 0.0, %v1894
      %v1896 = vpop.f32.mrf.mxu0
      %v1897 = vpop.f32.mrf.mxu0
      %v1898 = vadd.f32 0.0, %v1897
      %v1899 = vpop.f32.mrf.mxu0
      %1900 = vmatprep.mubr.bf16.mxu0 0
      %1901 = vmatmul.mubr.bf16.gmra.mxu0 %v1732
      %v1902 = vpop.f32.mrf.mxu0
      %v1903 = vadd.f32 0.0, %v1902
      %v1904 = vpop.f32.mrf.mxu0
      %v1905 = vpop.f32.mrf.mxu0
      %v1906 = vadd.f32 0.0, %v1905
      %v1907 = vpop.f32.mrf.mxu0
      %1908 = vmatprep.mubr.bf16.mxu0 0
      %1909 = vmatmul.mubr.bf16.gmra.mxu0 %v1733
      %v1910 = vpop.f32.mrf.mxu0
      %v1911 = vadd.f32 0.0, %v1910
      %v1912 = vpop.f32.mrf.mxu0
      %v1913 = vpop.f32.mrf.mxu0
      %v1914 = vadd.f32 0.0, %v1913
      %v1915 = vpop.f32.mrf.mxu0
      %1916 = vmatprep.mubr.bf16.mxu0 0
      %1917 = vmatmul.mubr.bf16.gmra.mxu0 %v1734
      %v1918 = vpop.f32.mrf.mxu0
      %v1919 = vadd.f32 0.0, %v1918
      %v1920 = vpop.f32.mrf.mxu0
      %v1921 = vpop.f32.mrf.mxu0
      %v1922 = vadd.f32 0.0, %v1921
      %v1923 = vpop.f32.mrf.mxu0
      %1924 = vmatprep.mubr.bf16.mxu0 0
      %1925 = vmatmul.mubr.bf16.gmra.mxu0 %v1735
      %v1926 = vpop.f32.mrf.mxu0
      %v1927 = vadd.f32 0.0, %v1926
      %v1928 = vpop.f32.mrf.mxu0
      %v1929 = vpop.f32.mrf.mxu0
      %v1930 = vadd.f32 0.0, %v1929
      %v1931 = vpop.f32.mrf.mxu0
      %1932 = vmatprep.mubr.bf16.mxu0 0
      %1933 = vmatmul.mubr.bf16.gmra.mxu0 %v1736
      %v1934 = vpop.f32.mrf.mxu0
      %v1935 = vadd.f32 0.0, %v1934
      %v1936 = vpop.f32.mrf.mxu0
      %v1937 = vpop.f32.mrf.mxu0
      %v1938 = vadd.f32 0.0, %v1937
      %v1939 = vpop.f32.mrf.mxu0
      %1940 = vmatprep.mubr.bf16.mxu0 0
      %1941 = vmatmul.mubr.bf16.gmra.mxu0 %v1737
      %v1942 = vpop.f32.mrf.mxu0
      %v1943 = vadd.f32 0.0, %v1942
      %v1944 = vpop.f32.mrf.mxu0
      %v1945 = vpop.f32.mrf.mxu0
      %v1946 = vadd.f32 0.0, %v1945
      %v1947 = vpop.f32.mrf.mxu0
      %1948 = vmatprep.mubr.bf16.mxu0 0
      %1949 = vmatmul.mubr.bf16.gmra.mxu0 %v1738
      %v1950 = vpop.f32.mrf.mxu0
      %v1951 = vadd.f32 0.0, %v1950
      %v1952 = vpop.f32.mrf.mxu0
      %v1953 = vpop.f32.mrf.mxu0
      %v1954 = vadd.f32 0.0, %v1953
      %v1955 = vpop.f32.mrf.mxu0
      %1956 = vmatprep.mubr.bf16.mxu0 0
      %1957 = vmatmul.mubr.bf16.gmra.mxu0 %v1739
      %v1958 = vpop.f32.mrf.mxu0
      %v1959 = vadd.f32 0.0, %v1958
      %v1960 = vpop.f32.mrf.mxu0
      %v1961 = vpop.f32.mrf.mxu0
      %v1962 = vadd.f32 0.0, %v1961
      %v1963 = vpop.f32.mrf.mxu0
      %1964 = vdwg.mxu0
      %v1965 = vadd.f32 %v1114, %v1839
      %v1966 = vadd.f32 %v1117, %v1842
      %v1967 = vadd.f32 %v1122, %v1847
      %v1968 = vadd.f32 %v1125, %v1850
      %v1969 = vadd.f32 %v1130, %v1855
      %v1970 = vadd.f32 %v1133, %v1858
      %v1971 = vadd.f32 %v1138, %v1863
      %v1972 = vadd.f32 %v1141, %v1866
      %v1973 = vadd.f32 %v1146, %v1871
      %v1974 = vadd.f32 %v1149, %v1874
      %v1975 = vadd.f32 %v1154, %v1879
      %v1976 = vadd.f32 %v1157, %v1882
      %v1977 = vadd.f32 %v1162, %v1887
      %v1978 = vadd.f32 %v1165, %v1890
      %v1979 = vadd.f32 %v1170, %v1895
      %v1980 = vadd.f32 %v1173, %v1898
      %v1981 = vadd.f32 %v1178, %v1903
      %v1982 = vadd.f32 %v1181, %v1906
      %v1983 = vadd.f32 %v1186, %v1911
      %v1984 = vadd.f32 %v1189, %v1914
      %v1985 = vadd.f32 %v1194, %v1919
      %v1986 = vadd.f32 %v1197, %v1922
      %v1987 = vadd.f32 %v1202, %v1927
      %v1988 = vadd.f32 %v1205, %v1930
      %v1989 = vadd.f32 %v1210, %v1935
      %v1990 = vadd.f32 %v1213, %v1938
      %v1991 = vadd.f32 %v1218, %v1943
      %v1992 = vadd.f32 %v1221, %v1946
      %v1993 = vadd.f32 %v1226, %v1951
      %v1994 = vadd.f32 %v1229, %v1954
      %v1995 = vadd.f32 %v1234, %v1959
      %v1996 = vadd.f32 %v1237, %v1962
      %s1997 = scalar_lea.vmem %s219, 16
      %v1998 = vld [vmem:[%s1997] sm:$0x8]
      %v1999 = vld [vmem:[%s1997 + $0x4] sm:$0xf]
      %v2000 = vld [vmem:[%s1997 + $0x8] sm:$0xf]
      %v2001 = vld [vmem:[%s1997 + $0x10] sm:$0x8]
      %v2002 = vld [vmem:[%s1997 + $0x14] sm:$0xf]
      %v2003 = vld [vmem:[%s1997 + $0x18] sm:$0xf]
      %v2004 = vld [vmem:[%s1997 + $0x20] sm:$0x8]
      %v2005 = vld [vmem:[%s1997 + $0x24] sm:$0xf]
      %v2006 = vld [vmem:[%s1997 + $0x28] sm:$0xf]
      %v2007 = vld [vmem:[%s1997 + $0x30] sm:$0x8]
      %v2008 = vld [vmem:[%s1997 + $0x34] sm:$0xf]
      %v2009 = vld [vmem:[%s1997 + $0x38] sm:$0xf]
      %v2010 = vld [vmem:[%s1997 + $0x40] sm:$0x8]
      %v2011 = vld [vmem:[%s1997 + $0x44] sm:$0xf]
      %v2012 = vld [vmem:[%s1997 + $0x48] sm:$0xf]
      %v2013 = vld [vmem:[%s1997 + $0x50] sm:$0x8]
      %v2014 = vld [vmem:[%s1997 + $0x54] sm:$0xf]
      %v2015 = vld [vmem:[%s1997 + $0x58] sm:$0xf]
      %v2016 = vld [vmem:[%s1997 + $0x60] sm:$0x8]
      %v2017 = vld [vmem:[%s1997 + $0x64] sm:$0xf]
      %v2018 = vld [vmem:[%s1997 + $0x68] sm:$0xf]
      %v2019 = vld [vmem:[%s1997 + $0x70] sm:$0x8]
      %v2020 = vld [vmem:[%s1997 + $0x74] sm:$0xf]
      %v2021 = vld [vmem:[%s1997 + $0x78] sm:$0xf]
      %v2022 = vld [vmem:[%s1997 + $0x80] sm:$0x8]
      %v2023 = vld [vmem:[%s1997 + $0x84] sm:$0xf]
      %v2024 = vld [vmem:[%s1997 + $0x88] sm:$0xf]
      %v2025 = vld [vmem:[%s1997 + $0x90] sm:$0x8]
      %v2026 = vld [vmem:[%s1997 + $0x94] sm:$0xf]
      %v2027 = vld [vmem:[%s1997 + $0x98] sm:$0xf]
      %v2028 = vld [vmem:[%s1997 + $0xa0] sm:$0x8]
      %v2029 = vld [vmem:[%s1997 + $0xa4] sm:$0xf]
      %v2030 = vld [vmem:[%s1997 + $0xa8] sm:$0xf]
      %v2031 = vld [vmem:[%s1997 + $0xb0] sm:$0x8]
      %v2032 = vld [vmem:[%s1997 + $0xb4] sm:$0xf]
      %v2033 = vld [vmem:[%s1997 + $0xb8] sm:$0xf]
      %v2034 = vld [vmem:[%s1997 + $0xc0] sm:$0x8]
      %v2035 = vld [vmem:[%s1997 + $0xc4] sm:$0xf]
      %v2036 = vld [vmem:[%s1997 + $0xc8] sm:$0xf]
      %v2037 = vld [vmem:[%s1997 + $0xd0] sm:$0x8]
      %v2038 = vld [vmem:[%s1997 + $0xd4] sm:$0xf]
      %v2039 = vld [vmem:[%s1997 + $0xd8] sm:$0xf]
      %v2040 = vld [vmem:[%s1997 + $0xe0] sm:$0x8]
      %v2041 = vld [vmem:[%s1997 + $0xe4] sm:$0xf]
      %v2042 = vld [vmem:[%s1997 + $0xe8] sm:$0xf]
      %v2043 = vld [vmem:[%s1997 + $0xf0] sm:$0x8]
      %v2044 = vld [vmem:[%s1997 + $0xf4] sm:$0xf]
      %v2045 = vld [vmem:[%s1997 + $0xf8] sm:$0xf]
      %v2047 = vshrl.u32 %v1998, 16
      %v2049 = vrot.slane %v2047, 7
      %v2050 = vrot.slane %v2049, 4
      %v2052 = vshrl.u32 %v1999, 16
      %v2054 = vrot.slane %v2052, 7
      %v2055 = vshll.u32 %v1999, 16
      %v2057 = vor.u32 %v2054, %v2055
      %v2058 = vsel %vm276, %v2050, %v2057
      %v2059 = vrot.slane %v2054, 4
      %v2061 = vshrl.u32 %v2000, 16
      %v2063 = vrot.slane %v2061, 7
      %v2064 = vshll.u32 %v2000, 16
      %v2066 = vor.u32 %v2063, %v2064
      %v2067 = vsel %vm276, %v2059, %v2066
      %v2069 = vshrl.u32 %v2001, 16
      %v2071 = vrot.slane %v2069, 7
      %v2072 = vrot.slane %v2071, 4
      %v2074 = vshrl.u32 %v2002, 16
      %v2076 = vrot.slane %v2074, 7
      %v2077 = vshll.u32 %v2002, 16
      %v2079 = vor.u32 %v2076, %v2077
      %v2080 = vsel %vm276, %v2072, %v2079
      %v2081 = vrot.slane %v2076, 4
      %v2083 = vshrl.u32 %v2003, 16
      %v2085 = vrot.slane %v2083, 7
      %v2086 = vshll.u32 %v2003, 16
      %v2088 = vor.u32 %v2085, %v2086
      %v2089 = vsel %vm276, %v2081, %v2088
      %v2091 = vshrl.u32 %v2004, 16
      %v2093 = vrot.slane %v2091, 7
      %v2094 = vrot.slane %v2093, 4
      %v2096 = vshrl.u32 %v2005, 16
      %v2098 = vrot.slane %v2096, 7
      %v2099 = vshll.u32 %v2005, 16
      %v2101 = vor.u32 %v2098, %v2099
      %v2102 = vsel %vm276, %v2094, %v2101
      %v2103 = vrot.slane %v2098, 4
      %v2105 = vshrl.u32 %v2006, 16
      %v2107 = vrot.slane %v2105, 7
      %v2108 = vshll.u32 %v2006, 16
      %v2110 = vor.u32 %v2107, %v2108
      %v2111 = vsel %vm276, %v2103, %v2110
      %v2113 = vshrl.u32 %v2007, 16
      %v2115 = vrot.slane %v2113, 7
      %v2116 = vrot.slane %v2115, 4
      %v2118 = vshrl.u32 %v2008, 16
      %v2120 = vrot.slane %v2118, 7
      %v2121 = vshll.u32 %v2008, 16
      %v2123 = vor.u32 %v2120, %v2121
      %v2124 = vsel %vm276, %v2116, %v2123
      %v2125 = vrot.slane %v2120, 4
      %v2127 = vshrl.u32 %v2009, 16
      %v2129 = vrot.slane %v2127, 7
      %v2130 = vshll.u32 %v2009, 16
      %v2132 = vor.u32 %v2129, %v2130
      %v2133 = vsel %vm276, %v2125, %v2132
      %v2135 = vshrl.u32 %v2010, 16
      %v2137 = vrot.slane %v2135, 7
      %v2138 = vrot.slane %v2137, 4
      %v2140 = vshrl.u32 %v2011, 16
      %v2142 = vrot.slane %v2140, 7
      %v2143 = vshll.u32 %v2011, 16
      %v2145 = vor.u32 %v2142, %v2143
      %v2146 = vsel %vm276, %v2138, %v2145
      %v2147 = vrot.slane %v2142, 4
      %v2149 = vshrl.u32 %v2012, 16
      %v2151 = vrot.slane %v2149, 7
      %v2152 = vshll.u32 %v2012, 16
      %v2154 = vor.u32 %v2151, %v2152
      %v2155 = vsel %vm276, %v2147, %v2154
      %v2157 = vshrl.u32 %v2013, 16
      %v2159 = vrot.slane %v2157, 7
      %v2160 = vrot.slane %v2159, 4
      %v2162 = vshrl.u32 %v2014, 16
      %v2164 = vrot.slane %v2162, 7
      %v2165 = vshll.u32 %v2014, 16
      %v2167 = vor.u32 %v2164, %v2165
      %v2168 = vsel %vm276, %v2160, %v2167
      %v2169 = vrot.slane %v2164, 4
      %v2171 = vshrl.u32 %v2015, 16
      %v2173 = vrot.slane %v2171, 7
      %v2174 = vshll.u32 %v2015, 16
      %v2176 = vor.u32 %v2173, %v2174
      %v2177 = vsel %vm276, %v2169, %v2176
      %v2179 = vshrl.u32 %v2016, 16
      %v2181 = vrot.slane %v2179, 7
      %v2182 = vrot.slane %v2181, 4
      %v2184 = vshrl.u32 %v2017, 16
      %v2186 = vrot.slane %v2184, 7
      %v2187 = vshll.u32 %v2017, 16
      %v2189 = vor.u32 %v2186, %v2187
      %v2190 = vsel %vm276, %v2182, %v2189
      %v2191 = vrot.slane %v2186, 4
      %v2193 = vshrl.u32 %v2018, 16
      %v2195 = vrot.slane %v2193, 7
      %v2196 = vshll.u32 %v2018, 16
      %v2198 = vor.u32 %v2195, %v2196
      %v2199 = vsel %vm276, %v2191, %v2198
      %v2201 = vshrl.u32 %v2019, 16
      %v2203 = vrot.slane %v2201, 7
      %v2204 = vrot.slane %v2203, 4
      %v2206 = vshrl.u32 %v2020, 16
      %v2208 = vrot.slane %v2206, 7
      %v2209 = vshll.u32 %v2020, 16
      %v2211 = vor.u32 %v2208, %v2209
      %v2212 = vsel %vm276, %v2204, %v2211
      %v2213 = vrot.slane %v2208, 4
      %v2215 = vshrl.u32 %v2021, 16
      %v2217 = vrot.slane %v2215, 7
      %v2218 = vshll.u32 %v2021, 16
      %v2220 = vor.u32 %v2217, %v2218
      %v2221 = vsel %vm276, %v2213, %v2220
      %v2223 = vshrl.u32 %v2022, 16
      %v2225 = vrot.slane %v2223, 7
      %v2226 = vrot.slane %v2225, 4
      %v2228 = vshrl.u32 %v2023, 16
      %v2230 = vrot.slane %v2228, 7
      %v2231 = vshll.u32 %v2023, 16
      %v2233 = vor.u32 %v2230, %v2231
      %v2234 = vsel %vm276, %v2226, %v2233
      %v2235 = vrot.slane %v2230, 4
      %v2237 = vshrl.u32 %v2024, 16
      %v2239 = vrot.slane %v2237, 7
      %v2240 = vshll.u32 %v2024, 16
      %v2242 = vor.u32 %v2239, %v2240
      %v2243 = vsel %vm276, %v2235, %v2242
      %v2245 = vshrl.u32 %v2025, 16
      %v2247 = vrot.slane %v2245, 7
      %v2248 = vrot.slane %v2247, 4
      %v2250 = vshrl.u32 %v2026, 16
      %v2252 = vrot.slane %v2250, 7
      %v2253 = vshll.u32 %v2026, 16
      %v2255 = vor.u32 %v2252, %v2253
      %v2256 = vsel %vm276, %v2248, %v2255
      %v2257 = vrot.slane %v2252, 4
      %v2259 = vshrl.u32 %v2027, 16
      %v2261 = vrot.slane %v2259, 7
      %v2262 = vshll.u32 %v2027, 16
      %v2264 = vor.u32 %v2261, %v2262
      %v2265 = vsel %vm276, %v2257, %v2264
      %v2267 = vshrl.u32 %v2028, 16
      %v2269 = vrot.slane %v2267, 7
      %v2270 = vrot.slane %v2269, 4
      %v2272 = vshrl.u32 %v2029, 16
      %v2274 = vrot.slane %v2272, 7
      %v2275 = vshll.u32 %v2029, 16
      %v2277 = vor.u32 %v2274, %v2275
      %v2278 = vsel %vm276, %v2270, %v2277
      %v2279 = vrot.slane %v2274, 4
      %v2281 = vshrl.u32 %v2030, 16
      %v2283 = vrot.slane %v2281, 7
      %v2284 = vshll.u32 %v2030, 16
      %v2286 = vor.u32 %v2283, %v2284
      %v2287 = vsel %vm276, %v2279, %v2286
      %v2289 = vshrl.u32 %v2031, 16
      %v2291 = vrot.slane %v2289, 7
      %v2292 = vrot.slane %v2291, 4
      %v2294 = vshrl.u32 %v2032, 16
      %v2296 = vrot.slane %v2294, 7
      %v2297 = vshll.u32 %v2032, 16
      %v2299 = vor.u32 %v2296, %v2297
      %v2300 = vsel %vm276, %v2292, %v2299
      %v2301 = vrot.slane %v2296, 4
      %v2303 = vshrl.u32 %v2033, 16
      %v2305 = vrot.slane %v2303, 7
      %v2306 = vshll.u32 %v2033, 16
      %v2308 = vor.u32 %v2305, %v2306
      %v2309 = vsel %vm276, %v2301, %v2308
      %v2311 = vshrl.u32 %v2034, 16
      %v2313 = vrot.slane %v2311, 7
      %v2314 = vrot.slane %v2313, 4
      %v2316 = vshrl.u32 %v2035, 16
      %v2318 = vrot.slane %v2316, 7
      %v2319 = vshll.u32 %v2035, 16
      %v2321 = vor.u32 %v2318, %v2319
      %v2322 = vsel %vm276, %v2314, %v2321
      %v2323 = vrot.slane %v2318, 4
      %v2325 = vshrl.u32 %v2036, 16
      %v2327 = vrot.slane %v2325, 7
      %v2328 = vshll.u32 %v2036, 16
      %v2330 = vor.u32 %v2327, %v2328
      %v2331 = vsel %vm276, %v2323, %v2330
      %v2333 = vshrl.u32 %v2037, 16
      %v2335 = vrot.slane %v2333, 7
      %v2336 = vrot.slane %v2335, 4
      %v2338 = vshrl.u32 %v2038, 16
      %v2340 = vrot.slane %v2338, 7
      %v2341 = vshll.u32 %v2038, 16
      %v2343 = vor.u32 %v2340, %v2341
      %v2344 = vsel %vm276, %v2336, %v2343
      %v2345 = vrot.slane %v2340, 4
      %v2347 = vshrl.u32 %v2039, 16
      %v2349 = vrot.slane %v2347, 7
      %v2350 = vshll.u32 %v2039, 16
      %v2352 = vor.u32 %v2349, %v2350
      %v2353 = vsel %vm276, %v2345, %v2352
      %v2355 = vshrl.u32 %v2040, 16
      %v2357 = vrot.slane %v2355, 7
      %v2358 = vrot.slane %v2357, 4
      %v2360 = vshrl.u32 %v2041, 16
      %v2362 = vrot.slane %v2360, 7
      %v2363 = vshll.u32 %v2041, 16
      %v2365 = vor.u32 %v2362, %v2363
      %v2366 = vsel %vm276, %v2358, %v2365
      %v2367 = vrot.slane %v2362, 4
      %v2369 = vshrl.u32 %v2042, 16
      %v2371 = vrot.slane %v2369, 7
      %v2372 = vshll.u32 %v2042, 16
      %v2374 = vor.u32 %v2371, %v2372
      %v2375 = vsel %vm276, %v2367, %v2374
      %v2377 = vshrl.u32 %v2043, 16
      %v2379 = vrot.slane %v2377, 7
      %v2380 = vrot.slane %v2379, 4
      %v2382 = vshrl.u32 %v2044, 16
      %v2384 = vrot.slane %v2382, 7
      %v2385 = vshll.u32 %v2044, 16
      %v2387 = vor.u32 %v2384, %v2385
      %v2388 = vsel %vm276, %v2380, %v2387
      %v2389 = vrot.slane %v2384, 4
      %v2391 = vshrl.u32 %v2045, 16
      %v2393 = vrot.slane %v2391, 7
      %v2394 = vshll.u32 %v2045, 16
      %v2396 = vor.u32 %v2393, %v2394
      %v2397 = vsel %vm276, %v2389, %v2396
      %s2398 = scalar_lea.vmem %s1, 192
      %v2399 = vld [vmem:[%s2398] sm:$0xf]
      %v2400 = vld [vmem:[%s2398 + $0x4] sm:$0xf]
      %v2401 = vld [vmem:[%s2398 + $0x8] sm:$0xf]
      %v2402 = vld [vmem:[%s2398 + $0xc] sm:$0xf]
      %v2403 = vld [vmem:[%s2398 + $0x10] sm:$0xf]
      %v2404 = vld [vmem:[%s2398 + $0x14] sm:$0xf]
      %v2405 = vld [vmem:[%s2398 + $0x18] sm:$0xf]
      %v2406 = vld [vmem:[%s2398 + $0x1c] sm:$0xf]
      %v2407 = vld [vmem:[%s2398 + $0x20] sm:$0xf]
      %v2408 = vld [vmem:[%s2398 + $0x24] sm:$0xf]
      %v2409 = vld [vmem:[%s2398 + $0x28] sm:$0xf]
      %v2410 = vld [vmem:[%s2398 + $0x2c] sm:$0xf]
      %v2411 = vld [vmem:[%s2398 + $0x30] sm:$0xf]
      %v2412 = vld [vmem:[%s2398 + $0x34] sm:$0xf]
      %v2413 = vld [vmem:[%s2398 + $0x38] sm:$0xf]
      %v2414 = vld [vmem:[%s2398 + $0x3c] sm:$0xf]
      %v2415 = vunpack.c.l.b16 %v2058
      %v2416 = vunpack.c.l.b16 %v2067
      %v2417 = vunpack.c.l.b16 %v2080
      %v2418 = vunpack.c.l.b16 %v2089
      %v2419 = vunpack.c.l.b16 %v2102
      %v2420 = vunpack.c.l.b16 %v2111
      %v2421 = vunpack.c.l.b16 %v2124
      %v2422 = vunpack.c.l.b16 %v2133
      %v2423 = vunpack.c.l.b16 %v2146
      %v2424 = vunpack.c.l.b16 %v2155
      %v2425 = vunpack.c.l.b16 %v2168
      %v2426 = vunpack.c.l.b16 %v2177
      %v2427 = vunpack.c.l.b16 %v2190
      %v2428 = vunpack.c.l.b16 %v2199
      %v2429 = vunpack.c.l.b16 %v2212
      %v2430 = vunpack.c.l.b16 %v2221
      %v2431 = vunpack.c.l.b16 %v2234
      %v2432 = vunpack.c.l.b16 %v2243
      %v2433 = vunpack.c.l.b16 %v2256
      %v2434 = vunpack.c.l.b16 %v2265
      %v2435 = vunpack.c.l.b16 %v2278
      %v2436 = vunpack.c.l.b16 %v2287
      %v2437 = vunpack.c.l.b16 %v2300
      %v2438 = vunpack.c.l.b16 %v2309
      %v2439 = vunpack.c.l.b16 %v2322
      %v2440 = vunpack.c.l.b16 %v2331
      %v2441 = vunpack.c.l.b16 %v2344
      %v2442 = vunpack.c.l.b16 %v2353
      %v2443 = vunpack.c.l.b16 %v2366
      %v2444 = vunpack.c.l.b16 %v2375
      %v2445 = vunpack.c.l.b16 %v2388
      %v2446 = vunpack.c.l.b16 %v2397
      %v2447 = vpack.c.b16 %v2416, %v2415
      %v2448 = vpack.c.b16 %v2418, %v2417
      %v2449 = vpack.c.b16 %v2420, %v2419
      %v2450 = vpack.c.b16 %v2422, %v2421
      %v2451 = vpack.c.b16 %v2424, %v2423
      %v2452 = vpack.c.b16 %v2426, %v2425
      %v2453 = vpack.c.b16 %v2428, %v2427
      %v2454 = vpack.c.b16 %v2430, %v2429
      %v2455 = vpack.c.b16 %v2432, %v2431
      %v2456 = vpack.c.b16 %v2434, %v2433
      %v2457 = vpack.c.b16 %v2436, %v2435
      %v2458 = vpack.c.b16 %v2438, %v2437
      %v2459 = vpack.c.b16 %v2440, %v2439
      %v2460 = vpack.c.b16 %v2442, %v2441
      %v2461 = vpack.c.b16 %v2444, %v2443
      %v2462 = vpack.c.b16 %v2446, %v2445
      %v2495 = vunpack.c.l.b16 %v2399
      %v2496 = vunpack.c.l.b16 %v2400
      %v2497 = vunpack.c.l.b16 %v2401
      %v2498 = vunpack.c.l.b16 %v2402
      %v2499 = vunpack.c.l.b16 %v2403
      %v2500 = vunpack.c.l.b16 %v2404
      %v2501 = vunpack.c.l.b16 %v2405
      %v2502 = vunpack.c.l.b16 %v2406
      %v2503 = vunpack.c.l.b16 %v2407
      %v2504 = vunpack.c.l.b16 %v2408
      %v2505 = vunpack.c.l.b16 %v2409
      %v2506 = vunpack.c.l.b16 %v2410
      %v2507 = vunpack.c.l.b16 %v2411
      %v2508 = vunpack.c.l.b16 %v2412
      %v2509 = vunpack.c.l.b16 %v2413
      %v2510 = vunpack.c.l.b16 %v2414
      %v2511 = vpack.c.b16 %v2496, %v2495
      %v2512 = vpack.c.b16 %v2498, %v2497
      %v2513 = vpack.c.b16 %v2500, %v2499
      %v2514 = vpack.c.b16 %v2502, %v2501
      %v2515 = vpack.c.b16 %v2504, %v2503
      %v2516 = vpack.c.b16 %v2506, %v2505
      %v2517 = vpack.c.b16 %v2508, %v2507
      %v2518 = vpack.c.b16 %v2510, %v2509
      %2527 = vmatprep.subr.bf16.mxu0 0
      %2528 = vmatpush1.bf16.msra.mxu0 %v2518
      %2529 = vmatprep.subr.bf16.mxu0 0
      %2530 = vmatpush1.bf16.msra.mxu0 %v2517
      %2531 = vmatprep.subr.bf16.mxu0 0
      %2532 = vmatpush1.bf16.msra.mxu0 %v2516
      %2533 = vmatprep.subr.bf16.mxu0 0
      %2534 = vmatpush1.bf16.msra.mxu0 %v2515
      %2535 = vmatprep.subr.bf16.mxu0 0
      %2536 = vmatpush1.bf16.msra.mxu0 %v2514
      %2537 = vmatprep.subr.bf16.mxu0 0
      %2538 = vmatpush1.bf16.msra.mxu0 %v2513
      %2539 = vmatprep.subr.bf16.mxu0 0
      %2540 = vmatpush1.bf16.msra.mxu0 %v2512
      %2541 = vmatprep.subr.bf16.mxu0 0
      %2542 = vmatpush1.bf16.msra.mxu0 %v2511
      %2543 = vmatprep.subr.bf16.mxu0 0
      %2544 = vmatpush2.bf16.msra.mxu0 0
      %2545 = vmatprep.subr.bf16.mxu0 0
      %2546 = vmatpush2.bf16.msra.mxu0 0
      %2547 = vmatprep.subr.bf16.mxu0 0
      %2548 = vmatpush2.bf16.msra.mxu0 0
      %2549 = vmatprep.subr.bf16.mxu0 0
      %2550 = vmatpush2.bf16.msra.mxu0 0
      %2551 = vmatprep.subr.bf16.mxu0 0
      %2552 = vmatpush2.bf16.msra.mxu0 0
      %2553 = vmatprep.subr.bf16.mxu0 0
      %2554 = vmatpush2.bf16.msra.mxu0 0
      %2555 = vmatprep.subr.bf16.mxu0 0
      %2556 = vmatpush2.bf16.msra.mxu0 0
      %2557 = vmatprep.subr.bf16.mxu0 0
      %2558 = vmatpush2.bf16.msra.mxu0 0
      %2559 = vmatprep.mubr.bf16.mxu0 0
      %2560 = vmatmul.mubr.bf16.gmra.mxu0 %v2447
      %v2561 = vpop.f32.mrf.mxu0
      %v2562 = vadd.f32 0.0, %v2561
      %v2563 = vpop.f32.mrf.mxu0
      %v2564 = vpop.f32.mrf.mxu0
      %v2565 = vadd.f32 0.0, %v2564
      %v2566 = vpop.f32.mrf.mxu0
      %2567 = vmatprep.mubr.bf16.mxu0 0
      %2568 = vmatmul.mubr.bf16.gmra.mxu0 %v2448
      %v2569 = vpop.f32.mrf.mxu0
      %v2570 = vadd.f32 0.0, %v2569
      %v2571 = vpop.f32.mrf.mxu0
      %v2572 = vpop.f32.mrf.mxu0
      %v2573 = vadd.f32 0.0, %v2572
      %v2574 = vpop.f32.mrf.mxu0
      %2575 = vmatprep.mubr.bf16.mxu0 0
      %2576 = vmatmul.mubr.bf16.gmra.mxu0 %v2449
      %v2577 = vpop.f32.mrf.mxu0
      %v2578 = vadd.f32 0.0, %v2577
      %v2579 = vpop.f32.mrf.mxu0
      %v2580 = vpop.f32.mrf.mxu0
      %v2581 = vadd.f32 0.0, %v2580
      %v2582 = vpop.f32.mrf.mxu0
      %2583 = vmatprep.mubr.bf16.mxu0 0
      %2584 = vmatmul.mubr.bf16.gmra.mxu0 %v2450
      %v2585 = vpop.f32.mrf.mxu0
      %v2586 = vadd.f32 0.0, %v2585
      %v2587 = vpop.f32.mrf.mxu0
      %v2588 = vpop.f32.mrf.mxu0
      %v2589 = vadd.f32 0.0, %v2588
      %v2590 = vpop.f32.mrf.mxu0
      %2591 = vmatprep.mubr.bf16.mxu0 0
      %2592 = vmatmul.mubr.bf16.gmra.mxu0 %v2451
      %v2593 = vpop.f32.mrf.mxu0
      %v2594 = vadd.f32 0.0, %v2593
      %v2595 = vpop.f32.mrf.mxu0
      %v2596 = vpop.f32.mrf.mxu0
      %v2597 = vadd.f32 0.0, %v2596
      %v2598 = vpop.f32.mrf.mxu0
      %2599 = vmatprep.mubr.bf16.mxu0 0
      %2600 = vmatmul.mubr.bf16.gmra.mxu0 %v2452
      %v2601 = vpop.f32.mrf.mxu0
      %v2602 = vadd.f32 0.0, %v2601
      %v2603 = vpop.f32.mrf.mxu0
      %v2604 = vpop.f32.mrf.mxu0
      %v2605 = vadd.f32 0.0, %v2604
      %v2606 = vpop.f32.mrf.mxu0
      %2607 = vmatprep.mubr.bf16.mxu0 0
      %2608 = vmatmul.mubr.bf16.gmra.mxu0 %v2453
      %v2609 = vpop.f32.mrf.mxu0
      %v2610 = vadd.f32 0.0, %v2609
      %v2611 = vpop.f32.mrf.mxu0
      %v2612 = vpop.f32.mrf.mxu0
      %v2613 = vadd.f32 0.0, %v2612
      %v2614 = vpop.f32.mrf.mxu0
      %2615 = vmatprep.mubr.bf16.mxu0 0
      %2616 = vmatmul.mubr.bf16.gmra.mxu0 %v2454
      %v2617 = vpop.f32.mrf.mxu0
      %v2618 = vadd.f32 0.0, %v2617
      %v2619 = vpop.f32.mrf.mxu0
      %v2620 = vpop.f32.mrf.mxu0
      %v2621 = vadd.f32 0.0, %v2620
      %v2622 = vpop.f32.mrf.mxu0
      %2623 = vmatprep.mubr.bf16.mxu0 0
      %2624 = vmatmul.mubr.bf16.gmra.mxu0 %v2455
      %v2625 = vpop.f32.mrf.mxu0
      %v2626 = vadd.f32 0.0, %v2625
      %v2627 = vpop.f32.mrf.mxu0
      %v2628 = vpop.f32.mrf.mxu0
      %v2629 = vadd.f32 0.0, %v2628
      %v2630 = vpop.f32.mrf.mxu0
      %2631 = vmatprep.mubr.bf16.mxu0 0
      %2632 = vmatmul.mubr.bf16.gmra.mxu0 %v2456
      %v2633 = vpop.f32.mrf.mxu0
      %v2634 = vadd.f32 0.0, %v2633
      %v2635 = vpop.f32.mrf.mxu0
      %v2636 = vpop.f32.mrf.mxu0
      %v2637 = vadd.f32 0.0, %v2636
      %v2638 = vpop.f32.mrf.mxu0
      %2639 = vmatprep.mubr.bf16.mxu0 0
      %2640 = vmatmul.mubr.bf16.gmra.mxu0 %v2457
      %v2641 = vpop.f32.mrf.mxu0
      %v2642 = vadd.f32 0.0, %v2641
      %v2643 = vpop.f32.mrf.mxu0
      %v2644 = vpop.f32.mrf.mxu0
      %v2645 = vadd.f32 0.0, %v2644
      %v2646 = vpop.f32.mrf.mxu0
      %2647 = vmatprep.mubr.bf16.mxu0 0
      %2648 = vmatmul.mubr.bf16.gmra.mxu0 %v2458
      %v2649 = vpop.f32.mrf.mxu0
      %v2650 = vadd.f32 0.0, %v2649
      %v2651 = vpop.f32.mrf.mxu0
      %v2652 = vpop.f32.mrf.mxu0
      %v2653 = vadd.f32 0.0, %v2652
      %v2654 = vpop.f32.mrf.mxu0
      %2655 = vmatprep.mubr.bf16.mxu0 0
      %2656 = vmatmul.mubr.bf16.gmra.mxu0 %v2459
      %v2657 = vpop.f32.mrf.mxu0
      %v2658 = vadd.f32 0.0, %v2657
      %v2659 = vpop.f32.mrf.mxu0
      %v2660 = vpop.f32.mrf.mxu0
      %v2661 = vadd.f32 0.0, %v2660
      %v2662 = vpop.f32.mrf.mxu0
      %2663 = vmatprep.mubr.bf16.mxu0 0
      %2664 = vmatmul.mubr.bf16.gmra.mxu0 %v2460
      %v2665 = vpop.f32.mrf.mxu0
      %v2666 = vadd.f32 0.0, %v2665
      %v2667 = vpop.f32.mrf.mxu0
      %v2668 = vpop.f32.mrf.mxu0
      %v2669 = vadd.f32 0.0, %v2668
      %v2670 = vpop.f32.mrf.mxu0
      %2671 = vmatprep.mubr.bf16.mxu0 0
      %2672 = vmatmul.mubr.bf16.gmra.mxu0 %v2461
      %v2673 = vpop.f32.mrf.mxu0
      %v2674 = vadd.f32 0.0, %v2673
      %v2675 = vpop.f32.mrf.mxu0
      %v2676 = vpop.f32.mrf.mxu0
      %v2677 = vadd.f32 0.0, %v2676
      %v2678 = vpop.f32.mrf.mxu0
      %2679 = vmatprep.mubr.bf16.mxu0 0
      %2680 = vmatmul.mubr.bf16.gmra.mxu0 %v2462
      %v2681 = vpop.f32.mrf.mxu0
      %v2682 = vadd.f32 0.0, %v2681
      %v2683 = vpop.f32.mrf.mxu0
      %v2684 = vpop.f32.mrf.mxu0
      %v2685 = vadd.f32 0.0, %v2684
      %v2686 = vpop.f32.mrf.mxu0
      %2687 = vdwg.mxu0
      %v2688 = vadd.f32 %v1965, %v2562
      %v2689 = vadd.f32 %v1966, %v2565
      %v2690 = vadd.f32 %v1967, %v2570
      %v2691 = vadd.f32 %v1968, %v2573
      %v2692 = vadd.f32 %v1969, %v2578
      %v2693 = vadd.f32 %v1970, %v2581
      %v2694 = vadd.f32 %v1971, %v2586
      %v2695 = vadd.f32 %v1972, %v2589
      %v2696 = vadd.f32 %v1973, %v2594
      %v2697 = vadd.f32 %v1974, %v2597
      %v2698 = vadd.f32 %v1975, %v2602
      %v2699 = vadd.f32 %v1976, %v2605
      %v2700 = vadd.f32 %v1977, %v2610
      %v2701 = vadd.f32 %v1978, %v2613
      %v2702 = vadd.f32 %v1979, %v2618
      %v2703 = vadd.f32 %v1980, %v2621
      %v2704 = vadd.f32 %v1981, %v2626
      %v2705 = vadd.f32 %v1982, %v2629
      %v2706 = vadd.f32 %v1983, %v2634
      %v2707 = vadd.f32 %v1984, %v2637
      %v2708 = vadd.f32 %v1985, %v2642
      %v2709 = vadd.f32 %v1986, %v2645
      %v2710 = vadd.f32 %v1987, %v2650
      %v2711 = vadd.f32 %v1988, %v2653
      %v2712 = vadd.f32 %v1989, %v2658
      %v2713 = vadd.f32 %v1990, %v2661
      %v2714 = vadd.f32 %v1991, %v2666
      %v2715 = vadd.f32 %v1992, %v2669
      %v2716 = vadd.f32 %v1993, %v2674
      %v2717 = vadd.f32 %v1994, %v2677
      %v2718 = vadd.f32 %v1995, %v2682
      %v2719 = vadd.f32 %v1996, %v2685
      %s2720 = scalar_lea.vmem %s1, 256
      %v2721 = vld [vmem:[%s2720] sm:$0xf]
      %v2722 = vld [vmem:[%s2720 + $0x4] sm:$0xf]
      %v2723 = vld [vmem:[%s2720 + $0x8] sm:$0xf]
      %v2724 = vld [vmem:[%s2720 + $0xc] sm:$0xf]
      %v2725 = vld [vmem:[%s2720 + $0x10] sm:$0xf]
      %v2726 = vld [vmem:[%s2720 + $0x14] sm:$0xf]
      %v2727 = vld [vmem:[%s2720 + $0x18] sm:$0xf]
      %v2728 = vld [vmem:[%s2720 + $0x1c] sm:$0xf]
      %v2729 = vld [vmem:[%s2720 + $0x20] sm:$0xf]
      %v2730 = vld [vmem:[%s2720 + $0x24] sm:$0xf]
      %v2731 = vld [vmem:[%s2720 + $0x28] sm:$0xf]
      %v2732 = vld [vmem:[%s2720 + $0x2c] sm:$0xf]
      %v2733 = vld [vmem:[%s2720 + $0x30] sm:$0xf]
      %v2734 = vld [vmem:[%s2720 + $0x34] sm:$0xf]
      %v2735 = vld [vmem:[%s2720 + $0x38] sm:$0xf]
      %v2736 = vld [vmem:[%s2720 + $0x3c] sm:$0xf]
      %v2769 = vunpack.c.l.b16 %v1999
      %v2770 = vunpack.c.l.b16 %v2000
      %v2771 = vunpack.c.l.b16 %v2002
      %v2772 = vunpack.c.l.b16 %v2003
      %v2773 = vunpack.c.l.b16 %v2005
      %v2774 = vunpack.c.l.b16 %v2006
      %v2775 = vunpack.c.l.b16 %v2008
      %v2776 = vunpack.c.l.b16 %v2009
      %v2777 = vunpack.c.l.b16 %v2011
      %v2778 = vunpack.c.l.b16 %v2012
      %v2779 = vunpack.c.l.b16 %v2014
      %v2780 = vunpack.c.l.b16 %v2015
      %v2781 = vunpack.c.l.b16 %v2017
      %v2782 = vunpack.c.l.b16 %v2018
      %v2783 = vunpack.c.l.b16 %v2020
      %v2784 = vunpack.c.l.b16 %v2021
      %v2785 = vunpack.c.l.b16 %v2023
      %v2786 = vunpack.c.l.b16 %v2024
      %v2787 = vunpack.c.l.b16 %v2026
      %v2788 = vunpack.c.l.b16 %v2027
      %v2789 = vunpack.c.l.b16 %v2029
      %v2790 = vunpack.c.l.b16 %v2030
      %v2791 = vunpack.c.l.b16 %v2032
      %v2792 = vunpack.c.l.b16 %v2033
      %v2793 = vunpack.c.l.b16 %v2035
      %v2794 = vunpack.c.l.b16 %v2036
      %v2795 = vunpack.c.l.b16 %v2038
      %v2796 = vunpack.c.l.b16 %v2039
      %v2797 = vunpack.c.l.b16 %v2041
      %v2798 = vunpack.c.l.b16 %v2042
      %v2799 = vunpack.c.l.b16 %v2044
      %v2800 = vunpack.c.l.b16 %v2045
      %v2801 = vpack.c.b16 %v2770, %v2769
      %v2802 = vpack.c.b16 %v2772, %v2771
      %v2803 = vpack.c.b16 %v2774, %v2773
      %v2804 = vpack.c.b16 %v2776, %v2775
      %v2805 = vpack.c.b16 %v2778, %v2777
      %v2806 = vpack.c.b16 %v2780, %v2779
      %v2807 = vpack.c.b16 %v2782, %v2781
      %v2808 = vpack.c.b16 %v2784, %v2783
      %v2809 = vpack.c.b16 %v2786, %v2785
      %v2810 = vpack.c.b16 %v2788, %v2787
      %v2811 = vpack.c.b16 %v2790, %v2789
      %v2812 = vpack.c.b16 %v2792, %v2791
      %v2813 = vpack.c.b16 %v2794, %v2793
      %v2814 = vpack.c.b16 %v2796, %v2795
      %v2815 = vpack.c.b16 %v2798, %v2797
      %v2816 = vpack.c.b16 %v2800, %v2799
      %v2849 = vunpack.c.l.b16 %v2721
      %v2850 = vunpack.c.l.b16 %v2722
      %v2851 = vunpack.c.l.b16 %v2723
      %v2852 = vunpack.c.l.b16 %v2724
      %v2853 = vunpack.c.l.b16 %v2725
      %v2854 = vunpack.c.l.b16 %v2726
      %v2855 = vunpack.c.l.b16 %v2727
      %v2856 = vunpack.c.l.b16 %v2728
      %v2857 = vunpack.c.l.b16 %v2729
      %v2858 = vunpack.c.l.b16 %v2730
      %v2859 = vunpack.c.l.b16 %v2731
      %v2860 = vunpack.c.l.b16 %v2732
      %v2861 = vunpack.c.l.b16 %v2733
      %v2862 = vunpack.c.l.b16 %v2734
      %v2863 = vunpack.c.l.b16 %v2735
      %v2864 = vunpack.c.l.b16 %v2736
      %v2865 = vpack.c.b16 %v2850, %v2849
      %v2866 = vpack.c.b16 %v2852, %v2851
      %v2867 = vpack.c.b16 %v2854, %v2853
      %v2868 = vpack.c.b16 %v2856, %v2855
      %v2869 = vpack.c.b16 %v2858, %v2857
      %v2870 = vpack.c.b16 %v2860, %v2859
      %v2871 = vpack.c.b16 %v2862, %v2861
      %v2872 = vpack.c.b16 %v2864, %v2863
      %2881 = vmatprep.subr.bf16.mxu0 0
      %2882 = vmatpush1.bf16.msra.mxu0 %v2872
      %2883 = vmatprep.subr.bf16.mxu0 0
      %2884 = vmatpush1.bf16.msra.mxu0 %v2871
      %2885 = vmatprep.subr.bf16.mxu0 0
      %2886 = vmatpush1.bf16.msra.mxu0 %v2870
      %2887 = vmatprep.subr.bf16.mxu0 0
      %2888 = vmatpush1.bf16.msra.mxu0 %v2869
      %2889 = vmatprep.subr.bf16.mxu0 0
      %2890 = vmatpush1.bf16.msra.mxu0 %v2868
      %2891 = vmatprep.subr.bf16.mxu0 0
      %2892 = vmatpush1.bf16.msra.mxu0 %v2867
      %2893 = vmatprep.subr.bf16.mxu0 0
      %2894 = vmatpush1.bf16.msra.mxu0 %v2866
      %2895 = vmatprep.subr.bf16.mxu0 0
      %2896 = vmatpush1.bf16.msra.mxu0 %v2865
      %2897 = vmatprep.subr.bf16.mxu0 0
      %2898 = vmatpush2.bf16.msra.mxu0 0
      %2899 = vmatprep.subr.bf16.mxu0 0
      %2900 = vmatpush2.bf16.msra.mxu0 0
      %2901 = vmatprep.subr.bf16.mxu0 0
      %2902 = vmatpush2.bf16.msra.mxu0 0
      %2903 = vmatprep.subr.bf16.mxu0 0
      %2904 = vmatpush2.bf16.msra.mxu0 0
      %2905 = vmatprep.subr.bf16.mxu0 0
      %2906 = vmatpush2.bf16.msra.mxu0 0
      %2907 = vmatprep.subr.bf16.mxu0 0
      %2908 = vmatpush2.bf16.msra.mxu0 0
      %2909 = vmatprep.subr.bf16.mxu0 0
      %2910 = vmatpush2.bf16.msra.mxu0 0
      %2911 = vmatprep.subr.bf16.mxu0 0
      %2912 = vmatpush2.bf16.msra.mxu0 0
      %2913 = vmatprep.mubr.bf16.mxu0 0
      %2914 = vmatmul.mubr.bf16.gmra.mxu0 %v2801
      %v2915 = vpop.f32.mrf.mxu0
      %v2916 = vadd.f32 0.0, %v2915
      %v2917 = vpop.f32.mrf.mxu0
      %v2918 = vpop.f32.mrf.mxu0
      %v2919 = vadd.f32 0.0, %v2918
      %v2920 = vpop.f32.mrf.mxu0
      %2921 = vmatprep.mubr.bf16.mxu0 0
      %2922 = vmatmul.mubr.bf16.gmra.mxu0 %v2802
      %v2923 = vpop.f32.mrf.mxu0
      %v2924 = vadd.f32 0.0, %v2923
      %v2925 = vpop.f32.mrf.mxu0
      %v2926 = vpop.f32.mrf.mxu0
      %v2927 = vadd.f32 0.0, %v2926
      %v2928 = vpop.f32.mrf.mxu0
      %2929 = vmatprep.mubr.bf16.mxu0 0
      %2930 = vmatmul.mubr.bf16.gmra.mxu0 %v2803
      %v2931 = vpop.f32.mrf.mxu0
      %v2932 = vadd.f32 0.0, %v2931
      %v2933 = vpop.f32.mrf.mxu0
      %v2934 = vpop.f32.mrf.mxu0
      %v2935 = vadd.f32 0.0, %v2934
      %v2936 = vpop.f32.mrf.mxu0
      %2937 = vmatprep.mubr.bf16.mxu0 0
      %2938 = vmatmul.mubr.bf16.gmra.mxu0 %v2804
      %v2939 = vpop.f32.mrf.mxu0
      %v2940 = vadd.f32 0.0, %v2939
      %v2941 = vpop.f32.mrf.mxu0
      %v2942 = vpop.f32.mrf.mxu0
      %v2943 = vadd.f32 0.0, %v2942
      %v2944 = vpop.f32.mrf.mxu0
      %2945 = vmatprep.mubr.bf16.mxu0 0
      %2946 = vmatmul.mubr.bf16.gmra.mxu0 %v2805
      %v2947 = vpop.f32.mrf.mxu0
      %v2948 = vadd.f32 0.0, %v2947
      %v2949 = vpop.f32.mrf.mxu0
      %v2950 = vpop.f32.mrf.mxu0
      %v2951 = vadd.f32 0.0, %v2950
      %v2952 = vpop.f32.mrf.mxu0
      %2953 = vmatprep.mubr.bf16.mxu0 0
      %2954 = vmatmul.mubr.bf16.gmra.mxu0 %v2806
      %v2955 = vpop.f32.mrf.mxu0
      %v2956 = vadd.f32 0.0, %v2955
      %v2957 = vpop.f32.mrf.mxu0
      %v2958 = vpop.f32.mrf.mxu0
      %v2959 = vadd.f32 0.0, %v2958
      %v2960 = vpop.f32.mrf.mxu0
      %2961 = vmatprep.mubr.bf16.mxu0 0
      %2962 = vmatmul.mubr.bf16.gmra.mxu0 %v2807
      %v2963 = vpop.f32.mrf.mxu0
      %v2964 = vadd.f32 0.0, %v2963
      %v2965 = vpop.f32.mrf.mxu0
      %v2966 = vpop.f32.mrf.mxu0
      %v2967 = vadd.f32 0.0, %v2966
      %v2968 = vpop.f32.mrf.mxu0
      %2969 = vmatprep.mubr.bf16.mxu0 0
      %2970 = vmatmul.mubr.bf16.gmra.mxu0 %v2808
      %v2971 = vpop.f32.mrf.mxu0
      %v2972 = vadd.f32 0.0, %v2971
      %v2973 = vpop.f32.mrf.mxu0
      %v2974 = vpop.f32.mrf.mxu0
      %v2975 = vadd.f32 0.0, %v2974
      %v2976 = vpop.f32.mrf.mxu0
      %2977 = vmatprep.mubr.bf16.mxu0 0
      %2978 = vmatmul.mubr.bf16.gmra.mxu0 %v2809
      %v2979 = vpop.f32.mrf.mxu0
      %v2980 = vadd.f32 0.0, %v2979
      %v2981 = vpop.f32.mrf.mxu0
      %v2982 = vpop.f32.mrf.mxu0
      %v2983 = vadd.f32 0.0, %v2982
      %v2984 = vpop.f32.mrf.mxu0
      %2985 = vmatprep.mubr.bf16.mxu0 0
      %2986 = vmatmul.mubr.bf16.gmra.mxu0 %v2810
      %v2987 = vpop.f32.mrf.mxu0
      %v2988 = vadd.f32 0.0, %v2987
      %v2989 = vpop.f32.mrf.mxu0
      %v2990 = vpop.f32.mrf.mxu0
      %v2991 = vadd.f32 0.0, %v2990
      %v2992 = vpop.f32.mrf.mxu0
      %2993 = vmatprep.mubr.bf16.mxu0 0
      %2994 = vmatmul.mubr.bf16.gmra.mxu0 %v2811
      %v2995 = vpop.f32.mrf.mxu0
      %v2996 = vadd.f32 0.0, %v2995
      %v2997 = vpop.f32.mrf.mxu0
      %v2998 = vpop.f32.mrf.mxu0
      %v2999 = vadd.f32 0.0, %v2998
      %v3000 = vpop.f32.mrf.mxu0
      %3001 = vmatprep.mubr.bf16.mxu0 0
      %3002 = vmatmul.mubr.bf16.gmra.mxu0 %v2812
      %v3003 = vpop.f32.mrf.mxu0
      %v3004 = vadd.f32 0.0, %v3003
      %v3005 = vpop.f32.mrf.mxu0
      %v3006 = vpop.f32.mrf.mxu0
      %v3007 = vadd.f32 0.0, %v3006
      %v3008 = vpop.f32.mrf.mxu0
      %3009 = vmatprep.mubr.bf16.mxu0 0
      %3010 = vmatmul.mubr.bf16.gmra.mxu0 %v2813
      %v3011 = vpop.f32.mrf.mxu0
      %v3012 = vadd.f32 0.0, %v3011
      %v3013 = vpop.f32.mrf.mxu0
      %v3014 = vpop.f32.mrf.mxu0
      %v3015 = vadd.f32 0.0, %v3014
      %v3016 = vpop.f32.mrf.mxu0
      %3017 = vmatprep.mubr.bf16.mxu0 0
      %3018 = vmatmul.mubr.bf16.gmra.mxu0 %v2814
      %v3019 = vpop.f32.mrf.mxu0
      %v3020 = vadd.f32 0.0, %v3019
      %v3021 = vpop.f32.mrf.mxu0
      %v3022 = vpop.f32.mrf.mxu0
      %v3023 = vadd.f32 0.0, %v3022
      %v3024 = vpop.f32.mrf.mxu0
      %3025 = vmatprep.mubr.bf16.mxu0 0
      %3026 = vmatmul.mubr.bf16.gmra.mxu0 %v2815
      %v3027 = vpop.f32.mrf.mxu0
      %v3028 = vadd.f32 0.0, %v3027
      %v3029 = vpop.f32.mrf.mxu0
      %v3030 = vpop.f32.mrf.mxu0
      %v3031 = vadd.f32 0.0, %v3030
      %v3032 = vpop.f32.mrf.mxu0
      %3033 = vmatprep.mubr.bf16.mxu0 0
      %3034 = vmatmul.mubr.bf16.gmra.mxu0 %v2816
      %v3035 = vpop.f32.mrf.mxu0
      %v3036 = vadd.f32 0.0, %v3035
      %v3037 = vpop.f32.mrf.mxu0
      %v3038 = vpop.f32.mrf.mxu0
      %v3039 = vadd.f32 0.0, %v3038
      %v3040 = vpop.f32.mrf.mxu0
      %3041 = vdwg.mxu0
      %v3042 = vadd.f32 %v2688, %v2916
      %v3043 = vadd.f32 %v2689, %v2919
      %v3044 = vadd.f32 %v2690, %v2924
      %v3045 = vadd.f32 %v2691, %v2927
      %v3046 = vadd.f32 %v2692, %v2932
      %v3047 = vadd.f32 %v2693, %v2935
      %v3048 = vadd.f32 %v2694, %v2940
      %v3049 = vadd.f32 %v2695, %v2943
      %v3050 = vadd.f32 %v2696, %v2948
      %v3051 = vadd.f32 %v2697, %v2951
      %v3052 = vadd.f32 %v2698, %v2956
      %v3053 = vadd.f32 %v2699, %v2959
      %v3054 = vadd.f32 %v2700, %v2964
      %v3055 = vadd.f32 %v2701, %v2967
      %v3056 = vadd.f32 %v2702, %v2972
      %v3057 = vadd.f32 %v2703, %v2975
      %v3058 = vadd.f32 %v2704, %v2980
      %v3059 = vadd.f32 %v2705, %v2983
      %v3060 = vadd.f32 %v2706, %v2988
      %v3061 = vadd.f32 %v2707, %v2991
      %v3062 = vadd.f32 %v2708, %v2996
      %v3063 = vadd.f32 %v2709, %v2999
      %v3064 = vadd.f32 %v2710, %v3004
      %v3065 = vadd.f32 %v2711, %v3007
      %v3066 = vadd.f32 %v2712, %v3012
      %v3067 = vadd.f32 %v2713, %v3015
      %v3068 = vadd.f32 %v2714, %v3020
      %v3069 = vadd.f32 %v2715, %v3023
      %v3070 = vadd.f32 %v2716, %v3028
      %v3071 = vadd.f32 %v2717, %v3031
      %v3072 = vadd.f32 %v2718, %v3036
      %v3073 = vadd.f32 %v2719, %v3039
      %v3074 = vld [vmem:[%s1997 + $0x4] sm:$0xf]
      %v3075 = vld [vmem:[%s1997 + $0x8] sm:$0xf]
      %v3076 = vld [vmem:[%s1997 + $0xc] sm:$0x1]
      %v3077 = vld [vmem:[%s1997 + $0x14] sm:$0xf]
      %v3078 = vld [vmem:[%s1997 + $0x18] sm:$0xf]
      %v3079 = vld [vmem:[%s1997 + $0x1c] sm:$0x1]
      %v3080 = vld [vmem:[%s1997 + $0x24] sm:$0xf]
      %v3081 = vld [vmem:[%s1997 + $0x28] sm:$0xf]
      %v3082 = vld [vmem:[%s1997 + $0x2c] sm:$0x1]
      %v3083 = vld [vmem:[%s1997 + $0x34] sm:$0xf]
      %v3084 = vld [vmem:[%s1997 + $0x38] sm:$0xf]
      %v3085 = vld [vmem:[%s1997 + $0x3c] sm:$0x1]
      %v3086 = vld [vmem:[%s1997 + $0x44] sm:$0xf]
      %v3087 = vld [vmem:[%s1997 + $0x48] sm:$0xf]
      %v3088 = vld [vmem:[%s1997 + $0x4c] sm:$0x1]
      %v3089 = vld [vmem:[%s1997 + $0x54] sm:$0xf]
      %v3090 = vld [vmem:[%s1997 + $0x58] sm:$0xf]
      %v3091 = vld [vmem:[%s1997 + $0x5c] sm:$0x1]
      %v3092 = vld [vmem:[%s1997 + $0x64] sm:$0xf]
      %v3093 = vld [vmem:[%s1997 + $0x68] sm:$0xf]
      %v3094 = vld [vmem:[%s1997 + $0x6c] sm:$0x1]
      %v3095 = vld [vmem:[%s1997 + $0x74] sm:$0xf]
      %v3096 = vld [vmem:[%s1997 + $0x78] sm:$0xf]
      %v3097 = vld [vmem:[%s1997 + $0x7c] sm:$0x1]
      %v3098 = vld [vmem:[%s1997 + $0x84] sm:$0xf]
      %v3099 = vld [vmem:[%s1997 + $0x88] sm:$0xf]
      %v3100 = vld [vmem:[%s1997 + $0x8c] sm:$0x1]
      %v3101 = vld [vmem:[%s1997 + $0x94] sm:$0xf]
      %v3102 = vld [vmem:[%s1997 + $0x98] sm:$0xf]
      %v3103 = vld [vmem:[%s1997 + $0x9c] sm:$0x1]
      %v3104 = vld [vmem:[%s1997 + $0xa4] sm:$0xf]
      %v3105 = vld [vmem:[%s1997 + $0xa8] sm:$0xf]
      %v3106 = vld [vmem:[%s1997 + $0xac] sm:$0x1]
      %v3107 = vld [vmem:[%s1997 + $0xb4] sm:$0xf]
      %v3108 = vld [vmem:[%s1997 + $0xb8] sm:$0xf]
      %v3109 = vld [vmem:[%s1997 + $0xbc] sm:$0x1]
      %v3110 = vld [vmem:[%s1997 + $0xc4] sm:$0xf]
      %v3111 = vld [vmem:[%s1997 + $0xc8] sm:$0xf]
      %v3112 = vld [vmem:[%s1997 + $0xcc] sm:$0x1]
      %v3113 = vld [vmem:[%s1997 + $0xd4] sm:$0xf]
      %v3114 = vld [vmem:[%s1997 + $0xd8] sm:$0xf]
      %v3115 = vld [vmem:[%s1997 + $0xdc] sm:$0x1]
      %v3116 = vld [vmem:[%s1997 + $0xe4] sm:$0xf]
      %v3117 = vld [vmem:[%s1997 + $0xe8] sm:$0xf]
      %v3118 = vld [vmem:[%s1997 + $0xec] sm:$0x1]
      %v3119 = vld [vmem:[%s1997 + $0xf4] sm:$0xf]
      %v3120 = vld [vmem:[%s1997 + $0xf8] sm:$0xf]
      %v3121 = vld [vmem:[%s1997 + $0xfc] sm:$0x1]
      %v3123 = vshrl.u32 %v3074, 16
      %v3125 = vrot.slane %v3123, 4
      %v3126 = vshll.u32 %v3074, 16
      %v3128 = vrot.slane %v3126, 5
      %v3129 = vor.u32 %v3125, %v3128
      %v3130 = vrot.slane %v3129, 4
      %v3132 = vshll.u32 %v3075, 16
      %v3134 = vrot.slane %v3132, 5
      %v3135 = vsel %vm1290, %v3130, %v3134
      %v3136 = vshrl.u32 %v3075, 16
      %v3138 = vrot.slane %v3136, 4
      %v3139 = vor.u32 %v3138, %v3134
      %v3140 = vrot.slane %v3139, 4
      %v3142 = vshll.u32 %v3076, 16
      %v3144 = vrot.slane %v3142, 5
      %v3145 = vsel %vm1290, %v3140, %v3144
      %v3147 = vshrl.u32 %v3077, 16
      %v3149 = vrot.slane %v3147, 4
      %v3150 = vshll.u32 %v3077, 16
      %v3152 = vrot.slane %v3150, 5
      %v3153 = vor.u32 %v3149, %v3152
      %v3154 = vrot.slane %v3153, 4
      %v3156 = vshll.u32 %v3078, 16
      %v3158 = vrot.slane %v3156, 5
      %v3159 = vsel %vm1290, %v3154, %v3158
      %v3160 = vshrl.u32 %v3078, 16
      %v3162 = vrot.slane %v3160, 4
      %v3163 = vor.u32 %v3162, %v3158
      %v3164 = vrot.slane %v3163, 4
      %v3166 = vshll.u32 %v3079, 16
      %v3168 = vrot.slane %v3166, 5
      %v3169 = vsel %vm1290, %v3164, %v3168
      %v3171 = vshrl.u32 %v3080, 16
      %v3173 = vrot.slane %v3171, 4
      %v3174 = vshll.u32 %v3080, 16
      %v3176 = vrot.slane %v3174, 5
      %v3177 = vor.u32 %v3173, %v3176
      %v3178 = vrot.slane %v3177, 4
      %v3180 = vshll.u32 %v3081, 16
      %v3182 = vrot.slane %v3180, 5
      %v3183 = vsel %vm1290, %v3178, %v3182
      %v3184 = vshrl.u32 %v3081, 16
      %v3186 = vrot.slane %v3184, 4
      %v3187 = vor.u32 %v3186, %v3182
      %v3188 = vrot.slane %v3187, 4
      %v3190 = vshll.u32 %v3082, 16
      %v3192 = vrot.slane %v3190, 5
      %v3193 = vsel %vm1290, %v3188, %v3192
      %v3195 = vshrl.u32 %v3083, 16
      %v3197 = vrot.slane %v3195, 4
      %v3198 = vshll.u32 %v3083, 16
      %v3200 = vrot.slane %v3198, 5
      %v3201 = vor.u32 %v3197, %v3200
      %v3202 = vrot.slane %v3201, 4
      %v3204 = vshll.u32 %v3084, 16
      %v3206 = vrot.slane %v3204, 5
      %v3207 = vsel %vm1290, %v3202, %v3206
      %v3208 = vshrl.u32 %v3084, 16
      %v3210 = vrot.slane %v3208, 4
      %v3211 = vor.u32 %v3210, %v3206
      %v3212 = vrot.slane %v3211, 4
      %v3214 = vshll.u32 %v3085, 16
      %v3216 = vrot.slane %v3214, 5
      %v3217 = vsel %vm1290, %v3212, %v3216
      %v3219 = vshrl.u32 %v3086, 16
      %v3221 = vrot.slane %v3219, 4
      %v3222 = vshll.u32 %v3086, 16
      %v3224 = vrot.slane %v3222, 5
      %v3225 = vor.u32 %v3221, %v3224
      %v3226 = vrot.slane %v3225, 4
      %v3228 = vshll.u32 %v3087, 16
      %v3230 = vrot.slane %v3228, 5
      %v3231 = vsel %vm1290, %v3226, %v3230
      %v3232 = vshrl.u32 %v3087, 16
      %v3234 = vrot.slane %v3232, 4
      %v3235 = vor.u32 %v3234, %v3230
      %v3236 = vrot.slane %v3235, 4
      %v3238 = vshll.u32 %v3088, 16
      %v3240 = vrot.slane %v3238, 5
      %v3241 = vsel %vm1290, %v3236, %v3240
      %v3243 = vshrl.u32 %v3089, 16
      %v3245 = vrot.slane %v3243, 4
      %v3246 = vshll.u32 %v3089, 16
      %v3248 = vrot.slane %v3246, 5
      %v3249 = vor.u32 %v3245, %v3248
      %v3250 = vrot.slane %v3249, 4
      %v3252 = vshll.u32 %v3090, 16
      %v3254 = vrot.slane %v3252, 5
      %v3255 = vsel %vm1290, %v3250, %v3254
      %v3256 = vshrl.u32 %v3090, 16
      %v3258 = vrot.slane %v3256, 4
      %v3259 = vor.u32 %v3258, %v3254
      %v3260 = vrot.slane %v3259, 4
      %v3262 = vshll.u32 %v3091, 16
      %v3264 = vrot.slane %v3262, 5
      %v3265 = vsel %vm1290, %v3260, %v3264
      %v3267 = vshrl.u32 %v3092, 16
      %v3269 = vrot.slane %v3267, 4
      %v3270 = vshll.u32 %v3092, 16
      %v3272 = vrot.slane %v3270, 5
      %v3273 = vor.u32 %v3269, %v3272
      %v3274 = vrot.slane %v3273, 4
      %v3276 = vshll.u32 %v3093, 16
      %v3278 = vrot.slane %v3276, 5
      %v3279 = vsel %vm1290, %v3274, %v3278
      %v3280 = vshrl.u32 %v3093, 16
      %v3282 = vrot.slane %v3280, 4
      %v3283 = vor.u32 %v3282, %v3278
      %v3284 = vrot.slane %v3283, 4
      %v3286 = vshll.u32 %v3094, 16
      %v3288 = vrot.slane %v3286, 5
      %v3289 = vsel %vm1290, %v3284, %v3288
      %v3291 = vshrl.u32 %v3095, 16
      %v3293 = vrot.slane %v3291, 4
      %v3294 = vshll.u32 %v3095, 16
      %v3296 = vrot.slane %v3294, 5
      %v3297 = vor.u32 %v3293, %v3296
      %v3298 = vrot.slane %v3297, 4
      %v3300 = vshll.u32 %v3096, 16
      %v3302 = vrot.slane %v3300, 5
      %v3303 = vsel %vm1290, %v3298, %v3302
      %v3304 = vshrl.u32 %v3096, 16
      %v3306 = vrot.slane %v3304, 4
      %v3307 = vor.u32 %v3306, %v3302
      %v3308 = vrot.slane %v3307, 4
      %v3310 = vshll.u32 %v3097, 16
      %v3312 = vrot.slane %v3310, 5
      %v3313 = vsel %vm1290, %v3308, %v3312
      %v3315 = vshrl.u32 %v3098, 16
      %v3317 = vrot.slane %v3315, 4
      %v3318 = vshll.u32 %v3098, 16
      %v3320 = vrot.slane %v3318, 5
      %v3321 = vor.u32 %v3317, %v3320
      %v3322 = vrot.slane %v3321, 4
      %v3324 = vshll.u32 %v3099, 16
      %v3326 = vrot.slane %v3324, 5
      %v3327 = vsel %vm1290, %v3322, %v3326
      %v3328 = vshrl.u32 %v3099, 16
      %v3330 = vrot.slane %v3328, 4
      %v3331 = vor.u32 %v3330, %v3326
      %v3332 = vrot.slane %v3331, 4
      %v3334 = vshll.u32 %v3100, 16
      %v3336 = vrot.slane %v3334, 5
      %v3337 = vsel %vm1290, %v3332, %v3336
      %v3339 = vshrl.u32 %v3101, 16
      %v3341 = vrot.slane %v3339, 4
      %v3342 = vshll.u32 %v3101, 16
      %v3344 = vrot.slane %v3342, 5
      %v3345 = vor.u32 %v3341, %v3344
      %v3346 = vrot.slane %v3345, 4
      %v3348 = vshll.u32 %v3102, 16
      %v3350 = vrot.slane %v3348, 5
      %v3351 = vsel %vm1290, %v3346, %v3350
      %v3352 = vshrl.u32 %v3102, 16
      %v3354 = vrot.slane %v3352, 4
      %v3355 = vor.u32 %v3354, %v3350
      %v3356 = vrot.slane %v3355, 4
      %v3358 = vshll.u32 %v3103, 16
      %v3360 = vrot.slane %v3358, 5
      %v3361 = vsel %vm1290, %v3356, %v3360
      %v3363 = vshrl.u32 %v3104, 16
      %v3365 = vrot.slane %v3363, 4
      %v3366 = vshll.u32 %v3104, 16
      %v3368 = vrot.slane %v3366, 5
      %v3369 = vor.u32 %v3365, %v3368
      %v3370 = vrot.slane %v3369, 4
      %v3372 = vshll.u32 %v3105, 16
      %v3374 = vrot.slane %v3372, 5
      %v3375 = vsel %vm1290, %v3370, %v3374
      %v3376 = vshrl.u32 %v3105, 16
      %v3378 = vrot.slane %v3376, 4
      %v3379 = vor.u32 %v3378, %v3374
      %v3380 = vrot.slane %v3379, 4
      %v3382 = vshll.u32 %v3106, 16
      %v3384 = vrot.slane %v3382, 5
      %v3385 = vsel %vm1290, %v3380, %v3384
      %v3387 = vshrl.u32 %v3107, 16
      %v3389 = vrot.slane %v3387, 4
      %v3390 = vshll.u32 %v3107, 16
      %v3392 = vrot.slane %v3390, 5
      %v3393 = vor.u32 %v3389, %v3392
      %v3394 = vrot.slane %v3393, 4
      %v3396 = vshll.u32 %v3108, 16
      %v3398 = vrot.slane %v3396, 5
      %v3399 = vsel %vm1290, %v3394, %v3398
      %v3400 = vshrl.u32 %v3108, 16
      %v3402 = vrot.slane %v3400, 4
      %v3403 = vor.u32 %v3402, %v3398
      %v3404 = vrot.slane %v3403, 4
      %v3406 = vshll.u32 %v3109, 16
      %v3408 = vrot.slane %v3406, 5
      %v3409 = vsel %vm1290, %v3404, %v3408
      %v3411 = vshrl.u32 %v3110, 16
      %v3413 = vrot.slane %v3411, 4
      %v3414 = vshll.u32 %v3110, 16
      %v3416 = vrot.slane %v3414, 5
      %v3417 = vor.u32 %v3413, %v3416
      %v3418 = vrot.slane %v3417, 4
      %v3420 = vshll.u32 %v3111, 16
      %v3422 = vrot.slane %v3420, 5
      %v3423 = vsel %vm1290, %v3418, %v3422
      %v3424 = vshrl.u32 %v3111, 16
      %v3426 = vrot.slane %v3424, 4
      %v3427 = vor.u32 %v3426, %v3422
      %v3428 = vrot.slane %v3427, 4
      %v3430 = vshll.u32 %v3112, 16
      %v3432 = vrot.slane %v3430, 5
      %v3433 = vsel %vm1290, %v3428, %v3432
      %v3435 = vshrl.u32 %v3113, 16
      %v3437 = vrot.slane %v3435, 4
      %v3438 = vshll.u32 %v3113, 16
      %v3440 = vrot.slane %v3438, 5
      %v3441 = vor.u32 %v3437, %v3440
      %v3442 = vrot.slane %v3441, 4
      %v3444 = vshll.u32 %v3114, 16
      %v3446 = vrot.slane %v3444, 5
      %v3447 = vsel %vm1290, %v3442, %v3446
      %v3448 = vshrl.u32 %v3114, 16
      %v3450 = vrot.slane %v3448, 4
      %v3451 = vor.u32 %v3450, %v3446
      %v3452 = vrot.slane %v3451, 4
      %v3454 = vshll.u32 %v3115, 16
      %v3456 = vrot.slane %v3454, 5
      %v3457 = vsel %vm1290, %v3452, %v3456
      %v3459 = vshrl.u32 %v3116, 16
      %v3461 = vrot.slane %v3459, 4
      %v3462 = vshll.u32 %v3116, 16
      %v3464 = vrot.slane %v3462, 5
      %v3465 = vor.u32 %v3461, %v3464
      %v3466 = vrot.slane %v3465, 4
      %v3468 = vshll.u32 %v3117, 16
      %v3470 = vrot.slane %v3468, 5
      %v3471 = vsel %vm1290, %v3466, %v3470
      %v3472 = vshrl.u32 %v3117, 16
      %v3474 = vrot.slane %v3472, 4
      %v3475 = vor.u32 %v3474, %v3470
      %v3476 = vrot.slane %v3475, 4
      %v3478 = vshll.u32 %v3118, 16
      %v3480 = vrot.slane %v3478, 5
      %v3481 = vsel %vm1290, %v3476, %v3480
      %v3483 = vshrl.u32 %v3119, 16
      %v3485 = vrot.slane %v3483, 4
      %v3486 = vshll.u32 %v3119, 16
      %v3488 = vrot.slane %v3486, 5
      %v3489 = vor.u32 %v3485, %v3488
      %v3490 = vrot.slane %v3489, 4
      %v3492 = vshll.u32 %v3120, 16
      %v3494 = vrot.slane %v3492, 5
      %v3495 = vsel %vm1290, %v3490, %v3494
      %v3496 = vshrl.u32 %v3120, 16
      %v3498 = vrot.slane %v3496, 4
      %v3499 = vor.u32 %v3498, %v3494
      %v3500 = vrot.slane %v3499, 4
      %v3502 = vshll.u32 %v3121, 16
      %v3504 = vrot.slane %v3502, 5
      %v3505 = vsel %vm1290, %v3500, %v3504
      %s3506 = scalar_lea.vmem %s1, 320
      %v3507 = vld [vmem:[%s3506] sm:$0xf]
      %v3508 = vld [vmem:[%s3506 + $0x4] sm:$0xf]
      %v3509 = vld [vmem:[%s3506 + $0x8] sm:$0xf]
      %v3510 = vld [vmem:[%s3506 + $0xc] sm:$0xf]
      %v3511 = vld [vmem:[%s3506 + $0x10] sm:$0xf]
      %v3512 = vld [vmem:[%s3506 + $0x14] sm:$0xf]
      %v3513 = vld [vmem:[%s3506 + $0x18] sm:$0xf]
      %v3514 = vld [vmem:[%s3506 + $0x1c] sm:$0xf]
      %v3515 = vld [vmem:[%s3506 + $0x20] sm:$0xf]
      %v3516 = vld [vmem:[%s3506 + $0x24] sm:$0xf]
      %v3517 = vld [vmem:[%s3506 + $0x28] sm:$0xf]
      %v3518 = vld [vmem:[%s3506 + $0x2c] sm:$0xf]
      %v3519 = vld [vmem:[%s3506 + $0x30] sm:$0xf]
      %v3520 = vld [vmem:[%s3506 + $0x34] sm:$0xf]
      %v3521 = vld [vmem:[%s3506 + $0x38] sm:$0xf]
      %v3522 = vld [vmem:[%s3506 + $0x3c] sm:$0xf]
      %v3523 = vunpack.c.l.b16 %v3135
      %v3524 = vunpack.c.l.b16 %v3145
      %v3525 = vunpack.c.l.b16 %v3159
      %v3526 = vunpack.c.l.b16 %v3169
      %v3527 = vunpack.c.l.b16 %v3183
      %v3528 = vunpack.c.l.b16 %v3193
      %v3529 = vunpack.c.l.b16 %v3207
      %v3530 = vunpack.c.l.b16 %v3217
      %v3531 = vunpack.c.l.b16 %v3231
      %v3532 = vunpack.c.l.b16 %v3241
      %v3533 = vunpack.c.l.b16 %v3255
      %v3534 = vunpack.c.l.b16 %v3265
      %v3535 = vunpack.c.l.b16 %v3279
      %v3536 = vunpack.c.l.b16 %v3289
      %v3537 = vunpack.c.l.b16 %v3303
      %v3538 = vunpack.c.l.b16 %v3313
      %v3539 = vunpack.c.l.b16 %v3327
      %v3540 = vunpack.c.l.b16 %v3337
      %v3541 = vunpack.c.l.b16 %v3351
      %v3542 = vunpack.c.l.b16 %v3361
      %v3543 = vunpack.c.l.b16 %v3375
      %v3544 = vunpack.c.l.b16 %v3385
      %v3545 = vunpack.c.l.b16 %v3399
      %v3546 = vunpack.c.l.b16 %v3409
      %v3547 = vunpack.c.l.b16 %v3423
      %v3548 = vunpack.c.l.b16 %v3433
      %v3549 = vunpack.c.l.b16 %v3447
      %v3550 = vunpack.c.l.b16 %v3457
      %v3551 = vunpack.c.l.b16 %v3471
      %v3552 = vunpack.c.l.b16 %v3481
      %v3553 = vunpack.c.l.b16 %v3495
      %v3554 = vunpack.c.l.b16 %v3505
      %v3555 = vpack.c.b16 %v3524, %v3523
      %v3556 = vpack.c.b16 %v3526, %v3525
      %v3557 = vpack.c.b16 %v3528, %v3527
      %v3558 = vpack.c.b16 %v3530, %v3529
      %v3559 = vpack.c.b16 %v3532, %v3531
      %v3560 = vpack.c.b16 %v3534, %v3533
      %v3561 = vpack.c.b16 %v3536, %v3535
      %v3562 = vpack.c.b16 %v3538, %v3537
      %v3563 = vpack.c.b16 %v3540, %v3539
      %v3564 = vpack.c.b16 %v3542, %v3541
      %v3565 = vpack.c.b16 %v3544, %v3543
      %v3566 = vpack.c.b16 %v3546, %v3545
      %v3567 = vpack.c.b16 %v3548, %v3547
      %v3568 = vpack.c.b16 %v3550, %v3549
      %v3569 = vpack.c.b16 %v3552, %v3551
      %v3570 = vpack.c.b16 %v3554, %v3553
      %v3603 = vunpack.c.l.b16 %v3507
      %v3604 = vunpack.c.l.b16 %v3508
      %v3605 = vunpack.c.l.b16 %v3509
      %v3606 = vunpack.c.l.b16 %v3510
      %v3607 = vunpack.c.l.b16 %v3511
      %v3608 = vunpack.c.l.b16 %v3512
      %v3609 = vunpack.c.l.b16 %v3513
      %v3610 = vunpack.c.l.b16 %v3514
      %v3611 = vunpack.c.l.b16 %v3515
      %v3612 = vunpack.c.l.b16 %v3516
      %v3613 = vunpack.c.l.b16 %v3517
      %v3614 = vunpack.c.l.b16 %v3518
      %v3615 = vunpack.c.l.b16 %v3519
      %v3616 = vunpack.c.l.b16 %v3520
      %v3617 = vunpack.c.l.b16 %v3521
      %v3618 = vunpack.c.l.b16 %v3522
      %v3619 = vpack.c.b16 %v3604, %v3603
      %v3620 = vpack.c.b16 %v3606, %v3605
      %v3621 = vpack.c.b16 %v3608, %v3607
      %v3622 = vpack.c.b16 %v3610, %v3609
      %v3623 = vpack.c.b16 %v3612, %v3611
      %v3624 = vpack.c.b16 %v3614, %v3613
      %v3625 = vpack.c.b16 %v3616, %v3615
      %v3626 = vpack.c.b16 %v3618, %v3617
      %3635 = vmatprep.subr.bf16.mxu0 0
      %3636 = vmatpush1.bf16.msra.mxu0 %v3626
      %3637 = vmatprep.subr.bf16.mxu0 0
      %3638 = vmatpush1.bf16.msra.mxu0 %v3625
      %3639 = vmatprep.subr.bf16.mxu0 0
      %3640 = vmatpush1.bf16.msra.mxu0 %v3624
      %3641 = vmatprep.subr.bf16.mxu0 0
      %3642 = vmatpush1.bf16.msra.mxu0 %v3623
      %3643 = vmatprep.subr.bf16.mxu0 0
      %3644 = vmatpush1.bf16.msra.mxu0 %v3622
      %3645 = vmatprep.subr.bf16.mxu0 0
      %3646 = vmatpush1.bf16.msra.mxu0 %v3621
      %3647 = vmatprep.subr.bf16.mxu0 0
      %3648 = vmatpush1.bf16.msra.mxu0 %v3620
      %3649 = vmatprep.subr.bf16.mxu0 0
      %3650 = vmatpush1.bf16.msra.mxu0 %v3619
      %3651 = vmatprep.subr.bf16.mxu0 0
      %3652 = vmatpush2.bf16.msra.mxu0 0
      %3653 = vmatprep.subr.bf16.mxu0 0
      %3654 = vmatpush2.bf16.msra.mxu0 0
      %3655 = vmatprep.subr.bf16.mxu0 0
      %3656 = vmatpush2.bf16.msra.mxu0 0
      %3657 = vmatprep.subr.bf16.mxu0 0
      %3658 = vmatpush2.bf16.msra.mxu0 0
      %3659 = vmatprep.subr.bf16.mxu0 0
      %3660 = vmatpush2.bf16.msra.mxu0 0
      %3661 = vmatprep.subr.bf16.mxu0 0
      %3662 = vmatpush2.bf16.msra.mxu0 0
      %3663 = vmatprep.subr.bf16.mxu0 0
      %3664 = vmatpush2.bf16.msra.mxu0 0
      %3665 = vmatprep.subr.bf16.mxu0 0
      %3666 = vmatpush2.bf16.msra.mxu0 0
      %3667 = vmatprep.mubr.bf16.mxu0 0
      %3668 = vmatmul.mubr.bf16.gmra.mxu0 %v3555
      %v3669 = vpop.f32.mrf.mxu0
      %v3670 = vadd.f32 0.0, %v3669
      %v3671 = vpop.f32.mrf.mxu0
      %v3672 = vpop.f32.mrf.mxu0
      %v3673 = vadd.f32 0.0, %v3672
      %v3674 = vpop.f32.mrf.mxu0
      %3675 = vmatprep.mubr.bf16.mxu0 0
      %3676 = vmatmul.mubr.bf16.gmra.mxu0 %v3556
      %v3677 = vpop.f32.mrf.mxu0
      %v3678 = vadd.f32 0.0, %v3677
      %v3679 = vpop.f32.mrf.mxu0
      %v3680 = vpop.f32.mrf.mxu0
      %v3681 = vadd.f32 0.0, %v3680
      %v3682 = vpop.f32.mrf.mxu0
      %3683 = vmatprep.mubr.bf16.mxu0 0
      %3684 = vmatmul.mubr.bf16.gmra.mxu0 %v3557
      %v3685 = vpop.f32.mrf.mxu0
      %v3686 = vadd.f32 0.0, %v3685
      %v3687 = vpop.f32.mrf.mxu0
      %v3688 = vpop.f32.mrf.mxu0
      %v3689 = vadd.f32 0.0, %v3688
      %v3690 = vpop.f32.mrf.mxu0
      %3691 = vmatprep.mubr.bf16.mxu0 0
      %3692 = vmatmul.mubr.bf16.gmra.mxu0 %v3558
      %v3693 = vpop.f32.mrf.mxu0
      %v3694 = vadd.f32 0.0, %v3693
      %v3695 = vpop.f32.mrf.mxu0
      %v3696 = vpop.f32.mrf.mxu0
      %v3697 = vadd.f32 0.0, %v3696
      %v3698 = vpop.f32.mrf.mxu0
      %3699 = vmatprep.mubr.bf16.mxu0 0
      %3700 = vmatmul.mubr.bf16.gmra.mxu0 %v3559
      %v3701 = vpop.f32.mrf.mxu0
      %v3702 = vadd.f32 0.0, %v3701
      %v3703 = vpop.f32.mrf.mxu0
      %v3704 = vpop.f32.mrf.mxu0
      %v3705 = vadd.f32 0.0, %v3704
      %v3706 = vpop.f32.mrf.mxu0
      %3707 = vmatprep.mubr.bf16.mxu0 0
      %3708 = vmatmul.mubr.bf16.gmra.mxu0 %v3560
      %v3709 = vpop.f32.mrf.mxu0
      %v3710 = vadd.f32 0.0, %v3709
      %v3711 = vpop.f32.mrf.mxu0
      %v3712 = vpop.f32.mrf.mxu0
      %v3713 = vadd.f32 0.0, %v3712
      %v3714 = vpop.f32.mrf.mxu0
      %3715 = vmatprep.mubr.bf16.mxu0 0
      %3716 = vmatmul.mubr.bf16.gmra.mxu0 %v3561
      %v3717 = vpop.f32.mrf.mxu0
      %v3718 = vadd.f32 0.0, %v3717
      %v3719 = vpop.f32.mrf.mxu0
      %v3720 = vpop.f32.mrf.mxu0
      %v3721 = vadd.f32 0.0, %v3720
      %v3722 = vpop.f32.mrf.mxu0
      %3723 = vmatprep.mubr.bf16.mxu0 0
      %3724 = vmatmul.mubr.bf16.gmra.mxu0 %v3562
      %v3725 = vpop.f32.mrf.mxu0
      %v3726 = vadd.f32 0.0, %v3725
      %v3727 = vpop.f32.mrf.mxu0
      %v3728 = vpop.f32.mrf.mxu0
      %v3729 = vadd.f32 0.0, %v3728
      %v3730 = vpop.f32.mrf.mxu0
      %3731 = vmatprep.mubr.bf16.mxu0 0
      %3732 = vmatmul.mubr.bf16.gmra.mxu0 %v3563
      %v3733 = vpop.f32.mrf.mxu0
      %v3734 = vadd.f32 0.0, %v3733
      %v3735 = vpop.f32.mrf.mxu0
      %v3736 = vpop.f32.mrf.mxu0
      %v3737 = vadd.f32 0.0, %v3736
      %v3738 = vpop.f32.mrf.mxu0
      %3739 = vmatprep.mubr.bf16.mxu0 0
      %3740 = vmatmul.mubr.bf16.gmra.mxu0 %v3564
      %v3741 = vpop.f32.mrf.mxu0
      %v3742 = vadd.f32 0.0, %v3741
      %v3743 = vpop.f32.mrf.mxu0
      %v3744 = vpop.f32.mrf.mxu0
      %v3745 = vadd.f32 0.0, %v3744
      %v3746 = vpop.f32.mrf.mxu0
      %3747 = vmatprep.mubr.bf16.mxu0 0
      %3748 = vmatmul.mubr.bf16.gmra.mxu0 %v3565
      %v3749 = vpop.f32.mrf.mxu0
      %v3750 = vadd.f32 0.0, %v3749
      %v3751 = vpop.f32.mrf.mxu0
      %v3752 = vpop.f32.mrf.mxu0
      %v3753 = vadd.f32 0.0, %v3752
      %v3754 = vpop.f32.mrf.mxu0
      %3755 = vmatprep.mubr.bf16.mxu0 0
      %3756 = vmatmul.mubr.bf16.gmra.mxu0 %v3566
      %v3757 = vpop.f32.mrf.mxu0
      %v3758 = vadd.f32 0.0, %v3757
      %v3759 = vpop.f32.mrf.mxu0
      %v3760 = vpop.f32.mrf.mxu0
      %v3761 = vadd.f32 0.0, %v3760
      %v3762 = vpop.f32.mrf.mxu0
      %3763 = vmatprep.mubr.bf16.mxu0 0
      %3764 = vmatmul.mubr.bf16.gmra.mxu0 %v3567
      %v3765 = vpop.f32.mrf.mxu0
      %v3766 = vadd.f32 0.0, %v3765
      %v3767 = vpop.f32.mrf.mxu0
      %v3768 = vpop.f32.mrf.mxu0
      %v3769 = vadd.f32 0.0, %v3768
      %v3770 = vpop.f32.mrf.mxu0
      %3771 = vmatprep.mubr.bf16.mxu0 0
      %3772 = vmatmul.mubr.bf16.gmra.mxu0 %v3568
      %v3773 = vpop.f32.mrf.mxu0
      %v3774 = vadd.f32 0.0, %v3773
      %v3775 = vpop.f32.mrf.mxu0
      %v3776 = vpop.f32.mrf.mxu0
      %v3777 = vadd.f32 0.0, %v3776
      %v3778 = vpop.f32.mrf.mxu0
      %3779 = vmatprep.mubr.bf16.mxu0 0
      %3780 = vmatmul.mubr.bf16.gmra.mxu0 %v3569
      %v3781 = vpop.f32.mrf.mxu0
      %v3782 = vadd.f32 0.0, %v3781
      %v3783 = vpop.f32.mrf.mxu0
      %v3784 = vpop.f32.mrf.mxu0
      %v3785 = vadd.f32 0.0, %v3784
      %v3786 = vpop.f32.mrf.mxu0
      %3787 = vmatprep.mubr.bf16.mxu0 0
      %3788 = vmatmul.mubr.bf16.gmra.mxu0 %v3570
      %v3789 = vpop.f32.mrf.mxu0
      %v3790 = vadd.f32 0.0, %v3789
      %v3791 = vpop.f32.mrf.mxu0
      %v3792 = vpop.f32.mrf.mxu0
      %v3793 = vadd.f32 0.0, %v3792
      %v3794 = vpop.f32.mrf.mxu0
      %3795 = vdwg.mxu0
      %v3796 = vadd.f32 %v3042, %v3670
      %v3797 = vadd.f32 %v3043, %v3673
      %v3798 = vadd.f32 %v3044, %v3678
      %v3799 = vadd.f32 %v3045, %v3681
      %v3800 = vadd.f32 %v3046, %v3686
      %v3801 = vadd.f32 %v3047, %v3689
      %v3802 = vadd.f32 %v3048, %v3694
      %v3803 = vadd.f32 %v3049, %v3697
      %v3804 = vadd.f32 %v3050, %v3702
      %v3805 = vadd.f32 %v3051, %v3705
      %v3806 = vadd.f32 %v3052, %v3710
      %v3807 = vadd.f32 %v3053, %v3713
      %v3808 = vadd.f32 %v3054, %v3718
      %v3809 = vadd.f32 %v3055, %v3721
      %v3810 = vadd.f32 %v3056, %v3726
      %v3811 = vadd.f32 %v3057, %v3729
      %v3812 = vadd.f32 %v3058, %v3734
      %v3813 = vadd.f32 %v3059, %v3737
      %v3814 = vadd.f32 %v3060, %v3742
      %v3815 = vadd.f32 %v3061, %v3745
      %v3816 = vadd.f32 %v3062, %v3750
      %v3817 = vadd.f32 %v3063, %v3753
      %v3818 = vadd.f32 %v3064, %v3758
      %v3819 = vadd.f32 %v3065, %v3761
      %v3820 = vadd.f32 %v3066, %v3766
      %v3821 = vadd.f32 %v3067, %v3769
      %v3822 = vadd.f32 %v3068, %v3774
      %v3823 = vadd.f32 %v3069, %v3777
      %v3824 = vadd.f32 %v3070, %v3782
      %v3825 = vadd.f32 %v3071, %v3785
      %v3826 = vadd.f32 %v3072, %v3790
      %v3827 = vadd.f32 %v3073, %v3793
      %s3828 = scalar_lea.vmem %s219, 32
      %v3829 = vld [vmem:[%s3828] sm:$0x8]
      %v3830 = vld [vmem:[%s3828 + $0x4] sm:$0xf]
      %v3831 = vld [vmem:[%s3828 + $0x8] sm:$0xf]
      %v3832 = vld [vmem:[%s3828 + $0x10] sm:$0x8]
      %v3833 = vld [vmem:[%s3828 + $0x14] sm:$0xf]
      %v3834 = vld [vmem:[%s3828 + $0x18] sm:$0xf]
      %v3835 = vld [vmem:[%s3828 + $0x20] sm:$0x8]
      %v3836 = vld [vmem:[%s3828 + $0x24] sm:$0xf]
      %v3837 = vld [vmem:[%s3828 + $0x28] sm:$0xf]
      %v3838 = vld [vmem:[%s3828 + $0x30] sm:$0x8]
      %v3839 = vld [vmem:[%s3828 + $0x34] sm:$0xf]
      %v3840 = vld [vmem:[%s3828 + $0x38] sm:$0xf]
      %v3841 = vld [vmem:[%s3828 + $0x40] sm:$0x8]
      %v3842 = vld [vmem:[%s3828 + $0x44] sm:$0xf]
      %v3843 = vld [vmem:[%s3828 + $0x48] sm:$0xf]
      %v3844 = vld [vmem:[%s3828 + $0x50] sm:$0x8]
      %v3845 = vld [vmem:[%s3828 + $0x54] sm:$0xf]
      %v3846 = vld [vmem:[%s3828 + $0x58] sm:$0xf]
      %v3847 = vld [vmem:[%s3828 + $0x60] sm:$0x8]
      %v3848 = vld [vmem:[%s3828 + $0x64] sm:$0xf]
      %v3849 = vld [vmem:[%s3828 + $0x68] sm:$0xf]
      %v3850 = vld [vmem:[%s3828 + $0x70] sm:$0x8]
      %v3851 = vld [vmem:[%s3828 + $0x74] sm:$0xf]
      %v3852 = vld [vmem:[%s3828 + $0x78] sm:$0xf]
      %v3853 = vld [vmem:[%s3828 + $0x80] sm:$0x8]
      %v3854 = vld [vmem:[%s3828 + $0x84] sm:$0xf]
      %v3855 = vld [vmem:[%s3828 + $0x88] sm:$0xf]
      %v3856 = vld [vmem:[%s3828 + $0x90] sm:$0x8]
      %v3857 = vld [vmem:[%s3828 + $0x94] sm:$0xf]
      %v3858 = vld [vmem:[%s3828 + $0x98] sm:$0xf]
      %v3859 = vld [vmem:[%s3828 + $0xa0] sm:$0x8]
      %v3860 = vld [vmem:[%s3828 + $0xa4] sm:$0xf]
      %v3861 = vld [vmem:[%s3828 + $0xa8] sm:$0xf]
      %v3862 = vld [vmem:[%s3828 + $0xb0] sm:$0x8]
      %v3863 = vld [vmem:[%s3828 + $0xb4] sm:$0xf]
      %v3864 = vld [vmem:[%s3828 + $0xb8] sm:$0xf]
      %v3865 = vld [vmem:[%s3828 + $0xc0] sm:$0x8]
      %v3866 = vld [vmem:[%s3828 + $0xc4] sm:$0xf]
      %v3867 = vld [vmem:[%s3828 + $0xc8] sm:$0xf]
      %v3868 = vld [vmem:[%s3828 + $0xd0] sm:$0x8]
      %v3869 = vld [vmem:[%s3828 + $0xd4] sm:$0xf]
      %v3870 = vld [vmem:[%s3828 + $0xd8] sm:$0xf]
      %v3871 = vld [vmem:[%s3828 + $0xe0] sm:$0x8]
      %v3872 = vld [vmem:[%s3828 + $0xe4] sm:$0xf]
      %v3873 = vld [vmem:[%s3828 + $0xe8] sm:$0xf]
      %v3874 = vld [vmem:[%s3828 + $0xf0] sm:$0x8]
      %v3875 = vld [vmem:[%s3828 + $0xf4] sm:$0xf]
      %v3876 = vld [vmem:[%s3828 + $0xf8] sm:$0xf]
      %v3878 = vshrl.u32 %v3829, 16
      %v3880 = vrot.slane %v3878, 7
      %v3881 = vrot.slane %v3880, 4
      %v3883 = vshrl.u32 %v3830, 16
      %v3885 = vrot.slane %v3883, 7
      %v3886 = vshll.u32 %v3830, 16
      %v3888 = vor.u32 %v3885, %v3886
      %v3889 = vsel %vm276, %v3881, %v3888
      %v3890 = vrot.slane %v3885, 4
      %v3892 = vshrl.u32 %v3831, 16
      %v3894 = vrot.slane %v3892, 7
      %v3895 = vshll.u32 %v3831, 16
      %v3897 = vor.u32 %v3894, %v3895
      %v3898 = vsel %vm276, %v3890, %v3897
      %v3900 = vshrl.u32 %v3832, 16
      %v3902 = vrot.slane %v3900, 7
      %v3903 = vrot.slane %v3902, 4
      %v3905 = vshrl.u32 %v3833, 16
      %v3907 = vrot.slane %v3905, 7
      %v3908 = vshll.u32 %v3833, 16
      %v3910 = vor.u32 %v3907, %v3908
      %v3911 = vsel %vm276, %v3903, %v3910
      %v3912 = vrot.slane %v3907, 4
      %v3914 = vshrl.u32 %v3834, 16
      %v3916 = vrot.slane %v3914, 7
      %v3917 = vshll.u32 %v3834, 16
      %v3919 = vor.u32 %v3916, %v3917
      %v3920 = vsel %vm276, %v3912, %v3919
      %v3922 = vshrl.u32 %v3835, 16
      %v3924 = vrot.slane %v3922, 7
      %v3925 = vrot.slane %v3924, 4
      %v3927 = vshrl.u32 %v3836, 16
      %v3929 = vrot.slane %v3927, 7
      %v3930 = vshll.u32 %v3836, 16
      %v3932 = vor.u32 %v3929, %v3930
      %v3933 = vsel %vm276, %v3925, %v3932
      %v3934 = vrot.slane %v3929, 4
      %v3936 = vshrl.u32 %v3837, 16
      %v3938 = vrot.slane %v3936, 7
      %v3939 = vshll.u32 %v3837, 16
      %v3941 = vor.u32 %v3938, %v3939
      %v3942 = vsel %vm276, %v3934, %v3941
      %v3944 = vshrl.u32 %v3838, 16
      %v3946 = vrot.slane %v3944, 7
      %v3947 = vrot.slane %v3946, 4
      %v3949 = vshrl.u32 %v3839, 16
      %v3951 = vrot.slane %v3949, 7
      %v3952 = vshll.u32 %v3839, 16
      %v3954 = vor.u32 %v3951, %v3952
      %v3955 = vsel %vm276, %v3947, %v3954
      %v3956 = vrot.slane %v3951, 4
      %v3958 = vshrl.u32 %v3840, 16
      %v3960 = vrot.slane %v3958, 7
      %v3961 = vshll.u32 %v3840, 16
      %v3963 = vor.u32 %v3960, %v3961
      %v3964 = vsel %vm276, %v3956, %v3963
      %v3966 = vshrl.u32 %v3841, 16
      %v3968 = vrot.slane %v3966, 7
      %v3969 = vrot.slane %v3968, 4
      %v3971 = vshrl.u32 %v3842, 16
      %v3973 = vrot.slane %v3971, 7
      %v3974 = vshll.u32 %v3842, 16
      %v3976 = vor.u32 %v3973, %v3974
      %v3977 = vsel %vm276, %v3969, %v3976
      %v3978 = vrot.slane %v3973, 4
      %v3980 = vshrl.u32 %v3843, 16
      %v3982 = vrot.slane %v3980, 7
      %v3983 = vshll.u32 %v3843, 16
      %v3985 = vor.u32 %v3982, %v3983
      %v3986 = vsel %vm276, %v3978, %v3985
      %v3988 = vshrl.u32 %v3844, 16
      %v3990 = vrot.slane %v3988, 7
      %v3991 = vrot.slane %v3990, 4
      %v3993 = vshrl.u32 %v3845, 16
      %v3995 = vrot.slane %v3993, 7
      %v3996 = vshll.u32 %v3845, 16
      %v3998 = vor.u32 %v3995, %v3996
      %v3999 = vsel %vm276, %v3991, %v3998
      %v4000 = vrot.slane %v3995, 4
      %v4002 = vshrl.u32 %v3846, 16
      %v4004 = vrot.slane %v4002, 7
      %v4005 = vshll.u32 %v3846, 16
      %v4007 = vor.u32 %v4004, %v4005
      %v4008 = vsel %vm276, %v4000, %v4007
      %v4010 = vshrl.u32 %v3847, 16
      %v4012 = vrot.slane %v4010, 7
      %v4013 = vrot.slane %v4012, 4
      %v4015 = vshrl.u32 %v3848, 16
      %v4017 = vrot.slane %v4015, 7
      %v4018 = vshll.u32 %v3848, 16
      %v4020 = vor.u32 %v4017, %v4018
      %v4021 = vsel %vm276, %v4013, %v4020
      %v4022 = vrot.slane %v4017, 4
      %v4024 = vshrl.u32 %v3849, 16
      %v4026 = vrot.slane %v4024, 7
      %v4027 = vshll.u32 %v3849, 16
      %v4029 = vor.u32 %v4026, %v4027
      %v4030 = vsel %vm276, %v4022, %v4029
      %v4032 = vshrl.u32 %v3850, 16
      %v4034 = vrot.slane %v4032, 7
      %v4035 = vrot.slane %v4034, 4
      %v4037 = vshrl.u32 %v3851, 16
      %v4039 = vrot.slane %v4037, 7
      %v4040 = vshll.u32 %v3851, 16
      %v4042 = vor.u32 %v4039, %v4040
      %v4043 = vsel %vm276, %v4035, %v4042
      %v4044 = vrot.slane %v4039, 4
      %v4046 = vshrl.u32 %v3852, 16
      %v4048 = vrot.slane %v4046, 7
      %v4049 = vshll.u32 %v3852, 16
      %v4051 = vor.u32 %v4048, %v4049
      %v4052 = vsel %vm276, %v4044, %v4051
      %v4054 = vshrl.u32 %v3853, 16
      %v4056 = vrot.slane %v4054, 7
      %v4057 = vrot.slane %v4056, 4
      %v4059 = vshrl.u32 %v3854, 16
      %v4061 = vrot.slane %v4059, 7
      %v4062 = vshll.u32 %v3854, 16
      %v4064 = vor.u32 %v4061, %v4062
      %v4065 = vsel %vm276, %v4057, %v4064
      %v4066 = vrot.slane %v4061, 4
      %v4068 = vshrl.u32 %v3855, 16
      %v4070 = vrot.slane %v4068, 7
      %v4071 = vshll.u32 %v3855, 16
      %v4073 = vor.u32 %v4070, %v4071
      %v4074 = vsel %vm276, %v4066, %v4073
      %v4076 = vshrl.u32 %v3856, 16
      %v4078 = vrot.slane %v4076, 7
      %v4079 = vrot.slane %v4078, 4
      %v4081 = vshrl.u32 %v3857, 16
      %v4083 = vrot.slane %v4081, 7
      %v4084 = vshll.u32 %v3857, 16
      %v4086 = vor.u32 %v4083, %v4084
      %v4087 = vsel %vm276, %v4079, %v4086
      %v4088 = vrot.slane %v4083, 4
      %v4090 = vshrl.u32 %v3858, 16
      %v4092 = vrot.slane %v4090, 7
      %v4093 = vshll.u32 %v3858, 16
      %v4095 = vor.u32 %v4092, %v4093
      %v4096 = vsel %vm276, %v4088, %v4095
      %v4098 = vshrl.u32 %v3859, 16
      %v4100 = vrot.slane %v4098, 7
      %v4101 = vrot.slane %v4100, 4
      %v4103 = vshrl.u32 %v3860, 16
      %v4105 = vrot.slane %v4103, 7
      %v4106 = vshll.u32 %v3860, 16
      %v4108 = vor.u32 %v4105, %v4106
      %v4109 = vsel %vm276, %v4101, %v4108
      %v4110 = vrot.slane %v4105, 4
      %v4112 = vshrl.u32 %v3861, 16
      %v4114 = vrot.slane %v4112, 7
      %v4115 = vshll.u32 %v3861, 16
      %v4117 = vor.u32 %v4114, %v4115
      %v4118 = vsel %vm276, %v4110, %v4117
      %v4120 = vshrl.u32 %v3862, 16
      %v4122 = vrot.slane %v4120, 7
      %v4123 = vrot.slane %v4122, 4
      %v4125 = vshrl.u32 %v3863, 16
      %v4127 = vrot.slane %v4125, 7
      %v4128 = vshll.u32 %v3863, 16
      %v4130 = vor.u32 %v4127, %v4128
      %v4131 = vsel %vm276, %v4123, %v4130
      %v4132 = vrot.slane %v4127, 4
      %v4134 = vshrl.u32 %v3864, 16
      %v4136 = vrot.slane %v4134, 7
      %v4137 = vshll.u32 %v3864, 16
      %v4139 = vor.u32 %v4136, %v4137
      %v4140 = vsel %vm276, %v4132, %v4139
      %v4142 = vshrl.u32 %v3865, 16
      %v4144 = vrot.slane %v4142, 7
      %v4145 = vrot.slane %v4144, 4
      %v4147 = vshrl.u32 %v3866, 16
      %v4149 = vrot.slane %v4147, 7
      %v4150 = vshll.u32 %v3866, 16
      %v4152 = vor.u32 %v4149, %v4150
      %v4153 = vsel %vm276, %v4145, %v4152
      %v4154 = vrot.slane %v4149, 4
      %v4156 = vshrl.u32 %v3867, 16
      %v4158 = vrot.slane %v4156, 7
      %v4159 = vshll.u32 %v3867, 16
      %v4161 = vor.u32 %v4158, %v4159
      %v4162 = vsel %vm276, %v4154, %v4161
      %v4164 = vshrl.u32 %v3868, 16
      %v4166 = vrot.slane %v4164, 7
      %v4167 = vrot.slane %v4166, 4
      %v4169 = vshrl.u32 %v3869, 16
      %v4171 = vrot.slane %v4169, 7
      %v4172 = vshll.u32 %v3869, 16
      %v4174 = vor.u32 %v4171, %v4172
      %v4175 = vsel %vm276, %v4167, %v4174
      %v4176 = vrot.slane %v4171, 4
      %v4178 = vshrl.u32 %v3870, 16
      %v4180 = vrot.slane %v4178, 7
      %v4181 = vshll.u32 %v3870, 16
      %v4183 = vor.u32 %v4180, %v4181
      %v4184 = vsel %vm276, %v4176, %v4183
      %v4186 = vshrl.u32 %v3871, 16
      %v4188 = vrot.slane %v4186, 7
      %v4189 = vrot.slane %v4188, 4
      %v4191 = vshrl.u32 %v3872, 16
      %v4193 = vrot.slane %v4191, 7
      %v4194 = vshll.u32 %v3872, 16
      %v4196 = vor.u32 %v4193, %v4194
      %v4197 = vsel %vm276, %v4189, %v4196
      %v4198 = vrot.slane %v4193, 4
      %v4200 = vshrl.u32 %v3873, 16
      %v4202 = vrot.slane %v4200, 7
      %v4203 = vshll.u32 %v3873, 16
      %v4205 = vor.u32 %v4202, %v4203
      %v4206 = vsel %vm276, %v4198, %v4205
      %v4208 = vshrl.u32 %v3874, 16
      %v4210 = vrot.slane %v4208, 7
      %v4211 = vrot.slane %v4210, 4
      %v4213 = vshrl.u32 %v3875, 16
      %v4215 = vrot.slane %v4213, 7
      %v4216 = vshll.u32 %v3875, 16
      %v4218 = vor.u32 %v4215, %v4216
      %v4219 = vsel %vm276, %v4211, %v4218
      %v4220 = vrot.slane %v4215, 4
      %v4222 = vshrl.u32 %v3876, 16
      %v4224 = vrot.slane %v4222, 7
      %v4225 = vshll.u32 %v3876, 16
      %v4227 = vor.u32 %v4224, %v4225
      %v4228 = vsel %vm276, %v4220, %v4227
      %s4229 = scalar_lea.vmem %s1, 384
      %v4230 = vld [vmem:[%s4229] sm:$0xf]
      %v4231 = vld [vmem:[%s4229 + $0x4] sm:$0xf]
      %v4232 = vld [vmem:[%s4229 + $0x8] sm:$0xf]
      %v4233 = vld [vmem:[%s4229 + $0xc] sm:$0xf]
      %v4234 = vld [vmem:[%s4229 + $0x10] sm:$0xf]
      %v4235 = vld [vmem:[%s4229 + $0x14] sm:$0xf]
      %v4236 = vld [vmem:[%s4229 + $0x18] sm:$0xf]
      %v4237 = vld [vmem:[%s4229 + $0x1c] sm:$0xf]
      %v4238 = vld [vmem:[%s4229 + $0x20] sm:$0xf]
      %v4239 = vld [vmem:[%s4229 + $0x24] sm:$0xf]
      %v4240 = vld [vmem:[%s4229 + $0x28] sm:$0xf]
      %v4241 = vld [vmem:[%s4229 + $0x2c] sm:$0xf]
      %v4242 = vld [vmem:[%s4229 + $0x30] sm:$0xf]
      %v4243 = vld [vmem:[%s4229 + $0x34] sm:$0xf]
      %v4244 = vld [vmem:[%s4229 + $0x38] sm:$0xf]
      %v4245 = vld [vmem:[%s4229 + $0x3c] sm:$0xf]
      %v4246 = vunpack.c.l.b16 %v3889
      %v4247 = vunpack.c.l.b16 %v3898
      %v4248 = vunpack.c.l.b16 %v3911
      %v4249 = vunpack.c.l.b16 %v3920
      %v4250 = vunpack.c.l.b16 %v3933
      %v4251 = vunpack.c.l.b16 %v3942
      %v4252 = vunpack.c.l.b16 %v3955
      %v4253 = vunpack.c.l.b16 %v3964
      %v4254 = vunpack.c.l.b16 %v3977
      %v4255 = vunpack.c.l.b16 %v3986
      %v4256 = vunpack.c.l.b16 %v3999
      %v4257 = vunpack.c.l.b16 %v4008
      %v4258 = vunpack.c.l.b16 %v4021
      %v4259 = vunpack.c.l.b16 %v4030
      %v4260 = vunpack.c.l.b16 %v4043
      %v4261 = vunpack.c.l.b16 %v4052
      %v4262 = vunpack.c.l.b16 %v4065
      %v4263 = vunpack.c.l.b16 %v4074
      %v4264 = vunpack.c.l.b16 %v4087
      %v4265 = vunpack.c.l.b16 %v4096
      %v4266 = vunpack.c.l.b16 %v4109
      %v4267 = vunpack.c.l.b16 %v4118
      %v4268 = vunpack.c.l.b16 %v4131
      %v4269 = vunpack.c.l.b16 %v4140
      %v4270 = vunpack.c.l.b16 %v4153
      %v4271 = vunpack.c.l.b16 %v4162
      %v4272 = vunpack.c.l.b16 %v4175
      %v4273 = vunpack.c.l.b16 %v4184
      %v4274 = vunpack.c.l.b16 %v4197
      %v4275 = vunpack.c.l.b16 %v4206
      %v4276 = vunpack.c.l.b16 %v4219
      %v4277 = vunpack.c.l.b16 %v4228
      %v4278 = vpack.c.b16 %v4247, %v4246
      %v4279 = vpack.c.b16 %v4249, %v4248
      %v4280 = vpack.c.b16 %v4251, %v4250
      %v4281 = vpack.c.b16 %v4253, %v4252
      %v4282 = vpack.c.b16 %v4255, %v4254
      %v4283 = vpack.c.b16 %v4257, %v4256
      %v4284 = vpack.c.b16 %v4259, %v4258
      %v4285 = vpack.c.b16 %v4261, %v4260
      %v4286 = vpack.c.b16 %v4263, %v4262
      %v4287 = vpack.c.b16 %v4265, %v4264
      %v4288 = vpack.c.b16 %v4267, %v4266
      %v4289 = vpack.c.b16 %v4269, %v4268
      %v4290 = vpack.c.b16 %v4271, %v4270
      %v4291 = vpack.c.b16 %v4273, %v4272
      %v4292 = vpack.c.b16 %v4275, %v4274
      %v4293 = vpack.c.b16 %v4277, %v4276
      %v4326 = vunpack.c.l.b16 %v4230
      %v4327 = vunpack.c.l.b16 %v4231
      %v4328 = vunpack.c.l.b16 %v4232
      %v4329 = vunpack.c.l.b16 %v4233
      %v4330 = vunpack.c.l.b16 %v4234
      %v4331 = vunpack.c.l.b16 %v4235
      %v4332 = vunpack.c.l.b16 %v4236
      %v4333 = vunpack.c.l.b16 %v4237
      %v4334 = vunpack.c.l.b16 %v4238
      %v4335 = vunpack.c.l.b16 %v4239
      %v4336 = vunpack.c.l.b16 %v4240
      %v4337 = vunpack.c.l.b16 %v4241
      %v4338 = vunpack.c.l.b16 %v4242
      %v4339 = vunpack.c.l.b16 %v4243
      %v4340 = vunpack.c.l.b16 %v4244
      %v4341 = vunpack.c.l.b16 %v4245
      %v4342 = vpack.c.b16 %v4327, %v4326
      %v4343 = vpack.c.b16 %v4329, %v4328
      %v4344 = vpack.c.b16 %v4331, %v4330
      %v4345 = vpack.c.b16 %v4333, %v4332
      %v4346 = vpack.c.b16 %v4335, %v4334
      %v4347 = vpack.c.b16 %v4337, %v4336
      %v4348 = vpack.c.b16 %v4339, %v4338
      %v4349 = vpack.c.b16 %v4341, %v4340
      %4358 = vmatprep.subr.bf16.mxu0 0
      %4359 = vmatpush1.bf16.msra.mxu0 %v4349
      %4360 = vmatprep.subr.bf16.mxu0 0
      %4361 = vmatpush1.bf16.msra.mxu0 %v4348
      %4362 = vmatprep.subr.bf16.mxu0 0
      %4363 = vmatpush1.bf16.msra.mxu0 %v4347
      %4364 = vmatprep.subr.bf16.mxu0 0
      %4365 = vmatpush1.bf16.msra.mxu0 %v4346
      %4366 = vmatprep.subr.bf16.mxu0 0
      %4367 = vmatpush1.bf16.msra.mxu0 %v4345
      %4368 = vmatprep.subr.bf16.mxu0 0
      %4369 = vmatpush1.bf16.msra.mxu0 %v4344
      %4370 = vmatprep.subr.bf16.mxu0 0
      %4371 = vmatpush1.bf16.msra.mxu0 %v4343
      %4372 = vmatprep.subr.bf16.mxu0 0
      %4373 = vmatpush1.bf16.msra.mxu0 %v4342
      %4374 = vmatprep.subr.bf16.mxu0 0
      %4375 = vmatpush2.bf16.msra.mxu0 0
      %4376 = vmatprep.subr.bf16.mxu0 0
      %4377 = vmatpush2.bf16.msra.mxu0 0
      %4378 = vmatprep.subr.bf16.mxu0 0
      %4379 = vmatpush2.bf16.msra.mxu0 0
      %4380 = vmatprep.subr.bf16.mxu0 0
      %4381 = vmatpush2.bf16.msra.mxu0 0
      %4382 = vmatprep.subr.bf16.mxu0 0
      %4383 = vmatpush2.bf16.msra.mxu0 0
      %4384 = vmatprep.subr.bf16.mxu0 0
      %4385 = vmatpush2.bf16.msra.mxu0 0
      %4386 = vmatprep.subr.bf16.mxu0 0
      %4387 = vmatpush2.bf16.msra.mxu0 0
      %4388 = vmatprep.subr.bf16.mxu0 0
      %4389 = vmatpush2.bf16.msra.mxu0 0
      %4390 = vmatprep.mubr.bf16.mxu0 0
      %4391 = vmatmul.mubr.bf16.gmra.mxu0 %v4278
      %v4392 = vpop.f32.mrf.mxu0
      %v4393 = vadd.f32 0.0, %v4392
      %v4394 = vpop.f32.mrf.mxu0
      %v4395 = vpop.f32.mrf.mxu0
      %v4396 = vadd.f32 0.0, %v4395
      %v4397 = vpop.f32.mrf.mxu0
      %4398 = vmatprep.mubr.bf16.mxu0 0
      %4399 = vmatmul.mubr.bf16.gmra.mxu0 %v4279
      %v4400 = vpop.f32.mrf.mxu0
      %v4401 = vadd.f32 0.0, %v4400
      %v4402 = vpop.f32.mrf.mxu0
      %v4403 = vpop.f32.mrf.mxu0
      %v4404 = vadd.f32 0.0, %v4403
      %v4405 = vpop.f32.mrf.mxu0
      %4406 = vmatprep.mubr.bf16.mxu0 0
      %4407 = vmatmul.mubr.bf16.gmra.mxu0 %v4280
      %v4408 = vpop.f32.mrf.mxu0
      %v4409 = vadd.f32 0.0, %v4408
      %v4410 = vpop.f32.mrf.mxu0
      %v4411 = vpop.f32.mrf.mxu0
      %v4412 = vadd.f32 0.0, %v4411
      %v4413 = vpop.f32.mrf.mxu0
      %4414 = vmatprep.mubr.bf16.mxu0 0
      %4415 = vmatmul.mubr.bf16.gmra.mxu0 %v4281
      %v4416 = vpop.f32.mrf.mxu0
      %v4417 = vadd.f32 0.0, %v4416
      %v4418 = vpop.f32.mrf.mxu0
      %v4419 = vpop.f32.mrf.mxu0
      %v4420 = vadd.f32 0.0, %v4419
      %v4421 = vpop.f32.mrf.mxu0
      %4422 = vmatprep.mubr.bf16.mxu0 0
      %4423 = vmatmul.mubr.bf16.gmra.mxu0 %v4282
      %v4424 = vpop.f32.mrf.mxu0
      %v4425 = vadd.f32 0.0, %v4424
      %v4426 = vpop.f32.mrf.mxu0
      %v4427 = vpop.f32.mrf.mxu0
      %v4428 = vadd.f32 0.0, %v4427
      %v4429 = vpop.f32.mrf.mxu0
      %4430 = vmatprep.mubr.bf16.mxu0 0
      %4431 = vmatmul.mubr.bf16.gmra.mxu0 %v4283
      %v4432 = vpop.f32.mrf.mxu0
      %v4433 = vadd.f32 0.0, %v4432
      %v4434 = vpop.f32.mrf.mxu0
      %v4435 = vpop.f32.mrf.mxu0
      %v4436 = vadd.f32 0.0, %v4435
      %v4437 = vpop.f32.mrf.mxu0
      %4438 = vmatprep.mubr.bf16.mxu0 0
      %4439 = vmatmul.mubr.bf16.gmra.mxu0 %v4284
      %v4440 = vpop.f32.mrf.mxu0
      %v4441 = vadd.f32 0.0, %v4440
      %v4442 = vpop.f32.mrf.mxu0
      %v4443 = vpop.f32.mrf.mxu0
      %v4444 = vadd.f32 0.0, %v4443
      %v4445 = vpop.f32.mrf.mxu0
      %4446 = vmatprep.mubr.bf16.mxu0 0
      %4447 = vmatmul.mubr.bf16.gmra.mxu0 %v4285
      %v4448 = vpop.f32.mrf.mxu0
      %v4449 = vadd.f32 0.0, %v4448
      %v4450 = vpop.f32.mrf.mxu0
      %v4451 = vpop.f32.mrf.mxu0
      %v4452 = vadd.f32 0.0, %v4451
      %v4453 = vpop.f32.mrf.mxu0
      %4454 = vmatprep.mubr.bf16.mxu0 0
      %4455 = vmatmul.mubr.bf16.gmra.mxu0 %v4286
      %v4456 = vpop.f32.mrf.mxu0
      %v4457 = vadd.f32 0.0, %v4456
      %v4458 = vpop.f32.mrf.mxu0
      %v4459 = vpop.f32.mrf.mxu0
      %v4460 = vadd.f32 0.0, %v4459
      %v4461 = vpop.f32.mrf.mxu0
      %4462 = vmatprep.mubr.bf16.mxu0 0
      %4463 = vmatmul.mubr.bf16.gmra.mxu0 %v4287
      %v4464 = vpop.f32.mrf.mxu0
      %v4465 = vadd.f32 0.0, %v4464
      %v4466 = vpop.f32.mrf.mxu0
      %v4467 = vpop.f32.mrf.mxu0
      %v4468 = vadd.f32 0.0, %v4467
      %v4469 = vpop.f32.mrf.mxu0
      %4470 = vmatprep.mubr.bf16.mxu0 0
      %4471 = vmatmul.mubr.bf16.gmra.mxu0 %v4288
      %v4472 = vpop.f32.mrf.mxu0
      %v4473 = vadd.f32 0.0, %v4472
      %v4474 = vpop.f32.mrf.mxu0
      %v4475 = vpop.f32.mrf.mxu0
      %v4476 = vadd.f32 0.0, %v4475
      %v4477 = vpop.f32.mrf.mxu0
      %4478 = vmatprep.mubr.bf16.mxu0 0
      %4479 = vmatmul.mubr.bf16.gmra.mxu0 %v4289
      %v4480 = vpop.f32.mrf.mxu0
      %v4481 = vadd.f32 0.0, %v4480
      %v4482 = vpop.f32.mrf.mxu0
      %v4483 = vpop.f32.mrf.mxu0
      %v4484 = vadd.f32 0.0, %v4483
      %v4485 = vpop.f32.mrf.mxu0
      %4486 = vmatprep.mubr.bf16.mxu0 0
      %4487 = vmatmul.mubr.bf16.gmra.mxu0 %v4290
      %v4488 = vpop.f32.mrf.mxu0
      %v4489 = vadd.f32 0.0, %v4488
      %v4490 = vpop.f32.mrf.mxu0
      %v4491 = vpop.f32.mrf.mxu0
      %v4492 = vadd.f32 0.0, %v4491
      %v4493 = vpop.f32.mrf.mxu0
      %4494 = vmatprep.mubr.bf16.mxu0 0
      %4495 = vmatmul.mubr.bf16.gmra.mxu0 %v4291
      %v4496 = vpop.f32.mrf.mxu0
      %v4497 = vadd.f32 0.0, %v4496
      %v4498 = vpop.f32.mrf.mxu0
      %v4499 = vpop.f32.mrf.mxu0
      %v4500 = vadd.f32 0.0, %v4499
      %v4501 = vpop.f32.mrf.mxu0
      %4502 = vmatprep.mubr.bf16.mxu0 0
      %4503 = vmatmul.mubr.bf16.gmra.mxu0 %v4292
      %v4504 = vpop.f32.mrf.mxu0
      %v4505 = vadd.f32 0.0, %v4504
      %v4506 = vpop.f32.mrf.mxu0
      %v4507 = vpop.f32.mrf.mxu0
      %v4508 = vadd.f32 0.0, %v4507
      %v4509 = vpop.f32.mrf.mxu0
      %4510 = vmatprep.mubr.bf16.mxu0 0
      %4511 = vmatmul.mubr.bf16.gmra.mxu0 %v4293
      %v4512 = vpop.f32.mrf.mxu0
      %v4513 = vadd.f32 0.0, %v4512
      %v4514 = vpop.f32.mrf.mxu0
      %v4515 = vpop.f32.mrf.mxu0
      %v4516 = vadd.f32 0.0, %v4515
      %v4517 = vpop.f32.mrf.mxu0
      %4518 = vdwg.mxu0
      %v4519 = vadd.f32 %v3796, %v4393
      %v4520 = vadd.f32 %v3797, %v4396
      %v4521 = vadd.f32 %v3798, %v4401
      %v4522 = vadd.f32 %v3799, %v4404
      %v4523 = vadd.f32 %v3800, %v4409
      %v4524 = vadd.f32 %v3801, %v4412
      %v4525 = vadd.f32 %v3802, %v4417
      %v4526 = vadd.f32 %v3803, %v4420
      %v4527 = vadd.f32 %v3804, %v4425
      %v4528 = vadd.f32 %v3805, %v4428
      %v4529 = vadd.f32 %v3806, %v4433
      %v4530 = vadd.f32 %v3807, %v4436
      %v4531 = vadd.f32 %v3808, %v4441
      %v4532 = vadd.f32 %v3809, %v4444
      %v4533 = vadd.f32 %v3810, %v4449
      %v4534 = vadd.f32 %v3811, %v4452
      %v4535 = vadd.f32 %v3812, %v4457
      %v4536 = vadd.f32 %v3813, %v4460
      %v4537 = vadd.f32 %v3814, %v4465
      %v4538 = vadd.f32 %v3815, %v4468
      %v4539 = vadd.f32 %v3816, %v4473
      %v4540 = vadd.f32 %v3817, %v4476
      %v4541 = vadd.f32 %v3818, %v4481
      %v4542 = vadd.f32 %v3819, %v4484
      %v4543 = vadd.f32 %v3820, %v4489
      %v4544 = vadd.f32 %v3821, %v4492
      %v4545 = vadd.f32 %v3822, %v4497
      %v4546 = vadd.f32 %v3823, %v4500
      %v4547 = vadd.f32 %v3824, %v4505
      %v4548 = vadd.f32 %v3825, %v4508
      %v4549 = vadd.f32 %v3826, %v4513
      %v4550 = vadd.f32 %v3827, %v4516
      %s4551 = scalar_lea.vmem %s1, 448
      %v4552 = vld [vmem:[%s4551] sm:$0xf]
      %v4553 = vld [vmem:[%s4551 + $0x4] sm:$0xf]
      %v4554 = vld [vmem:[%s4551 + $0x8] sm:$0xf]
      %v4555 = vld [vmem:[%s4551 + $0xc] sm:$0xf]
      %v4556 = vld [vmem:[%s4551 + $0x10] sm:$0xf]
      %v4557 = vld [vmem:[%s4551 + $0x14] sm:$0xf]
      %v4558 = vld [vmem:[%s4551 + $0x18] sm:$0xf]
      %v4559 = vld [vmem:[%s4551 + $0x1c] sm:$0xf]
      %v4560 = vld [vmem:[%s4551 + $0x20] sm:$0xf]
      %v4561 = vld [vmem:[%s4551 + $0x24] sm:$0xf]
      %v4562 = vld [vmem:[%s4551 + $0x28] sm:$0xf]
      %v4563 = vld [vmem:[%s4551 + $0x2c] sm:$0xf]
      %v4564 = vld [vmem:[%s4551 + $0x30] sm:$0xf]
      %v4565 = vld [vmem:[%s4551 + $0x34] sm:$0xf]
      %v4566 = vld [vmem:[%s4551 + $0x38] sm:$0xf]
      %v4567 = vld [vmem:[%s4551 + $0x3c] sm:$0xf]
      %v4600 = vunpack.c.l.b16 %v3830
      %v4601 = vunpack.c.l.b16 %v3831
      %v4602 = vunpack.c.l.b16 %v3833
      %v4603 = vunpack.c.l.b16 %v3834
      %v4604 = vunpack.c.l.b16 %v3836
      %v4605 = vunpack.c.l.b16 %v3837
      %v4606 = vunpack.c.l.b16 %v3839
      %v4607 = vunpack.c.l.b16 %v3840
      %v4608 = vunpack.c.l.b16 %v3842
      %v4609 = vunpack.c.l.b16 %v3843
      %v4610 = vunpack.c.l.b16 %v3845
      %v4611 = vunpack.c.l.b16 %v3846
      %v4612 = vunpack.c.l.b16 %v3848
      %v4613 = vunpack.c.l.b16 %v3849
      %v4614 = vunpack.c.l.b16 %v3851
      %v4615 = vunpack.c.l.b16 %v3852
      %v4616 = vunpack.c.l.b16 %v3854
      %v4617 = vunpack.c.l.b16 %v3855
      %v4618 = vunpack.c.l.b16 %v3857
      %v4619 = vunpack.c.l.b16 %v3858
      %v4620 = vunpack.c.l.b16 %v3860
      %v4621 = vunpack.c.l.b16 %v3861
      %v4622 = vunpack.c.l.b16 %v3863
      %v4623 = vunpack.c.l.b16 %v3864
      %v4624 = vunpack.c.l.b16 %v3866
      %v4625 = vunpack.c.l.b16 %v3867
      %v4626 = vunpack.c.l.b16 %v3869
      %v4627 = vunpack.c.l.b16 %v3870
      %v4628 = vunpack.c.l.b16 %v3872
      %v4629 = vunpack.c.l.b16 %v3873
      %v4630 = vunpack.c.l.b16 %v3875
      %v4631 = vunpack.c.l.b16 %v3876
      %v4632 = vpack.c.b16 %v4601, %v4600
      %v4633 = vpack.c.b16 %v4603, %v4602
      %v4634 = vpack.c.b16 %v4605, %v4604
      %v4635 = vpack.c.b16 %v4607, %v4606
      %v4636 = vpack.c.b16 %v4609, %v4608
      %v4637 = vpack.c.b16 %v4611, %v4610
      %v4638 = vpack.c.b16 %v4613, %v4612
      %v4639 = vpack.c.b16 %v4615, %v4614
      %v4640 = vpack.c.b16 %v4617, %v4616
      %v4641 = vpack.c.b16 %v4619, %v4618
      %v4642 = vpack.c.b16 %v4621, %v4620
      %v4643 = vpack.c.b16 %v4623, %v4622
      %v4644 = vpack.c.b16 %v4625, %v4624
      %v4645 = vpack.c.b16 %v4627, %v4626
      %v4646 = vpack.c.b16 %v4629, %v4628
      %v4647 = vpack.c.b16 %v4631, %v4630
      %v4680 = vunpack.c.l.b16 %v4552
      %v4681 = vunpack.c.l.b16 %v4553
      %v4682 = vunpack.c.l.b16 %v4554
      %v4683 = vunpack.c.l.b16 %v4555
      %v4684 = vunpack.c.l.b16 %v4556
      %v4685 = vunpack.c.l.b16 %v4557
      %v4686 = vunpack.c.l.b16 %v4558
      %v4687 = vunpack.c.l.b16 %v4559
      %v4688 = vunpack.c.l.b16 %v4560
      %v4689 = vunpack.c.l.b16 %v4561
      %v4690 = vunpack.c.l.b16 %v4562
      %v4691 = vunpack.c.l.b16 %v4563
      %v4692 = vunpack.c.l.b16 %v4564
      %v4693 = vunpack.c.l.b16 %v4565
      %v4694 = vunpack.c.l.b16 %v4566
      %v4695 = vunpack.c.l.b16 %v4567
      %v4696 = vpack.c.b16 %v4681, %v4680
      %v4697 = vpack.c.b16 %v4683, %v4682
      %v4698 = vpack.c.b16 %v4685, %v4684
      %v4699 = vpack.c.b16 %v4687, %v4686
      %v4700 = vpack.c.b16 %v4689, %v4688
      %v4701 = vpack.c.b16 %v4691, %v4690
      %v4702 = vpack.c.b16 %v4693, %v4692
      %v4703 = vpack.c.b16 %v4695, %v4694
      %4712 = vmatprep.subr.bf16.mxu0 0
      %4713 = vmatpush1.bf16.msra.mxu0 %v4703
      %4714 = vmatprep.subr.bf16.mxu0 0
      %4715 = vmatpush1.bf16.msra.mxu0 %v4702
      %4716 = vmatprep.subr.bf16.mxu0 0
      %4717 = vmatpush1.bf16.msra.mxu0 %v4701
      %4718 = vmatprep.subr.bf16.mxu0 0
      %4719 = vmatpush1.bf16.msra.mxu0 %v4700
      %4720 = vmatprep.subr.bf16.mxu0 0
      %4721 = vmatpush1.bf16.msra.mxu0 %v4699
      %4722 = vmatprep.subr.bf16.mxu0 0
      %4723 = vmatpush1.bf16.msra.mxu0 %v4698
      %4724 = vmatprep.subr.bf16.mxu0 0
      %4725 = vmatpush1.bf16.msra.mxu0 %v4697
      %4726 = vmatprep.subr.bf16.mxu0 0
      %4727 = vmatpush1.bf16.msra.mxu0 %v4696
      %4728 = vmatprep.subr.bf16.mxu0 0
      %4729 = vmatpush2.bf16.msra.mxu0 0
      %4730 = vmatprep.subr.bf16.mxu0 0
      %4731 = vmatpush2.bf16.msra.mxu0 0
      %4732 = vmatprep.subr.bf16.mxu0 0
      %4733 = vmatpush2.bf16.msra.mxu0 0
      %4734 = vmatprep.subr.bf16.mxu0 0
      %4735 = vmatpush2.bf16.msra.mxu0 0
      %4736 = vmatprep.subr.bf16.mxu0 0
      %4737 = vmatpush2.bf16.msra.mxu0 0
      %4738 = vmatprep.subr.bf16.mxu0 0
      %4739 = vmatpush2.bf16.msra.mxu0 0
      %4740 = vmatprep.subr.bf16.mxu0 0
      %4741 = vmatpush2.bf16.msra.mxu0 0
      %4742 = vmatprep.subr.bf16.mxu0 0
      %4743 = vmatpush2.bf16.msra.mxu0 0
      %4744 = vmatprep.mubr.bf16.mxu0 0
      %4745 = vmatmul.mubr.bf16.gmra.mxu0 %v4632
      %v4746 = vpop.f32.mrf.mxu0
      %v4747 = vadd.f32 0.0, %v4746
      %v4748 = vpop.f32.mrf.mxu0
      %v4749 = vpop.f32.mrf.mxu0
      %v4750 = vadd.f32 0.0, %v4749
      %v4751 = vpop.f32.mrf.mxu0
      %4752 = vmatprep.mubr.bf16.mxu0 0
      %4753 = vmatmul.mubr.bf16.gmra.mxu0 %v4633
      %v4754 = vpop.f32.mrf.mxu0
      %v4755 = vadd.f32 0.0, %v4754
      %v4756 = vpop.f32.mrf.mxu0
      %v4757 = vpop.f32.mrf.mxu0
      %v4758 = vadd.f32 0.0, %v4757
      %v4759 = vpop.f32.mrf.mxu0
      %4760 = vmatprep.mubr.bf16.mxu0 0
      %4761 = vmatmul.mubr.bf16.gmra.mxu0 %v4634
      %v4762 = vpop.f32.mrf.mxu0
      %v4763 = vadd.f32 0.0, %v4762
      %v4764 = vpop.f32.mrf.mxu0
      %v4765 = vpop.f32.mrf.mxu0
      %v4766 = vadd.f32 0.0, %v4765
      %v4767 = vpop.f32.mrf.mxu0
      %4768 = vmatprep.mubr.bf16.mxu0 0
      %4769 = vmatmul.mubr.bf16.gmra.mxu0 %v4635
      %v4770 = vpop.f32.mrf.mxu0
      %v4771 = vadd.f32 0.0, %v4770
      %v4772 = vpop.f32.mrf.mxu0
      %v4773 = vpop.f32.mrf.mxu0
      %v4774 = vadd.f32 0.0, %v4773
      %v4775 = vpop.f32.mrf.mxu0
      %4776 = vmatprep.mubr.bf16.mxu0 0
      %4777 = vmatmul.mubr.bf16.gmra.mxu0 %v4636
      %v4778 = vpop.f32.mrf.mxu0
      %v4779 = vadd.f32 0.0, %v4778
      %v4780 = vpop.f32.mrf.mxu0
      %v4781 = vpop.f32.mrf.mxu0
      %v4782 = vadd.f32 0.0, %v4781
      %v4783 = vpop.f32.mrf.mxu0
      %4784 = vmatprep.mubr.bf16.mxu0 0
      %4785 = vmatmul.mubr.bf16.gmra.mxu0 %v4637
      %v4786 = vpop.f32.mrf.mxu0
      %v4787 = vadd.f32 0.0, %v4786
      %v4788 = vpop.f32.mrf.mxu0
      %v4789 = vpop.f32.mrf.mxu0
      %v4790 = vadd.f32 0.0, %v4789
      %v4791 = vpop.f32.mrf.mxu0
      %4792 = vmatprep.mubr.bf16.mxu0 0
      %4793 = vmatmul.mubr.bf16.gmra.mxu0 %v4638
      %v4794 = vpop.f32.mrf.mxu0
      %v4795 = vadd.f32 0.0, %v4794
      %v4796 = vpop.f32.mrf.mxu0
      %v4797 = vpop.f32.mrf.mxu0
      %v4798 = vadd.f32 0.0, %v4797
      %v4799 = vpop.f32.mrf.mxu0
      %4800 = vmatprep.mubr.bf16.mxu0 0
      %4801 = vmatmul.mubr.bf16.gmra.mxu0 %v4639
      %v4802 = vpop.f32.mrf.mxu0
      %v4803 = vadd.f32 0.0, %v4802
      %v4804 = vpop.f32.mrf.mxu0
      %v4805 = vpop.f32.mrf.mxu0
      %v4806 = vadd.f32 0.0, %v4805
      %v4807 = vpop.f32.mrf.mxu0
      %4808 = vmatprep.mubr.bf16.mxu0 0
      %4809 = vmatmul.mubr.bf16.gmra.mxu0 %v4640
      %v4810 = vpop.f32.mrf.mxu0
      %v4811 = vadd.f32 0.0, %v4810
      %v4812 = vpop.f32.mrf.mxu0
      %v4813 = vpop.f32.mrf.mxu0
      %v4814 = vadd.f32 0.0, %v4813
      %v4815 = vpop.f32.mrf.mxu0
      %4816 = vmatprep.mubr.bf16.mxu0 0
      %4817 = vmatmul.mubr.bf16.gmra.mxu0 %v4641
      %v4818 = vpop.f32.mrf.mxu0
      %v4819 = vadd.f32 0.0, %v4818
      %v4820 = vpop.f32.mrf.mxu0
      %v4821 = vpop.f32.mrf.mxu0
      %v4822 = vadd.f32 0.0, %v4821
      %v4823 = vpop.f32.mrf.mxu0
      %4824 = vmatprep.mubr.bf16.mxu0 0
      %4825 = vmatmul.mubr.bf16.gmra.mxu0 %v4642
      %v4826 = vpop.f32.mrf.mxu0
      %v4827 = vadd.f32 0.0, %v4826
      %v4828 = vpop.f32.mrf.mxu0
      %v4829 = vpop.f32.mrf.mxu0
      %v4830 = vadd.f32 0.0, %v4829
      %v4831 = vpop.f32.mrf.mxu0
      %4832 = vmatprep.mubr.bf16.mxu0 0
      %4833 = vmatmul.mubr.bf16.gmra.mxu0 %v4643
      %v4834 = vpop.f32.mrf.mxu0
      %v4835 = vadd.f32 0.0, %v4834
      %v4836 = vpop.f32.mrf.mxu0
      %v4837 = vpop.f32.mrf.mxu0
      %v4838 = vadd.f32 0.0, %v4837
      %v4839 = vpop.f32.mrf.mxu0
      %4840 = vmatprep.mubr.bf16.mxu0 0
      %4841 = vmatmul.mubr.bf16.gmra.mxu0 %v4644
      %v4842 = vpop.f32.mrf.mxu0
      %v4843 = vadd.f32 0.0, %v4842
      %v4844 = vpop.f32.mrf.mxu0
      %v4845 = vpop.f32.mrf.mxu0
      %v4846 = vadd.f32 0.0, %v4845
      %v4847 = vpop.f32.mrf.mxu0
      %4848 = vmatprep.mubr.bf16.mxu0 0
      %4849 = vmatmul.mubr.bf16.gmra.mxu0 %v4645
      %v4850 = vpop.f32.mrf.mxu0
      %v4851 = vadd.f32 0.0, %v4850
      %v4852 = vpop.f32.mrf.mxu0
      %v4853 = vpop.f32.mrf.mxu0
      %v4854 = vadd.f32 0.0, %v4853
      %v4855 = vpop.f32.mrf.mxu0
      %4856 = vmatprep.mubr.bf16.mxu0 0
      %4857 = vmatmul.mubr.bf16.gmra.mxu0 %v4646
      %v4858 = vpop.f32.mrf.mxu0
      %v4859 = vadd.f32 0.0, %v4858
      %v4860 = vpop.f32.mrf.mxu0
      %v4861 = vpop.f32.mrf.mxu0
      %v4862 = vadd.f32 0.0, %v4861
      %v4863 = vpop.f32.mrf.mxu0
      %4864 = vmatprep.mubr.bf16.mxu0 0
      %4865 = vmatmul.mubr.bf16.gmra.mxu0 %v4647
      %v4866 = vpop.f32.mrf.mxu0
      %v4867 = vadd.f32 0.0, %v4866
      %v4868 = vpop.f32.mrf.mxu0
      %v4869 = vpop.f32.mrf.mxu0
      %v4870 = vadd.f32 0.0, %v4869
      %v4871 = vpop.f32.mrf.mxu0
      %4872 = vdwg.mxu0
      %v4873 = vadd.f32 %v4519, %v4747
      %v4874 = vadd.f32 %v4520, %v4750
      %v4875 = vadd.f32 %v4521, %v4755
      %v4876 = vadd.f32 %v4522, %v4758
      %v4877 = vadd.f32 %v4523, %v4763
      %v4878 = vadd.f32 %v4524, %v4766
      %v4879 = vadd.f32 %v4525, %v4771
      %v4880 = vadd.f32 %v4526, %v4774
      %v4881 = vadd.f32 %v4527, %v4779
      %v4882 = vadd.f32 %v4528, %v4782
      %v4883 = vadd.f32 %v4529, %v4787
      %v4884 = vadd.f32 %v4530, %v4790
      %v4885 = vadd.f32 %v4531, %v4795
      %v4886 = vadd.f32 %v4532, %v4798
      %v4887 = vadd.f32 %v4533, %v4803
      %v4888 = vadd.f32 %v4534, %v4806
      %v4889 = vadd.f32 %v4535, %v4811
      %v4890 = vadd.f32 %v4536, %v4814
      %v4891 = vadd.f32 %v4537, %v4819
      %v4892 = vadd.f32 %v4538, %v4822
      %v4893 = vadd.f32 %v4539, %v4827
      %v4894 = vadd.f32 %v4540, %v4830
      %v4895 = vadd.f32 %v4541, %v4835
      %v4896 = vadd.f32 %v4542, %v4838
      %v4897 = vadd.f32 %v4543, %v4843
      %v4898 = vadd.f32 %v4544, %v4846
      %v4899 = vadd.f32 %v4545, %v4851
      %v4900 = vadd.f32 %v4546, %v4854
      %v4901 = vadd.f32 %v4547, %v4859
      %v4902 = vadd.f32 %v4548, %v4862
      %v4903 = vadd.f32 %v4549, %v4867
      %v4904 = vadd.f32 %v4550, %v4870
      %v4905 = vld [vmem:[%s3828 + $0x4] sm:$0xf]
      %v4906 = vld [vmem:[%s3828 + $0x8] sm:$0xf]
      %v4907 = vld [vmem:[%s3828 + $0xc] sm:$0x1]
      %v4908 = vld [vmem:[%s3828 + $0x14] sm:$0xf]
      %v4909 = vld [vmem:[%s3828 + $0x18] sm:$0xf]
      %v4910 = vld [vmem:[%s3828 + $0x1c] sm:$0x1]
      %v4911 = vld [vmem:[%s3828 + $0x24] sm:$0xf]
      %v4912 = vld [vmem:[%s3828 + $0x28] sm:$0xf]
      %v4913 = vld [vmem:[%s3828 + $0x2c] sm:$0x1]
      %v4914 = vld [vmem:[%s3828 + $0x34] sm:$0xf]
      %v4915 = vld [vmem:[%s3828 + $0x38] sm:$0xf]
      %v4916 = vld [vmem:[%s3828 + $0x3c] sm:$0x1]
      %v4917 = vld [vmem:[%s3828 + $0x44] sm:$0xf]
      %v4918 = vld [vmem:[%s3828 + $0x48] sm:$0xf]
      %v4919 = vld [vmem:[%s3828 + $0x4c] sm:$0x1]
      %v4920 = vld [vmem:[%s3828 + $0x54] sm:$0xf]
      %v4921 = vld [vmem:[%s3828 + $0x58] sm:$0xf]
      %v4922 = vld [vmem:[%s3828 + $0x5c] sm:$0x1]
      %v4923 = vld [vmem:[%s3828 + $0x64] sm:$0xf]
      %v4924 = vld [vmem:[%s3828 + $0x68] sm:$0xf]
      %v4925 = vld [vmem:[%s3828 + $0x6c] sm:$0x1]
      %v4926 = vld [vmem:[%s3828 + $0x74] sm:$0xf]
      %v4927 = vld [vmem:[%s3828 + $0x78] sm:$0xf]
      %v4928 = vld [vmem:[%s3828 + $0x7c] sm:$0x1]
      %v4929 = vld [vmem:[%s3828 + $0x84] sm:$0xf]
      %v4930 = vld [vmem:[%s3828 + $0x88] sm:$0xf]
      %v4931 = vld [vmem:[%s3828 + $0x8c] sm:$0x1]
      %v4932 = vld [vmem:[%s3828 + $0x94] sm:$0xf]
      %v4933 = vld [vmem:[%s3828 + $0x98] sm:$0xf]
      %v4934 = vld [vmem:[%s3828 + $0x9c] sm:$0x1]
      %v4935 = vld [vmem:[%s3828 + $0xa4] sm:$0xf]
      %v4936 = vld [vmem:[%s3828 + $0xa8] sm:$0xf]
      %v4937 = vld [vmem:[%s3828 + $0xac] sm:$0x1]
      %v4938 = vld [vmem:[%s3828 + $0xb4] sm:$0xf]
      %v4939 = vld [vmem:[%s3828 + $0xb8] sm:$0xf]
      %v4940 = vld [vmem:[%s3828 + $0xbc] sm:$0x1]
      %v4941 = vld [vmem:[%s3828 + $0xc4] sm:$0xf]
      %v4942 = vld [vmem:[%s3828 + $0xc8] sm:$0xf]
      %v4943 = vld [vmem:[%s3828 + $0xcc] sm:$0x1]
      %v4944 = vld [vmem:[%s3828 + $0xd4] sm:$0xf]
      %v4945 = vld [vmem:[%s3828 + $0xd8] sm:$0xf]
      %v4946 = vld [vmem:[%s3828 + $0xdc] sm:$0x1]
      %v4947 = vld [vmem:[%s3828 + $0xe4] sm:$0xf]
      %v4948 = vld [vmem:[%s3828 + $0xe8] sm:$0xf]
      %v4949 = vld [vmem:[%s3828 + $0xec] sm:$0x1]
      %v4950 = vld [vmem:[%s3828 + $0xf4] sm:$0xf]
      %v4951 = vld [vmem:[%s3828 + $0xf8] sm:$0xf]
      %v4952 = vld [vmem:[%s3828 + $0xfc] sm:$0x1]
      %v4954 = vshrl.u32 %v4905, 16
      %v4956 = vrot.slane %v4954, 4
      %v4957 = vshll.u32 %v4905, 16
      %v4959 = vrot.slane %v4957, 5
      %v4960 = vor.u32 %v4956, %v4959
      %v4961 = vrot.slane %v4960, 4
      %v4963 = vshll.u32 %v4906, 16
      %v4965 = vrot.slane %v4963, 5
      %v4966 = vsel %vm1290, %v4961, %v4965
      %v4967 = vshrl.u32 %v4906, 16
      %v4969 = vrot.slane %v4967, 4
      %v4970 = vor.u32 %v4969, %v4965
      %v4971 = vrot.slane %v4970, 4
      %v4973 = vshll.u32 %v4907, 16
      %v4975 = vrot.slane %v4973, 5
      %v4976 = vsel %vm1290, %v4971, %v4975
      %v4978 = vshrl.u32 %v4908, 16
      %v4980 = vrot.slane %v4978, 4
      %v4981 = vshll.u32 %v4908, 16
      %v4983 = vrot.slane %v4981, 5
      %v4984 = vor.u32 %v4980, %v4983
      %v4985 = vrot.slane %v4984, 4
      %v4987 = vshll.u32 %v4909, 16
      %v4989 = vrot.slane %v4987, 5
      %v4990 = vsel %vm1290, %v4985, %v4989
      %v4991 = vshrl.u32 %v4909, 16
      %v4993 = vrot.slane %v4991, 4
      %v4994 = vor.u32 %v4993, %v4989
      %v4995 = vrot.slane %v4994, 4
      %v4997 = vshll.u32 %v4910, 16
      %v4999 = vrot.slane %v4997, 5
      %v5000 = vsel %vm1290, %v4995, %v4999
      %v5002 = vshrl.u32 %v4911, 16
      %v5004 = vrot.slane %v5002, 4
      %v5005 = vshll.u32 %v4911, 16
      %v5007 = vrot.slane %v5005, 5
      %v5008 = vor.u32 %v5004, %v5007
      %v5009 = vrot.slane %v5008, 4
      %v5011 = vshll.u32 %v4912, 16
      %v5013 = vrot.slane %v5011, 5
      %v5014 = vsel %vm1290, %v5009, %v5013
      %v5015 = vshrl.u32 %v4912, 16
      %v5017 = vrot.slane %v5015, 4
      %v5018 = vor.u32 %v5017, %v5013
      %v5019 = vrot.slane %v5018, 4
      %v5021 = vshll.u32 %v4913, 16
      %v5023 = vrot.slane %v5021, 5
      %v5024 = vsel %vm1290, %v5019, %v5023
      %v5026 = vshrl.u32 %v4914, 16
      %v5028 = vrot.slane %v5026, 4
      %v5029 = vshll.u32 %v4914, 16
      %v5031 = vrot.slane %v5029, 5
      %v5032 = vor.u32 %v5028, %v5031
      %v5033 = vrot.slane %v5032, 4
      %v5035 = vshll.u32 %v4915, 16
      %v5037 = vrot.slane %v5035, 5
      %v5038 = vsel %vm1290, %v5033, %v5037
      %v5039 = vshrl.u32 %v4915, 16
      %v5041 = vrot.slane %v5039, 4
      %v5042 = vor.u32 %v5041, %v5037
      %v5043 = vrot.slane %v5042, 4
      %v5045 = vshll.u32 %v4916, 16
      %v5047 = vrot.slane %v5045, 5
      %v5048 = vsel %vm1290, %v5043, %v5047
      %v5050 = vshrl.u32 %v4917, 16
      %v5052 = vrot.slane %v5050, 4
      %v5053 = vshll.u32 %v4917, 16
      %v5055 = vrot.slane %v5053, 5
      %v5056 = vor.u32 %v5052, %v5055
      %v5057 = vrot.slane %v5056, 4
      %v5059 = vshll.u32 %v4918, 16
      %v5061 = vrot.slane %v5059, 5
      %v5062 = vsel %vm1290, %v5057, %v5061
      %v5063 = vshrl.u32 %v4918, 16
      %v5065 = vrot.slane %v5063, 4
      %v5066 = vor.u32 %v5065, %v5061
      %v5067 = vrot.slane %v5066, 4
      %v5069 = vshll.u32 %v4919, 16
      %v5071 = vrot.slane %v5069, 5
      %v5072 = vsel %vm1290, %v5067, %v5071
      %v5074 = vshrl.u32 %v4920, 16
      %v5076 = vrot.slane %v5074, 4
      %v5077 = vshll.u32 %v4920, 16
      %v5079 = vrot.slane %v5077, 5
      %v5080 = vor.u32 %v5076, %v5079
      %v5081 = vrot.slane %v5080, 4
      %v5083 = vshll.u32 %v4921, 16
      %v5085 = vrot.slane %v5083, 5
      %v5086 = vsel %vm1290, %v5081, %v5085
      %v5087 = vshrl.u32 %v4921, 16
      %v5089 = vrot.slane %v5087, 4
      %v5090 = vor.u32 %v5089, %v5085
      %v5091 = vrot.slane %v5090, 4
      %v5093 = vshll.u32 %v4922, 16
      %v5095 = vrot.slane %v5093, 5
      %v5096 = vsel %vm1290, %v5091, %v5095
      %v5098 = vshrl.u32 %v4923, 16
      %v5100 = vrot.slane %v5098, 4
      %v5101 = vshll.u32 %v4923, 16
      %v5103 = vrot.slane %v5101, 5
      %v5104 = vor.u32 %v5100, %v5103
      %v5105 = vrot.slane %v5104, 4
      %v5107 = vshll.u32 %v4924, 16
      %v5109 = vrot.slane %v5107, 5
      %v5110 = vsel %vm1290, %v5105, %v5109
      %v5111 = vshrl.u32 %v4924, 16
      %v5113 = vrot.slane %v5111, 4
      %v5114 = vor.u32 %v5113, %v5109
      %v5115 = vrot.slane %v5114, 4
      %v5117 = vshll.u32 %v4925, 16
      %v5119 = vrot.slane %v5117, 5
      %v5120 = vsel %vm1290, %v5115, %v5119
      %v5122 = vshrl.u32 %v4926, 16
      %v5124 = vrot.slane %v5122, 4
      %v5125 = vshll.u32 %v4926, 16
      %v5127 = vrot.slane %v5125, 5
      %v5128 = vor.u32 %v5124, %v5127
      %v5129 = vrot.slane %v5128, 4
      %v5131 = vshll.u32 %v4927, 16
      %v5133 = vrot.slane %v5131, 5
      %v5134 = vsel %vm1290, %v5129, %v5133
      %v5135 = vshrl.u32 %v4927, 16
      %v5137 = vrot.slane %v5135, 4
      %v5138 = vor.u32 %v5137, %v5133
      %v5139 = vrot.slane %v5138, 4
      %v5141 = vshll.u32 %v4928, 16
      %v5143 = vrot.slane %v5141, 5
      %v5144 = vsel %vm1290, %v5139, %v5143
      %v5146 = vshrl.u32 %v4929, 16
      %v5148 = vrot.slane %v5146, 4
      %v5149 = vshll.u32 %v4929, 16
      %v5151 = vrot.slane %v5149, 5
      %v5152 = vor.u32 %v5148, %v5151
      %v5153 = vrot.slane %v5152, 4
      %v5155 = vshll.u32 %v4930, 16
      %v5157 = vrot.slane %v5155, 5
      %v5158 = vsel %vm1290, %v5153, %v5157
      %v5159 = vshrl.u32 %v4930, 16
      %v5161 = vrot.slane %v5159, 4
      %v5162 = vor.u32 %v5161, %v5157
      %v5163 = vrot.slane %v5162, 4
      %v5165 = vshll.u32 %v4931, 16
      %v5167 = vrot.slane %v5165, 5
      %v5168 = vsel %vm1290, %v5163, %v5167
      %v5170 = vshrl.u32 %v4932, 16
      %v5172 = vrot.slane %v5170, 4
      %v5173 = vshll.u32 %v4932, 16
      %v5175 = vrot.slane %v5173, 5
      %v5176 = vor.u32 %v5172, %v5175
      %v5177 = vrot.slane %v5176, 4
      %v5179 = vshll.u32 %v4933, 16
      %v5181 = vrot.slane %v5179, 5
      %v5182 = vsel %vm1290, %v5177, %v5181
      %v5183 = vshrl.u32 %v4933, 16
      %v5185 = vrot.slane %v5183, 4
      %v5186 = vor.u32 %v5185, %v5181
      %v5187 = vrot.slane %v5186, 4
      %v5189 = vshll.u32 %v4934, 16
      %v5191 = vrot.slane %v5189, 5
      %v5192 = vsel %vm1290, %v5187, %v5191
      %v5194 = vshrl.u32 %v4935, 16
      %v5196 = vrot.slane %v5194, 4
      %v5197 = vshll.u32 %v4935, 16
      %v5199 = vrot.slane %v5197, 5
      %v5200 = vor.u32 %v5196, %v5199
      %v5201 = vrot.slane %v5200, 4
      %v5203 = vshll.u32 %v4936, 16
      %v5205 = vrot.slane %v5203, 5
      %v5206 = vsel %vm1290, %v5201, %v5205
      %v5207 = vshrl.u32 %v4936, 16
      %v5209 = vrot.slane %v5207, 4
      %v5210 = vor.u32 %v5209, %v5205
      %v5211 = vrot.slane %v5210, 4
      %v5213 = vshll.u32 %v4937, 16
      %v5215 = vrot.slane %v5213, 5
      %v5216 = vsel %vm1290, %v5211, %v5215
      %v5218 = vshrl.u32 %v4938, 16
      %v5220 = vrot.slane %v5218, 4
      %v5221 = vshll.u32 %v4938, 16
      %v5223 = vrot.slane %v5221, 5
      %v5224 = vor.u32 %v5220, %v5223
      %v5225 = vrot.slane %v5224, 4
      %v5227 = vshll.u32 %v4939, 16
      %v5229 = vrot.slane %v5227, 5
      %v5230 = vsel %vm1290, %v5225, %v5229
      %v5231 = vshrl.u32 %v4939, 16
      %v5233 = vrot.slane %v5231, 4
      %v5234 = vor.u32 %v5233, %v5229
      %v5235 = vrot.slane %v5234, 4
      %v5237 = vshll.u32 %v4940, 16
      %v5239 = vrot.slane %v5237, 5
      %v5240 = vsel %vm1290, %v5235, %v5239
      %v5242 = vshrl.u32 %v4941, 16
      %v5244 = vrot.slane %v5242, 4
      %v5245 = vshll.u32 %v4941, 16
      %v5247 = vrot.slane %v5245, 5
      %v5248 = vor.u32 %v5244, %v5247
      %v5249 = vrot.slane %v5248, 4
      %v5251 = vshll.u32 %v4942, 16
      %v5253 = vrot.slane %v5251, 5
      %v5254 = vsel %vm1290, %v5249, %v5253
      %v5255 = vshrl.u32 %v4942, 16
      %v5257 = vrot.slane %v5255, 4
      %v5258 = vor.u32 %v5257, %v5253
      %v5259 = vrot.slane %v5258, 4
      %v5261 = vshll.u32 %v4943, 16
      %v5263 = vrot.slane %v5261, 5
      %v5264 = vsel %vm1290, %v5259, %v5263
      %v5266 = vshrl.u32 %v4944, 16
      %v5268 = vrot.slane %v5266, 4
      %v5269 = vshll.u32 %v4944, 16
      %v5271 = vrot.slane %v5269, 5
      %v5272 = vor.u32 %v5268, %v5271
      %v5273 = vrot.slane %v5272, 4
      %v5275 = vshll.u32 %v4945, 16
      %v5277 = vrot.slane %v5275, 5
      %v5278 = vsel %vm1290, %v5273, %v5277
      %v5279 = vshrl.u32 %v4945, 16
      %v5281 = vrot.slane %v5279, 4
      %v5282 = vor.u32 %v5281, %v5277
      %v5283 = vrot.slane %v5282, 4
      %v5285 = vshll.u32 %v4946, 16
      %v5287 = vrot.slane %v5285, 5
      %v5288 = vsel %vm1290, %v5283, %v5287
      %v5290 = vshrl.u32 %v4947, 16
      %v5292 = vrot.slane %v5290, 4
      %v5293 = vshll.u32 %v4947, 16
      %v5295 = vrot.slane %v5293, 5
      %v5296 = vor.u32 %v5292, %v5295
      %v5297 = vrot.slane %v5296, 4
      %v5299 = vshll.u32 %v4948, 16
      %v5301 = vrot.slane %v5299, 5
      %v5302 = vsel %vm1290, %v5297, %v5301
      %v5303 = vshrl.u32 %v4948, 16
      %v5305 = vrot.slane %v5303, 4
      %v5306 = vor.u32 %v5305, %v5301
      %v5307 = vrot.slane %v5306, 4
      %v5309 = vshll.u32 %v4949, 16
      %v5311 = vrot.slane %v5309, 5
      %v5312 = vsel %vm1290, %v5307, %v5311
      %v5314 = vshrl.u32 %v4950, 16
      %v5316 = vrot.slane %v5314, 4
      %v5317 = vshll.u32 %v4950, 16
      %v5319 = vrot.slane %v5317, 5
      %v5320 = vor.u32 %v5316, %v5319
      %v5321 = vrot.slane %v5320, 4
      %v5323 = vshll.u32 %v4951, 16
      %v5325 = vrot.slane %v5323, 5
      %v5326 = vsel %vm1290, %v5321, %v5325
      %v5327 = vshrl.u32 %v4951, 16
      %v5329 = vrot.slane %v5327, 4
      %v5330 = vor.u32 %v5329, %v5325
      %v5331 = vrot.slane %v5330, 4
      %v5333 = vshll.u32 %v4952, 16
      %v5335 = vrot.slane %v5333, 5
      %v5336 = vsel %vm1290, %v5331, %v5335
      %s5337 = scalar_lea.vmem %s1, 512
      %v5338 = vld [vmem:[%s5337] sm:$0xf]
      %v5339 = vld [vmem:[%s5337 + $0x4] sm:$0xf]
      %v5340 = vld [vmem:[%s5337 + $0x8] sm:$0xf]
      %v5341 = vld [vmem:[%s5337 + $0xc] sm:$0xf]
      %v5342 = vld [vmem:[%s5337 + $0x10] sm:$0xf]
      %v5343 = vld [vmem:[%s5337 + $0x14] sm:$0xf]
      %v5344 = vld [vmem:[%s5337 + $0x18] sm:$0xf]
      %v5345 = vld [vmem:[%s5337 + $0x1c] sm:$0xf]
      %v5346 = vld [vmem:[%s5337 + $0x20] sm:$0xf]
      %v5347 = vld [vmem:[%s5337 + $0x24] sm:$0xf]
      %v5348 = vld [vmem:[%s5337 + $0x28] sm:$0xf]
      %v5349 = vld [vmem:[%s5337 + $0x2c] sm:$0xf]
      %v5350 = vld [vmem:[%s5337 + $0x30] sm:$0xf]
      %v5351 = vld [vmem:[%s5337 + $0x34] sm:$0xf]
      %v5352 = vld [vmem:[%s5337 + $0x38] sm:$0xf]
      %v5353 = vld [vmem:[%s5337 + $0x3c] sm:$0xf]
      %v5354 = vunpack.c.l.b16 %v4966
      %v5355 = vunpack.c.l.b16 %v4976
      %v5356 = vunpack.c.l.b16 %v4990
      %v5357 = vunpack.c.l.b16 %v5000
      %v5358 = vunpack.c.l.b16 %v5014
      %v5359 = vunpack.c.l.b16 %v5024
      %v5360 = vunpack.c.l.b16 %v5038
      %v5361 = vunpack.c.l.b16 %v5048
      %v5362 = vunpack.c.l.b16 %v5062
      %v5363 = vunpack.c.l.b16 %v5072
      %v5364 = vunpack.c.l.b16 %v5086
      %v5365 = vunpack.c.l.b16 %v5096
      %v5366 = vunpack.c.l.b16 %v5110
      %v5367 = vunpack.c.l.b16 %v5120
      %v5368 = vunpack.c.l.b16 %v5134
      %v5369 = vunpack.c.l.b16 %v5144
      %v5370 = vunpack.c.l.b16 %v5158
      %v5371 = vunpack.c.l.b16 %v5168
      %v5372 = vunpack.c.l.b16 %v5182
      %v5373 = vunpack.c.l.b16 %v5192
      %v5374 = vunpack.c.l.b16 %v5206
      %v5375 = vunpack.c.l.b16 %v5216
      %v5376 = vunpack.c.l.b16 %v5230
      %v5377 = vunpack.c.l.b16 %v5240
      %v5378 = vunpack.c.l.b16 %v5254
      %v5379 = vunpack.c.l.b16 %v5264
      %v5380 = vunpack.c.l.b16 %v5278
      %v5381 = vunpack.c.l.b16 %v5288
      %v5382 = vunpack.c.l.b16 %v5302
      %v5383 = vunpack.c.l.b16 %v5312
      %v5384 = vunpack.c.l.b16 %v5326
      %v5385 = vunpack.c.l.b16 %v5336
      %v5386 = vpack.c.b16 %v5355, %v5354
      %v5387 = vpack.c.b16 %v5357, %v5356
      %v5388 = vpack.c.b16 %v5359, %v5358
      %v5389 = vpack.c.b16 %v5361, %v5360
      %v5390 = vpack.c.b16 %v5363, %v5362
      %v5391 = vpack.c.b16 %v5365, %v5364
      %v5392 = vpack.c.b16 %v5367, %v5366
      %v5393 = vpack.c.b16 %v5369, %v5368
      %v5394 = vpack.c.b16 %v5371, %v5370
      %v5395 = vpack.c.b16 %v5373, %v5372
      %v5396 = vpack.c.b16 %v5375, %v5374
      %v5397 = vpack.c.b16 %v5377, %v5376
      %v5398 = vpack.c.b16 %v5379, %v5378
      %v5399 = vpack.c.b16 %v5381, %v5380
      %v5400 = vpack.c.b16 %v5383, %v5382
      %v5401 = vpack.c.b16 %v5385, %v5384
      %v5434 = vunpack.c.l.b16 %v5338
      %v5435 = vunpack.c.l.b16 %v5339
      %v5436 = vunpack.c.l.b16 %v5340
      %v5437 = vunpack.c.l.b16 %v5341
      %v5438 = vunpack.c.l.b16 %v5342
      %v5439 = vunpack.c.l.b16 %v5343
      %v5440 = vunpack.c.l.b16 %v5344
      %v5441 = vunpack.c.l.b16 %v5345
      %v5442 = vunpack.c.l.b16 %v5346
      %v5443 = vunpack.c.l.b16 %v5347
      %v5444 = vunpack.c.l.b16 %v5348
      %v5445 = vunpack.c.l.b16 %v5349
      %v5446 = vunpack.c.l.b16 %v5350
      %v5447 = vunpack.c.l.b16 %v5351
      %v5448 = vunpack.c.l.b16 %v5352
      %v5449 = vunpack.c.l.b16 %v5353
      %v5450 = vpack.c.b16 %v5435, %v5434
      %v5451 = vpack.c.b16 %v5437, %v5436
      %v5452 = vpack.c.b16 %v5439, %v5438
      %v5453 = vpack.c.b16 %v5441, %v5440
      %v5454 = vpack.c.b16 %v5443, %v5442
      %v5455 = vpack.c.b16 %v5445, %v5444
      %v5456 = vpack.c.b16 %v5447, %v5446
      %v5457 = vpack.c.b16 %v5449, %v5448
      %5466 = vmatprep.subr.bf16.mxu0 0
      %5467 = vmatpush1.bf16.msra.mxu0 %v5457
      %5468 = vmatprep.subr.bf16.mxu0 0
      %5469 = vmatpush1.bf16.msra.mxu0 %v5456
      %5470 = vmatprep.subr.bf16.mxu0 0
      %5471 = vmatpush1.bf16.msra.mxu0 %v5455
      %5472 = vmatprep.subr.bf16.mxu0 0
      %5473 = vmatpush1.bf16.msra.mxu0 %v5454
      %5474 = vmatprep.subr.bf16.mxu0 0
      %5475 = vmatpush1.bf16.msra.mxu0 %v5453
      %5476 = vmatprep.subr.bf16.mxu0 0
      %5477 = vmatpush1.bf16.msra.mxu0 %v5452
      %5478 = vmatprep.subr.bf16.mxu0 0
      %5479 = vmatpush1.bf16.msra.mxu0 %v5451
      %5480 = vmatprep.subr.bf16.mxu0 0
      %5481 = vmatpush1.bf16.msra.mxu0 %v5450
      %5482 = vmatprep.subr.bf16.mxu0 0
      %5483 = vmatpush2.bf16.msra.mxu0 0
      %5484 = vmatprep.subr.bf16.mxu0 0
      %5485 = vmatpush2.bf16.msra.mxu0 0
      %5486 = vmatprep.subr.bf16.mxu0 0
      %5487 = vmatpush2.bf16.msra.mxu0 0
      %5488 = vmatprep.subr.bf16.mxu0 0
      %5489 = vmatpush2.bf16.msra.mxu0 0
      %5490 = vmatprep.subr.bf16.mxu0 0
      %5491 = vmatpush2.bf16.msra.mxu0 0
      %5492 = vmatprep.subr.bf16.mxu0 0
      %5493 = vmatpush2.bf16.msra.mxu0 0
      %5494 = vmatprep.subr.bf16.mxu0 0
      %5495 = vmatpush2.bf16.msra.mxu0 0
      %5496 = vmatprep.subr.bf16.mxu0 0
      %5497 = vmatpush2.bf16.msra.mxu0 0
      %5498 = vmatprep.mubr.bf16.mxu0 0
      %5499 = vmatmul.mubr.bf16.gmra.mxu0 %v5386
      %v5500 = vpop.f32.mrf.mxu0
      %v5501 = vadd.f32 0.0, %v5500
      %v5502 = vpop.f32.mrf.mxu0
      %v5503 = vpop.f32.mrf.mxu0
      %v5504 = vadd.f32 0.0, %v5503
      %v5505 = vpop.f32.mrf.mxu0
      %5506 = vmatprep.mubr.bf16.mxu0 0
      %5507 = vmatmul.mubr.bf16.gmra.mxu0 %v5387
      %v5508 = vpop.f32.mrf.mxu0
      %v5509 = vadd.f32 0.0, %v5508
      %v5510 = vpop.f32.mrf.mxu0
      %v5511 = vpop.f32.mrf.mxu0
      %v5512 = vadd.f32 0.0, %v5511
      %v5513 = vpop.f32.mrf.mxu0
      %5514 = vmatprep.mubr.bf16.mxu0 0
      %5515 = vmatmul.mubr.bf16.gmra.mxu0 %v5388
      %v5516 = vpop.f32.mrf.mxu0
      %v5517 = vadd.f32 0.0, %v5516
      %v5518 = vpop.f32.mrf.mxu0
      %v5519 = vpop.f32.mrf.mxu0
      %v5520 = vadd.f32 0.0, %v5519
      %v5521 = vpop.f32.mrf.mxu0
      %5522 = vmatprep.mubr.bf16.mxu0 0
      %5523 = vmatmul.mubr.bf16.gmra.mxu0 %v5389
      %v5524 = vpop.f32.mrf.mxu0
      %v5525 = vadd.f32 0.0, %v5524
      %v5526 = vpop.f32.mrf.mxu0
      %v5527 = vpop.f32.mrf.mxu0
      %v5528 = vadd.f32 0.0, %v5527
      %v5529 = vpop.f32.mrf.mxu0
      %5530 = vmatprep.mubr.bf16.mxu0 0
      %5531 = vmatmul.mubr.bf16.gmra.mxu0 %v5390
      %v5532 = vpop.f32.mrf.mxu0
      %v5533 = vadd.f32 0.0, %v5532
      %v5534 = vpop.f32.mrf.mxu0
      %v5535 = vpop.f32.mrf.mxu0
      %v5536 = vadd.f32 0.0, %v5535
      %v5537 = vpop.f32.mrf.mxu0
      %5538 = vmatprep.mubr.bf16.mxu0 0
      %5539 = vmatmul.mubr.bf16.gmra.mxu0 %v5391
      %v5540 = vpop.f32.mrf.mxu0
      %v5541 = vadd.f32 0.0, %v5540
      %v5542 = vpop.f32.mrf.mxu0
      %v5543 = vpop.f32.mrf.mxu0
      %v5544 = vadd.f32 0.0, %v5543
      %v5545 = vpop.f32.mrf.mxu0
      %5546 = vmatprep.mubr.bf16.mxu0 0
      %5547 = vmatmul.mubr.bf16.gmra.mxu0 %v5392
      %v5548 = vpop.f32.mrf.mxu0
      %v5549 = vadd.f32 0.0, %v5548
      %v5550 = vpop.f32.mrf.mxu0
      %v5551 = vpop.f32.mrf.mxu0
      %v5552 = vadd.f32 0.0, %v5551
      %v5553 = vpop.f32.mrf.mxu0
      %5554 = vmatprep.mubr.bf16.mxu0 0
      %5555 = vmatmul.mubr.bf16.gmra.mxu0 %v5393
      %v5556 = vpop.f32.mrf.mxu0
      %v5557 = vadd.f32 0.0, %v5556
      %v5558 = vpop.f32.mrf.mxu0
      %v5559 = vpop.f32.mrf.mxu0
      %v5560 = vadd.f32 0.0, %v5559
      %v5561 = vpop.f32.mrf.mxu0
      %5562 = vmatprep.mubr.bf16.mxu0 0
      %5563 = vmatmul.mubr.bf16.gmra.mxu0 %v5394
      %v5564 = vpop.f32.mrf.mxu0
      %v5565 = vadd.f32 0.0, %v5564
      %v5566 = vpop.f32.mrf.mxu0
      %v5567 = vpop.f32.mrf.mxu0
      %v5568 = vadd.f32 0.0, %v5567
      %v5569 = vpop.f32.mrf.mxu0
      %5570 = vmatprep.mubr.bf16.mxu0 0
      %5571 = vmatmul.mubr.bf16.gmra.mxu0 %v5395
      %v5572 = vpop.f32.mrf.mxu0
      %v5573 = vadd.f32 0.0, %v5572
      %v5574 = vpop.f32.mrf.mxu0
      %v5575 = vpop.f32.mrf.mxu0
      %v5576 = vadd.f32 0.0, %v5575
      %v5577 = vpop.f32.mrf.mxu0
      %5578 = vmatprep.mubr.bf16.mxu0 0
      %5579 = vmatmul.mubr.bf16.gmra.mxu0 %v5396
      %v5580 = vpop.f32.mrf.mxu0
      %v5581 = vadd.f32 0.0, %v5580
      %v5582 = vpop.f32.mrf.mxu0
      %v5583 = vpop.f32.mrf.mxu0
      %v5584 = vadd.f32 0.0, %v5583
      %v5585 = vpop.f32.mrf.mxu0
      %5586 = vmatprep.mubr.bf16.mxu0 0
      %5587 = vmatmul.mubr.bf16.gmra.mxu0 %v5397
      %v5588 = vpop.f32.mrf.mxu0
      %v5589 = vadd.f32 0.0, %v5588
      %v5590 = vpop.f32.mrf.mxu0
      %v5591 = vpop.f32.mrf.mxu0
      %v5592 = vadd.f32 0.0, %v5591
      %v5593 = vpop.f32.mrf.mxu0
      %5594 = vmatprep.mubr.bf16.mxu0 0
      %5595 = vmatmul.mubr.bf16.gmra.mxu0 %v5398
      %v5596 = vpop.f32.mrf.mxu0
      %v5597 = vadd.f32 0.0, %v5596
      %v5598 = vpop.f32.mrf.mxu0
      %v5599 = vpop.f32.mrf.mxu0
      %v5600 = vadd.f32 0.0, %v5599
      %v5601 = vpop.f32.mrf.mxu0
      %5602 = vmatprep.mubr.bf16.mxu0 0
      %5603 = vmatmul.mubr.bf16.gmra.mxu0 %v5399
      %v5604 = vpop.f32.mrf.mxu0
      %v5605 = vadd.f32 0.0, %v5604
      %v5606 = vpop.f32.mrf.mxu0
      %v5607 = vpop.f32.mrf.mxu0
      %v5608 = vadd.f32 0.0, %v5607
      %v5609 = vpop.f32.mrf.mxu0
      %5610 = vmatprep.mubr.bf16.mxu0 0
      %5611 = vmatmul.mubr.bf16.gmra.mxu0 %v5400
      %v5612 = vpop.f32.mrf.mxu0
      %v5613 = vadd.f32 0.0, %v5612
      %v5614 = vpop.f32.mrf.mxu0
      %v5615 = vpop.f32.mrf.mxu0
      %v5616 = vadd.f32 0.0, %v5615
      %v5617 = vpop.f32.mrf.mxu0
      %5618 = vmatprep.mubr.bf16.mxu0 0
      %5619 = vmatmul.mubr.bf16.gmra.mxu0 %v5401
      %v5620 = vpop.f32.mrf.mxu0
      %v5621 = vadd.f32 0.0, %v5620
      %v5622 = vpop.f32.mrf.mxu0
      %v5623 = vpop.f32.mrf.mxu0
      %v5624 = vadd.f32 0.0, %v5623
      %v5625 = vpop.f32.mrf.mxu0
      %5626 = vdwg.mxu0
      %v5627 = vadd.f32 %v4873, %v5501
      %v5628 = vadd.f32 %v4874, %v5504
      %v5629 = vadd.f32 %v4875, %v5509
      %v5630 = vadd.f32 %v4876, %v5512
      %v5631 = vadd.f32 %v4877, %v5517
      %v5632 = vadd.f32 %v4878, %v5520
      %v5633 = vadd.f32 %v4879, %v5525
      %v5634 = vadd.f32 %v4880, %v5528
      %v5635 = vadd.f32 %v4881, %v5533
      %v5636 = vadd.f32 %v4882, %v5536
      %v5637 = vadd.f32 %v4883, %v5541
      %v5638 = vadd.f32 %v4884, %v5544
      %v5639 = vadd.f32 %v4885, %v5549
      %v5640 = vadd.f32 %v4886, %v5552
      %v5641 = vadd.f32 %v4887, %v5557
      %v5642 = vadd.f32 %v4888, %v5560
      %v5643 = vadd.f32 %v4889, %v5565
      %v5644 = vadd.f32 %v4890, %v5568
      %v5645 = vadd.f32 %v4891, %v5573
      %v5646 = vadd.f32 %v4892, %v5576
      %v5647 = vadd.f32 %v4893, %v5581
      %v5648 = vadd.f32 %v4894, %v5584
      %v5649 = vadd.f32 %v4895, %v5589
      %v5650 = vadd.f32 %v4896, %v5592
      %v5651 = vadd.f32 %v4897, %v5597
      %v5652 = vadd.f32 %v4898, %v5600
      %v5653 = vadd.f32 %v4899, %v5605
      %v5654 = vadd.f32 %v4900, %v5608
      %v5655 = vadd.f32 %v4901, %v5613
      %v5656 = vadd.f32 %v4902, %v5616
      %v5657 = vadd.f32 %v4903, %v5621
      %v5658 = vadd.f32 %v4904, %v5624
      %v5659 = vld [vmem:[%s2] sm:$0x1]
      %v5661 = vlaneseq
      %v5662 = vshrl.u32 %v5661, 7
      %v5663 = vsub.s32 0, %v5662
      %v5664 = vrot.slane %v5659, %v5663
      %v5666 = vadd.f32 %v5627, %v5664
      %v5667 = vadd.f32 %v5628, %v5664
      %v5668 = vadd.f32 %v5629, %v5664
      %v5669 = vadd.f32 %v5630, %v5664
      %v5670 = vadd.f32 %v5631, %v5664
      %v5671 = vadd.f32 %v5632, %v5664
      %v5672 = vadd.f32 %v5633, %v5664
      %v5673 = vadd.f32 %v5634, %v5664
      %v5674 = vadd.f32 %v5635, %v5664
      %v5675 = vadd.f32 %v5636, %v5664
      %v5676 = vadd.f32 %v5637, %v5664
      %v5677 = vadd.f32 %v5638, %v5664
      %v5678 = vadd.f32 %v5639, %v5664
      %v5679 = vadd.f32 %v5640, %v5664
      %v5680 = vadd.f32 %v5641, %v5664
      %v5681 = vadd.f32 %v5642, %v5664
      %v5682 = vadd.f32 %v5643, %v5664
      %v5683 = vadd.f32 %v5644, %v5664
      %v5684 = vadd.f32 %v5645, %v5664
      %v5685 = vadd.f32 %v5646, %v5664
      %v5686 = vadd.f32 %v5647, %v5664
      %v5687 = vadd.f32 %v5648, %v5664
      %v5688 = vadd.f32 %v5649, %v5664
      %v5689 = vadd.f32 %v5650, %v5664
      %v5690 = vadd.f32 %v5651, %v5664
      %v5691 = vadd.f32 %v5652, %v5664
      %v5692 = vadd.f32 %v5653, %v5664
      %v5693 = vadd.f32 %v5654, %v5664
      %v5694 = vadd.f32 %v5655, %v5664
      %v5695 = vadd.f32 %v5656, %v5664
      %v5696 = vadd.f32 %v5657, %v5664
      %v5697 = vadd.f32 %v5658, %v5664
      %v5698 = vmax.f32 %v5666, 0.0
      %v5699 = vmax.f32 %v5667, 0.0
      %v5700 = vmax.f32 %v5668, 0.0
      %v5701 = vmax.f32 %v5669, 0.0
      %v5702 = vmax.f32 %v5670, 0.0
      %v5703 = vmax.f32 %v5671, 0.0
      %v5704 = vmax.f32 %v5672, 0.0
      %v5705 = vmax.f32 %v5673, 0.0
      %v5706 = vmax.f32 %v5674, 0.0
      %v5707 = vmax.f32 %v5675, 0.0
      %v5708 = vmax.f32 %v5676, 0.0
      %v5709 = vmax.f32 %v5677, 0.0
      %v5710 = vmax.f32 %v5678, 0.0
      %v5711 = vmax.f32 %v5679, 0.0
      %v5712 = vmax.f32 %v5680, 0.0
      %v5713 = vmax.f32 %v5681, 0.0
      %v5714 = vmax.f32 %v5682, 0.0
      %v5715 = vmax.f32 %v5683, 0.0
      %v5716 = vmax.f32 %v5684, 0.0
      %v5717 = vmax.f32 %v5685, 0.0
      %v5718 = vmax.f32 %v5686, 0.0
      %v5719 = vmax.f32 %v5687, 0.0
      %v5720 = vmax.f32 %v5688, 0.0
      %v5721 = vmax.f32 %v5689, 0.0
      %v5722 = vmax.f32 %v5690, 0.0
      %v5723 = vmax.f32 %v5691, 0.0
      %v5724 = vmax.f32 %v5692, 0.0
      %v5725 = vmax.f32 %v5693, 0.0
      %v5726 = vmax.f32 %v5694, 0.0
      %v5727 = vmax.f32 %v5695, 0.0
      %v5728 = vmax.f32 %v5696, 0.0
      %v5729 = vmax.f32 %v5697, 0.0
      %5730 = vst [vmem:[#allocation2] sm:$0xf] 0
      %5731 = vst [vmem:[#allocation2 + $0x4] sm:$0xf] 0
      %5732 = vst [vmem:[#allocation2 + $0x8] sm:$0xf] 0
      %5733 = vst [vmem:[#allocation2 + $0xc] sm:$0xf] 0
      %s5734 = scalar_lea.vmem [#allocation2], 272
      %5735 = vst [vmem:[%s5734] sm:$0xf] 0
      %5736 = vst [vmem:[%s5734 + $0x4] sm:$0xf] 0
      %5737 = vst [vmem:[%s5734 + $0x8] sm:$0xf] 0
      %5738 = vst [vmem:[%s5734 + $0xc] sm:$0xf] 0
      %5739 = vst [vmem:[#allocation2] sm:$0xf] 0
      %5740 = vst [vmem:[#allocation2 + $0x10] sm:$0xf] 0
      %5741 = vst [vmem:[#allocation2 + $0x20] sm:$0xf] 0
      %5742 = vst [vmem:[#allocation2 + $0x30] sm:$0xf] 0
      %5743 = vst [vmem:[#allocation2 + $0x40] sm:$0xf] 0
      %5744 = vst [vmem:[#allocation2 + $0x50] sm:$0xf] 0
      %5745 = vst [vmem:[#allocation2 + $0x60] sm:$0xf] 0
      %5746 = vst [vmem:[#allocation2 + $0x70] sm:$0xf] 0
      %5747 = vst [vmem:[#allocation2 + $0x80] sm:$0xf] 0
      %5748 = vst [vmem:[#allocation2 + $0x90] sm:$0xf] 0
      %5749 = vst [vmem:[#allocation2 + $0xa0] sm:$0xf] 0
      %5750 = vst [vmem:[#allocation2 + $0xb0] sm:$0xf] 0
      %5751 = vst [vmem:[#allocation2 + $0xc0] sm:$0xf] 0
      %5752 = vst [vmem:[#allocation2 + $0xd0] sm:$0xf] 0
      %5753 = vst [vmem:[#allocation2 + $0xe0] sm:$0xf] 0
      %5754 = vst [vmem:[#allocation2 + $0xf0] sm:$0xf] 0
      %5755 = vst [vmem:[#allocation2 + $0x100] sm:$0xf] 0
      %5756 = vst [vmem:[#allocation2 + $0x110] sm:$0xf] 0
      %5757 = vst [vmem:[#allocation2 + $0xc] sm:$0xf] 0
      %5758 = vst [vmem:[#allocation2 + $0x1c] sm:$0xf] 0
      %5759 = vst [vmem:[#allocation2 + $0x2c] sm:$0xf] 0
      %5760 = vst [vmem:[#allocation2 + $0x3c] sm:$0xf] 0
      %5761 = vst [vmem:[#allocation2 + $0x4c] sm:$0xf] 0
      %5762 = vst [vmem:[#allocation2 + $0x5c] sm:$0xf] 0
      %5763 = vst [vmem:[#allocation2 + $0x6c] sm:$0xf] 0
      %5764 = vst [vmem:[#allocation2 + $0x7c] sm:$0xf] 0
      %5765 = vst [vmem:[#allocation2 + $0x8c] sm:$0xf] 0
      %5766 = vst [vmem:[#allocation2 + $0x9c] sm:$0xf] 0
      %5767 = vst [vmem:[#allocation2 + $0xac] sm:$0xf] 0
      %5768 = vst [vmem:[#allocation2 + $0xbc] sm:$0xf] 0
      %5769 = vst [vmem:[#allocation2 + $0xcc] sm:$0xf] 0
      %5770 = vst [vmem:[#allocation2 + $0xdc] sm:$0xf] 0
      %5771 = vst [vmem:[#allocation2 + $0xec] sm:$0xf] 0
      %5772 = vst [vmem:[#allocation2 + $0xfc] sm:$0xf] 0
      %5773 = vst [vmem:[#allocation2 + $0x10c] sm:$0xf] 0
      %5774 = vst [vmem:[#allocation2 + $0x11c] sm:$0xf] 0
      %v5775 = vpack.c.bf16 %v5699, %v5698
      %v5776 = vpack.c.bf16 %v5701, %v5700
      %v5777 = vpack.c.bf16 %v5703, %v5702
      %v5778 = vpack.c.bf16 %v5705, %v5704
      %v5779 = vpack.c.bf16 %v5707, %v5706
      %v5780 = vpack.c.bf16 %v5709, %v5708
      %v5781 = vpack.c.bf16 %v5711, %v5710
      %v5782 = vpack.c.bf16 %v5713, %v5712
      %v5783 = vpack.c.bf16 %v5715, %v5714
      %v5784 = vpack.c.bf16 %v5717, %v5716
      %v5785 = vpack.c.bf16 %v5719, %v5718
      %v5786 = vpack.c.bf16 %v5721, %v5720
      %v5787 = vpack.c.bf16 %v5723, %v5722
      %v5788 = vpack.c.bf16 %v5725, %v5724
      %v5789 = vpack.c.bf16 %v5727, %v5726
      %v5790 = vpack.c.bf16 %v5729, %v5728
      %v5807 = vunpack.c.l.b16 %v5775
      %v5808 = vunpack.c.h.b16 %v5775
      %v5809 = vunpack.c.l.b16 %v5776
      %v5810 = vunpack.c.h.b16 %v5776
      %v5811 = vunpack.c.l.b16 %v5777
      %v5812 = vunpack.c.h.b16 %v5777
      %v5813 = vunpack.c.l.b16 %v5778
      %v5814 = vunpack.c.h.b16 %v5778
      %v5815 = vunpack.c.l.b16 %v5779
      %v5816 = vunpack.c.h.b16 %v5779
      %v5817 = vunpack.c.l.b16 %v5780
      %v5818 = vunpack.c.h.b16 %v5780
      %v5819 = vunpack.c.l.b16 %v5781
      %v5820 = vunpack.c.h.b16 %v5781
      %v5821 = vunpack.c.l.b16 %v5782
      %v5822 = vunpack.c.h.b16 %v5782
      %v5823 = vunpack.c.l.b16 %v5783
      %v5824 = vunpack.c.h.b16 %v5783
      %v5825 = vunpack.c.l.b16 %v5784
      %v5826 = vunpack.c.h.b16 %v5784
      %v5827 = vunpack.c.l.b16 %v5785
      %v5828 = vunpack.c.h.b16 %v5785
      %v5829 = vunpack.c.l.b16 %v5786
      %v5830 = vunpack.c.h.b16 %v5786
      %v5831 = vunpack.c.l.b16 %v5787
      %v5832 = vunpack.c.h.b16 %v5787
      %v5833 = vunpack.c.l.b16 %v5788
      %v5834 = vunpack.c.h.b16 %v5788
      %v5835 = vunpack.c.l.b16 %v5789
      %v5836 = vunpack.c.h.b16 %v5789
      %v5837 = vunpack.c.l.b16 %v5790
      %v5838 = vunpack.c.h.b16 %v5790
      %v5839 = vpack.c.b16 %v5807, %v5807
      %v5840 = vpack.c.b16 %v5808, %v5808
      %v5841 = vpack.c.b16 %v5809, %v5809
      %v5842 = vpack.c.b16 %v5810, %v5810
      %v5843 = vpack.c.b16 %v5811, %v5811
      %v5844 = vpack.c.b16 %v5812, %v5812
      %v5845 = vpack.c.b16 %v5813, %v5813
      %v5846 = vpack.c.b16 %v5814, %v5814
      %v5847 = vpack.c.b16 %v5815, %v5815
      %v5848 = vpack.c.b16 %v5816, %v5816
      %v5849 = vpack.c.b16 %v5817, %v5817
      %v5850 = vpack.c.b16 %v5818, %v5818
      %v5851 = vpack.c.b16 %v5819, %v5819
      %v5852 = vpack.c.b16 %v5820, %v5820
      %v5853 = vpack.c.b16 %v5821, %v5821
      %v5854 = vpack.c.b16 %v5822, %v5822
      %v5855 = vpack.c.b16 %v5823, %v5823
      %v5856 = vpack.c.b16 %v5824, %v5824
      %v5857 = vpack.c.b16 %v5825, %v5825
      %v5858 = vpack.c.b16 %v5826, %v5826
      %v5859 = vpack.c.b16 %v5827, %v5827
      %v5860 = vpack.c.b16 %v5828, %v5828
      %v5861 = vpack.c.b16 %v5829, %v5829
      %v5862 = vpack.c.b16 %v5830, %v5830
      %v5863 = vpack.c.b16 %v5831, %v5831
      %v5864 = vpack.c.b16 %v5832, %v5832
      %v5865 = vpack.c.b16 %v5833, %v5833
      %v5866 = vpack.c.b16 %v5834, %v5834
      %v5867 = vpack.c.b16 %v5835, %v5835
      %v5868 = vpack.c.b16 %v5836, %v5836
      %v5869 = vpack.c.b16 %v5837, %v5837
      %v5870 = vpack.c.b16 %v5838, %v5838
      %s5903 = scalar_lea.vmem [#allocation2], 16
      %5904 = vst [vmem:[%s5903 + $0x4] sm:$0xf] %v5839
      %5905 = vst [vmem:[%s5903 + $0x8] sm:$0xf] %v5840
      %5906 = vst [vmem:[%s5903 + $0x14] sm:$0xf] %v5841
      %5907 = vst [vmem:[%s5903 + $0x18] sm:$0xf] %v5842
      %5908 = vst [vmem:[%s5903 + $0x24] sm:$0xf] %v5843
      %5909 = vst [vmem:[%s5903 + $0x28] sm:$0xf] %v5844
      %5910 = vst [vmem:[%s5903 + $0x34] sm:$0xf] %v5845
      %5911 = vst [vmem:[%s5903 + $0x38] sm:$0xf] %v5846
      %5912 = vst [vmem:[%s5903 + $0x44] sm:$0xf] %v5847
      %5913 = vst [vmem:[%s5903 + $0x48] sm:$0xf] %v5848
      %5914 = vst [vmem:[%s5903 + $0x54] sm:$0xf] %v5849
      %5915 = vst [vmem:[%s5903 + $0x58] sm:$0xf] %v5850
      %5916 = vst [vmem:[%s5903 + $0x64] sm:$0xf] %v5851
      %5917 = vst [vmem:[%s5903 + $0x68] sm:$0xf] %v5852
      %5918 = vst [vmem:[%s5903 + $0x74] sm:$0xf] %v5853
      %5919 = vst [vmem:[%s5903 + $0x78] sm:$0xf] %v5854
      %5920 = vst [vmem:[%s5903 + $0x84] sm:$0xf] %v5855
      %5921 = vst [vmem:[%s5903 + $0x88] sm:$0xf] %v5856
      %5922 = vst [vmem:[%s5903 + $0x94] sm:$0xf] %v5857
      %5923 = vst [vmem:[%s5903 + $0x98] sm:$0xf] %v5858
      %5924 = vst [vmem:[%s5903 + $0xa4] sm:$0xf] %v5859
      %5925 = vst [vmem:[%s5903 + $0xa8] sm:$0xf] %v5860
      %5926 = vst [vmem:[%s5903 + $0xb4] sm:$0xf] %v5861
      %5927 = vst [vmem:[%s5903 + $0xb8] sm:$0xf] %v5862
      %5928 = vst [vmem:[%s5903 + $0xc4] sm:$0xf] %v5863
      %5929 = vst [vmem:[%s5903 + $0xc8] sm:$0xf] %v5864
      %5930 = vst [vmem:[%s5903 + $0xd4] sm:$0xf] %v5865
      %5931 = vst [vmem:[%s5903 + $0xd8] sm:$0xf] %v5866
      %5932 = vst [vmem:[%s5903 + $0xe4] sm:$0xf] %v5867
      %5933 = vst [vmem:[%s5903 + $0xe8] sm:$0xf] %v5868
      %5934 = vst [vmem:[%s5903 + $0xf4] sm:$0xf] %v5869
      %5935 = vst [vmem:[%s5903 + $0xf8] sm:$0xf] %v5870
      %v5936 = vld [vmem:[#allocation2] sm:$0x8]
      %v5937 = vld [vmem:[#allocation2 + $0x4] sm:$0xf]
      %v5938 = vld [vmem:[#allocation2 + $0x8] sm:$0xf]
      %v5939 = vld [vmem:[#allocation2 + $0x10] sm:$0x8]
      %v5940 = vld [vmem:[#allocation2 + $0x14] sm:$0xf]
      %v5941 = vld [vmem:[#allocation2 + $0x18] sm:$0xf]
      %v5942 = vld [vmem:[#allocation2 + $0x20] sm:$0x8]
      %v5943 = vld [vmem:[#allocation2 + $0x24] sm:$0xf]
      %v5944 = vld [vmem:[#allocation2 + $0x28] sm:$0xf]
      %v5945 = vld [vmem:[#allocation2 + $0x30] sm:$0x8]
      %v5946 = vld [vmem:[#allocation2 + $0x34] sm:$0xf]
      %v5947 = vld [vmem:[#allocation2 + $0x38] sm:$0xf]
      %v5948 = vld [vmem:[#allocation2 + $0x40] sm:$0x8]
      %v5949 = vld [vmem:[#allocation2 + $0x44] sm:$0xf]
      %v5950 = vld [vmem:[#allocation2 + $0x48] sm:$0xf]
      %v5951 = vld [vmem:[#allocation2 + $0x50] sm:$0x8]
      %v5952 = vld [vmem:[#allocation2 + $0x54] sm:$0xf]
      %v5953 = vld [vmem:[#allocation2 + $0x58] sm:$0xf]
      %v5954 = vld [vmem:[#allocation2 + $0x60] sm:$0x8]
      %v5955 = vld [vmem:[#allocation2 + $0x64] sm:$0xf]
      %v5956 = vld [vmem:[#allocation2 + $0x68] sm:$0xf]
      %v5957 = vld [vmem:[#allocation2 + $0x70] sm:$0x8]
      %v5958 = vld [vmem:[#allocation2 + $0x74] sm:$0xf]
      %v5959 = vld [vmem:[#allocation2 + $0x78] sm:$0xf]
      %v5960 = vld [vmem:[#allocation2 + $0x80] sm:$0x8]
      %v5961 = vld [vmem:[#allocation2 + $0x84] sm:$0xf]
      %v5962 = vld [vmem:[#allocation2 + $0x88] sm:$0xf]
      %v5963 = vld [vmem:[#allocation2 + $0x90] sm:$0x8]
      %v5964 = vld [vmem:[#allocation2 + $0x94] sm:$0xf]
      %v5965 = vld [vmem:[#allocation2 + $0x98] sm:$0xf]
      %v5966 = vld [vmem:[#allocation2 + $0xa0] sm:$0x8]
      %v5967 = vld [vmem:[#allocation2 + $0xa4] sm:$0xf]
      %v5968 = vld [vmem:[#allocation2 + $0xa8] sm:$0xf]
      %v5969 = vld [vmem:[#allocation2 + $0xb0] sm:$0x8]
      %v5970 = vld [vmem:[#allocation2 + $0xb4] sm:$0xf]
      %v5971 = vld [vmem:[#allocation2 + $0xb8] sm:$0xf]
      %v5972 = vld [vmem:[#allocation2 + $0xc0] sm:$0x8]
      %v5973 = vld [vmem:[#allocation2 + $0xc4] sm:$0xf]
      %v5974 = vld [vmem:[#allocation2 + $0xc8] sm:$0xf]
      %v5975 = vld [vmem:[#allocation2 + $0xd0] sm:$0x8]
      %v5976 = vld [vmem:[#allocation2 + $0xd4] sm:$0xf]
      %v5977 = vld [vmem:[#allocation2 + $0xd8] sm:$0xf]
      %v5978 = vld [vmem:[#allocation2 + $0xe0] sm:$0x8]
      %v5979 = vld [vmem:[#allocation2 + $0xe4] sm:$0xf]
      %v5980 = vld [vmem:[#allocation2 + $0xe8] sm:$0xf]
      %v5981 = vld [vmem:[#allocation2 + $0xf0] sm:$0x8]
      %v5982 = vld [vmem:[#allocation2 + $0xf4] sm:$0xf]
      %v5983 = vld [vmem:[#allocation2 + $0xf8] sm:$0xf]
      %v5985 = vshrl.u32 %v5936, 16
      %v5987 = vrot.slane %v5985, 7
      %v5988 = vrot.slane %v5987, 4
      %v5990 = vshrl.u32 %v5937, 16
      %v5992 = vrot.slane %v5990, 7
      %v5993 = vshll.u32 %v5937, 16
      %v5995 = vor.u32 %v5992, %v5993
      %v5996 = vsel %vm276, %v5988, %v5995
      %v5997 = vrot.slane %v5992, 4
      %v5999 = vshrl.u32 %v5938, 16
      %v6001 = vrot.slane %v5999, 7
      %v6002 = vshll.u32 %v5938, 16
      %v6004 = vor.u32 %v6001, %v6002
      %v6005 = vsel %vm276, %v5997, %v6004
      %v6007 = vshrl.u32 %v5939, 16
      %v6009 = vrot.slane %v6007, 7
      %v6010 = vrot.slane %v6009, 4
      %v6012 = vshrl.u32 %v5940, 16
      %v6014 = vrot.slane %v6012, 7
      %v6015 = vshll.u32 %v5940, 16
      %v6017 = vor.u32 %v6014, %v6015
      %v6018 = vsel %vm276, %v6010, %v6017
      %v6019 = vrot.slane %v6014, 4
      %v6021 = vshrl.u32 %v5941, 16
      %v6023 = vrot.slane %v6021, 7
      %v6024 = vshll.u32 %v5941, 16
      %v6026 = vor.u32 %v6023, %v6024
      %v6027 = vsel %vm276, %v6019, %v6026
      %v6029 = vshrl.u32 %v5942, 16
      %v6031 = vrot.slane %v6029, 7
      %v6032 = vrot.slane %v6031, 4
      %v6034 = vshrl.u32 %v5943, 16
      %v6036 = vrot.slane %v6034, 7
      %v6037 = vshll.u32 %v5943, 16
      %v6039 = vor.u32 %v6036, %v6037
      %v6040 = vsel %vm276, %v6032, %v6039
      %v6041 = vrot.slane %v6036, 4
      %v6043 = vshrl.u32 %v5944, 16
      %v6045 = vrot.slane %v6043, 7
      %v6046 = vshll.u32 %v5944, 16
      %v6048 = vor.u32 %v6045, %v6046
      %v6049 = vsel %vm276, %v6041, %v6048
      %v6051 = vshrl.u32 %v5945, 16
      %v6053 = vrot.slane %v6051, 7
      %v6054 = vrot.slane %v6053, 4
      %v6056 = vshrl.u32 %v5946, 16
      %v6058 = vrot.slane %v6056, 7
      %v6059 = vshll.u32 %v5946, 16
      %v6061 = vor.u32 %v6058, %v6059
      %v6062 = vsel %vm276, %v6054, %v6061
      %v6063 = vrot.slane %v6058, 4
      %v6065 = vshrl.u32 %v5947, 16
      %v6067 = vrot.slane %v6065, 7
      %v6068 = vshll.u32 %v5947, 16
      %v6070 = vor.u32 %v6067, %v6068
      %v6071 = vsel %vm276, %v6063, %v6070
      %v6073 = vshrl.u32 %v5948, 16
      %v6075 = vrot.slane %v6073, 7
      %v6076 = vrot.slane %v6075, 4
      %v6078 = vshrl.u32 %v5949, 16
      %v6080 = vrot.slane %v6078, 7
      %v6081 = vshll.u32 %v5949, 16
      %v6083 = vor.u32 %v6080, %v6081
      %v6084 = vsel %vm276, %v6076, %v6083
      %v6085 = vrot.slane %v6080, 4
      %v6087 = vshrl.u32 %v5950, 16
      %v6089 = vrot.slane %v6087, 7
      %v6090 = vshll.u32 %v5950, 16
      %v6092 = vor.u32 %v6089, %v6090
      %v6093 = vsel %vm276, %v6085, %v6092
      %v6095 = vshrl.u32 %v5951, 16
      %v6097 = vrot.slane %v6095, 7
      %v6098 = vrot.slane %v6097, 4
      %v6100 = vshrl.u32 %v5952, 16
      %v6102 = vrot.slane %v6100, 7
      %v6103 = vshll.u32 %v5952, 16
      %v6105 = vor.u32 %v6102, %v6103
      %v6106 = vsel %vm276, %v6098, %v6105
      %v6107 = vrot.slane %v6102, 4
      %v6109 = vshrl.u32 %v5953, 16
      %v6111 = vrot.slane %v6109, 7
      %v6112 = vshll.u32 %v5953, 16
      %v6114 = vor.u32 %v6111, %v6112
      %v6115 = vsel %vm276, %v6107, %v6114
      %v6117 = vshrl.u32 %v5954, 16
      %v6119 = vrot.slane %v6117, 7
      %v6120 = vrot.slane %v6119, 4
      %v6122 = vshrl.u32 %v5955, 16
      %v6124 = vrot.slane %v6122, 7
      %v6125 = vshll.u32 %v5955, 16
      %v6127 = vor.u32 %v6124, %v6125
      %v6128 = vsel %vm276, %v6120, %v6127
      %v6129 = vrot.slane %v6124, 4
      %v6131 = vshrl.u32 %v5956, 16
      %v6133 = vrot.slane %v6131, 7
      %v6134 = vshll.u32 %v5956, 16
      %v6136 = vor.u32 %v6133, %v6134
      %v6137 = vsel %vm276, %v6129, %v6136
      %v6139 = vshrl.u32 %v5957, 16
      %v6141 = vrot.slane %v6139, 7
      %v6142 = vrot.slane %v6141, 4
      %v6144 = vshrl.u32 %v5958, 16
      %v6146 = vrot.slane %v6144, 7
      %v6147 = vshll.u32 %v5958, 16
      %v6149 = vor.u32 %v6146, %v6147
      %v6150 = vsel %vm276, %v6142, %v6149
      %v6151 = vrot.slane %v6146, 4
      %v6153 = vshrl.u32 %v5959, 16
      %v6155 = vrot.slane %v6153, 7
      %v6156 = vshll.u32 %v5959, 16
      %v6158 = vor.u32 %v6155, %v6156
      %v6159 = vsel %vm276, %v6151, %v6158
      %v6161 = vshrl.u32 %v5960, 16
      %v6163 = vrot.slane %v6161, 7
      %v6164 = vrot.slane %v6163, 4
      %v6166 = vshrl.u32 %v5961, 16
      %v6168 = vrot.slane %v6166, 7
      %v6169 = vshll.u32 %v5961, 16
      %v6171 = vor.u32 %v6168, %v6169
      %v6172 = vsel %vm276, %v6164, %v6171
      %v6173 = vrot.slane %v6168, 4
      %v6175 = vshrl.u32 %v5962, 16
      %v6177 = vrot.slane %v6175, 7
      %v6178 = vshll.u32 %v5962, 16
      %v6180 = vor.u32 %v6177, %v6178
      %v6181 = vsel %vm276, %v6173, %v6180
      %v6183 = vshrl.u32 %v5963, 16
      %v6185 = vrot.slane %v6183, 7
      %v6186 = vrot.slane %v6185, 4
      %v6188 = vshrl.u32 %v5964, 16
      %v6190 = vrot.slane %v6188, 7
      %v6191 = vshll.u32 %v5964, 16
      %v6193 = vor.u32 %v6190, %v6191
      %v6194 = vsel %vm276, %v6186, %v6193
      %v6195 = vrot.slane %v6190, 4
      %v6197 = vshrl.u32 %v5965, 16
      %v6199 = vrot.slane %v6197, 7
      %v6200 = vshll.u32 %v5965, 16
      %v6202 = vor.u32 %v6199, %v6200
      %v6203 = vsel %vm276, %v6195, %v6202
      %v6205 = vshrl.u32 %v5966, 16
      %v6207 = vrot.slane %v6205, 7
      %v6208 = vrot.slane %v6207, 4
      %v6210 = vshrl.u32 %v5967, 16
      %v6212 = vrot.slane %v6210, 7
      %v6213 = vshll.u32 %v5967, 16
      %v6215 = vor.u32 %v6212, %v6213
      %v6216 = vsel %vm276, %v6208, %v6215
      %v6217 = vrot.slane %v6212, 4
      %v6219 = vshrl.u32 %v5968, 16
      %v6221 = vrot.slane %v6219, 7
      %v6222 = vshll.u32 %v5968, 16
      %v6224 = vor.u32 %v6221, %v6222
      %v6225 = vsel %vm276, %v6217, %v6224
      %v6227 = vshrl.u32 %v5969, 16
      %v6229 = vrot.slane %v6227, 7
      %v6230 = vrot.slane %v6229, 4
      %v6232 = vshrl.u32 %v5970, 16
      %v6234 = vrot.slane %v6232, 7
      %v6235 = vshll.u32 %v5970, 16
      %v6237 = vor.u32 %v6234, %v6235
      %v6238 = vsel %vm276, %v6230, %v6237
      %v6239 = vrot.slane %v6234, 4
      %v6241 = vshrl.u32 %v5971, 16
      %v6243 = vrot.slane %v6241, 7
      %v6244 = vshll.u32 %v5971, 16
      %v6246 = vor.u32 %v6243, %v6244
      %v6247 = vsel %vm276, %v6239, %v6246
      %v6249 = vshrl.u32 %v5972, 16
      %v6251 = vrot.slane %v6249, 7
      %v6252 = vrot.slane %v6251, 4
      %v6254 = vshrl.u32 %v5973, 16
      %v6256 = vrot.slane %v6254, 7
      %v6257 = vshll.u32 %v5973, 16
      %v6259 = vor.u32 %v6256, %v6257
      %v6260 = vsel %vm276, %v6252, %v6259
      %v6261 = vrot.slane %v6256, 4
      %v6263 = vshrl.u32 %v5974, 16
      %v6265 = vrot.slane %v6263, 7
      %v6266 = vshll.u32 %v5974, 16
      %v6268 = vor.u32 %v6265, %v6266
      %v6269 = vsel %vm276, %v6261, %v6268
      %v6271 = vshrl.u32 %v5975, 16
      %v6273 = vrot.slane %v6271, 7
      %v6274 = vrot.slane %v6273, 4
      %v6276 = vshrl.u32 %v5976, 16
      %v6278 = vrot.slane %v6276, 7
      %v6279 = vshll.u32 %v5976, 16
      %v6281 = vor.u32 %v6278, %v6279
      %v6282 = vsel %vm276, %v6274, %v6281
      %v6283 = vrot.slane %v6278, 4
      %v6285 = vshrl.u32 %v5977, 16
      %v6287 = vrot.slane %v6285, 7
      %v6288 = vshll.u32 %v5977, 16
      %v6290 = vor.u32 %v6287, %v6288
      %v6291 = vsel %vm276, %v6283, %v6290
      %v6293 = vshrl.u32 %v5978, 16
      %v6295 = vrot.slane %v6293, 7
      %v6296 = vrot.slane %v6295, 4
      %v6298 = vshrl.u32 %v5979, 16
      %v6300 = vrot.slane %v6298, 7
      %v6301 = vshll.u32 %v5979, 16
      %v6303 = vor.u32 %v6300, %v6301
      %v6304 = vsel %vm276, %v6296, %v6303
      %v6305 = vrot.slane %v6300, 4
      %v6307 = vshrl.u32 %v5980, 16
      %v6309 = vrot.slane %v6307, 7
      %v6310 = vshll.u32 %v5980, 16
      %v6312 = vor.u32 %v6309, %v6310
      %v6313 = vsel %vm276, %v6305, %v6312
      %v6315 = vshrl.u32 %v5981, 16
      %v6317 = vrot.slane %v6315, 7
      %v6318 = vrot.slane %v6317, 4
      %v6320 = vshrl.u32 %v5982, 16
      %v6322 = vrot.slane %v6320, 7
      %v6323 = vshll.u32 %v5982, 16
      %v6325 = vor.u32 %v6322, %v6323
      %v6326 = vsel %vm276, %v6318, %v6325
      %v6327 = vrot.slane %v6322, 4
      %v6329 = vshrl.u32 %v5983, 16
      %v6331 = vrot.slane %v6329, 7
      %v6332 = vshll.u32 %v5983, 16
      %v6334 = vor.u32 %v6331, %v6332
      %v6335 = vsel %vm276, %v6327, %v6334
      %v6336 = vld [vmem:[%s3] sm:$0xf]
      %v6337 = vld [vmem:[%s3 + $0x4] sm:$0xf]
      %v6338 = vld [vmem:[%s3 + $0x8] sm:$0xf]
      %v6339 = vld [vmem:[%s3 + $0xc] sm:$0xf]
      %v6340 = vld [vmem:[%s3 + $0x10] sm:$0xf]
      %v6341 = vld [vmem:[%s3 + $0x14] sm:$0xf]
      %v6342 = vld [vmem:[%s3 + $0x18] sm:$0xf]
      %v6343 = vld [vmem:[%s3 + $0x1c] sm:$0xf]
      %v6344 = vld [vmem:[%s3 + $0x20] sm:$0xf]
      %v6345 = vld [vmem:[%s3 + $0x24] sm:$0xf]
      %v6346 = vld [vmem:[%s3 + $0x28] sm:$0xf]
      %v6347 = vld [vmem:[%s3 + $0x2c] sm:$0xf]
      %v6348 = vld [vmem:[%s3 + $0x30] sm:$0xf]
      %v6349 = vld [vmem:[%s3 + $0x34] sm:$0xf]
      %v6350 = vld [vmem:[%s3 + $0x38] sm:$0xf]
      %v6351 = vld [vmem:[%s3 + $0x3c] sm:$0xf]
      %s6352 = scalar_lea.vmem %s3, 64
      %v6353 = vld [vmem:[%s6352] sm:$0xf]
      %v6354 = vld [vmem:[%s6352 + $0x4] sm:$0xf]
      %v6355 = vld [vmem:[%s6352 + $0x8] sm:$0xf]
      %v6356 = vld [vmem:[%s6352 + $0xc] sm:$0xf]
      %v6357 = vld [vmem:[%s6352 + $0x10] sm:$0xf]
      %v6358 = vld [vmem:[%s6352 + $0x14] sm:$0xf]
      %v6359 = vld [vmem:[%s6352 + $0x18] sm:$0xf]
      %v6360 = vld [vmem:[%s6352 + $0x1c] sm:$0xf]
      %v6361 = vld [vmem:[%s6352 + $0x20] sm:$0xf]
      %v6362 = vld [vmem:[%s6352 + $0x24] sm:$0xf]
      %v6363 = vld [vmem:[%s6352 + $0x28] sm:$0xf]
      %v6364 = vld [vmem:[%s6352 + $0x2c] sm:$0xf]
      %v6365 = vld [vmem:[%s6352 + $0x30] sm:$0xf]
      %v6366 = vld [vmem:[%s6352 + $0x34] sm:$0xf]
      %v6367 = vld [vmem:[%s6352 + $0x38] sm:$0xf]
      %v6368 = vld [vmem:[%s6352 + $0x3c] sm:$0xf]
      %v6401 = vunpack.c.l.b16 %v5937
      %v6402 = vunpack.c.l.b16 %v5938
      %v6403 = vunpack.c.l.b16 %v5940
      %v6404 = vunpack.c.l.b16 %v5941
      %v6405 = vunpack.c.l.b16 %v5943
      %v6406 = vunpack.c.l.b16 %v5944
      %v6407 = vunpack.c.l.b16 %v5946
      %v6408 = vunpack.c.l.b16 %v5947
      %v6409 = vunpack.c.l.b16 %v5949
      %v6410 = vunpack.c.l.b16 %v5950
      %v6411 = vunpack.c.l.b16 %v5952
      %v6412 = vunpack.c.l.b16 %v5953
      %v6413 = vunpack.c.l.b16 %v5955
      %v6414 = vunpack.c.l.b16 %v5956
      %v6415 = vunpack.c.l.b16 %v5958
      %v6416 = vunpack.c.l.b16 %v5959
      %v6417 = vunpack.c.l.b16 %v5961
      %v6418 = vunpack.c.l.b16 %v5962
      %v6419 = vunpack.c.l.b16 %v5964
      %v6420 = vunpack.c.l.b16 %v5965
      %v6421 = vunpack.c.l.b16 %v5967
      %v6422 = vunpack.c.l.b16 %v5968
      %v6423 = vunpack.c.l.b16 %v5970
      %v6424 = vunpack.c.l.b16 %v5971
      %v6425 = vunpack.c.l.b16 %v5973
      %v6426 = vunpack.c.l.b16 %v5974
      %v6427 = vunpack.c.l.b16 %v5976
      %v6428 = vunpack.c.l.b16 %v5977
      %v6429 = vunpack.c.l.b16 %v5979
      %v6430 = vunpack.c.l.b16 %v5980
      %v6431 = vunpack.c.l.b16 %v5982
      %v6432 = vunpack.c.l.b16 %v5983
      %v6433 = vpack.c.b16 %v6402, %v6401
      %v6434 = vpack.c.b16 %v6404, %v6403
      %v6435 = vpack.c.b16 %v6406, %v6405
      %v6436 = vpack.c.b16 %v6408, %v6407
      %v6437 = vpack.c.b16 %v6410, %v6409
      %v6438 = vpack.c.b16 %v6412, %v6411
      %v6439 = vpack.c.b16 %v6414, %v6413
      %v6440 = vpack.c.b16 %v6416, %v6415
      %v6441 = vpack.c.b16 %v6418, %v6417
      %v6442 = vpack.c.b16 %v6420, %v6419
      %v6443 = vpack.c.b16 %v6422, %v6421
      %v6444 = vpack.c.b16 %v6424, %v6423
      %v6445 = vpack.c.b16 %v6426, %v6425
      %v6446 = vpack.c.b16 %v6428, %v6427
      %v6447 = vpack.c.b16 %v6430, %v6429
      %v6448 = vpack.c.b16 %v6432, %v6431
      %v6481 = vunpack.c.l.b16 %v6353
      %v6482 = vunpack.c.l.b16 %v6354
      %v6483 = vunpack.c.l.b16 %v6355
      %v6484 = vunpack.c.l.b16 %v6356
      %v6485 = vunpack.c.l.b16 %v6357
      %v6486 = vunpack.c.l.b16 %v6358
      %v6487 = vunpack.c.l.b16 %v6359
      %v6488 = vunpack.c.l.b16 %v6360
      %v6489 = vunpack.c.l.b16 %v6361
      %v6490 = vunpack.c.l.b16 %v6362
      %v6491 = vunpack.c.l.b16 %v6363
      %v6492 = vunpack.c.l.b16 %v6364
      %v6493 = vunpack.c.l.b16 %v6365
      %v6494 = vunpack.c.l.b16 %v6366
      %v6495 = vunpack.c.l.b16 %v6367
      %v6496 = vunpack.c.l.b16 %v6368
      %v6497 = vpack.c.b16 %v6482, %v6481
      %v6498 = vpack.c.b16 %v6484, %v6483
      %v6499 = vpack.c.b16 %v6486, %v6485
      %v6500 = vpack.c.b16 %v6488, %v6487
      %v6501 = vpack.c.b16 %v6490, %v6489
      %v6502 = vpack.c.b16 %v6492, %v6491
      %v6503 = vpack.c.b16 %v6494, %v6493
      %v6504 = vpack.c.b16 %v6496, %v6495
      %6513 = vmatprep.subr.bf16.mxu0 0
      %6514 = vmatpush1.bf16.msra.mxu0 %v6504
      %6515 = vmatprep.subr.bf16.mxu0 0
      %6516 = vmatpush1.bf16.msra.mxu0 %v6503
      %6517 = vmatprep.subr.bf16.mxu0 0
      %6518 = vmatpush1.bf16.msra.mxu0 %v6502
      %6519 = vmatprep.subr.bf16.mxu0 0
      %6520 = vmatpush1.bf16.msra.mxu0 %v6501
      %6521 = vmatprep.subr.bf16.mxu0 0
      %6522 = vmatpush1.bf16.msra.mxu0 %v6500
      %6523 = vmatprep.subr.bf16.mxu0 0
      %6524 = vmatpush1.bf16.msra.mxu0 %v6499
      %6525 = vmatprep.subr.bf16.mxu0 0
      %6526 = vmatpush1.bf16.msra.mxu0 %v6498
      %6527 = vmatprep.subr.bf16.mxu0 0
      %6528 = vmatpush1.bf16.msra.mxu0 %v6497
      %6529 = vmatprep.subr.bf16.mxu0 0
      %6530 = vmatpush2.bf16.msra.mxu0 0
      %6531 = vmatprep.subr.bf16.mxu0 0
      %6532 = vmatpush2.bf16.msra.mxu0 0
      %6533 = vmatprep.subr.bf16.mxu0 0
      %6534 = vmatpush2.bf16.msra.mxu0 0
      %6535 = vmatprep.subr.bf16.mxu0 0
      %6536 = vmatpush2.bf16.msra.mxu0 0
      %6537 = vmatprep.subr.bf16.mxu0 0
      %6538 = vmatpush2.bf16.msra.mxu0 0
      %6539 = vmatprep.subr.bf16.mxu0 0
      %6540 = vmatpush2.bf16.msra.mxu0 0
      %6541 = vmatprep.subr.bf16.mxu0 0
      %6542 = vmatpush2.bf16.msra.mxu0 0
      %6543 = vmatprep.subr.bf16.mxu0 0
      %6544 = vmatpush2.bf16.msra.mxu0 0
      %6545 = vmatprep.mubr.bf16.mxu0 0
      %6546 = vmatmul.mubr.bf16.gmra.mxu0 %v6433
      %v6547 = vpop.f32.mrf.mxu0
      %v6548 = vadd.f32 0.0, %v6547
      %v6549 = vpop.f32.mrf.mxu0
      %v6550 = vpop.f32.mrf.mxu0
      %v6551 = vadd.f32 0.0, %v6550
      %v6552 = vpop.f32.mrf.mxu0
      %6553 = vmatprep.mubr.bf16.mxu0 0
      %6554 = vmatmul.mubr.bf16.gmra.mxu0 %v6434
      %v6555 = vpop.f32.mrf.mxu0
      %v6556 = vadd.f32 0.0, %v6555
      %v6557 = vpop.f32.mrf.mxu0
      %v6558 = vpop.f32.mrf.mxu0
      %v6559 = vadd.f32 0.0, %v6558
      %v6560 = vpop.f32.mrf.mxu0
      %6561 = vmatprep.mubr.bf16.mxu0 0
      %6562 = vmatmul.mubr.bf16.gmra.mxu0 %v6435
      %v6563 = vpop.f32.mrf.mxu0
      %v6564 = vadd.f32 0.0, %v6563
      %v6565 = vpop.f32.mrf.mxu0
      %v6566 = vpop.f32.mrf.mxu0
      %v6567 = vadd.f32 0.0, %v6566
      %v6568 = vpop.f32.mrf.mxu0
      %6569 = vmatprep.mubr.bf16.mxu0 0
      %6570 = vmatmul.mubr.bf16.gmra.mxu0 %v6436
      %v6571 = vpop.f32.mrf.mxu0
      %v6572 = vadd.f32 0.0, %v6571
      %v6573 = vpop.f32.mrf.mxu0
      %v6574 = vpop.f32.mrf.mxu0
      %v6575 = vadd.f32 0.0, %v6574
      %v6576 = vpop.f32.mrf.mxu0
      %6577 = vmatprep.mubr.bf16.mxu0 0
      %6578 = vmatmul.mubr.bf16.gmra.mxu0 %v6437
      %v6579 = vpop.f32.mrf.mxu0
      %v6580 = vadd.f32 0.0, %v6579
      %v6581 = vpop.f32.mrf.mxu0
      %v6582 = vpop.f32.mrf.mxu0
      %v6583 = vadd.f32 0.0, %v6582
      %v6584 = vpop.f32.mrf.mxu0
      %6585 = vmatprep.mubr.bf16.mxu0 0
      %6586 = vmatmul.mubr.bf16.gmra.mxu0 %v6438
      %v6587 = vpop.f32.mrf.mxu0
      %v6588 = vadd.f32 0.0, %v6587
      %v6589 = vpop.f32.mrf.mxu0
      %v6590 = vpop.f32.mrf.mxu0
      %v6591 = vadd.f32 0.0, %v6590
      %v6592 = vpop.f32.mrf.mxu0
      %6593 = vmatprep.mubr.bf16.mxu0 0
      %6594 = vmatmul.mubr.bf16.gmra.mxu0 %v6439
      %v6595 = vpop.f32.mrf.mxu0
      %v6596 = vadd.f32 0.0, %v6595
      %v6597 = vpop.f32.mrf.mxu0
      %v6598 = vpop.f32.mrf.mxu0
      %v6599 = vadd.f32 0.0, %v6598
      %v6600 = vpop.f32.mrf.mxu0
      %6601 = vmatprep.mubr.bf16.mxu0 0
      %6602 = vmatmul.mubr.bf16.gmra.mxu0 %v6440
      %v6603 = vpop.f32.mrf.mxu0
      %v6604 = vadd.f32 0.0, %v6603
      %v6605 = vpop.f32.mrf.mxu0
      %v6606 = vpop.f32.mrf.mxu0
      %v6607 = vadd.f32 0.0, %v6606
      %v6608 = vpop.f32.mrf.mxu0
      %6609 = vmatprep.mubr.bf16.mxu0 0
      %6610 = vmatmul.mubr.bf16.gmra.mxu0 %v6441
      %v6611 = vpop.f32.mrf.mxu0
      %v6612 = vadd.f32 0.0, %v6611
      %v6613 = vpop.f32.mrf.mxu0
      %v6614 = vpop.f32.mrf.mxu0
      %v6615 = vadd.f32 0.0, %v6614
      %v6616 = vpop.f32.mrf.mxu0
      %6617 = vmatprep.mubr.bf16.mxu0 0
      %6618 = vmatmul.mubr.bf16.gmra.mxu0 %v6442
      %v6619 = vpop.f32.mrf.mxu0
      %v6620 = vadd.f32 0.0, %v6619
      %v6621 = vpop.f32.mrf.mxu0
      %v6622 = vpop.f32.mrf.mxu0
      %v6623 = vadd.f32 0.0, %v6622
      %v6624 = vpop.f32.mrf.mxu0
      %6625 = vmatprep.mubr.bf16.mxu0 0
      %6626 = vmatmul.mubr.bf16.gmra.mxu0 %v6443
      %v6627 = vpop.f32.mrf.mxu0
      %v6628 = vadd.f32 0.0, %v6627
      %v6629 = vpop.f32.mrf.mxu0
      %v6630 = vpop.f32.mrf.mxu0
      %v6631 = vadd.f32 0.0, %v6630
      %v6632 = vpop.f32.mrf.mxu0
      %6633 = vmatprep.mubr.bf16.mxu0 0
      %6634 = vmatmul.mubr.bf16.gmra.mxu0 %v6444
      %v6635 = vpop.f32.mrf.mxu0
      %v6636 = vadd.f32 0.0, %v6635
      %v6637 = vpop.f32.mrf.mxu0
      %v6638 = vpop.f32.mrf.mxu0
      %v6639 = vadd.f32 0.0, %v6638
      %v6640 = vpop.f32.mrf.mxu0
      %6641 = vmatprep.mubr.bf16.mxu0 0
      %6642 = vmatmul.mubr.bf16.gmra.mxu0 %v6445
      %v6643 = vpop.f32.mrf.mxu0
      %v6644 = vadd.f32 0.0, %v6643
      %v6645 = vpop.f32.mrf.mxu0
      %v6646 = vpop.f32.mrf.mxu0
      %v6647 = vadd.f32 0.0, %v6646
      %v6648 = vpop.f32.mrf.mxu0
      %6649 = vmatprep.mubr.bf16.mxu0 0
      %6650 = vmatmul.mubr.bf16.gmra.mxu0 %v6446
      %v6651 = vpop.f32.mrf.mxu0
      %v6652 = vadd.f32 0.0, %v6651
      %v6653 = vpop.f32.mrf.mxu0
      %v6654 = vpop.f32.mrf.mxu0
      %v6655 = vadd.f32 0.0, %v6654
      %v6656 = vpop.f32.mrf.mxu0
      %6657 = vmatprep.mubr.bf16.mxu0 0
      %6658 = vmatmul.mubr.bf16.gmra.mxu0 %v6447
      %v6659 = vpop.f32.mrf.mxu0
      %v6660 = vadd.f32 0.0, %v6659
      %v6661 = vpop.f32.mrf.mxu0
      %v6662 = vpop.f32.mrf.mxu0
      %v6663 = vadd.f32 0.0, %v6662
      %v6664 = vpop.f32.mrf.mxu0
      %6665 = vmatprep.mubr.bf16.mxu0 0
      %6666 = vmatmul.mubr.bf16.gmra.mxu0 %v6448
      %v6667 = vpop.f32.mrf.mxu0
      %v6668 = vadd.f32 0.0, %v6667
      %v6669 = vpop.f32.mrf.mxu0
      %v6670 = vpop.f32.mrf.mxu0
      %v6671 = vadd.f32 0.0, %v6670
      %v6672 = vpop.f32.mrf.mxu0
      %6673 = vdwg.mxu0
      %v6674 = vunpack.c.l.b16 %v5996
      %v6675 = vunpack.c.l.b16 %v6005
      %v6676 = vunpack.c.l.b16 %v6018
      %v6677 = vunpack.c.l.b16 %v6027
      %v6678 = vunpack.c.l.b16 %v6040
      %v6679 = vunpack.c.l.b16 %v6049
      %v6680 = vunpack.c.l.b16 %v6062
      %v6681 = vunpack.c.l.b16 %v6071
      %v6682 = vunpack.c.l.b16 %v6084
      %v6683 = vunpack.c.l.b16 %v6093
      %v6684 = vunpack.c.l.b16 %v6106
      %v6685 = vunpack.c.l.b16 %v6115
      %v6686 = vunpack.c.l.b16 %v6128
      %v6687 = vunpack.c.l.b16 %v6137
      %v6688 = vunpack.c.l.b16 %v6150
      %v6689 = vunpack.c.l.b16 %v6159
      %v6690 = vunpack.c.l.b16 %v6172
      %v6691 = vunpack.c.l.b16 %v6181
      %v6692 = vunpack.c.l.b16 %v6194
      %v6693 = vunpack.c.l.b16 %v6203
      %v6694 = vunpack.c.l.b16 %v6216
      %v6695 = vunpack.c.l.b16 %v6225
      %v6696 = vunpack.c.l.b16 %v6238
      %v6697 = vunpack.c.l.b16 %v6247
      %v6698 = vunpack.c.l.b16 %v6260
      %v6699 = vunpack.c.l.b16 %v6269
      %v6700 = vunpack.c.l.b16 %v6282
      %v6701 = vunpack.c.l.b16 %v6291
      %v6702 = vunpack.c.l.b16 %v6304
      %v6703 = vunpack.c.l.b16 %v6313
      %v6704 = vunpack.c.l.b16 %v6326
      %v6705 = vunpack.c.l.b16 %v6335
      %v6706 = vpack.c.b16 %v6675, %v6674
      %v6707 = vpack.c.b16 %v6677, %v6676
      %v6708 = vpack.c.b16 %v6679, %v6678
      %v6709 = vpack.c.b16 %v6681, %v6680
      %v6710 = vpack.c.b16 %v6683, %v6682
      %v6711 = vpack.c.b16 %v6685, %v6684
      %v6712 = vpack.c.b16 %v6687, %v6686
      %v6713 = vpack.c.b16 %v6689, %v6688
      %v6714 = vpack.c.b16 %v6691, %v6690
      %v6715 = vpack.c.b16 %v6693, %v6692
      %v6716 = vpack.c.b16 %v6695, %v6694
      %v6717 = vpack.c.b16 %v6697, %v6696
      %v6718 = vpack.c.b16 %v6699, %v6698
      %v6719 = vpack.c.b16 %v6701, %v6700
      %v6720 = vpack.c.b16 %v6703, %v6702
      %v6721 = vpack.c.b16 %v6705, %v6704
      %v6754 = vunpack.c.l.b16 %v6336
      %v6755 = vunpack.c.l.b16 %v6337
      %v6756 = vunpack.c.l.b16 %v6338
      %v6757 = vunpack.c.l.b16 %v6339
      %v6758 = vunpack.c.l.b16 %v6340
      %v6759 = vunpack.c.l.b16 %v6341
      %v6760 = vunpack.c.l.b16 %v6342
      %v6761 = vunpack.c.l.b16 %v6343
      %v6762 = vunpack.c.l.b16 %v6344
      %v6763 = vunpack.c.l.b16 %v6345
      %v6764 = vunpack.c.l.b16 %v6346
      %v6765 = vunpack.c.l.b16 %v6347
      %v6766 = vunpack.c.l.b16 %v6348
      %v6767 = vunpack.c.l.b16 %v6349
      %v6768 = vunpack.c.l.b16 %v6350
      %v6769 = vunpack.c.l.b16 %v6351
      %v6770 = vpack.c.b16 %v6755, %v6754
      %v6771 = vpack.c.b16 %v6757, %v6756
      %v6772 = vpack.c.b16 %v6759, %v6758
      %v6773 = vpack.c.b16 %v6761, %v6760
      %v6774 = vpack.c.b16 %v6763, %v6762
      %v6775 = vpack.c.b16 %v6765, %v6764
      %v6776 = vpack.c.b16 %v6767, %v6766
      %v6777 = vpack.c.b16 %v6769, %v6768
      %6786 = vmatprep.subr.bf16.mxu0 0
      %6787 = vmatpush1.bf16.msra.mxu0 %v6777
      %6788 = vmatprep.subr.bf16.mxu0 0
      %6789 = vmatpush1.bf16.msra.mxu0 %v6776
      %6790 = vmatprep.subr.bf16.mxu0 0
      %6791 = vmatpush1.bf16.msra.mxu0 %v6775
      %6792 = vmatprep.subr.bf16.mxu0 0
      %6793 = vmatpush1.bf16.msra.mxu0 %v6774
      %6794 = vmatprep.subr.bf16.mxu0 0
      %6795 = vmatpush1.bf16.msra.mxu0 %v6773
      %6796 = vmatprep.subr.bf16.mxu0 0
      %6797 = vmatpush1.bf16.msra.mxu0 %v6772
      %6798 = vmatprep.subr.bf16.mxu0 0
      %6799 = vmatpush1.bf16.msra.mxu0 %v6771
      %6800 = vmatprep.subr.bf16.mxu0 0
      %6801 = vmatpush1.bf16.msra.mxu0 %v6770
      %6802 = vmatprep.subr.bf16.mxu0 0
      %6803 = vmatpush2.bf16.msra.mxu0 0
      %6804 = vmatprep.subr.bf16.mxu0 0
      %6805 = vmatpush2.bf16.msra.mxu0 0
      %6806 = vmatprep.subr.bf16.mxu0 0
      %6807 = vmatpush2.bf16.msra.mxu0 0
      %6808 = vmatprep.subr.bf16.mxu0 0
      %6809 = vmatpush2.bf16.msra.mxu0 0
      %6810 = vmatprep.subr.bf16.mxu0 0
      %6811 = vmatpush2.bf16.msra.mxu0 0
      %6812 = vmatprep.subr.bf16.mxu0 0
      %6813 = vmatpush2.bf16.msra.mxu0 0
      %6814 = vmatprep.subr.bf16.mxu0 0
      %6815 = vmatpush2.bf16.msra.mxu0 0
      %6816 = vmatprep.subr.bf16.mxu0 0
      %6817 = vmatpush2.bf16.msra.mxu0 0
      %6818 = vmatprep.mubr.bf16.mxu0 0
      %6819 = vmatmul.mubr.bf16.gmra.mxu0 %v6706
      %v6820 = vpop.f32.mrf.mxu0
      %v6821 = vadd.f32 %v6548, %v6820
      %v6822 = vpop.f32.mrf.mxu0
      %v6823 = vpop.f32.mrf.mxu0
      %v6824 = vadd.f32 %v6551, %v6823
      %v6825 = vpop.f32.mrf.mxu0
      %6826 = vmatprep.mubr.bf16.mxu0 0
      %6827 = vmatmul.mubr.bf16.gmra.mxu0 %v6707
      %v6828 = vpop.f32.mrf.mxu0
      %v6829 = vadd.f32 %v6556, %v6828
      %v6830 = vpop.f32.mrf.mxu0
      %v6831 = vpop.f32.mrf.mxu0
      %v6832 = vadd.f32 %v6559, %v6831
      %v6833 = vpop.f32.mrf.mxu0
      %6834 = vmatprep.mubr.bf16.mxu0 0
      %6835 = vmatmul.mubr.bf16.gmra.mxu0 %v6708
      %v6836 = vpop.f32.mrf.mxu0
      %v6837 = vadd.f32 %v6564, %v6836
      %v6838 = vpop.f32.mrf.mxu0
      %v6839 = vpop.f32.mrf.mxu0
      %v6840 = vadd.f32 %v6567, %v6839
      %v6841 = vpop.f32.mrf.mxu0
      %6842 = vmatprep.mubr.bf16.mxu0 0
      %6843 = vmatmul.mubr.bf16.gmra.mxu0 %v6709
      %v6844 = vpop.f32.mrf.mxu0
      %v6845 = vadd.f32 %v6572, %v6844
      %v6846 = vpop.f32.mrf.mxu0
      %v6847 = vpop.f32.mrf.mxu0
      %v6848 = vadd.f32 %v6575, %v6847
      %v6849 = vpop.f32.mrf.mxu0
      %6850 = vmatprep.mubr.bf16.mxu0 0
      %6851 = vmatmul.mubr.bf16.gmra.mxu0 %v6710
      %v6852 = vpop.f32.mrf.mxu0
      %v6853 = vadd.f32 %v6580, %v6852
      %v6854 = vpop.f32.mrf.mxu0
      %v6855 = vpop.f32.mrf.mxu0
      %v6856 = vadd.f32 %v6583, %v6855
      %v6857 = vpop.f32.mrf.mxu0
      %6858 = vmatprep.mubr.bf16.mxu0 0
      %6859 = vmatmul.mubr.bf16.gmra.mxu0 %v6711
      %v6860 = vpop.f32.mrf.mxu0
      %v6861 = vadd.f32 %v6588, %v6860
      %v6862 = vpop.f32.mrf.mxu0
      %v6863 = vpop.f32.mrf.mxu0
      %v6864 = vadd.f32 %v6591, %v6863
      %v6865 = vpop.f32.mrf.mxu0
      %6866 = vmatprep.mubr.bf16.mxu0 0
      %6867 = vmatmul.mubr.bf16.gmra.mxu0 %v6712
      %v6868 = vpop.f32.mrf.mxu0
      %v6869 = vadd.f32 %v6596, %v6868
      %v6870 = vpop.f32.mrf.mxu0
      %v6871 = vpop.f32.mrf.mxu0
      %v6872 = vadd.f32 %v6599, %v6871
      %v6873 = vpop.f32.mrf.mxu0
      %6874 = vmatprep.mubr.bf16.mxu0 0
      %6875 = vmatmul.mubr.bf16.gmra.mxu0 %v6713
      %v6876 = vpop.f32.mrf.mxu0
      %v6877 = vadd.f32 %v6604, %v6876
      %v6878 = vpop.f32.mrf.mxu0
      %v6879 = vpop.f32.mrf.mxu0
      %v6880 = vadd.f32 %v6607, %v6879
      %v6881 = vpop.f32.mrf.mxu0
      %6882 = vmatprep.mubr.bf16.mxu0 0
      %6883 = vmatmul.mubr.bf16.gmra.mxu0 %v6714
      %v6884 = vpop.f32.mrf.mxu0
      %v6885 = vadd.f32 %v6612, %v6884
      %v6886 = vpop.f32.mrf.mxu0
      %v6887 = vpop.f32.mrf.mxu0
      %v6888 = vadd.f32 %v6615, %v6887
      %v6889 = vpop.f32.mrf.mxu0
      %6890 = vmatprep.mubr.bf16.mxu0 0
      %6891 = vmatmul.mubr.bf16.gmra.mxu0 %v6715
      %v6892 = vpop.f32.mrf.mxu0
      %v6893 = vadd.f32 %v6620, %v6892
      %v6894 = vpop.f32.mrf.mxu0
      %v6895 = vpop.f32.mrf.mxu0
      %v6896 = vadd.f32 %v6623, %v6895
      %v6897 = vpop.f32.mrf.mxu0
      %6898 = vmatprep.mubr.bf16.mxu0 0
      %6899 = vmatmul.mubr.bf16.gmra.mxu0 %v6716
      %v6900 = vpop.f32.mrf.mxu0
      %v6901 = vadd.f32 %v6628, %v6900
      %v6902 = vpop.f32.mrf.mxu0
      %v6903 = vpop.f32.mrf.mxu0
      %v6904 = vadd.f32 %v6631, %v6903
      %v6905 = vpop.f32.mrf.mxu0
      %6906 = vmatprep.mubr.bf16.mxu0 0
      %6907 = vmatmul.mubr.bf16.gmra.mxu0 %v6717
      %v6908 = vpop.f32.mrf.mxu0
      %v6909 = vadd.f32 %v6636, %v6908
      %v6910 = vpop.f32.mrf.mxu0
      %v6911 = vpop.f32.mrf.mxu0
      %v6912 = vadd.f32 %v6639, %v6911
      %v6913 = vpop.f32.mrf.mxu0
      %6914 = vmatprep.mubr.bf16.mxu0 0
      %6915 = vmatmul.mubr.bf16.gmra.mxu0 %v6718
      %v6916 = vpop.f32.mrf.mxu0
      %v6917 = vadd.f32 %v6644, %v6916
      %v6918 = vpop.f32.mrf.mxu0
      %v6919 = vpop.f32.mrf.mxu0
      %v6920 = vadd.f32 %v6647, %v6919
      %v6921 = vpop.f32.mrf.mxu0
      %6922 = vmatprep.mubr.bf16.mxu0 0
      %6923 = vmatmul.mubr.bf16.gmra.mxu0 %v6719
      %v6924 = vpop.f32.mrf.mxu0
      %v6925 = vadd.f32 %v6652, %v6924
      %v6926 = vpop.f32.mrf.mxu0
      %v6927 = vpop.f32.mrf.mxu0
      %v6928 = vadd.f32 %v6655, %v6927
      %v6929 = vpop.f32.mrf.mxu0
      %6930 = vmatprep.mubr.bf16.mxu0 0
      %6931 = vmatmul.mubr.bf16.gmra.mxu0 %v6720
      %v6932 = vpop.f32.mrf.mxu0
      %v6933 = vadd.f32 %v6660, %v6932
      %v6934 = vpop.f32.mrf.mxu0
      %v6935 = vpop.f32.mrf.mxu0
      %v6936 = vadd.f32 %v6663, %v6935
      %v6937 = vpop.f32.mrf.mxu0
      %6938 = vmatprep.mubr.bf16.mxu0 0
      %6939 = vmatmul.mubr.bf16.gmra.mxu0 %v6721
      %v6940 = vpop.f32.mrf.mxu0
      %v6941 = vadd.f32 %v6668, %v6940
      %v6942 = vpop.f32.mrf.mxu0
      %v6943 = vpop.f32.mrf.mxu0
      %v6944 = vadd.f32 %v6671, %v6943
      %v6945 = vpop.f32.mrf.mxu0
      %6946 = vdwg.mxu0
      %v6947 = vld [vmem:[#allocation2 + $0x4] sm:$0xf]
      %v6948 = vld [vmem:[#allocation2 + $0x8] sm:$0xf]
      %v6949 = vld [vmem:[#allocation2 + $0xc] sm:$0x1]
      %v6950 = vld [vmem:[#allocation2 + $0x14] sm:$0xf]
      %v6951 = vld [vmem:[#allocation2 + $0x18] sm:$0xf]
      %v6952 = vld [vmem:[#allocation2 + $0x1c] sm:$0x1]
      %v6953 = vld [vmem:[#allocation2 + $0x24] sm:$0xf]
      %v6954 = vld [vmem:[#allocation2 + $0x28] sm:$0xf]
      %v6955 = vld [vmem:[#allocation2 + $0x2c] sm:$0x1]
      %v6956 = vld [vmem:[#allocation2 + $0x34] sm:$0xf]
      %v6957 = vld [vmem:[#allocation2 + $0x38] sm:$0xf]
      %v6958 = vld [vmem:[#allocation2 + $0x3c] sm:$0x1]
      %v6959 = vld [vmem:[#allocation2 + $0x44] sm:$0xf]
      %v6960 = vld [vmem:[#allocation2 + $0x48] sm:$0xf]
      %v6961 = vld [vmem:[#allocation2 + $0x4c] sm:$0x1]
      %v6962 = vld [vmem:[#allocation2 + $0x54] sm:$0xf]
      %v6963 = vld [vmem:[#allocation2 + $0x58] sm:$0xf]
      %v6964 = vld [vmem:[#allocation2 + $0x5c] sm:$0x1]
      %v6965 = vld [vmem:[#allocation2 + $0x64] sm:$0xf]
      %v6966 = vld [vmem:[#allocation2 + $0x68] sm:$0xf]
      %v6967 = vld [vmem:[#allocation2 + $0x6c] sm:$0x1]
      %v6968 = vld [vmem:[#allocation2 + $0x74] sm:$0xf]
      %v6969 = vld [vmem:[#allocation2 + $0x78] sm:$0xf]
      %v6970 = vld [vmem:[#allocation2 + $0x7c] sm:$0x1]
      %v6971 = vld [vmem:[#allocation2 + $0x84] sm:$0xf]
      %v6972 = vld [vmem:[#allocation2 + $0x88] sm:$0xf]
      %v6973 = vld [vmem:[#allocation2 + $0x8c] sm:$0x1]
      %v6974 = vld [vmem:[#allocation2 + $0x94] sm:$0xf]
      %v6975 = vld [vmem:[#allocation2 + $0x98] sm:$0xf]
      %v6976 = vld [vmem:[#allocation2 + $0x9c] sm:$0x1]
      %v6977 = vld [vmem:[#allocation2 + $0xa4] sm:$0xf]
      %v6978 = vld [vmem:[#allocation2 + $0xa8] sm:$0xf]
      %v6979 = vld [vmem:[#allocation2 + $0xac] sm:$0x1]
      %v6980 = vld [vmem:[#allocation2 + $0xb4] sm:$0xf]
      %v6981 = vld [vmem:[#allocation2 + $0xb8] sm:$0xf]
      %v6982 = vld [vmem:[#allocation2 + $0xbc] sm:$0x1]
      %v6983 = vld [vmem:[#allocation2 + $0xc4] sm:$0xf]
      %v6984 = vld [vmem:[#allocation2 + $0xc8] sm:$0xf]
      %v6985 = vld [vmem:[#allocation2 + $0xcc] sm:$0x1]
      %v6986 = vld [vmem:[#allocation2 + $0xd4] sm:$0xf]
      %v6987 = vld [vmem:[#allocation2 + $0xd8] sm:$0xf]
      %v6988 = vld [vmem:[#allocation2 + $0xdc] sm:$0x1]
      %v6989 = vld [vmem:[#allocation2 + $0xe4] sm:$0xf]
      %v6990 = vld [vmem:[#allocation2 + $0xe8] sm:$0xf]
      %v6991 = vld [vmem:[#allocation2 + $0xec] sm:$0x1]
      %v6992 = vld [vmem:[#allocation2 + $0xf4] sm:$0xf]
      %v6993 = vld [vmem:[#allocation2 + $0xf8] sm:$0xf]
      %v6994 = vld [vmem:[#allocation2 + $0xfc] sm:$0x1]
      %v6996 = vshrl.u32 %v6947, 16
      %v6998 = vrot.slane %v6996, 4
      %v6999 = vshll.u32 %v6947, 16
      %v7001 = vrot.slane %v6999, 5
      %v7002 = vor.u32 %v6998, %v7001
      %v7003 = vrot.slane %v7002, 4
      %v7005 = vshll.u32 %v6948, 16
      %v7007 = vrot.slane %v7005, 5
      %v7008 = vsel %vm1290, %v7003, %v7007
      %v7009 = vshrl.u32 %v6948, 16
      %v7011 = vrot.slane %v7009, 4
      %v7012 = vor.u32 %v7011, %v7007
      %v7013 = vrot.slane %v7012, 4
      %v7015 = vshll.u32 %v6949, 16
      %v7017 = vrot.slane %v7015, 5
      %v7018 = vsel %vm1290, %v7013, %v7017
      %v7020 = vshrl.u32 %v6950, 16
      %v7022 = vrot.slane %v7020, 4
      %v7023 = vshll.u32 %v6950, 16
      %v7025 = vrot.slane %v7023, 5
      %v7026 = vor.u32 %v7022, %v7025
      %v7027 = vrot.slane %v7026, 4
      %v7029 = vshll.u32 %v6951, 16
      %v7031 = vrot.slane %v7029, 5
      %v7032 = vsel %vm1290, %v7027, %v7031
      %v7033 = vshrl.u32 %v6951, 16
      %v7035 = vrot.slane %v7033, 4
      %v7036 = vor.u32 %v7035, %v7031
      %v7037 = vrot.slane %v7036, 4
      %v7039 = vshll.u32 %v6952, 16
      %v7041 = vrot.slane %v7039, 5
      %v7042 = vsel %vm1290, %v7037, %v7041
      %v7044 = vshrl.u32 %v6953, 16
      %v7046 = vrot.slane %v7044, 4
      %v7047 = vshll.u32 %v6953, 16
      %v7049 = vrot.slane %v7047, 5
      %v7050 = vor.u32 %v7046, %v7049
      %v7051 = vrot.slane %v7050, 4
      %v7053 = vshll.u32 %v6954, 16
      %v7055 = vrot.slane %v7053, 5
      %v7056 = vsel %vm1290, %v7051, %v7055
      %v7057 = vshrl.u32 %v6954, 16
      %v7059 = vrot.slane %v7057, 4
      %v7060 = vor.u32 %v7059, %v7055
      %v7061 = vrot.slane %v7060, 4
      %v7063 = vshll.u32 %v6955, 16
      %v7065 = vrot.slane %v7063, 5
      %v7066 = vsel %vm1290, %v7061, %v7065
      %v7068 = vshrl.u32 %v6956, 16
      %v7070 = vrot.slane %v7068, 4
      %v7071 = vshll.u32 %v6956, 16
      %v7073 = vrot.slane %v7071, 5
      %v7074 = vor.u32 %v7070, %v7073
      %v7075 = vrot.slane %v7074, 4
      %v7077 = vshll.u32 %v6957, 16
      %v7079 = vrot.slane %v7077, 5
      %v7080 = vsel %vm1290, %v7075, %v7079
      %v7081 = vshrl.u32 %v6957, 16
      %v7083 = vrot.slane %v7081, 4
      %v7084 = vor.u32 %v7083, %v7079
      %v7085 = vrot.slane %v7084, 4
      %v7087 = vshll.u32 %v6958, 16
      %v7089 = vrot.slane %v7087, 5
      %v7090 = vsel %vm1290, %v7085, %v7089
      %v7092 = vshrl.u32 %v6959, 16
      %v7094 = vrot.slane %v7092, 4
      %v7095 = vshll.u32 %v6959, 16
      %v7097 = vrot.slane %v7095, 5
      %v7098 = vor.u32 %v7094, %v7097
      %v7099 = vrot.slane %v7098, 4
      %v7101 = vshll.u32 %v6960, 16
      %v7103 = vrot.slane %v7101, 5
      %v7104 = vsel %vm1290, %v7099, %v7103
      %v7105 = vshrl.u32 %v6960, 16
      %v7107 = vrot.slane %v7105, 4
      %v7108 = vor.u32 %v7107, %v7103
      %v7109 = vrot.slane %v7108, 4
      %v7111 = vshll.u32 %v6961, 16
      %v7113 = vrot.slane %v7111, 5
      %v7114 = vsel %vm1290, %v7109, %v7113
      %v7116 = vshrl.u32 %v6962, 16
      %v7118 = vrot.slane %v7116, 4
      %v7119 = vshll.u32 %v6962, 16
      %v7121 = vrot.slane %v7119, 5
      %v7122 = vor.u32 %v7118, %v7121
      %v7123 = vrot.slane %v7122, 4
      %v7125 = vshll.u32 %v6963, 16
      %v7127 = vrot.slane %v7125, 5
      %v7128 = vsel %vm1290, %v7123, %v7127
      %v7129 = vshrl.u32 %v6963, 16
      %v7131 = vrot.slane %v7129, 4
      %v7132 = vor.u32 %v7131, %v7127
      %v7133 = vrot.slane %v7132, 4
      %v7135 = vshll.u32 %v6964, 16
      %v7137 = vrot.slane %v7135, 5
      %v7138 = vsel %vm1290, %v7133, %v7137
      %v7140 = vshrl.u32 %v6965, 16
      %v7142 = vrot.slane %v7140, 4
      %v7143 = vshll.u32 %v6965, 16
      %v7145 = vrot.slane %v7143, 5
      %v7146 = vor.u32 %v7142, %v7145
      %v7147 = vrot.slane %v7146, 4
      %v7149 = vshll.u32 %v6966, 16
      %v7151 = vrot.slane %v7149, 5
      %v7152 = vsel %vm1290, %v7147, %v7151
      %v7153 = vshrl.u32 %v6966, 16
      %v7155 = vrot.slane %v7153, 4
      %v7156 = vor.u32 %v7155, %v7151
      %v7157 = vrot.slane %v7156, 4
      %v7159 = vshll.u32 %v6967, 16
      %v7161 = vrot.slane %v7159, 5
      %v7162 = vsel %vm1290, %v7157, %v7161
      %v7164 = vshrl.u32 %v6968, 16
      %v7166 = vrot.slane %v7164, 4
      %v7167 = vshll.u32 %v6968, 16
      %v7169 = vrot.slane %v7167, 5
      %v7170 = vor.u32 %v7166, %v7169
      %v7171 = vrot.slane %v7170, 4
      %v7173 = vshll.u32 %v6969, 16
      %v7175 = vrot.slane %v7173, 5
      %v7176 = vsel %vm1290, %v7171, %v7175
      %v7177 = vshrl.u32 %v6969, 16
      %v7179 = vrot.slane %v7177, 4
      %v7180 = vor.u32 %v7179, %v7175
      %v7181 = vrot.slane %v7180, 4
      %v7183 = vshll.u32 %v6970, 16
      %v7185 = vrot.slane %v7183, 5
      %v7186 = vsel %vm1290, %v7181, %v7185
      %v7188 = vshrl.u32 %v6971, 16
      %v7190 = vrot.slane %v7188, 4
      %v7191 = vshll.u32 %v6971, 16
      %v7193 = vrot.slane %v7191, 5
      %v7194 = vor.u32 %v7190, %v7193
      %v7195 = vrot.slane %v7194, 4
      %v7197 = vshll.u32 %v6972, 16
      %v7199 = vrot.slane %v7197, 5
      %v7200 = vsel %vm1290, %v7195, %v7199
      %v7201 = vshrl.u32 %v6972, 16
      %v7203 = vrot.slane %v7201, 4
      %v7204 = vor.u32 %v7203, %v7199
      %v7205 = vrot.slane %v7204, 4
      %v7207 = vshll.u32 %v6973, 16
      %v7209 = vrot.slane %v7207, 5
      %v7210 = vsel %vm1290, %v7205, %v7209
      %v7212 = vshrl.u32 %v6974, 16
      %v7214 = vrot.slane %v7212, 4
      %v7215 = vshll.u32 %v6974, 16
      %v7217 = vrot.slane %v7215, 5
      %v7218 = vor.u32 %v7214, %v7217
      %v7219 = vrot.slane %v7218, 4
      %v7221 = vshll.u32 %v6975, 16
      %v7223 = vrot.slane %v7221, 5
      %v7224 = vsel %vm1290, %v7219, %v7223
      %v7225 = vshrl.u32 %v6975, 16
      %v7227 = vrot.slane %v7225, 4
      %v7228 = vor.u32 %v7227, %v7223
      %v7229 = vrot.slane %v7228, 4
      %v7231 = vshll.u32 %v6976, 16
      %v7233 = vrot.slane %v7231, 5
      %v7234 = vsel %vm1290, %v7229, %v7233
      %v7236 = vshrl.u32 %v6977, 16
      %v7238 = vrot.slane %v7236, 4
      %v7239 = vshll.u32 %v6977, 16
      %v7241 = vrot.slane %v7239, 5
      %v7242 = vor.u32 %v7238, %v7241
      %v7243 = vrot.slane %v7242, 4
      %v7245 = vshll.u32 %v6978, 16
      %v7247 = vrot.slane %v7245, 5
      %v7248 = vsel %vm1290, %v7243, %v7247
      %v7249 = vshrl.u32 %v6978, 16
      %v7251 = vrot.slane %v7249, 4
      %v7252 = vor.u32 %v7251, %v7247
      %v7253 = vrot.slane %v7252, 4
      %v7255 = vshll.u32 %v6979, 16
      %v7257 = vrot.slane %v7255, 5
      %v7258 = vsel %vm1290, %v7253, %v7257
      %v7260 = vshrl.u32 %v6980, 16
      %v7262 = vrot.slane %v7260, 4
      %v7263 = vshll.u32 %v6980, 16
      %v7265 = vrot.slane %v7263, 5
      %v7266 = vor.u32 %v7262, %v7265
      %v7267 = vrot.slane %v7266, 4
      %v7269 = vshll.u32 %v6981, 16
      %v7271 = vrot.slane %v7269, 5
      %v7272 = vsel %vm1290, %v7267, %v7271
      %v7273 = vshrl.u32 %v6981, 16
      %v7275 = vrot.slane %v7273, 4
      %v7276 = vor.u32 %v7275, %v7271
      %v7277 = vrot.slane %v7276, 4
      %v7279 = vshll.u32 %v6982, 16
      %v7281 = vrot.slane %v7279, 5
      %v7282 = vsel %vm1290, %v7277, %v7281
      %v7284 = vshrl.u32 %v6983, 16
      %v7286 = vrot.slane %v7284, 4
      %v7287 = vshll.u32 %v6983, 16
      %v7289 = vrot.slane %v7287, 5
      %v7290 = vor.u32 %v7286, %v7289
      %v7291 = vrot.slane %v7290, 4
      %v7293 = vshll.u32 %v6984, 16
      %v7295 = vrot.slane %v7293, 5
      %v7296 = vsel %vm1290, %v7291, %v7295
      %v7297 = vshrl.u32 %v6984, 16
      %v7299 = vrot.slane %v7297, 4
      %v7300 = vor.u32 %v7299, %v7295
      %v7301 = vrot.slane %v7300, 4
      %v7303 = vshll.u32 %v6985, 16
      %v7305 = vrot.slane %v7303, 5
      %v7306 = vsel %vm1290, %v7301, %v7305
      %v7308 = vshrl.u32 %v6986, 16
      %v7310 = vrot.slane %v7308, 4
      %v7311 = vshll.u32 %v6986, 16
      %v7313 = vrot.slane %v7311, 5
      %v7314 = vor.u32 %v7310, %v7313
      %v7315 = vrot.slane %v7314, 4
      %v7317 = vshll.u32 %v6987, 16
      %v7319 = vrot.slane %v7317, 5
      %v7320 = vsel %vm1290, %v7315, %v7319
      %v7321 = vshrl.u32 %v6987, 16
      %v7323 = vrot.slane %v7321, 4
      %v7324 = vor.u32 %v7323, %v7319
      %v7325 = vrot.slane %v7324, 4
      %v7327 = vshll.u32 %v6988, 16
      %v7329 = vrot.slane %v7327, 5
      %v7330 = vsel %vm1290, %v7325, %v7329
      %v7332 = vshrl.u32 %v6989, 16
      %v7334 = vrot.slane %v7332, 4
      %v7335 = vshll.u32 %v6989, 16
      %v7337 = vrot.slane %v7335, 5
      %v7338 = vor.u32 %v7334, %v7337
      %v7339 = vrot.slane %v7338, 4
      %v7341 = vshll.u32 %v6990, 16
      %v7343 = vrot.slane %v7341, 5
      %v7344 = vsel %vm1290, %v7339, %v7343
      %v7345 = vshrl.u32 %v6990, 16
      %v7347 = vrot.slane %v7345, 4
      %v7348 = vor.u32 %v7347, %v7343
      %v7349 = vrot.slane %v7348, 4
      %v7351 = vshll.u32 %v6991, 16
      %v7353 = vrot.slane %v7351, 5
      %v7354 = vsel %vm1290, %v7349, %v7353
      %v7356 = vshrl.u32 %v6992, 16
      %v7358 = vrot.slane %v7356, 4
      %v7359 = vshll.u32 %v6992, 16
      %v7361 = vrot.slane %v7359, 5
      %v7362 = vor.u32 %v7358, %v7361
      %v7363 = vrot.slane %v7362, 4
      %v7365 = vshll.u32 %v6993, 16
      %v7367 = vrot.slane %v7365, 5
      %v7368 = vsel %vm1290, %v7363, %v7367
      %v7369 = vshrl.u32 %v6993, 16
      %v7371 = vrot.slane %v7369, 4
      %v7372 = vor.u32 %v7371, %v7367
      %v7373 = vrot.slane %v7372, 4
      %v7375 = vshll.u32 %v6994, 16
      %v7377 = vrot.slane %v7375, 5
      %v7378 = vsel %vm1290, %v7373, %v7377
      %s7379 = scalar_lea.vmem %s3, 128
      %v7380 = vld [vmem:[%s7379] sm:$0xf]
      %v7381 = vld [vmem:[%s7379 + $0x4] sm:$0xf]
      %v7382 = vld [vmem:[%s7379 + $0x8] sm:$0xf]
      %v7383 = vld [vmem:[%s7379 + $0xc] sm:$0xf]
      %v7384 = vld [vmem:[%s7379 + $0x10] sm:$0xf]
      %v7385 = vld [vmem:[%s7379 + $0x14] sm:$0xf]
      %v7386 = vld [vmem:[%s7379 + $0x18] sm:$0xf]
      %v7387 = vld [vmem:[%s7379 + $0x1c] sm:$0xf]
      %v7388 = vld [vmem:[%s7379 + $0x20] sm:$0xf]
      %v7389 = vld [vmem:[%s7379 + $0x24] sm:$0xf]
      %v7390 = vld [vmem:[%s7379 + $0x28] sm:$0xf]
      %v7391 = vld [vmem:[%s7379 + $0x2c] sm:$0xf]
      %v7392 = vld [vmem:[%s7379 + $0x30] sm:$0xf]
      %v7393 = vld [vmem:[%s7379 + $0x34] sm:$0xf]
      %v7394 = vld [vmem:[%s7379 + $0x38] sm:$0xf]
      %v7395 = vld [vmem:[%s7379 + $0x3c] sm:$0xf]
      %v7396 = vunpack.c.l.b16 %v7008
      %v7397 = vunpack.c.l.b16 %v7018
      %v7398 = vunpack.c.l.b16 %v7032
      %v7399 = vunpack.c.l.b16 %v7042
      %v7400 = vunpack.c.l.b16 %v7056
      %v7401 = vunpack.c.l.b16 %v7066
      %v7402 = vunpack.c.l.b16 %v7080
      %v7403 = vunpack.c.l.b16 %v7090
      %v7404 = vunpack.c.l.b16 %v7104
      %v7405 = vunpack.c.l.b16 %v7114
      %v7406 = vunpack.c.l.b16 %v7128
      %v7407 = vunpack.c.l.b16 %v7138
      %v7408 = vunpack.c.l.b16 %v7152
      %v7409 = vunpack.c.l.b16 %v7162
      %v7410 = vunpack.c.l.b16 %v7176
      %v7411 = vunpack.c.l.b16 %v7186
      %v7412 = vunpack.c.l.b16 %v7200
      %v7413 = vunpack.c.l.b16 %v7210
      %v7414 = vunpack.c.l.b16 %v7224
      %v7415 = vunpack.c.l.b16 %v7234
      %v7416 = vunpack.c.l.b16 %v7248
      %v7417 = vunpack.c.l.b16 %v7258
      %v7418 = vunpack.c.l.b16 %v7272
      %v7419 = vunpack.c.l.b16 %v7282
      %v7420 = vunpack.c.l.b16 %v7296
      %v7421 = vunpack.c.l.b16 %v7306
      %v7422 = vunpack.c.l.b16 %v7320
      %v7423 = vunpack.c.l.b16 %v7330
      %v7424 = vunpack.c.l.b16 %v7344
      %v7425 = vunpack.c.l.b16 %v7354
      %v7426 = vunpack.c.l.b16 %v7368
      %v7427 = vunpack.c.l.b16 %v7378
      %v7428 = vpack.c.b16 %v7397, %v7396
      %v7429 = vpack.c.b16 %v7399, %v7398
      %v7430 = vpack.c.b16 %v7401, %v7400
      %v7431 = vpack.c.b16 %v7403, %v7402
      %v7432 = vpack.c.b16 %v7405, %v7404
      %v7433 = vpack.c.b16 %v7407, %v7406
      %v7434 = vpack.c.b16 %v7409, %v7408
      %v7435 = vpack.c.b16 %v7411, %v7410
      %v7436 = vpack.c.b16 %v7413, %v7412
      %v7437 = vpack.c.b16 %v7415, %v7414
      %v7438 = vpack.c.b16 %v7417, %v7416
      %v7439 = vpack.c.b16 %v7419, %v7418
      %v7440 = vpack.c.b16 %v7421, %v7420
      %v7441 = vpack.c.b16 %v7423, %v7422
      %v7442 = vpack.c.b16 %v7425, %v7424
      %v7443 = vpack.c.b16 %v7427, %v7426
      %v7476 = vunpack.c.l.b16 %v7380
      %v7477 = vunpack.c.l.b16 %v7381
      %v7478 = vunpack.c.l.b16 %v7382
      %v7479 = vunpack.c.l.b16 %v7383
      %v7480 = vunpack.c.l.b16 %v7384
      %v7481 = vunpack.c.l.b16 %v7385
      %v7482 = vunpack.c.l.b16 %v7386
      %v7483 = vunpack.c.l.b16 %v7387
      %v7484 = vunpack.c.l.b16 %v7388
      %v7485 = vunpack.c.l.b16 %v7389
      %v7486 = vunpack.c.l.b16 %v7390
      %v7487 = vunpack.c.l.b16 %v7391
      %v7488 = vunpack.c.l.b16 %v7392
      %v7489 = vunpack.c.l.b16 %v7393
      %v7490 = vunpack.c.l.b16 %v7394
      %v7491 = vunpack.c.l.b16 %v7395
      %v7492 = vpack.c.b16 %v7477, %v7476
      %v7493 = vpack.c.b16 %v7479, %v7478
      %v7494 = vpack.c.b16 %v7481, %v7480
      %v7495 = vpack.c.b16 %v7483, %v7482
      %v7496 = vpack.c.b16 %v7485, %v7484
      %v7497 = vpack.c.b16 %v7487, %v7486
      %v7498 = vpack.c.b16 %v7489, %v7488
      %v7499 = vpack.c.b16 %v7491, %v7490
      %7508 = vmatprep.subr.bf16.mxu0 0
      %7509 = vmatpush1.bf16.msra.mxu0 %v7499
      %7510 = vmatprep.subr.bf16.mxu0 0
      %7511 = vmatpush1.bf16.msra.mxu0 %v7498
      %7512 = vmatprep.subr.bf16.mxu0 0
      %7513 = vmatpush1.bf16.msra.mxu0 %v7497
      %7514 = vmatprep.subr.bf16.mxu0 0
      %7515 = vmatpush1.bf16.msra.mxu0 %v7496
      %7516 = vmatprep.subr.bf16.mxu0 0
      %7517 = vmatpush1.bf16.msra.mxu0 %v7495
      %7518 = vmatprep.subr.bf16.mxu0 0
      %7519 = vmatpush1.bf16.msra.mxu0 %v7494
      %7520 = vmatprep.subr.bf16.mxu0 0
      %7521 = vmatpush1.bf16.msra.mxu0 %v7493
      %7522 = vmatprep.subr.bf16.mxu0 0
      %7523 = vmatpush1.bf16.msra.mxu0 %v7492
      %7524 = vmatprep.subr.bf16.mxu0 0
      %7525 = vmatpush2.bf16.msra.mxu0 0
      %7526 = vmatprep.subr.bf16.mxu0 0
      %7527 = vmatpush2.bf16.msra.mxu0 0
      %7528 = vmatprep.subr.bf16.mxu0 0
      %7529 = vmatpush2.bf16.msra.mxu0 0
      %7530 = vmatprep.subr.bf16.mxu0 0
      %7531 = vmatpush2.bf16.msra.mxu0 0
      %7532 = vmatprep.subr.bf16.mxu0 0
      %7533 = vmatpush2.bf16.msra.mxu0 0
      %7534 = vmatprep.subr.bf16.mxu0 0
      %7535 = vmatpush2.bf16.msra.mxu0 0
      %7536 = vmatprep.subr.bf16.mxu0 0
      %7537 = vmatpush2.bf16.msra.mxu0 0
      %7538 = vmatprep.subr.bf16.mxu0 0
      %7539 = vmatpush2.bf16.msra.mxu0 0
      %7540 = vmatprep.mubr.bf16.mxu0 0
      %7541 = vmatmul.mubr.bf16.gmra.mxu0 %v7428
      %v7542 = vpop.f32.mrf.mxu0
      %v7543 = vadd.f32 0.0, %v7542
      %v7544 = vpop.f32.mrf.mxu0
      %v7545 = vpop.f32.mrf.mxu0
      %v7546 = vadd.f32 0.0, %v7545
      %v7547 = vpop.f32.mrf.mxu0
      %7548 = vmatprep.mubr.bf16.mxu0 0
      %7549 = vmatmul.mubr.bf16.gmra.mxu0 %v7429
      %v7550 = vpop.f32.mrf.mxu0
      %v7551 = vadd.f32 0.0, %v7550
      %v7552 = vpop.f32.mrf.mxu0
      %v7553 = vpop.f32.mrf.mxu0
      %v7554 = vadd.f32 0.0, %v7553
      %v7555 = vpop.f32.mrf.mxu0
      %7556 = vmatprep.mubr.bf16.mxu0 0
      %7557 = vmatmul.mubr.bf16.gmra.mxu0 %v7430
      %v7558 = vpop.f32.mrf.mxu0
      %v7559 = vadd.f32 0.0, %v7558
      %v7560 = vpop.f32.mrf.mxu0
      %v7561 = vpop.f32.mrf.mxu0
      %v7562 = vadd.f32 0.0, %v7561
      %v7563 = vpop.f32.mrf.mxu0
      %7564 = vmatprep.mubr.bf16.mxu0 0
      %7565 = vmatmul.mubr.bf16.gmra.mxu0 %v7431
      %v7566 = vpop.f32.mrf.mxu0
      %v7567 = vadd.f32 0.0, %v7566
      %v7568 = vpop.f32.mrf.mxu0
      %v7569 = vpop.f32.mrf.mxu0
      %v7570 = vadd.f32 0.0, %v7569
      %v7571 = vpop.f32.mrf.mxu0
      %7572 = vmatprep.mubr.bf16.mxu0 0
      %7573 = vmatmul.mubr.bf16.gmra.mxu0 %v7432
      %v7574 = vpop.f32.mrf.mxu0
      %v7575 = vadd.f32 0.0, %v7574
      %v7576 = vpop.f32.mrf.mxu0
      %v7577 = vpop.f32.mrf.mxu0
      %v7578 = vadd.f32 0.0, %v7577
      %v7579 = vpop.f32.mrf.mxu0
      %7580 = vmatprep.mubr.bf16.mxu0 0
      %7581 = vmatmul.mubr.bf16.gmra.mxu0 %v7433
      %v7582 = vpop.f32.mrf.mxu0
      %v7583 = vadd.f32 0.0, %v7582
      %v7584 = vpop.f32.mrf.mxu0
      %v7585 = vpop.f32.mrf.mxu0
      %v7586 = vadd.f32 0.0, %v7585
      %v7587 = vpop.f32.mrf.mxu0
      %7588 = vmatprep.mubr.bf16.mxu0 0
      %7589 = vmatmul.mubr.bf16.gmra.mxu0 %v7434
      %v7590 = vpop.f32.mrf.mxu0
      %v7591 = vadd.f32 0.0, %v7590
      %v7592 = vpop.f32.mrf.mxu0
      %v7593 = vpop.f32.mrf.mxu0
      %v7594 = vadd.f32 0.0, %v7593
      %v7595 = vpop.f32.mrf.mxu0
      %7596 = vmatprep.mubr.bf16.mxu0 0
      %7597 = vmatmul.mubr.bf16.gmra.mxu0 %v7435
      %v7598 = vpop.f32.mrf.mxu0
      %v7599 = vadd.f32 0.0, %v7598
      %v7600 = vpop.f32.mrf.mxu0
      %v7601 = vpop.f32.mrf.mxu0
      %v7602 = vadd.f32 0.0, %v7601
      %v7603 = vpop.f32.mrf.mxu0
      %7604 = vmatprep.mubr.bf16.mxu0 0
      %7605 = vmatmul.mubr.bf16.gmra.mxu0 %v7436
      %v7606 = vpop.f32.mrf.mxu0
      %v7607 = vadd.f32 0.0, %v7606
      %v7608 = vpop.f32.mrf.mxu0
      %v7609 = vpop.f32.mrf.mxu0
      %v7610 = vadd.f32 0.0, %v7609
      %v7611 = vpop.f32.mrf.mxu0
      %7612 = vmatprep.mubr.bf16.mxu0 0
      %7613 = vmatmul.mubr.bf16.gmra.mxu0 %v7437
      %v7614 = vpop.f32.mrf.mxu0
      %v7615 = vadd.f32 0.0, %v7614
      %v7616 = vpop.f32.mrf.mxu0
      %v7617 = vpop.f32.mrf.mxu0
      %v7618 = vadd.f32 0.0, %v7617
      %v7619 = vpop.f32.mrf.mxu0
      %7620 = vmatprep.mubr.bf16.mxu0 0
      %7621 = vmatmul.mubr.bf16.gmra.mxu0 %v7438
      %v7622 = vpop.f32.mrf.mxu0
      %v7623 = vadd.f32 0.0, %v7622
      %v7624 = vpop.f32.mrf.mxu0
      %v7625 = vpop.f32.mrf.mxu0
      %v7626 = vadd.f32 0.0, %v7625
      %v7627 = vpop.f32.mrf.mxu0
      %7628 = vmatprep.mubr.bf16.mxu0 0
      %7629 = vmatmul.mubr.bf16.gmra.mxu0 %v7439
      %v7630 = vpop.f32.mrf.mxu0
      %v7631 = vadd.f32 0.0, %v7630
      %v7632 = vpop.f32.mrf.mxu0
      %v7633 = vpop.f32.mrf.mxu0
      %v7634 = vadd.f32 0.0, %v7633
      %v7635 = vpop.f32.mrf.mxu0
      %7636 = vmatprep.mubr.bf16.mxu0 0
      %7637 = vmatmul.mubr.bf16.gmra.mxu0 %v7440
      %v7638 = vpop.f32.mrf.mxu0
      %v7639 = vadd.f32 0.0, %v7638
      %v7640 = vpop.f32.mrf.mxu0
      %v7641 = vpop.f32.mrf.mxu0
      %v7642 = vadd.f32 0.0, %v7641
      %v7643 = vpop.f32.mrf.mxu0
      %7644 = vmatprep.mubr.bf16.mxu0 0
      %7645 = vmatmul.mubr.bf16.gmra.mxu0 %v7441
      %v7646 = vpop.f32.mrf.mxu0
      %v7647 = vadd.f32 0.0, %v7646
      %v7648 = vpop.f32.mrf.mxu0
      %v7649 = vpop.f32.mrf.mxu0
      %v7650 = vadd.f32 0.0, %v7649
      %v7651 = vpop.f32.mrf.mxu0
      %7652 = vmatprep.mubr.bf16.mxu0 0
      %7653 = vmatmul.mubr.bf16.gmra.mxu0 %v7442
      %v7654 = vpop.f32.mrf.mxu0
      %v7655 = vadd.f32 0.0, %v7654
      %v7656 = vpop.f32.mrf.mxu0
      %v7657 = vpop.f32.mrf.mxu0
      %v7658 = vadd.f32 0.0, %v7657
      %v7659 = vpop.f32.mrf.mxu0
      %7660 = vmatprep.mubr.bf16.mxu0 0
      %7661 = vmatmul.mubr.bf16.gmra.mxu0 %v7443
      %v7662 = vpop.f32.mrf.mxu0
      %v7663 = vadd.f32 0.0, %v7662
      %v7664 = vpop.f32.mrf.mxu0
      %v7665 = vpop.f32.mrf.mxu0
      %v7666 = vadd.f32 0.0, %v7665
      %v7667 = vpop.f32.mrf.mxu0
      %7668 = vdwg.mxu0
      %v7669 = vadd.f32 %v6821, %v7543
      %v7670 = vadd.f32 %v6824, %v7546
      %v7671 = vadd.f32 %v6829, %v7551
      %v7672 = vadd.f32 %v6832, %v7554
      %v7673 = vadd.f32 %v6837, %v7559
      %v7674 = vadd.f32 %v6840, %v7562
      %v7675 = vadd.f32 %v6845, %v7567
      %v7676 = vadd.f32 %v6848, %v7570
      %v7677 = vadd.f32 %v6853, %v7575
      %v7678 = vadd.f32 %v6856, %v7578
      %v7679 = vadd.f32 %v6861, %v7583
      %v7680 = vadd.f32 %v6864, %v7586
      %v7681 = vadd.f32 %v6869, %v7591
      %v7682 = vadd.f32 %v6872, %v7594
      %v7683 = vadd.f32 %v6877, %v7599
      %v7684 = vadd.f32 %v6880, %v7602
      %v7685 = vadd.f32 %v6885, %v7607
      %v7686 = vadd.f32 %v6888, %v7610
      %v7687 = vadd.f32 %v6893, %v7615
      %v7688 = vadd.f32 %v6896, %v7618
      %v7689 = vadd.f32 %v6901, %v7623
      %v7690 = vadd.f32 %v6904, %v7626
      %v7691 = vadd.f32 %v6909, %v7631
      %v7692 = vadd.f32 %v6912, %v7634
      %v7693 = vadd.f32 %v6917, %v7639
      %v7694 = vadd.f32 %v6920, %v7642
      %v7695 = vadd.f32 %v6925, %v7647
      %v7696 = vadd.f32 %v6928, %v7650
      %v7697 = vadd.f32 %v6933, %v7655
      %v7698 = vadd.f32 %v6936, %v7658
      %v7699 = vadd.f32 %v6941, %v7663
      %v7700 = vadd.f32 %v6944, %v7666
      %v7701 = vld [vmem:[%s5903] sm:$0x8]
      %v7702 = vld [vmem:[%s5903 + $0x4] sm:$0xf]
      %v7703 = vld [vmem:[%s5903 + $0x8] sm:$0xf]
      %v7704 = vld [vmem:[%s5903 + $0x10] sm:$0x8]
      %v7705 = vld [vmem:[%s5903 + $0x14] sm:$0xf]
      %v7706 = vld [vmem:[%s5903 + $0x18] sm:$0xf]
      %v7707 = vld [vmem:[%s5903 + $0x20] sm:$0x8]
      %v7708 = vld [vmem:[%s5903 + $0x24] sm:$0xf]
      %v7709 = vld [vmem:[%s5903 + $0x28] sm:$0xf]
      %v7710 = vld [vmem:[%s5903 + $0x30] sm:$0x8]
      %v7711 = vld [vmem:[%s5903 + $0x34] sm:$0xf]
      %v7712 = vld [vmem:[%s5903 + $0x38] sm:$0xf]
      %v7713 = vld [vmem:[%s5903 + $0x40] sm:$0x8]
      %v7714 = vld [vmem:[%s5903 + $0x44] sm:$0xf]
      %v7715 = vld [vmem:[%s5903 + $0x48] sm:$0xf]
      %v7716 = vld [vmem:[%s5903 + $0x50] sm:$0x8]
      %v7717 = vld [vmem:[%s5903 + $0x54] sm:$0xf]
      %v7718 = vld [vmem:[%s5903 + $0x58] sm:$0xf]
      %v7719 = vld [vmem:[%s5903 + $0x60] sm:$0x8]
      %v7720 = vld [vmem:[%s5903 + $0x64] sm:$0xf]
      %v7721 = vld [vmem:[%s5903 + $0x68] sm:$0xf]
      %v7722 = vld [vmem:[%s5903 + $0x70] sm:$0x8]
      %v7723 = vld [vmem:[%s5903 + $0x74] sm:$0xf]
      %v7724 = vld [vmem:[%s5903 + $0x78] sm:$0xf]
      %v7725 = vld [vmem:[%s5903 + $0x80] sm:$0x8]
      %v7726 = vld [vmem:[%s5903 + $0x84] sm:$0xf]
      %v7727 = vld [vmem:[%s5903 + $0x88] sm:$0xf]
      %v7728 = vld [vmem:[%s5903 + $0x90] sm:$0x8]
      %v7729 = vld [vmem:[%s5903 + $0x94] sm:$0xf]
      %v7730 = vld [vmem:[%s5903 + $0x98] sm:$0xf]
      %v7731 = vld [vmem:[%s5903 + $0xa0] sm:$0x8]
      %v7732 = vld [vmem:[%s5903 + $0xa4] sm:$0xf]
      %v7733 = vld [vmem:[%s5903 + $0xa8] sm:$0xf]
      %v7734 = vld [vmem:[%s5903 + $0xb0] sm:$0x8]
      %v7735 = vld [vmem:[%s5903 + $0xb4] sm:$0xf]
      %v7736 = vld [vmem:[%s5903 + $0xb8] sm:$0xf]
      %v7737 = vld [vmem:[%s5903 + $0xc0] sm:$0x8]
      %v7738 = vld [vmem:[%s5903 + $0xc4] sm:$0xf]
      %v7739 = vld [vmem:[%s5903 + $0xc8] sm:$0xf]
      %v7740 = vld [vmem:[%s5903 + $0xd0] sm:$0x8]
      %v7741 = vld [vmem:[%s5903 + $0xd4] sm:$0xf]
      %v7742 = vld [vmem:[%s5903 + $0xd8] sm:$0xf]
      %v7743 = vld [vmem:[%s5903 + $0xe0] sm:$0x8]
      %v7744 = vld [vmem:[%s5903 + $0xe4] sm:$0xf]
      %v7745 = vld [vmem:[%s5903 + $0xe8] sm:$0xf]
      %v7746 = vld [vmem:[%s5903 + $0xf0] sm:$0x8]
      %v7747 = vld [vmem:[%s5903 + $0xf4] sm:$0xf]
      %v7748 = vld [vmem:[%s5903 + $0xf8] sm:$0xf]
      %v7750 = vshrl.u32 %v7701, 16
      %v7752 = vrot.slane %v7750, 7
      %v7753 = vrot.slane %v7752, 4
      %v7755 = vshrl.u32 %v7702, 16
      %v7757 = vrot.slane %v7755, 7
      %v7758 = vshll.u32 %v7702, 16
      %v7760 = vor.u32 %v7757, %v7758
      %v7761 = vsel %vm276, %v7753, %v7760
      %v7762 = vrot.slane %v7757, 4
      %v7764 = vshrl.u32 %v7703, 16
      %v7766 = vrot.slane %v7764, 7
      %v7767 = vshll.u32 %v7703, 16
      %v7769 = vor.u32 %v7766, %v7767
      %v7770 = vsel %vm276, %v7762, %v7769
      %v7772 = vshrl.u32 %v7704, 16
      %v7774 = vrot.slane %v7772, 7
      %v7775 = vrot.slane %v7774, 4
      %v7777 = vshrl.u32 %v7705, 16
      %v7779 = vrot.slane %v7777, 7
      %v7780 = vshll.u32 %v7705, 16
      %v7782 = vor.u32 %v7779, %v7780
      %v7783 = vsel %vm276, %v7775, %v7782
      %v7784 = vrot.slane %v7779, 4
      %v7786 = vshrl.u32 %v7706, 16
      %v7788 = vrot.slane %v7786, 7
      %v7789 = vshll.u32 %v7706, 16
      %v7791 = vor.u32 %v7788, %v7789
      %v7792 = vsel %vm276, %v7784, %v7791
      %v7794 = vshrl.u32 %v7707, 16
      %v7796 = vrot.slane %v7794, 7
      %v7797 = vrot.slane %v7796, 4
      %v7799 = vshrl.u32 %v7708, 16
      %v7801 = vrot.slane %v7799, 7
      %v7802 = vshll.u32 %v7708, 16
      %v7804 = vor.u32 %v7801, %v7802
      %v7805 = vsel %vm276, %v7797, %v7804
      %v7806 = vrot.slane %v7801, 4
      %v7808 = vshrl.u32 %v7709, 16
      %v7810 = vrot.slane %v7808, 7
      %v7811 = vshll.u32 %v7709, 16
      %v7813 = vor.u32 %v7810, %v7811
      %v7814 = vsel %vm276, %v7806, %v7813
      %v7816 = vshrl.u32 %v7710, 16
      %v7818 = vrot.slane %v7816, 7
      %v7819 = vrot.slane %v7818, 4
      %v7821 = vshrl.u32 %v7711, 16
      %v7823 = vrot.slane %v7821, 7
      %v7824 = vshll.u32 %v7711, 16
      %v7826 = vor.u32 %v7823, %v7824
      %v7827 = vsel %vm276, %v7819, %v7826
      %v7828 = vrot.slane %v7823, 4
      %v7830 = vshrl.u32 %v7712, 16
      %v7832 = vrot.slane %v7830, 7
      %v7833 = vshll.u32 %v7712, 16
      %v7835 = vor.u32 %v7832, %v7833
      %v7836 = vsel %vm276, %v7828, %v7835
      %v7838 = vshrl.u32 %v7713, 16
      %v7840 = vrot.slane %v7838, 7
      %v7841 = vrot.slane %v7840, 4
      %v7843 = vshrl.u32 %v7714, 16
      %v7845 = vrot.slane %v7843, 7
      %v7846 = vshll.u32 %v7714, 16
      %v7848 = vor.u32 %v7845, %v7846
      %v7849 = vsel %vm276, %v7841, %v7848
      %v7850 = vrot.slane %v7845, 4
      %v7852 = vshrl.u32 %v7715, 16
      %v7854 = vrot.slane %v7852, 7
      %v7855 = vshll.u32 %v7715, 16
      %v7857 = vor.u32 %v7854, %v7855
      %v7858 = vsel %vm276, %v7850, %v7857
      %v7860 = vshrl.u32 %v7716, 16
      %v7862 = vrot.slane %v7860, 7
      %v7863 = vrot.slane %v7862, 4
      %v7865 = vshrl.u32 %v7717, 16
      %v7867 = vrot.slane %v7865, 7
      %v7868 = vshll.u32 %v7717, 16
      %v7870 = vor.u32 %v7867, %v7868
      %v7871 = vsel %vm276, %v7863, %v7870
      %v7872 = vrot.slane %v7867, 4
      %v7874 = vshrl.u32 %v7718, 16
      %v7876 = vrot.slane %v7874, 7
      %v7877 = vshll.u32 %v7718, 16
      %v7879 = vor.u32 %v7876, %v7877
      %v7880 = vsel %vm276, %v7872, %v7879
      %v7882 = vshrl.u32 %v7719, 16
      %v7884 = vrot.slane %v7882, 7
      %v7885 = vrot.slane %v7884, 4
      %v7887 = vshrl.u32 %v7720, 16
      %v7889 = vrot.slane %v7887, 7
      %v7890 = vshll.u32 %v7720, 16
      %v7892 = vor.u32 %v7889, %v7890
      %v7893 = vsel %vm276, %v7885, %v7892
      %v7894 = vrot.slane %v7889, 4
      %v7896 = vshrl.u32 %v7721, 16
      %v7898 = vrot.slane %v7896, 7
      %v7899 = vshll.u32 %v7721, 16
      %v7901 = vor.u32 %v7898, %v7899
      %v7902 = vsel %vm276, %v7894, %v7901
      %v7904 = vshrl.u32 %v7722, 16
      %v7906 = vrot.slane %v7904, 7
      %v7907 = vrot.slane %v7906, 4
      %v7909 = vshrl.u32 %v7723, 16
      %v7911 = vrot.slane %v7909, 7
      %v7912 = vshll.u32 %v7723, 16
      %v7914 = vor.u32 %v7911, %v7912
      %v7915 = vsel %vm276, %v7907, %v7914
      %v7916 = vrot.slane %v7911, 4
      %v7918 = vshrl.u32 %v7724, 16
      %v7920 = vrot.slane %v7918, 7
      %v7921 = vshll.u32 %v7724, 16
      %v7923 = vor.u32 %v7920, %v7921
      %v7924 = vsel %vm276, %v7916, %v7923
      %v7926 = vshrl.u32 %v7725, 16
      %v7928 = vrot.slane %v7926, 7
      %v7929 = vrot.slane %v7928, 4
      %v7931 = vshrl.u32 %v7726, 16
      %v7933 = vrot.slane %v7931, 7
      %v7934 = vshll.u32 %v7726, 16
      %v7936 = vor.u32 %v7933, %v7934
      %v7937 = vsel %vm276, %v7929, %v7936
      %v7938 = vrot.slane %v7933, 4
      %v7940 = vshrl.u32 %v7727, 16
      %v7942 = vrot.slane %v7940, 7
      %v7943 = vshll.u32 %v7727, 16
      %v7945 = vor.u32 %v7942, %v7943
      %v7946 = vsel %vm276, %v7938, %v7945
      %v7948 = vshrl.u32 %v7728, 16
      %v7950 = vrot.slane %v7948, 7
      %v7951 = vrot.slane %v7950, 4
      %v7953 = vshrl.u32 %v7729, 16
      %v7955 = vrot.slane %v7953, 7
      %v7956 = vshll.u32 %v7729, 16
      %v7958 = vor.u32 %v7955, %v7956
      %v7959 = vsel %vm276, %v7951, %v7958
      %v7960 = vrot.slane %v7955, 4
      %v7962 = vshrl.u32 %v7730, 16
      %v7964 = vrot.slane %v7962, 7
      %v7965 = vshll.u32 %v7730, 16
      %v7967 = vor.u32 %v7964, %v7965
      %v7968 = vsel %vm276, %v7960, %v7967
      %v7970 = vshrl.u32 %v7731, 16
      %v7972 = vrot.slane %v7970, 7
      %v7973 = vrot.slane %v7972, 4
      %v7975 = vshrl.u32 %v7732, 16
      %v7977 = vrot.slane %v7975, 7
      %v7978 = vshll.u32 %v7732, 16
      %v7980 = vor.u32 %v7977, %v7978
      %v7981 = vsel %vm276, %v7973, %v7980
      %v7982 = vrot.slane %v7977, 4
      %v7984 = vshrl.u32 %v7733, 16
      %v7986 = vrot.slane %v7984, 7
      %v7987 = vshll.u32 %v7733, 16
      %v7989 = vor.u32 %v7986, %v7987
      %v7990 = vsel %vm276, %v7982, %v7989
      %v7992 = vshrl.u32 %v7734, 16
      %v7994 = vrot.slane %v7992, 7
      %v7995 = vrot.slane %v7994, 4
      %v7997 = vshrl.u32 %v7735, 16
      %v7999 = vrot.slane %v7997, 7
      %v8000 = vshll.u32 %v7735, 16
      %v8002 = vor.u32 %v7999, %v8000
      %v8003 = vsel %vm276, %v7995, %v8002
      %v8004 = vrot.slane %v7999, 4
      %v8006 = vshrl.u32 %v7736, 16
      %v8008 = vrot.slane %v8006, 7
      %v8009 = vshll.u32 %v7736, 16
      %v8011 = vor.u32 %v8008, %v8009
      %v8012 = vsel %vm276, %v8004, %v8011
      %v8014 = vshrl.u32 %v7737, 16
      %v8016 = vrot.slane %v8014, 7
      %v8017 = vrot.slane %v8016, 4
      %v8019 = vshrl.u32 %v7738, 16
      %v8021 = vrot.slane %v8019, 7
      %v8022 = vshll.u32 %v7738, 16
      %v8024 = vor.u32 %v8021, %v8022
      %v8025 = vsel %vm276, %v8017, %v8024
      %v8026 = vrot.slane %v8021, 4
      %v8028 = vshrl.u32 %v7739, 16
      %v8030 = vrot.slane %v8028, 7
      %v8031 = vshll.u32 %v7739, 16
      %v8033 = vor.u32 %v8030, %v8031
      %v8034 = vsel %vm276, %v8026, %v8033
      %v8036 = vshrl.u32 %v7740, 16
      %v8038 = vrot.slane %v8036, 7
      %v8039 = vrot.slane %v8038, 4
      %v8041 = vshrl.u32 %v7741, 16
      %v8043 = vrot.slane %v8041, 7
      %v8044 = vshll.u32 %v7741, 16
      %v8046 = vor.u32 %v8043, %v8044
      %v8047 = vsel %vm276, %v8039, %v8046
      %v8048 = vrot.slane %v8043, 4
      %v8050 = vshrl.u32 %v7742, 16
      %v8052 = vrot.slane %v8050, 7
      %v8053 = vshll.u32 %v7742, 16
      %v8055 = vor.u32 %v8052, %v8053
      %v8056 = vsel %vm276, %v8048, %v8055
      %v8058 = vshrl.u32 %v7743, 16
      %v8060 = vrot.slane %v8058, 7
      %v8061 = vrot.slane %v8060, 4
      %v8063 = vshrl.u32 %v7744, 16
      %v8065 = vrot.slane %v8063, 7
      %v8066 = vshll.u32 %v7744, 16
      %v8068 = vor.u32 %v8065, %v8066
      %v8069 = vsel %vm276, %v8061, %v8068
      %v8070 = vrot.slane %v8065, 4
      %v8072 = vshrl.u32 %v7745, 16
      %v8074 = vrot.slane %v8072, 7
      %v8075 = vshll.u32 %v7745, 16
      %v8077 = vor.u32 %v8074, %v8075
      %v8078 = vsel %vm276, %v8070, %v8077
      %v8080 = vshrl.u32 %v7746, 16
      %v8082 = vrot.slane %v8080, 7
      %v8083 = vrot.slane %v8082, 4
      %v8085 = vshrl.u32 %v7747, 16
      %v8087 = vrot.slane %v8085, 7
      %v8088 = vshll.u32 %v7747, 16
      %v8090 = vor.u32 %v8087, %v8088
      %v8091 = vsel %vm276, %v8083, %v8090
      %v8092 = vrot.slane %v8087, 4
      %v8094 = vshrl.u32 %v7748, 16
      %v8096 = vrot.slane %v8094, 7
      %v8097 = vshll.u32 %v7748, 16
      %v8099 = vor.u32 %v8096, %v8097
      %v8100 = vsel %vm276, %v8092, %v8099
      %s8101 = scalar_lea.vmem %s3, 192
      %v8102 = vld [vmem:[%s8101] sm:$0xf]
      %v8103 = vld [vmem:[%s8101 + $0x4] sm:$0xf]
      %v8104 = vld [vmem:[%s8101 + $0x8] sm:$0xf]
      %v8105 = vld [vmem:[%s8101 + $0xc] sm:$0xf]
      %v8106 = vld [vmem:[%s8101 + $0x10] sm:$0xf]
      %v8107 = vld [vmem:[%s8101 + $0x14] sm:$0xf]
      %v8108 = vld [vmem:[%s8101 + $0x18] sm:$0xf]
      %v8109 = vld [vmem:[%s8101 + $0x1c] sm:$0xf]
      %v8110 = vld [vmem:[%s8101 + $0x20] sm:$0xf]
      %v8111 = vld [vmem:[%s8101 + $0x24] sm:$0xf]
      %v8112 = vld [vmem:[%s8101 + $0x28] sm:$0xf]
      %v8113 = vld [vmem:[%s8101 + $0x2c] sm:$0xf]
      %v8114 = vld [vmem:[%s8101 + $0x30] sm:$0xf]
      %v8115 = vld [vmem:[%s8101 + $0x34] sm:$0xf]
      %v8116 = vld [vmem:[%s8101 + $0x38] sm:$0xf]
      %v8117 = vld [vmem:[%s8101 + $0x3c] sm:$0xf]
      %v8118 = vunpack.c.l.b16 %v7761
      %v8119 = vunpack.c.l.b16 %v7770
      %v8120 = vunpack.c.l.b16 %v7783
      %v8121 = vunpack.c.l.b16 %v7792
      %v8122 = vunpack.c.l.b16 %v7805
      %v8123 = vunpack.c.l.b16 %v7814
      %v8124 = vunpack.c.l.b16 %v7827
      %v8125 = vunpack.c.l.b16 %v7836
      %v8126 = vunpack.c.l.b16 %v7849
      %v8127 = vunpack.c.l.b16 %v7858
      %v8128 = vunpack.c.l.b16 %v7871
      %v8129 = vunpack.c.l.b16 %v7880
      %v8130 = vunpack.c.l.b16 %v7893
      %v8131 = vunpack.c.l.b16 %v7902
      %v8132 = vunpack.c.l.b16 %v7915
      %v8133 = vunpack.c.l.b16 %v7924
      %v8134 = vunpack.c.l.b16 %v7937
      %v8135 = vunpack.c.l.b16 %v7946
      %v8136 = vunpack.c.l.b16 %v7959
      %v8137 = vunpack.c.l.b16 %v7968
      %v8138 = vunpack.c.l.b16 %v7981
      %v8139 = vunpack.c.l.b16 %v7990
      %v8140 = vunpack.c.l.b16 %v8003
      %v8141 = vunpack.c.l.b16 %v8012
      %v8142 = vunpack.c.l.b16 %v8025
      %v8143 = vunpack.c.l.b16 %v8034
      %v8144 = vunpack.c.l.b16 %v8047
      %v8145 = vunpack.c.l.b16 %v8056
      %v8146 = vunpack.c.l.b16 %v8069
      %v8147 = vunpack.c.l.b16 %v8078
      %v8148 = vunpack.c.l.b16 %v8091
      %v8149 = vunpack.c.l.b16 %v8100
      %v8150 = vpack.c.b16 %v8119, %v8118
      %v8151 = vpack.c.b16 %v8121, %v8120
      %v8152 = vpack.c.b16 %v8123, %v8122
      %v8153 = vpack.c.b16 %v8125, %v8124
      %v8154 = vpack.c.b16 %v8127, %v8126
      %v8155 = vpack.c.b16 %v8129, %v8128
      %v8156 = vpack.c.b16 %v8131, %v8130
      %v8157 = vpack.c.b16 %v8133, %v8132
      %v8158 = vpack.c.b16 %v8135, %v8134
      %v8159 = vpack.c.b16 %v8137, %v8136
      %v8160 = vpack.c.b16 %v8139, %v8138
      %v8161 = vpack.c.b16 %v8141, %v8140
      %v8162 = vpack.c.b16 %v8143, %v8142
      %v8163 = vpack.c.b16 %v8145, %v8144
      %v8164 = vpack.c.b16 %v8147, %v8146
      %v8165 = vpack.c.b16 %v8149, %v8148
      %v8198 = vunpack.c.l.b16 %v8102
      %v8199 = vunpack.c.l.b16 %v8103
      %v8200 = vunpack.c.l.b16 %v8104
      %v8201 = vunpack.c.l.b16 %v8105
      %v8202 = vunpack.c.l.b16 %v8106
      %v8203 = vunpack.c.l.b16 %v8107
      %v8204 = vunpack.c.l.b16 %v8108
      %v8205 = vunpack.c.l.b16 %v8109
      %v8206 = vunpack.c.l.b16 %v8110
      %v8207 = vunpack.c.l.b16 %v8111
      %v8208 = vunpack.c.l.b16 %v8112
      %v8209 = vunpack.c.l.b16 %v8113
      %v8210 = vunpack.c.l.b16 %v8114
      %v8211 = vunpack.c.l.b16 %v8115
      %v8212 = vunpack.c.l.b16 %v8116
      %v8213 = vunpack.c.l.b16 %v8117
      %v8214 = vpack.c.b16 %v8199, %v8198
      %v8215 = vpack.c.b16 %v8201, %v8200
      %v8216 = vpack.c.b16 %v8203, %v8202
      %v8217 = vpack.c.b16 %v8205, %v8204
      %v8218 = vpack.c.b16 %v8207, %v8206
      %v8219 = vpack.c.b16 %v8209, %v8208
      %v8220 = vpack.c.b16 %v8211, %v8210
      %v8221 = vpack.c.b16 %v8213, %v8212
      %8230 = vmatprep.subr.bf16.mxu0 0
      %8231 = vmatpush1.bf16.msra.mxu0 %v8221
      %8232 = vmatprep.subr.bf16.mxu0 0
      %8233 = vmatpush1.bf16.msra.mxu0 %v8220
      %8234 = vmatprep.subr.bf16.mxu0 0
      %8235 = vmatpush1.bf16.msra.mxu0 %v8219
      %8236 = vmatprep.subr.bf16.mxu0 0
      %8237 = vmatpush1.bf16.msra.mxu0 %v8218
      %8238 = vmatprep.subr.bf16.mxu0 0
      %8239 = vmatpush1.bf16.msra.mxu0 %v8217
      %8240 = vmatprep.subr.bf16.mxu0 0
      %8241 = vmatpush1.bf16.msra.mxu0 %v8216
      %8242 = vmatprep.subr.bf16.mxu0 0
      %8243 = vmatpush1.bf16.msra.mxu0 %v8215
      %8244 = vmatprep.subr.bf16.mxu0 0
      %8245 = vmatpush1.bf16.msra.mxu0 %v8214
      %8246 = vmatprep.subr.bf16.mxu0 0
      %8247 = vmatpush2.bf16.msra.mxu0 0
      %8248 = vmatprep.subr.bf16.mxu0 0
      %8249 = vmatpush2.bf16.msra.mxu0 0
      %8250 = vmatprep.subr.bf16.mxu0 0
      %8251 = vmatpush2.bf16.msra.mxu0 0
      %8252 = vmatprep.subr.bf16.mxu0 0
      %8253 = vmatpush2.bf16.msra.mxu0 0
      %8254 = vmatprep.subr.bf16.mxu0 0
      %8255 = vmatpush2.bf16.msra.mxu0 0
      %8256 = vmatprep.subr.bf16.mxu0 0
      %8257 = vmatpush2.bf16.msra.mxu0 0
      %8258 = vmatprep.subr.bf16.mxu0 0
      %8259 = vmatpush2.bf16.msra.mxu0 0
      %8260 = vmatprep.subr.bf16.mxu0 0
      %8261 = vmatpush2.bf16.msra.mxu0 0
      %8262 = vmatprep.mubr.bf16.mxu0 0
      %8263 = vmatmul.mubr.bf16.gmra.mxu0 %v8150
      %v8264 = vpop.f32.mrf.mxu0
      %v8265 = vadd.f32 0.0, %v8264
      %v8266 = vpop.f32.mrf.mxu0
      %v8267 = vpop.f32.mrf.mxu0
      %v8268 = vadd.f32 0.0, %v8267
      %v8269 = vpop.f32.mrf.mxu0
      %8270 = vmatprep.mubr.bf16.mxu0 0
      %8271 = vmatmul.mubr.bf16.gmra.mxu0 %v8151
      %v8272 = vpop.f32.mrf.mxu0
      %v8273 = vadd.f32 0.0, %v8272
      %v8274 = vpop.f32.mrf.mxu0
      %v8275 = vpop.f32.mrf.mxu0
      %v8276 = vadd.f32 0.0, %v8275
      %v8277 = vpop.f32.mrf.mxu0
      %8278 = vmatprep.mubr.bf16.mxu0 0
      %8279 = vmatmul.mubr.bf16.gmra.mxu0 %v8152
      %v8280 = vpop.f32.mrf.mxu0
      %v8281 = vadd.f32 0.0, %v8280
      %v8282 = vpop.f32.mrf.mxu0
      %v8283 = vpop.f32.mrf.mxu0
      %v8284 = vadd.f32 0.0, %v8283
      %v8285 = vpop.f32.mrf.mxu0
      %8286 = vmatprep.mubr.bf16.mxu0 0
      %8287 = vmatmul.mubr.bf16.gmra.mxu0 %v8153
      %v8288 = vpop.f32.mrf.mxu0
      %v8289 = vadd.f32 0.0, %v8288
      %v8290 = vpop.f32.mrf.mxu0
      %v8291 = vpop.f32.mrf.mxu0
      %v8292 = vadd.f32 0.0, %v8291
      %v8293 = vpop.f32.mrf.mxu0
      %8294 = vmatprep.mubr.bf16.mxu0 0
      %8295 = vmatmul.mubr.bf16.gmra.mxu0 %v8154
      %v8296 = vpop.f32.mrf.mxu0
      %v8297 = vadd.f32 0.0, %v8296
      %v8298 = vpop.f32.mrf.mxu0
      %v8299 = vpop.f32.mrf.mxu0
      %v8300 = vadd.f32 0.0, %v8299
      %v8301 = vpop.f32.mrf.mxu0
      %8302 = vmatprep.mubr.bf16.mxu0 0
      %8303 = vmatmul.mubr.bf16.gmra.mxu0 %v8155
      %v8304 = vpop.f32.mrf.mxu0
      %v8305 = vadd.f32 0.0, %v8304
      %v8306 = vpop.f32.mrf.mxu0
      %v8307 = vpop.f32.mrf.mxu0
      %v8308 = vadd.f32 0.0, %v8307
      %v8309 = vpop.f32.mrf.mxu0
      %8310 = vmatprep.mubr.bf16.mxu0 0
      %8311 = vmatmul.mubr.bf16.gmra.mxu0 %v8156
      %v8312 = vpop.f32.mrf.mxu0
      %v8313 = vadd.f32 0.0, %v8312
      %v8314 = vpop.f32.mrf.mxu0
      %v8315 = vpop.f32.mrf.mxu0
      %v8316 = vadd.f32 0.0, %v8315
      %v8317 = vpop.f32.mrf.mxu0
      %8318 = vmatprep.mubr.bf16.mxu0 0
      %8319 = vmatmul.mubr.bf16.gmra.mxu0 %v8157
      %v8320 = vpop.f32.mrf.mxu0
      %v8321 = vadd.f32 0.0, %v8320
      %v8322 = vpop.f32.mrf.mxu0
      %v8323 = vpop.f32.mrf.mxu0
      %v8324 = vadd.f32 0.0, %v8323
      %v8325 = vpop.f32.mrf.mxu0
      %8326 = vmatprep.mubr.bf16.mxu0 0
      %8327 = vmatmul.mubr.bf16.gmra.mxu0 %v8158
      %v8328 = vpop.f32.mrf.mxu0
      %v8329 = vadd.f32 0.0, %v8328
      %v8330 = vpop.f32.mrf.mxu0
      %v8331 = vpop.f32.mrf.mxu0
      %v8332 = vadd.f32 0.0, %v8331
      %v8333 = vpop.f32.mrf.mxu0
      %8334 = vmatprep.mubr.bf16.mxu0 0
      %8335 = vmatmul.mubr.bf16.gmra.mxu0 %v8159
      %v8336 = vpop.f32.mrf.mxu0
      %v8337 = vadd.f32 0.0, %v8336
      %v8338 = vpop.f32.mrf.mxu0
      %v8339 = vpop.f32.mrf.mxu0
      %v8340 = vadd.f32 0.0, %v8339
      %v8341 = vpop.f32.mrf.mxu0
      %8342 = vmatprep.mubr.bf16.mxu0 0
      %8343 = vmatmul.mubr.bf16.gmra.mxu0 %v8160
      %v8344 = vpop.f32.mrf.mxu0
      %v8345 = vadd.f32 0.0, %v8344
      %v8346 = vpop.f32.mrf.mxu0
      %v8347 = vpop.f32.mrf.mxu0
      %v8348 = vadd.f32 0.0, %v8347
      %v8349 = vpop.f32.mrf.mxu0
      %8350 = vmatprep.mubr.bf16.mxu0 0
      %8351 = vmatmul.mubr.bf16.gmra.mxu0 %v8161
      %v8352 = vpop.f32.mrf.mxu0
      %v8353 = vadd.f32 0.0, %v8352
      %v8354 = vpop.f32.mrf.mxu0
      %v8355 = vpop.f32.mrf.mxu0
      %v8356 = vadd.f32 0.0, %v8355
      %v8357 = vpop.f32.mrf.mxu0
      %8358 = vmatprep.mubr.bf16.mxu0 0
      %8359 = vmatmul.mubr.bf16.gmra.mxu0 %v8162
      %v8360 = vpop.f32.mrf.mxu0
      %v8361 = vadd.f32 0.0, %v8360
      %v8362 = vpop.f32.mrf.mxu0
      %v8363 = vpop.f32.mrf.mxu0
      %v8364 = vadd.f32 0.0, %v8363
      %v8365 = vpop.f32.mrf.mxu0
      %8366 = vmatprep.mubr.bf16.mxu0 0
      %8367 = vmatmul.mubr.bf16.gmra.mxu0 %v8163
      %v8368 = vpop.f32.mrf.mxu0
      %v8369 = vadd.f32 0.0, %v8368
      %v8370 = vpop.f32.mrf.mxu0
      %v8371 = vpop.f32.mrf.mxu0
      %v8372 = vadd.f32 0.0, %v8371
      %v8373 = vpop.f32.mrf.mxu0
      %8374 = vmatprep.mubr.bf16.mxu0 0
      %8375 = vmatmul.mubr.bf16.gmra.mxu0 %v8164
      %v8376 = vpop.f32.mrf.mxu0
      %v8377 = vadd.f32 0.0, %v8376
      %v8378 = vpop.f32.mrf.mxu0
      %v8379 = vpop.f32.mrf.mxu0
      %v8380 = vadd.f32 0.0, %v8379
      %v8381 = vpop.f32.mrf.mxu0
      %8382 = vmatprep.mubr.bf16.mxu0 0
      %8383 = vmatmul.mubr.bf16.gmra.mxu0 %v8165
      %v8384 = vpop.f32.mrf.mxu0
      %v8385 = vadd.f32 0.0, %v8384
      %v8386 = vpop.f32.mrf.mxu0
      %v8387 = vpop.f32.mrf.mxu0
      %v8388 = vadd.f32 0.0, %v8387
      %v8389 = vpop.f32.mrf.mxu0
      %8390 = vdwg.mxu0
      %v8391 = vadd.f32 %v7669, %v8265
      %v8392 = vadd.f32 %v7670, %v8268
      %v8393 = vadd.f32 %v7671, %v8273
      %v8394 = vadd.f32 %v7672, %v8276
      %v8395 = vadd.f32 %v7673, %v8281
      %v8396 = vadd.f32 %v7674, %v8284
      %v8397 = vadd.f32 %v7675, %v8289
      %v8398 = vadd.f32 %v7676, %v8292
      %v8399 = vadd.f32 %v7677, %v8297
      %v8400 = vadd.f32 %v7678, %v8300
      %v8401 = vadd.f32 %v7679, %v8305
      %v8402 = vadd.f32 %v7680, %v8308
      %v8403 = vadd.f32 %v7681, %v8313
      %v8404 = vadd.f32 %v7682, %v8316
      %v8405 = vadd.f32 %v7683, %v8321
      %v8406 = vadd.f32 %v7684, %v8324
      %v8407 = vadd.f32 %v7685, %v8329
      %v8408 = vadd.f32 %v7686, %v8332
      %v8409 = vadd.f32 %v7687, %v8337
      %v8410 = vadd.f32 %v7688, %v8340
      %v8411 = vadd.f32 %v7689, %v8345
      %v8412 = vadd.f32 %v7690, %v8348
      %v8413 = vadd.f32 %v7691, %v8353
      %v8414 = vadd.f32 %v7692, %v8356
      %v8415 = vadd.f32 %v7693, %v8361
      %v8416 = vadd.f32 %v7694, %v8364
      %v8417 = vadd.f32 %v7695, %v8369
      %v8418 = vadd.f32 %v7696, %v8372
      %v8419 = vadd.f32 %v7697, %v8377
      %v8420 = vadd.f32 %v7698, %v8380
      %v8421 = vadd.f32 %v7699, %v8385
      %v8422 = vadd.f32 %v7700, %v8388
      %s8423 = scalar_lea.vmem %s3, 256
      %v8424 = vld [vmem:[%s8423] sm:$0xf]
      %v8425 = vld [vmem:[%s8423 + $0x4] sm:$0xf]
      %v8426 = vld [vmem:[%s8423 + $0x8] sm:$0xf]
      %v8427 = vld [vmem:[%s8423 + $0xc] sm:$0xf]
      %v8428 = vld [vmem:[%s8423 + $0x10] sm:$0xf]
      %v8429 = vld [vmem:[%s8423 + $0x14] sm:$0xf]
      %v8430 = vld [vmem:[%s8423 + $0x18] sm:$0xf]
      %v8431 = vld [vmem:[%s8423 + $0x1c] sm:$0xf]
      %v8432 = vld [vmem:[%s8423 + $0x20] sm:$0xf]
      %v8433 = vld [vmem:[%s8423 + $0x24] sm:$0xf]
      %v8434 = vld [vmem:[%s8423 + $0x28] sm:$0xf]
      %v8435 = vld [vmem:[%s8423 + $0x2c] sm:$0xf]
      %v8436 = vld [vmem:[%s8423 + $0x30] sm:$0xf]
      %v8437 = vld [vmem:[%s8423 + $0x34] sm:$0xf]
      %v8438 = vld [vmem:[%s8423 + $0x38] sm:$0xf]
      %v8439 = vld [vmem:[%s8423 + $0x3c] sm:$0xf]
      %v8472 = vunpack.c.l.b16 %v7702
      %v8473 = vunpack.c.l.b16 %v7703
      %v8474 = vunpack.c.l.b16 %v7705
      %v8475 = vunpack.c.l.b16 %v7706
      %v8476 = vunpack.c.l.b16 %v7708
      %v8477 = vunpack.c.l.b16 %v7709
      %v8478 = vunpack.c.l.b16 %v7711
      %v8479 = vunpack.c.l.b16 %v7712
      %v8480 = vunpack.c.l.b16 %v7714
      %v8481 = vunpack.c.l.b16 %v7715
      %v8482 = vunpack.c.l.b16 %v7717
      %v8483 = vunpack.c.l.b16 %v7718
      %v8484 = vunpack.c.l.b16 %v7720
      %v8485 = vunpack.c.l.b16 %v7721
      %v8486 = vunpack.c.l.b16 %v7723
      %v8487 = vunpack.c.l.b16 %v7724
      %v8488 = vunpack.c.l.b16 %v7726
      %v8489 = vunpack.c.l.b16 %v7727
      %v8490 = vunpack.c.l.b16 %v7729
      %v8491 = vunpack.c.l.b16 %v7730
      %v8492 = vunpack.c.l.b16 %v7732
      %v8493 = vunpack.c.l.b16 %v7733
      %v8494 = vunpack.c.l.b16 %v7735
      %v8495 = vunpack.c.l.b16 %v7736
      %v8496 = vunpack.c.l.b16 %v7738
      %v8497 = vunpack.c.l.b16 %v7739
      %v8498 = vunpack.c.l.b16 %v7741
      %v8499 = vunpack.c.l.b16 %v7742
      %v8500 = vunpack.c.l.b16 %v7744
      %v8501 = vunpack.c.l.b16 %v7745
      %v8502 = vunpack.c.l.b16 %v7747
      %v8503 = vunpack.c.l.b16 %v7748
      %v8504 = vpack.c.b16 %v8473, %v8472
      %v8505 = vpack.c.b16 %v8475, %v8474
      %v8506 = vpack.c.b16 %v8477, %v8476
      %v8507 = vpack.c.b16 %v8479, %v8478
      %v8508 = vpack.c.b16 %v8481, %v8480
      %v8509 = vpack.c.b16 %v8483, %v8482
      %v8510 = vpack.c.b16 %v8485, %v8484
      %v8511 = vpack.c.b16 %v8487, %v8486
      %v8512 = vpack.c.b16 %v8489, %v8488
      %v8513 = vpack.c.b16 %v8491, %v8490
      %v8514 = vpack.c.b16 %v8493, %v8492
      %v8515 = vpack.c.b16 %v8495, %v8494
      %v8516 = vpack.c.b16 %v8497, %v8496
      %v8517 = vpack.c.b16 %v8499, %v8498
      %v8518 = vpack.c.b16 %v8501, %v8500
      %v8519 = vpack.c.b16 %v8503, %v8502
      %v8552 = vunpack.c.l.b16 %v8424
      %v8553 = vunpack.c.l.b16 %v8425
      %v8554 = vunpack.c.l.b16 %v8426
      %v8555 = vunpack.c.l.b16 %v8427
      %v8556 = vunpack.c.l.b16 %v8428
      %v8557 = vunpack.c.l.b16 %v8429
      %v8558 = vunpack.c.l.b16 %v8430
      %v8559 = vunpack.c.l.b16 %v8431
      %v8560 = vunpack.c.l.b16 %v8432
      %v8561 = vunpack.c.l.b16 %v8433
      %v8562 = vunpack.c.l.b16 %v8434
      %v8563 = vunpack.c.l.b16 %v8435
      %v8564 = vunpack.c.l.b16 %v8436
      %v8565 = vunpack.c.l.b16 %v8437
      %v8566 = vunpack.c.l.b16 %v8438
      %v8567 = vunpack.c.l.b16 %v8439
      %v8568 = vpack.c.b16 %v8553, %v8552
      %v8569 = vpack.c.b16 %v8555, %v8554
      %v8570 = vpack.c.b16 %v8557, %v8556
      %v8571 = vpack.c.b16 %v8559, %v8558
      %v8572 = vpack.c.b16 %v8561, %v8560
      %v8573 = vpack.c.b16 %v8563, %v8562
      %v8574 = vpack.c.b16 %v8565, %v8564
      %v8575 = vpack.c.b16 %v8567, %v8566
      %8584 = vmatprep.subr.bf16.mxu0 0
      %8585 = vmatpush1.bf16.msra.mxu0 %v8575
      %8586 = vmatprep.subr.bf16.mxu0 0
      %8587 = vmatpush1.bf16.msra.mxu0 %v8574
      %8588 = vmatprep.subr.bf16.mxu0 0
      %8589 = vmatpush1.bf16.msra.mxu0 %v8573
      %8590 = vmatprep.subr.bf16.mxu0 0
      %8591 = vmatpush1.bf16.msra.mxu0 %v8572
      %8592 = vmatprep.subr.bf16.mxu0 0
      %8593 = vmatpush1.bf16.msra.mxu0 %v8571
      %8594 = vmatprep.subr.bf16.mxu0 0
      %8595 = vmatpush1.bf16.msra.mxu0 %v8570
      %8596 = vmatprep.subr.bf16.mxu0 0
      %8597 = vmatpush1.bf16.msra.mxu0 %v8569
      %8598 = vmatprep.subr.bf16.mxu0 0
      %8599 = vmatpush1.bf16.msra.mxu0 %v8568
      %8600 = vmatprep.subr.bf16.mxu0 0
      %8601 = vmatpush2.bf16.msra.mxu0 0
      %8602 = vmatprep.subr.bf16.mxu0 0
      %8603 = vmatpush2.bf16.msra.mxu0 0
      %8604 = vmatprep.subr.bf16.mxu0 0
      %8605 = vmatpush2.bf16.msra.mxu0 0
      %8606 = vmatprep.subr.bf16.mxu0 0
      %8607 = vmatpush2.bf16.msra.mxu0 0
      %8608 = vmatprep.subr.bf16.mxu0 0
      %8609 = vmatpush2.bf16.msra.mxu0 0
      %8610 = vmatprep.subr.bf16.mxu0 0
      %8611 = vmatpush2.bf16.msra.mxu0 0
      %8612 = vmatprep.subr.bf16.mxu0 0
      %8613 = vmatpush2.bf16.msra.mxu0 0
      %8614 = vmatprep.subr.bf16.mxu0 0
      %8615 = vmatpush2.bf16.msra.mxu0 0
      %8616 = vmatprep.mubr.bf16.mxu0 0
      %8617 = vmatmul.mubr.bf16.gmra.mxu0 %v8504
      %v8618 = vpop.f32.mrf.mxu0
      %v8619 = vadd.f32 0.0, %v8618
      %v8620 = vpop.f32.mrf.mxu0
      %v8621 = vpop.f32.mrf.mxu0
      %v8622 = vadd.f32 0.0, %v8621
      %v8623 = vpop.f32.mrf.mxu0
      %8624 = vmatprep.mubr.bf16.mxu0 0
      %8625 = vmatmul.mubr.bf16.gmra.mxu0 %v8505
      %v8626 = vpop.f32.mrf.mxu0
      %v8627 = vadd.f32 0.0, %v8626
      %v8628 = vpop.f32.mrf.mxu0
      %v8629 = vpop.f32.mrf.mxu0
      %v8630 = vadd.f32 0.0, %v8629
      %v8631 = vpop.f32.mrf.mxu0
      %8632 = vmatprep.mubr.bf16.mxu0 0
      %8633 = vmatmul.mubr.bf16.gmra.mxu0 %v8506
      %v8634 = vpop.f32.mrf.mxu0
      %v8635 = vadd.f32 0.0, %v8634
      %v8636 = vpop.f32.mrf.mxu0
      %v8637 = vpop.f32.mrf.mxu0
      %v8638 = vadd.f32 0.0, %v8637
      %v8639 = vpop.f32.mrf.mxu0
      %8640 = vmatprep.mubr.bf16.mxu0 0
      %8641 = vmatmul.mubr.bf16.gmra.mxu0 %v8507
      %v8642 = vpop.f32.mrf.mxu0
      %v8643 = vadd.f32 0.0, %v8642
      %v8644 = vpop.f32.mrf.mxu0
      %v8645 = vpop.f32.mrf.mxu0
      %v8646 = vadd.f32 0.0, %v8645
      %v8647 = vpop.f32.mrf.mxu0
      %8648 = vmatprep.mubr.bf16.mxu0 0
      %8649 = vmatmul.mubr.bf16.gmra.mxu0 %v8508
      %v8650 = vpop.f32.mrf.mxu0
      %v8651 = vadd.f32 0.0, %v8650
      %v8652 = vpop.f32.mrf.mxu0
      %v8653 = vpop.f32.mrf.mxu0
      %v8654 = vadd.f32 0.0, %v8653
      %v8655 = vpop.f32.mrf.mxu0
      %8656 = vmatprep.mubr.bf16.mxu0 0
      %8657 = vmatmul.mubr.bf16.gmra.mxu0 %v8509
      %v8658 = vpop.f32.mrf.mxu0
      %v8659 = vadd.f32 0.0, %v8658
      %v8660 = vpop.f32.mrf.mxu0
      %v8661 = vpop.f32.mrf.mxu0
      %v8662 = vadd.f32 0.0, %v8661
      %v8663 = vpop.f32.mrf.mxu0
      %8664 = vmatprep.mubr.bf16.mxu0 0
      %8665 = vmatmul.mubr.bf16.gmra.mxu0 %v8510
      %v8666 = vpop.f32.mrf.mxu0
      %v8667 = vadd.f32 0.0, %v8666
      %v8668 = vpop.f32.mrf.mxu0
      %v8669 = vpop.f32.mrf.mxu0
      %v8670 = vadd.f32 0.0, %v8669
      %v8671 = vpop.f32.mrf.mxu0
      %8672 = vmatprep.mubr.bf16.mxu0 0
      %8673 = vmatmul.mubr.bf16.gmra.mxu0 %v8511
      %v8674 = vpop.f32.mrf.mxu0
      %v8675 = vadd.f32 0.0, %v8674
      %v8676 = vpop.f32.mrf.mxu0
      %v8677 = vpop.f32.mrf.mxu0
      %v8678 = vadd.f32 0.0, %v8677
      %v8679 = vpop.f32.mrf.mxu0
      %8680 = vmatprep.mubr.bf16.mxu0 0
      %8681 = vmatmul.mubr.bf16.gmra.mxu0 %v8512
      %v8682 = vpop.f32.mrf.mxu0
      %v8683 = vadd.f32 0.0, %v8682
      %v8684 = vpop.f32.mrf.mxu0
      %v8685 = vpop.f32.mrf.mxu0
      %v8686 = vadd.f32 0.0, %v8685
      %v8687 = vpop.f32.mrf.mxu0
      %8688 = vmatprep.mubr.bf16.mxu0 0
      %8689 = vmatmul.mubr.bf16.gmra.mxu0 %v8513
      %v8690 = vpop.f32.mrf.mxu0
      %v8691 = vadd.f32 0.0, %v8690
      %v8692 = vpop.f32.mrf.mxu0
      %v8693 = vpop.f32.mrf.mxu0
      %v8694 = vadd.f32 0.0, %v8693
      %v8695 = vpop.f32.mrf.mxu0
      %8696 = vmatprep.mubr.bf16.mxu0 0
      %8697 = vmatmul.mubr.bf16.gmra.mxu0 %v8514
      %v8698 = vpop.f32.mrf.mxu0
      %v8699 = vadd.f32 0.0, %v8698
      %v8700 = vpop.f32.mrf.mxu0
      %v8701 = vpop.f32.mrf.mxu0
      %v8702 = vadd.f32 0.0, %v8701
      %v8703 = vpop.f32.mrf.mxu0
      %8704 = vmatprep.mubr.bf16.mxu0 0
      %8705 = vmatmul.mubr.bf16.gmra.mxu0 %v8515
      %v8706 = vpop.f32.mrf.mxu0
      %v8707 = vadd.f32 0.0, %v8706
      %v8708 = vpop.f32.mrf.mxu0
      %v8709 = vpop.f32.mrf.mxu0
      %v8710 = vadd.f32 0.0, %v8709
      %v8711 = vpop.f32.mrf.mxu0
      %8712 = vmatprep.mubr.bf16.mxu0 0
      %8713 = vmatmul.mubr.bf16.gmra.mxu0 %v8516
      %v8714 = vpop.f32.mrf.mxu0
      %v8715 = vadd.f32 0.0, %v8714
      %v8716 = vpop.f32.mrf.mxu0
      %v8717 = vpop.f32.mrf.mxu0
      %v8718 = vadd.f32 0.0, %v8717
      %v8719 = vpop.f32.mrf.mxu0
      %8720 = vmatprep.mubr.bf16.mxu0 0
      %8721 = vmatmul.mubr.bf16.gmra.mxu0 %v8517
      %v8722 = vpop.f32.mrf.mxu0
      %v8723 = vadd.f32 0.0, %v8722
      %v8724 = vpop.f32.mrf.mxu0
      %v8725 = vpop.f32.mrf.mxu0
      %v8726 = vadd.f32 0.0, %v8725
      %v8727 = vpop.f32.mrf.mxu0
      %8728 = vmatprep.mubr.bf16.mxu0 0
      %8729 = vmatmul.mubr.bf16.gmra.mxu0 %v8518
      %v8730 = vpop.f32.mrf.mxu0
      %v8731 = vadd.f32 0.0, %v8730
      %v8732 = vpop.f32.mrf.mxu0
      %v8733 = vpop.f32.mrf.mxu0
      %v8734 = vadd.f32 0.0, %v8733
      %v8735 = vpop.f32.mrf.mxu0
      %8736 = vmatprep.mubr.bf16.mxu0 0
      %8737 = vmatmul.mubr.bf16.gmra.mxu0 %v8519
      %v8738 = vpop.f32.mrf.mxu0
      %v8739 = vadd.f32 0.0, %v8738
      %v8740 = vpop.f32.mrf.mxu0
      %v8741 = vpop.f32.mrf.mxu0
      %v8742 = vadd.f32 0.0, %v8741
      %v8743 = vpop.f32.mrf.mxu0
      %8744 = vdwg.mxu0
      %v8745 = vadd.f32 %v8391, %v8619
      %v8746 = vadd.f32 %v8392, %v8622
      %v8747 = vadd.f32 %v8393, %v8627
      %v8748 = vadd.f32 %v8394, %v8630
      %v8749 = vadd.f32 %v8395, %v8635
      %v8750 = vadd.f32 %v8396, %v8638
      %v8751 = vadd.f32 %v8397, %v8643
      %v8752 = vadd.f32 %v8398, %v8646
      %v8753 = vadd.f32 %v8399, %v8651
      %v8754 = vadd.f32 %v8400, %v8654
      %v8755 = vadd.f32 %v8401, %v8659
      %v8756 = vadd.f32 %v8402, %v8662
      %v8757 = vadd.f32 %v8403, %v8667
      %v8758 = vadd.f32 %v8404, %v8670
      %v8759 = vadd.f32 %v8405, %v8675
      %v8760 = vadd.f32 %v8406, %v8678
      %v8761 = vadd.f32 %v8407, %v8683
      %v8762 = vadd.f32 %v8408, %v8686
      %v8763 = vadd.f32 %v8409, %v8691
      %v8764 = vadd.f32 %v8410, %v8694
      %v8765 = vadd.f32 %v8411, %v8699
      %v8766 = vadd.f32 %v8412, %v8702
      %v8767 = vadd.f32 %v8413, %v8707
      %v8768 = vadd.f32 %v8414, %v8710
      %v8769 = vadd.f32 %v8415, %v8715
      %v8770 = vadd.f32 %v8416, %v8718
      %v8771 = vadd.f32 %v8417, %v8723
      %v8772 = vadd.f32 %v8418, %v8726
      %v8773 = vadd.f32 %v8419, %v8731
      %v8774 = vadd.f32 %v8420, %v8734
      %v8775 = vadd.f32 %v8421, %v8739
      %v8776 = vadd.f32 %v8422, %v8742
      %v8777 = vld [vmem:[%s5903 + $0x4] sm:$0xf]
      %v8778 = vld [vmem:[%s5903 + $0x8] sm:$0xf]
      %v8779 = vld [vmem:[%s5903 + $0xc] sm:$0x1]
      %v8780 = vld [vmem:[%s5903 + $0x14] sm:$0xf]
      %v8781 = vld [vmem:[%s5903 + $0x18] sm:$0xf]
      %v8782 = vld [vmem:[%s5903 + $0x1c] sm:$0x1]
      %v8783 = vld [vmem:[%s5903 + $0x24] sm:$0xf]
      %v8784 = vld [vmem:[%s5903 + $0x28] sm:$0xf]
      %v8785 = vld [vmem:[%s5903 + $0x2c] sm:$0x1]
      %v8786 = vld [vmem:[%s5903 + $0x34] sm:$0xf]
      %v8787 = vld [vmem:[%s5903 + $0x38] sm:$0xf]
      %v8788 = vld [vmem:[%s5903 + $0x3c] sm:$0x1]
      %v8789 = vld [vmem:[%s5903 + $0x44] sm:$0xf]
      %v8790 = vld [vmem:[%s5903 + $0x48] sm:$0xf]
      %v8791 = vld [vmem:[%s5903 + $0x4c] sm:$0x1]
      %v8792 = vld [vmem:[%s5903 + $0x54] sm:$0xf]
      %v8793 = vld [vmem:[%s5903 + $0x58] sm:$0xf]
      %v8794 = vld [vmem:[%s5903 + $0x5c] sm:$0x1]
      %v8795 = vld [vmem:[%s5903 + $0x64] sm:$0xf]
      %v8796 = vld [vmem:[%s5903 + $0x68] sm:$0xf]
      %v8797 = vld [vmem:[%s5903 + $0x6c] sm:$0x1]
      %v8798 = vld [vmem:[%s5903 + $0x74] sm:$0xf]
      %v8799 = vld [vmem:[%s5903 + $0x78] sm:$0xf]
      %v8800 = vld [vmem:[%s5903 + $0x7c] sm:$0x1]
      %v8801 = vld [vmem:[%s5903 + $0x84] sm:$0xf]
      %v8802 = vld [vmem:[%s5903 + $0x88] sm:$0xf]
      %v8803 = vld [vmem:[%s5903 + $0x8c] sm:$0x1]
      %v8804 = vld [vmem:[%s5903 + $0x94] sm:$0xf]
      %v8805 = vld [vmem:[%s5903 + $0x98] sm:$0xf]
      %v8806 = vld [vmem:[%s5903 + $0x9c] sm:$0x1]
      %v8807 = vld [vmem:[%s5903 + $0xa4] sm:$0xf]
      %v8808 = vld [vmem:[%s5903 + $0xa8] sm:$0xf]
      %v8809 = vld [vmem:[%s5903 + $0xac] sm:$0x1]
      %v8810 = vld [vmem:[%s5903 + $0xb4] sm:$0xf]
      %v8811 = vld [vmem:[%s5903 + $0xb8] sm:$0xf]
      %v8812 = vld [vmem:[%s5903 + $0xbc] sm:$0x1]
      %v8813 = vld [vmem:[%s5903 + $0xc4] sm:$0xf]
      %v8814 = vld [vmem:[%s5903 + $0xc8] sm:$0xf]
      %v8815 = vld [vmem:[%s5903 + $0xcc] sm:$0x1]
      %v8816 = vld [vmem:[%s5903 + $0xd4] sm:$0xf]
      %v8817 = vld [vmem:[%s5903 + $0xd8] sm:$0xf]
      %v8818 = vld [vmem:[%s5903 + $0xdc] sm:$0x1]
      %v8819 = vld [vmem:[%s5903 + $0xe4] sm:$0xf]
      %v8820 = vld [vmem:[%s5903 + $0xe8] sm:$0xf]
      %v8821 = vld [vmem:[%s5903 + $0xec] sm:$0x1]
      %v8822 = vld [vmem:[%s5903 + $0xf4] sm:$0xf]
      %v8823 = vld [vmem:[%s5903 + $0xf8] sm:$0xf]
      %v8824 = vld [vmem:[%s5903 + $0xfc] sm:$0x1]
      %v8826 = vshrl.u32 %v8777, 16
      %v8828 = vrot.slane %v8826, 4
      %v8829 = vshll.u32 %v8777, 16
      %v8831 = vrot.slane %v8829, 5
      %v8832 = vor.u32 %v8828, %v8831
      %v8833 = vrot.slane %v8832, 4
      %v8835 = vshll.u32 %v8778, 16
      %v8837 = vrot.slane %v8835, 5
      %v8838 = vsel %vm1290, %v8833, %v8837
      %v8839 = vshrl.u32 %v8778, 16
      %v8841 = vrot.slane %v8839, 4
      %v8842 = vor.u32 %v8841, %v8837
      %v8843 = vrot.slane %v8842, 4
      %v8845 = vshll.u32 %v8779, 16
      %v8847 = vrot.slane %v8845, 5
      %v8848 = vsel %vm1290, %v8843, %v8847
      %v8850 = vshrl.u32 %v8780, 16
      %v8852 = vrot.slane %v8850, 4
      %v8853 = vshll.u32 %v8780, 16
      %v8855 = vrot.slane %v8853, 5
      %v8856 = vor.u32 %v8852, %v8855
      %v8857 = vrot.slane %v8856, 4
      %v8859 = vshll.u32 %v8781, 16
      %v8861 = vrot.slane %v8859, 5
      %v8862 = vsel %vm1290, %v8857, %v8861
      %v8863 = vshrl.u32 %v8781, 16
      %v8865 = vrot.slane %v8863, 4
      %v8866 = vor.u32 %v8865, %v8861
      %v8867 = vrot.slane %v8866, 4
      %v8869 = vshll.u32 %v8782, 16
      %v8871 = vrot.slane %v8869, 5
      %v8872 = vsel %vm1290, %v8867, %v8871
      %v8874 = vshrl.u32 %v8783, 16
      %v8876 = vrot.slane %v8874, 4
      %v8877 = vshll.u32 %v8783, 16
      %v8879 = vrot.slane %v8877, 5
      %v8880 = vor.u32 %v8876, %v8879
      %v8881 = vrot.slane %v8880, 4
      %v8883 = vshll.u32 %v8784, 16
      %v8885 = vrot.slane %v8883, 5
      %v8886 = vsel %vm1290, %v8881, %v8885
      %v8887 = vshrl.u32 %v8784, 16
      %v8889 = vrot.slane %v8887, 4
      %v8890 = vor.u32 %v8889, %v8885
      %v8891 = vrot.slane %v8890, 4
      %v8893 = vshll.u32 %v8785, 16
      %v8895 = vrot.slane %v8893, 5
      %v8896 = vsel %vm1290, %v8891, %v8895
      %v8898 = vshrl.u32 %v8786, 16
      %v8900 = vrot.slane %v8898, 4
      %v8901 = vshll.u32 %v8786, 16
      %v8903 = vrot.slane %v8901, 5
      %v8904 = vor.u32 %v8900, %v8903
      %v8905 = vrot.slane %v8904, 4
      %v8907 = vshll.u32 %v8787, 16
      %v8909 = vrot.slane %v8907, 5
      %v8910 = vsel %vm1290, %v8905, %v8909
      %v8911 = vshrl.u32 %v8787, 16
      %v8913 = vrot.slane %v8911, 4
      %v8914 = vor.u32 %v8913, %v8909
      %v8915 = vrot.slane %v8914, 4
      %v8917 = vshll.u32 %v8788, 16
      %v8919 = vrot.slane %v8917, 5
      %v8920 = vsel %vm1290, %v8915, %v8919
      %v8922 = vshrl.u32 %v8789, 16
      %v8924 = vrot.slane %v8922, 4
      %v8925 = vshll.u32 %v8789, 16
      %v8927 = vrot.slane %v8925, 5
      %v8928 = vor.u32 %v8924, %v8927
      %v8929 = vrot.slane %v8928, 4
      %v8931 = vshll.u32 %v8790, 16
      %v8933 = vrot.slane %v8931, 5
      %v8934 = vsel %vm1290, %v8929, %v8933
      %v8935 = vshrl.u32 %v8790, 16
      %v8937 = vrot.slane %v8935, 4
      %v8938 = vor.u32 %v8937, %v8933
      %v8939 = vrot.slane %v8938, 4
      %v8941 = vshll.u32 %v8791, 16
      %v8943 = vrot.slane %v8941, 5
      %v8944 = vsel %vm1290, %v8939, %v8943
      %v8946 = vshrl.u32 %v8792, 16
      %v8948 = vrot.slane %v8946, 4
      %v8949 = vshll.u32 %v8792, 16
      %v8951 = vrot.slane %v8949, 5
      %v8952 = vor.u32 %v8948, %v8951
      %v8953 = vrot.slane %v8952, 4
      %v8955 = vshll.u32 %v8793, 16
      %v8957 = vrot.slane %v8955, 5
      %v8958 = vsel %vm1290, %v8953, %v8957
      %v8959 = vshrl.u32 %v8793, 16
      %v8961 = vrot.slane %v8959, 4
      %v8962 = vor.u32 %v8961, %v8957
      %v8963 = vrot.slane %v8962, 4
      %v8965 = vshll.u32 %v8794, 16
      %v8967 = vrot.slane %v8965, 5
      %v8968 = vsel %vm1290, %v8963, %v8967
      %v8970 = vshrl.u32 %v8795, 16
      %v8972 = vrot.slane %v8970, 4
      %v8973 = vshll.u32 %v8795, 16
      %v8975 = vrot.slane %v8973, 5
      %v8976 = vor.u32 %v8972, %v8975
      %v8977 = vrot.slane %v8976, 4
      %v8979 = vshll.u32 %v8796, 16
      %v8981 = vrot.slane %v8979, 5
      %v8982 = vsel %vm1290, %v8977, %v8981
      %v8983 = vshrl.u32 %v8796, 16
      %v8985 = vrot.slane %v8983, 4
      %v8986 = vor.u32 %v8985, %v8981
      %v8987 = vrot.slane %v8986, 4
      %v8989 = vshll.u32 %v8797, 16
      %v8991 = vrot.slane %v8989, 5
      %v8992 = vsel %vm1290, %v8987, %v8991
      %v8994 = vshrl.u32 %v8798, 16
      %v8996 = vrot.slane %v8994, 4
      %v8997 = vshll.u32 %v8798, 16
      %v8999 = vrot.slane %v8997, 5
      %v9000 = vor.u32 %v8996, %v8999
      %v9001 = vrot.slane %v9000, 4
      %v9003 = vshll.u32 %v8799, 16
      %v9005 = vrot.slane %v9003, 5
      %v9006 = vsel %vm1290, %v9001, %v9005
      %v9007 = vshrl.u32 %v8799, 16
      %v9009 = vrot.slane %v9007, 4
      %v9010 = vor.u32 %v9009, %v9005
      %v9011 = vrot.slane %v9010, 4
      %v9013 = vshll.u32 %v8800, 16
      %v9015 = vrot.slane %v9013, 5
      %v9016 = vsel %vm1290, %v9011, %v9015
      %v9018 = vshrl.u32 %v8801, 16
      %v9020 = vrot.slane %v9018, 4
      %v9021 = vshll.u32 %v8801, 16
      %v9023 = vrot.slane %v9021, 5
      %v9024 = vor.u32 %v9020, %v9023
      %v9025 = vrot.slane %v9024, 4
      %v9027 = vshll.u32 %v8802, 16
      %v9029 = vrot.slane %v9027, 5
      %v9030 = vsel %vm1290, %v9025, %v9029
      %v9031 = vshrl.u32 %v8802, 16
      %v9033 = vrot.slane %v9031, 4
      %v9034 = vor.u32 %v9033, %v9029
      %v9035 = vrot.slane %v9034, 4
      %v9037 = vshll.u32 %v8803, 16
      %v9039 = vrot.slane %v9037, 5
      %v9040 = vsel %vm1290, %v9035, %v9039
      %v9042 = vshrl.u32 %v8804, 16
      %v9044 = vrot.slane %v9042, 4
      %v9045 = vshll.u32 %v8804, 16
      %v9047 = vrot.slane %v9045, 5
      %v9048 = vor.u32 %v9044, %v9047
      %v9049 = vrot.slane %v9048, 4
      %v9051 = vshll.u32 %v8805, 16
      %v9053 = vrot.slane %v9051, 5
      %v9054 = vsel %vm1290, %v9049, %v9053
      %v9055 = vshrl.u32 %v8805, 16
      %v9057 = vrot.slane %v9055, 4
      %v9058 = vor.u32 %v9057, %v9053
      %v9059 = vrot.slane %v9058, 4
      %v9061 = vshll.u32 %v8806, 16
      %v9063 = vrot.slane %v9061, 5
      %v9064 = vsel %vm1290, %v9059, %v9063
      %v9066 = vshrl.u32 %v8807, 16
      %v9068 = vrot.slane %v9066, 4
      %v9069 = vshll.u32 %v8807, 16
      %v9071 = vrot.slane %v9069, 5
      %v9072 = vor.u32 %v9068, %v9071
      %v9073 = vrot.slane %v9072, 4
      %v9075 = vshll.u32 %v8808, 16
      %v9077 = vrot.slane %v9075, 5
      %v9078 = vsel %vm1290, %v9073, %v9077
      %v9079 = vshrl.u32 %v8808, 16
      %v9081 = vrot.slane %v9079, 4
      %v9082 = vor.u32 %v9081, %v9077
      %v9083 = vrot.slane %v9082, 4
      %v9085 = vshll.u32 %v8809, 16
      %v9087 = vrot.slane %v9085, 5
      %v9088 = vsel %vm1290, %v9083, %v9087
      %v9090 = vshrl.u32 %v8810, 16
      %v9092 = vrot.slane %v9090, 4
      %v9093 = vshll.u32 %v8810, 16
      %v9095 = vrot.slane %v9093, 5
      %v9096 = vor.u32 %v9092, %v9095
      %v9097 = vrot.slane %v9096, 4
      %v9099 = vshll.u32 %v8811, 16
      %v9101 = vrot.slane %v9099, 5
      %v9102 = vsel %vm1290, %v9097, %v9101
      %v9103 = vshrl.u32 %v8811, 16
      %v9105 = vrot.slane %v9103, 4
      %v9106 = vor.u32 %v9105, %v9101
      %v9107 = vrot.slane %v9106, 4
      %v9109 = vshll.u32 %v8812, 16
      %v9111 = vrot.slane %v9109, 5
      %v9112 = vsel %vm1290, %v9107, %v9111
      %v9114 = vshrl.u32 %v8813, 16
      %v9116 = vrot.slane %v9114, 4
      %v9117 = vshll.u32 %v8813, 16
      %v9119 = vrot.slane %v9117, 5
      %v9120 = vor.u32 %v9116, %v9119
      %v9121 = vrot.slane %v9120, 4
      %v9123 = vshll.u32 %v8814, 16
      %v9125 = vrot.slane %v9123, 5
      %v9126 = vsel %vm1290, %v9121, %v9125
      %v9127 = vshrl.u32 %v8814, 16
      %v9129 = vrot.slane %v9127, 4
      %v9130 = vor.u32 %v9129, %v9125
      %v9131 = vrot.slane %v9130, 4
      %v9133 = vshll.u32 %v8815, 16
      %v9135 = vrot.slane %v9133, 5
      %v9136 = vsel %vm1290, %v9131, %v9135
      %v9138 = vshrl.u32 %v8816, 16
      %v9140 = vrot.slane %v9138, 4
      %v9141 = vshll.u32 %v8816, 16
      %v9143 = vrot.slane %v9141, 5
      %v9144 = vor.u32 %v9140, %v9143
      %v9145 = vrot.slane %v9144, 4
      %v9147 = vshll.u32 %v8817, 16
      %v9149 = vrot.slane %v9147, 5
      %v9150 = vsel %vm1290, %v9145, %v9149
      %v9151 = vshrl.u32 %v8817, 16
      %v9153 = vrot.slane %v9151, 4
      %v9154 = vor.u32 %v9153, %v9149
      %v9155 = vrot.slane %v9154, 4
      %v9157 = vshll.u32 %v8818, 16
      %v9159 = vrot.slane %v9157, 5
      %v9160 = vsel %vm1290, %v9155, %v9159
      %v9162 = vshrl.u32 %v8819, 16
      %v9164 = vrot.slane %v9162, 4
      %v9165 = vshll.u32 %v8819, 16
      %v9167 = vrot.slane %v9165, 5
      %v9168 = vor.u32 %v9164, %v9167
      %v9169 = vrot.slane %v9168, 4
      %v9171 = vshll.u32 %v8820, 16
      %v9173 = vrot.slane %v9171, 5
      %v9174 = vsel %vm1290, %v9169, %v9173
      %v9175 = vshrl.u32 %v8820, 16
      %v9177 = vrot.slane %v9175, 4
      %v9178 = vor.u32 %v9177, %v9173
      %v9179 = vrot.slane %v9178, 4
      %v9181 = vshll.u32 %v8821, 16
      %v9183 = vrot.slane %v9181, 5
      %v9184 = vsel %vm1290, %v9179, %v9183
      %v9186 = vshrl.u32 %v8822, 16
      %v9188 = vrot.slane %v9186, 4
      %v9189 = vshll.u32 %v8822, 16
      %v9191 = vrot.slane %v9189, 5
      %v9192 = vor.u32 %v9188, %v9191
      %v9193 = vrot.slane %v9192, 4
      %v9195 = vshll.u32 %v8823, 16
      %v9197 = vrot.slane %v9195, 5
      %v9198 = vsel %vm1290, %v9193, %v9197
      %v9199 = vshrl.u32 %v8823, 16
      %v9201 = vrot.slane %v9199, 4
      %v9202 = vor.u32 %v9201, %v9197
      %v9203 = vrot.slane %v9202, 4
      %v9205 = vshll.u32 %v8824, 16
      %v9207 = vrot.slane %v9205, 5
      %v9208 = vsel %vm1290, %v9203, %v9207
      %s9209 = scalar_lea.vmem %s3, 320
      %v9210 = vld [vmem:[%s9209] sm:$0xf]
      %v9211 = vld [vmem:[%s9209 + $0x4] sm:$0xf]
      %v9212 = vld [vmem:[%s9209 + $0x8] sm:$0xf]
      %v9213 = vld [vmem:[%s9209 + $0xc] sm:$0xf]
      %v9214 = vld [vmem:[%s9209 + $0x10] sm:$0xf]
      %v9215 = vld [vmem:[%s9209 + $0x14] sm:$0xf]
      %v9216 = vld [vmem:[%s9209 + $0x18] sm:$0xf]
      %v9217 = vld [vmem:[%s9209 + $0x1c] sm:$0xf]
      %v9218 = vld [vmem:[%s9209 + $0x20] sm:$0xf]
      %v9219 = vld [vmem:[%s9209 + $0x24] sm:$0xf]
      %v9220 = vld [vmem:[%s9209 + $0x28] sm:$0xf]
      %v9221 = vld [vmem:[%s9209 + $0x2c] sm:$0xf]
      %v9222 = vld [vmem:[%s9209 + $0x30] sm:$0xf]
      %v9223 = vld [vmem:[%s9209 + $0x34] sm:$0xf]
      %v9224 = vld [vmem:[%s9209 + $0x38] sm:$0xf]
      %v9225 = vld [vmem:[%s9209 + $0x3c] sm:$0xf]
      %v9226 = vunpack.c.l.b16 %v8838
      %v9227 = vunpack.c.l.b16 %v8848
      %v9228 = vunpack.c.l.b16 %v8862
      %v9229 = vunpack.c.l.b16 %v8872
      %v9230 = vunpack.c.l.b16 %v8886
      %v9231 = vunpack.c.l.b16 %v8896
      %v9232 = vunpack.c.l.b16 %v8910
      %v9233 = vunpack.c.l.b16 %v8920
      %v9234 = vunpack.c.l.b16 %v8934
      %v9235 = vunpack.c.l.b16 %v8944
      %v9236 = vunpack.c.l.b16 %v8958
      %v9237 = vunpack.c.l.b16 %v8968
      %v9238 = vunpack.c.l.b16 %v8982
      %v9239 = vunpack.c.l.b16 %v8992
      %v9240 = vunpack.c.l.b16 %v9006
      %v9241 = vunpack.c.l.b16 %v9016
      %v9242 = vunpack.c.l.b16 %v9030
      %v9243 = vunpack.c.l.b16 %v9040
      %v9244 = vunpack.c.l.b16 %v9054
      %v9245 = vunpack.c.l.b16 %v9064
      %v9246 = vunpack.c.l.b16 %v9078
      %v9247 = vunpack.c.l.b16 %v9088
      %v9248 = vunpack.c.l.b16 %v9102
      %v9249 = vunpack.c.l.b16 %v9112
      %v9250 = vunpack.c.l.b16 %v9126
      %v9251 = vunpack.c.l.b16 %v9136
      %v9252 = vunpack.c.l.b16 %v9150
      %v9253 = vunpack.c.l.b16 %v9160
      %v9254 = vunpack.c.l.b16 %v9174
      %v9255 = vunpack.c.l.b16 %v9184
      %v9256 = vunpack.c.l.b16 %v9198
      %v9257 = vunpack.c.l.b16 %v9208
      %v9258 = vpack.c.b16 %v9227, %v9226
      %v9259 = vpack.c.b16 %v9229, %v9228
      %v9260 = vpack.c.b16 %v9231, %v9230
      %v9261 = vpack.c.b16 %v9233, %v9232
      %v9262 = vpack.c.b16 %v9235, %v9234
      %v9263 = vpack.c.b16 %v9237, %v9236
      %v9264 = vpack.c.b16 %v9239, %v9238
      %v9265 = vpack.c.b16 %v9241, %v9240
      %v9266 = vpack.c.b16 %v9243, %v9242
      %v9267 = vpack.c.b16 %v9245, %v9244
      %v9268 = vpack.c.b16 %v9247, %v9246
      %v9269 = vpack.c.b16 %v9249, %v9248
      %v9270 = vpack.c.b16 %v9251, %v9250
      %v9271 = vpack.c.b16 %v9253, %v9252
      %v9272 = vpack.c.b16 %v9255, %v9254
      %v9273 = vpack.c.b16 %v9257, %v9256
      %v9306 = vunpack.c.l.b16 %v9210
      %v9307 = vunpack.c.l.b16 %v9211
      %v9308 = vunpack.c.l.b16 %v9212
      %v9309 = vunpack.c.l.b16 %v9213
      %v9310 = vunpack.c.l.b16 %v9214
      %v9311 = vunpack.c.l.b16 %v9215
      %v9312 = vunpack.c.l.b16 %v9216
      %v9313 = vunpack.c.l.b16 %v9217
      %v9314 = vunpack.c.l.b16 %v9218
      %v9315 = vunpack.c.l.b16 %v9219
      %v9316 = vunpack.c.l.b16 %v9220
      %v9317 = vunpack.c.l.b16 %v9221
      %v9318 = vunpack.c.l.b16 %v9222
      %v9319 = vunpack.c.l.b16 %v9223
      %v9320 = vunpack.c.l.b16 %v9224
      %v9321 = vunpack.c.l.b16 %v9225
      %v9322 = vpack.c.b16 %v9307, %v9306
      %v9323 = vpack.c.b16 %v9309, %v9308
      %v9324 = vpack.c.b16 %v9311, %v9310
      %v9325 = vpack.c.b16 %v9313, %v9312
      %v9326 = vpack.c.b16 %v9315, %v9314
      %v9327 = vpack.c.b16 %v9317, %v9316
      %v9328 = vpack.c.b16 %v9319, %v9318
      %v9329 = vpack.c.b16 %v9321, %v9320
      %9338 = vmatprep.subr.bf16.mxu0 0
      %9339 = vmatpush1.bf16.msra.mxu0 %v9329
      %9340 = vmatprep.subr.bf16.mxu0 0
      %9341 = vmatpush1.bf16.msra.mxu0 %v9328
      %9342 = vmatprep.subr.bf16.mxu0 0
      %9343 = vmatpush1.bf16.msra.mxu0 %v9327
      %9344 = vmatprep.subr.bf16.mxu0 0
      %9345 = vmatpush1.bf16.msra.mxu0 %v9326
      %9346 = vmatprep.subr.bf16.mxu0 0
      %9347 = vmatpush1.bf16.msra.mxu0 %v9325
      %9348 = vmatprep.subr.bf16.mxu0 0
      %9349 = vmatpush1.bf16.msra.mxu0 %v9324
      %9350 = vmatprep.subr.bf16.mxu0 0
      %9351 = vmatpush1.bf16.msra.mxu0 %v9323
      %9352 = vmatprep.subr.bf16.mxu0 0
      %9353 = vmatpush1.bf16.msra.mxu0 %v9322
      %9354 = vmatprep.subr.bf16.mxu0 0
      %9355 = vmatpush2.bf16.msra.mxu0 0
      %9356 = vmatprep.subr.bf16.mxu0 0
      %9357 = vmatpush2.bf16.msra.mxu0 0
      %9358 = vmatprep.subr.bf16.mxu0 0
      %9359 = vmatpush2.bf16.msra.mxu0 0
      %9360 = vmatprep.subr.bf16.mxu0 0
      %9361 = vmatpush2.bf16.msra.mxu0 0
      %9362 = vmatprep.subr.bf16.mxu0 0
      %9363 = vmatpush2.bf16.msra.mxu0 0
      %9364 = vmatprep.subr.bf16.mxu0 0
      %9365 = vmatpush2.bf16.msra.mxu0 0
      %9366 = vmatprep.subr.bf16.mxu0 0
      %9367 = vmatpush2.bf16.msra.mxu0 0
      %9368 = vmatprep.subr.bf16.mxu0 0
      %9369 = vmatpush2.bf16.msra.mxu0 0
      %9370 = vmatprep.mubr.bf16.mxu0 0
      %9371 = vmatmul.mubr.bf16.gmra.mxu0 %v9258
      %v9372 = vpop.f32.mrf.mxu0
      %v9373 = vadd.f32 0.0, %v9372
      %v9374 = vpop.f32.mrf.mxu0
      %v9375 = vpop.f32.mrf.mxu0
      %v9376 = vadd.f32 0.0, %v9375
      %v9377 = vpop.f32.mrf.mxu0
      %9378 = vmatprep.mubr.bf16.mxu0 0
      %9379 = vmatmul.mubr.bf16.gmra.mxu0 %v9259
      %v9380 = vpop.f32.mrf.mxu0
      %v9381 = vadd.f32 0.0, %v9380
      %v9382 = vpop.f32.mrf.mxu0
      %v9383 = vpop.f32.mrf.mxu0
      %v9384 = vadd.f32 0.0, %v9383
      %v9385 = vpop.f32.mrf.mxu0
      %9386 = vmatprep.mubr.bf16.mxu0 0
      %9387 = vmatmul.mubr.bf16.gmra.mxu0 %v9260
      %v9388 = vpop.f32.mrf.mxu0
      %v9389 = vadd.f32 0.0, %v9388
      %v9390 = vpop.f32.mrf.mxu0
      %v9391 = vpop.f32.mrf.mxu0
      %v9392 = vadd.f32 0.0, %v9391
      %v9393 = vpop.f32.mrf.mxu0
      %9394 = vmatprep.mubr.bf16.mxu0 0
      %9395 = vmatmul.mubr.bf16.gmra.mxu0 %v9261
      %v9396 = vpop.f32.mrf.mxu0
      %v9397 = vadd.f32 0.0, %v9396
      %v9398 = vpop.f32.mrf.mxu0
      %v9399 = vpop.f32.mrf.mxu0
      %v9400 = vadd.f32 0.0, %v9399
      %v9401 = vpop.f32.mrf.mxu0
      %9402 = vmatprep.mubr.bf16.mxu0 0
      %9403 = vmatmul.mubr.bf16.gmra.mxu0 %v9262
      %v9404 = vpop.f32.mrf.mxu0
      %v9405 = vadd.f32 0.0, %v9404
      %v9406 = vpop.f32.mrf.mxu0
      %v9407 = vpop.f32.mrf.mxu0
      %v9408 = vadd.f32 0.0, %v9407
      %v9409 = vpop.f32.mrf.mxu0
      %9410 = vmatprep.mubr.bf16.mxu0 0
      %9411 = vmatmul.mubr.bf16.gmra.mxu0 %v9263
      %v9412 = vpop.f32.mrf.mxu0
      %v9413 = vadd.f32 0.0, %v9412
      %v9414 = vpop.f32.mrf.mxu0
      %v9415 = vpop.f32.mrf.mxu0
      %v9416 = vadd.f32 0.0, %v9415
      %v9417 = vpop.f32.mrf.mxu0
      %9418 = vmatprep.mubr.bf16.mxu0 0
      %9419 = vmatmul.mubr.bf16.gmra.mxu0 %v9264
      %v9420 = vpop.f32.mrf.mxu0
      %v9421 = vadd.f32 0.0, %v9420
      %v9422 = vpop.f32.mrf.mxu0
      %v9423 = vpop.f32.mrf.mxu0
      %v9424 = vadd.f32 0.0, %v9423
      %v9425 = vpop.f32.mrf.mxu0
      %9426 = vmatprep.mubr.bf16.mxu0 0
      %9427 = vmatmul.mubr.bf16.gmra.mxu0 %v9265
      %v9428 = vpop.f32.mrf.mxu0
      %v9429 = vadd.f32 0.0, %v9428
      %v9430 = vpop.f32.mrf.mxu0
      %v9431 = vpop.f32.mrf.mxu0
      %v9432 = vadd.f32 0.0, %v9431
      %v9433 = vpop.f32.mrf.mxu0
      %9434 = vmatprep.mubr.bf16.mxu0 0
      %9435 = vmatmul.mubr.bf16.gmra.mxu0 %v9266
      %v9436 = vpop.f32.mrf.mxu0
      %v9437 = vadd.f32 0.0, %v9436
      %v9438 = vpop.f32.mrf.mxu0
      %v9439 = vpop.f32.mrf.mxu0
      %v9440 = vadd.f32 0.0, %v9439
      %v9441 = vpop.f32.mrf.mxu0
      %9442 = vmatprep.mubr.bf16.mxu0 0
      %9443 = vmatmul.mubr.bf16.gmra.mxu0 %v9267
      %v9444 = vpop.f32.mrf.mxu0
      %v9445 = vadd.f32 0.0, %v9444
      %v9446 = vpop.f32.mrf.mxu0
      %v9447 = vpop.f32.mrf.mxu0
      %v9448 = vadd.f32 0.0, %v9447
      %v9449 = vpop.f32.mrf.mxu0
      %9450 = vmatprep.mubr.bf16.mxu0 0
      %9451 = vmatmul.mubr.bf16.gmra.mxu0 %v9268
      %v9452 = vpop.f32.mrf.mxu0
      %v9453 = vadd.f32 0.0, %v9452
      %v9454 = vpop.f32.mrf.mxu0
      %v9455 = vpop.f32.mrf.mxu0
      %v9456 = vadd.f32 0.0, %v9455
      %v9457 = vpop.f32.mrf.mxu0
      %9458 = vmatprep.mubr.bf16.mxu0 0
      %9459 = vmatmul.mubr.bf16.gmra.mxu0 %v9269
      %v9460 = vpop.f32.mrf.mxu0
      %v9461 = vadd.f32 0.0, %v9460
      %v9462 = vpop.f32.mrf.mxu0
      %v9463 = vpop.f32.mrf.mxu0
      %v9464 = vadd.f32 0.0, %v9463
      %v9465 = vpop.f32.mrf.mxu0
      %9466 = vmatprep.mubr.bf16.mxu0 0
      %9467 = vmatmul.mubr.bf16.gmra.mxu0 %v9270
      %v9468 = vpop.f32.mrf.mxu0
      %v9469 = vadd.f32 0.0, %v9468
      %v9470 = vpop.f32.mrf.mxu0
      %v9471 = vpop.f32.mrf.mxu0
      %v9472 = vadd.f32 0.0, %v9471
      %v9473 = vpop.f32.mrf.mxu0
      %9474 = vmatprep.mubr.bf16.mxu0 0
      %9475 = vmatmul.mubr.bf16.gmra.mxu0 %v9271
      %v9476 = vpop.f32.mrf.mxu0
      %v9477 = vadd.f32 0.0, %v9476
      %v9478 = vpop.f32.mrf.mxu0
      %v9479 = vpop.f32.mrf.mxu0
      %v9480 = vadd.f32 0.0, %v9479
      %v9481 = vpop.f32.mrf.mxu0
      %9482 = vmatprep.mubr.bf16.mxu0 0
      %9483 = vmatmul.mubr.bf16.gmra.mxu0 %v9272
      %v9484 = vpop.f32.mrf.mxu0
      %v9485 = vadd.f32 0.0, %v9484
      %v9486 = vpop.f32.mrf.mxu0
      %v9487 = vpop.f32.mrf.mxu0
      %v9488 = vadd.f32 0.0, %v9487
      %v9489 = vpop.f32.mrf.mxu0
      %9490 = vmatprep.mubr.bf16.mxu0 0
      %9491 = vmatmul.mubr.bf16.gmra.mxu0 %v9273
      %v9492 = vpop.f32.mrf.mxu0
      %v9493 = vadd.f32 0.0, %v9492
      %v9494 = vpop.f32.mrf.mxu0
      %v9495 = vpop.f32.mrf.mxu0
      %v9496 = vadd.f32 0.0, %v9495
      %v9497 = vpop.f32.mrf.mxu0
      %9498 = vdwg.mxu0
      %v9499 = vadd.f32 %v8745, %v9373
      %v9500 = vadd.f32 %v8746, %v9376
      %v9501 = vadd.f32 %v8747, %v9381
      %v9502 = vadd.f32 %v8748, %v9384
      %v9503 = vadd.f32 %v8749, %v9389
      %v9504 = vadd.f32 %v8750, %v9392
      %v9505 = vadd.f32 %v8751, %v9397
      %v9506 = vadd.f32 %v8752, %v9400
      %v9507 = vadd.f32 %v8753, %v9405
      %v9508 = vadd.f32 %v8754, %v9408
      %v9509 = vadd.f32 %v8755, %v9413
      %v9510 = vadd.f32 %v8756, %v9416
      %v9511 = vadd.f32 %v8757, %v9421
      %v9512 = vadd.f32 %v8758, %v9424
      %v9513 = vadd.f32 %v8759, %v9429
      %v9514 = vadd.f32 %v8760, %v9432
      %v9515 = vadd.f32 %v8761, %v9437
      %v9516 = vadd.f32 %v8762, %v9440
      %v9517 = vadd.f32 %v8763, %v9445
      %v9518 = vadd.f32 %v8764, %v9448
      %v9519 = vadd.f32 %v8765, %v9453
      %v9520 = vadd.f32 %v8766, %v9456
      %v9521 = vadd.f32 %v8767, %v9461
      %v9522 = vadd.f32 %v8768, %v9464
      %v9523 = vadd.f32 %v8769, %v9469
      %v9524 = vadd.f32 %v8770, %v9472
      %v9525 = vadd.f32 %v8771, %v9477
      %v9526 = vadd.f32 %v8772, %v9480
      %v9527 = vadd.f32 %v8773, %v9485
      %v9528 = vadd.f32 %v8774, %v9488
      %v9529 = vadd.f32 %v8775, %v9493
      %v9530 = vadd.f32 %v8776, %v9496
      %s9531 = scalar_lea.vmem [#allocation2], 32
      %v9532 = vld [vmem:[%s9531] sm:$0x8]
      %v9533 = vld [vmem:[%s9531 + $0x4] sm:$0xf]
      %v9534 = vld [vmem:[%s9531 + $0x8] sm:$0xf]
      %v9535 = vld [vmem:[%s9531 + $0x10] sm:$0x8]
      %v9536 = vld [vmem:[%s9531 + $0x14] sm:$0xf]
      %v9537 = vld [vmem:[%s9531 + $0x18] sm:$0xf]
      %v9538 = vld [vmem:[%s9531 + $0x20] sm:$0x8]
      %v9539 = vld [vmem:[%s9531 + $0x24] sm:$0xf]
      %v9540 = vld [vmem:[%s9531 + $0x28] sm:$0xf]
      %v9541 = vld [vmem:[%s9531 + $0x30] sm:$0x8]
      %v9542 = vld [vmem:[%s9531 + $0x34] sm:$0xf]
      %v9543 = vld [vmem:[%s9531 + $0x38] sm:$0xf]
      %v9544 = vld [vmem:[%s9531 + $0x40] sm:$0x8]
      %v9545 = vld [vmem:[%s9531 + $0x44] sm:$0xf]
      %v9546 = vld [vmem:[%s9531 + $0x48] sm:$0xf]
      %v9547 = vld [vmem:[%s9531 + $0x50] sm:$0x8]
      %v9548 = vld [vmem:[%s9531 + $0x54] sm:$0xf]
      %v9549 = vld [vmem:[%s9531 + $0x58] sm:$0xf]
      %v9550 = vld [vmem:[%s9531 + $0x60] sm:$0x8]
      %v9551 = vld [vmem:[%s9531 + $0x64] sm:$0xf]
      %v9552 = vld [vmem:[%s9531 + $0x68] sm:$0xf]
      %v9553 = vld [vmem:[%s9531 + $0x70] sm:$0x8]
      %v9554 = vld [vmem:[%s9531 + $0x74] sm:$0xf]
      %v9555 = vld [vmem:[%s9531 + $0x78] sm:$0xf]
      %v9556 = vld [vmem:[%s9531 + $0x80] sm:$0x8]
      %v9557 = vld [vmem:[%s9531 + $0x84] sm:$0xf]
      %v9558 = vld [vmem:[%s9531 + $0x88] sm:$0xf]
      %v9559 = vld [vmem:[%s9531 + $0x90] sm:$0x8]
      %v9560 = vld [vmem:[%s9531 + $0x94] sm:$0xf]
      %v9561 = vld [vmem:[%s9531 + $0x98] sm:$0xf]
      %v9562 = vld [vmem:[%s9531 + $0xa0] sm:$0x8]
      %v9563 = vld [vmem:[%s9531 + $0xa4] sm:$0xf]
      %v9564 = vld [vmem:[%s9531 + $0xa8] sm:$0xf]
      %v9565 = vld [vmem:[%s9531 + $0xb0] sm:$0x8]
      %v9566 = vld [vmem:[%s9531 + $0xb4] sm:$0xf]
      %v9567 = vld [vmem:[%s9531 + $0xb8] sm:$0xf]
      %v9568 = vld [vmem:[%s9531 + $0xc0] sm:$0x8]
      %v9569 = vld [vmem:[%s9531 + $0xc4] sm:$0xf]
      %v9570 = vld [vmem:[%s9531 + $0xc8] sm:$0xf]
      %v9571 = vld [vmem:[%s9531 + $0xd0] sm:$0x8]
      %v9572 = vld [vmem:[%s9531 + $0xd4] sm:$0xf]
      %v9573 = vld [vmem:[%s9531 + $0xd8] sm:$0xf]
      %v9574 = vld [vmem:[%s9531 + $0xe0] sm:$0x8]
      %v9575 = vld [vmem:[%s9531 + $0xe4] sm:$0xf]
      %v9576 = vld [vmem:[%s9531 + $0xe8] sm:$0xf]
      %v9577 = vld [vmem:[%s9531 + $0xf0] sm:$0x8]
      %v9578 = vld [vmem:[%s9531 + $0xf4] sm:$0xf]
      %v9579 = vld [vmem:[%s9531 + $0xf8] sm:$0xf]
      %v9581 = vshrl.u32 %v9532, 16
      %v9583 = vrot.slane %v9581, 7
      %v9584 = vrot.slane %v9583, 4
      %v9586 = vshrl.u32 %v9533, 16
      %v9588 = vrot.slane %v9586, 7
      %v9589 = vshll.u32 %v9533, 16
      %v9591 = vor.u32 %v9588, %v9589
      %v9592 = vsel %vm276, %v9584, %v9591
      %v9593 = vrot.slane %v9588, 4
      %v9595 = vshrl.u32 %v9534, 16
      %v9597 = vrot.slane %v9595, 7
      %v9598 = vshll.u32 %v9534, 16
      %v9600 = vor.u32 %v9597, %v9598
      %v9601 = vsel %vm276, %v9593, %v9600
      %v9603 = vshrl.u32 %v9535, 16
      %v9605 = vrot.slane %v9603, 7
      %v9606 = vrot.slane %v9605, 4
      %v9608 = vshrl.u32 %v9536, 16
      %v9610 = vrot.slane %v9608, 7
      %v9611 = vshll.u32 %v9536, 16
      %v9613 = vor.u32 %v9610, %v9611
      %v9614 = vsel %vm276, %v9606, %v9613
      %v9615 = vrot.slane %v9610, 4
      %v9617 = vshrl.u32 %v9537, 16
      %v9619 = vrot.slane %v9617, 7
      %v9620 = vshll.u32 %v9537, 16
      %v9622 = vor.u32 %v9619, %v9620
      %v9623 = vsel %vm276, %v9615, %v9622
      %v9625 = vshrl.u32 %v9538, 16
      %v9627 = vrot.slane %v9625, 7
      %v9628 = vrot.slane %v9627, 4
      %v9630 = vshrl.u32 %v9539, 16
      %v9632 = vrot.slane %v9630, 7
      %v9633 = vshll.u32 %v9539, 16
      %v9635 = vor.u32 %v9632, %v9633
      %v9636 = vsel %vm276, %v9628, %v9635
      %v9637 = vrot.slane %v9632, 4
      %v9639 = vshrl.u32 %v9540, 16
      %v9641 = vrot.slane %v9639, 7
      %v9642 = vshll.u32 %v9540, 16
      %v9644 = vor.u32 %v9641, %v9642
      %v9645 = vsel %vm276, %v9637, %v9644
      %v9647 = vshrl.u32 %v9541, 16
      %v9649 = vrot.slane %v9647, 7
      %v9650 = vrot.slane %v9649, 4
      %v9652 = vshrl.u32 %v9542, 16
      %v9654 = vrot.slane %v9652, 7
      %v9655 = vshll.u32 %v9542, 16
      %v9657 = vor.u32 %v9654, %v9655
      %v9658 = vsel %vm276, %v9650, %v9657
      %v9659 = vrot.slane %v9654, 4
      %v9661 = vshrl.u32 %v9543, 16
      %v9663 = vrot.slane %v9661, 7
      %v9664 = vshll.u32 %v9543, 16
      %v9666 = vor.u32 %v9663, %v9664
      %v9667 = vsel %vm276, %v9659, %v9666
      %v9669 = vshrl.u32 %v9544, 16
      %v9671 = vrot.slane %v9669, 7
      %v9672 = vrot.slane %v9671, 4
      %v9674 = vshrl.u32 %v9545, 16
      %v9676 = vrot.slane %v9674, 7
      %v9677 = vshll.u32 %v9545, 16
      %v9679 = vor.u32 %v9676, %v9677
      %v9680 = vsel %vm276, %v9672, %v9679
      %v9681 = vrot.slane %v9676, 4
      %v9683 = vshrl.u32 %v9546, 16
      %v9685 = vrot.slane %v9683, 7
      %v9686 = vshll.u32 %v9546, 16
      %v9688 = vor.u32 %v9685, %v9686
      %v9689 = vsel %vm276, %v9681, %v9688
      %v9691 = vshrl.u32 %v9547, 16
      %v9693 = vrot.slane %v9691, 7
      %v9694 = vrot.slane %v9693, 4
      %v9696 = vshrl.u32 %v9548, 16
      %v9698 = vrot.slane %v9696, 7
      %v9699 = vshll.u32 %v9548, 16
      %v9701 = vor.u32 %v9698, %v9699
      %v9702 = vsel %vm276, %v9694, %v9701
      %v9703 = vrot.slane %v9698, 4
      %v9705 = vshrl.u32 %v9549, 16
      %v9707 = vrot.slane %v9705, 7
      %v9708 = vshll.u32 %v9549, 16
      %v9710 = vor.u32 %v9707, %v9708
      %v9711 = vsel %vm276, %v9703, %v9710
      %v9713 = vshrl.u32 %v9550, 16
      %v9715 = vrot.slane %v9713, 7
      %v9716 = vrot.slane %v9715, 4
      %v9718 = vshrl.u32 %v9551, 16
      %v9720 = vrot.slane %v9718, 7
      %v9721 = vshll.u32 %v9551, 16
      %v9723 = vor.u32 %v9720, %v9721
      %v9724 = vsel %vm276, %v9716, %v9723
      %v9725 = vrot.slane %v9720, 4
      %v9727 = vshrl.u32 %v9552, 16
      %v9729 = vrot.slane %v9727, 7
      %v9730 = vshll.u32 %v9552, 16
      %v9732 = vor.u32 %v9729, %v9730
      %v9733 = vsel %vm276, %v9725, %v9732
      %v9735 = vshrl.u32 %v9553, 16
      %v9737 = vrot.slane %v9735, 7
      %v9738 = vrot.slane %v9737, 4
      %v9740 = vshrl.u32 %v9554, 16
      %v9742 = vrot.slane %v9740, 7
      %v9743 = vshll.u32 %v9554, 16
      %v9745 = vor.u32 %v9742, %v9743
      %v9746 = vsel %vm276, %v9738, %v9745
      %v9747 = vrot.slane %v9742, 4
      %v9749 = vshrl.u32 %v9555, 16
      %v9751 = vrot.slane %v9749, 7
      %v9752 = vshll.u32 %v9555, 16
      %v9754 = vor.u32 %v9751, %v9752
      %v9755 = vsel %vm276, %v9747, %v9754
      %v9757 = vshrl.u32 %v9556, 16
      %v9759 = vrot.slane %v9757, 7
      %v9760 = vrot.slane %v9759, 4
      %v9762 = vshrl.u32 %v9557, 16
      %v9764 = vrot.slane %v9762, 7
      %v9765 = vshll.u32 %v9557, 16
      %v9767 = vor.u32 %v9764, %v9765
      %v9768 = vsel %vm276, %v9760, %v9767
      %v9769 = vrot.slane %v9764, 4
      %v9771 = vshrl.u32 %v9558, 16
      %v9773 = vrot.slane %v9771, 7
      %v9774 = vshll.u32 %v9558, 16
      %v9776 = vor.u32 %v9773, %v9774
      %v9777 = vsel %vm276, %v9769, %v9776
      %v9779 = vshrl.u32 %v9559, 16
      %v9781 = vrot.slane %v9779, 7
      %v9782 = vrot.slane %v9781, 4
      %v9784 = vshrl.u32 %v9560, 16
      %v9786 = vrot.slane %v9784, 7
      %v9787 = vshll.u32 %v9560, 16
      %v9789 = vor.u32 %v9786, %v9787
      %v9790 = vsel %vm276, %v9782, %v9789
      %v9791 = vrot.slane %v9786, 4
      %v9793 = vshrl.u32 %v9561, 16
      %v9795 = vrot.slane %v9793, 7
      %v9796 = vshll.u32 %v9561, 16
      %v9798 = vor.u32 %v9795, %v9796
      %v9799 = vsel %vm276, %v9791, %v9798
      %v9801 = vshrl.u32 %v9562, 16
      %v9803 = vrot.slane %v9801, 7
      %v9804 = vrot.slane %v9803, 4
      %v9806 = vshrl.u32 %v9563, 16
      %v9808 = vrot.slane %v9806, 7
      %v9809 = vshll.u32 %v9563, 16
      %v9811 = vor.u32 %v9808, %v9809
      %v9812 = vsel %vm276, %v9804, %v9811
      %v9813 = vrot.slane %v9808, 4
      %v9815 = vshrl.u32 %v9564, 16
      %v9817 = vrot.slane %v9815, 7
      %v9818 = vshll.u32 %v9564, 16
      %v9820 = vor.u32 %v9817, %v9818
      %v9821 = vsel %vm276, %v9813, %v9820
      %v9823 = vshrl.u32 %v9565, 16
      %v9825 = vrot.slane %v9823, 7
      %v9826 = vrot.slane %v9825, 4
      %v9828 = vshrl.u32 %v9566, 16
      %v9830 = vrot.slane %v9828, 7
      %v9831 = vshll.u32 %v9566, 16
      %v9833 = vor.u32 %v9830, %v9831
      %v9834 = vsel %vm276, %v9826, %v9833
      %v9835 = vrot.slane %v9830, 4
      %v9837 = vshrl.u32 %v9567, 16
      %v9839 = vrot.slane %v9837, 7
      %v9840 = vshll.u32 %v9567, 16
      %v9842 = vor.u32 %v9839, %v9840
      %v9843 = vsel %vm276, %v9835, %v9842
      %v9845 = vshrl.u32 %v9568, 16
      %v9847 = vrot.slane %v9845, 7
      %v9848 = vrot.slane %v9847, 4
      %v9850 = vshrl.u32 %v9569, 16
      %v9852 = vrot.slane %v9850, 7
      %v9853 = vshll.u32 %v9569, 16
      %v9855 = vor.u32 %v9852, %v9853
      %v9856 = vsel %vm276, %v9848, %v9855
      %v9857 = vrot.slane %v9852, 4
      %v9859 = vshrl.u32 %v9570, 16
      %v9861 = vrot.slane %v9859, 7
      %v9862 = vshll.u32 %v9570, 16
      %v9864 = vor.u32 %v9861, %v9862
      %v9865 = vsel %vm276, %v9857, %v9864
      %v9867 = vshrl.u32 %v9571, 16
      %v9869 = vrot.slane %v9867, 7
      %v9870 = vrot.slane %v9869, 4
      %v9872 = vshrl.u32 %v9572, 16
      %v9874 = vrot.slane %v9872, 7
      %v9875 = vshll.u32 %v9572, 16
      %v9877 = vor.u32 %v9874, %v9875
      %v9878 = vsel %vm276, %v9870, %v9877
      %v9879 = vrot.slane %v9874, 4
      %v9881 = vshrl.u32 %v9573, 16
      %v9883 = vrot.slane %v9881, 7
      %v9884 = vshll.u32 %v9573, 16
      %v9886 = vor.u32 %v9883, %v9884
      %v9887 = vsel %vm276, %v9879, %v9886
      %v9889 = vshrl.u32 %v9574, 16
      %v9891 = vrot.slane %v9889, 7
      %v9892 = vrot.slane %v9891, 4
      %v9894 = vshrl.u32 %v9575, 16
      %v9896 = vrot.slane %v9894, 7
      %v9897 = vshll.u32 %v9575, 16
      %v9899 = vor.u32 %v9896, %v9897
      %v9900 = vsel %vm276, %v9892, %v9899
      %v9901 = vrot.slane %v9896, 4
      %v9903 = vshrl.u32 %v9576, 16
      %v9905 = vrot.slane %v9903, 7
      %v9906 = vshll.u32 %v9576, 16
      %v9908 = vor.u32 %v9905, %v9906
      %v9909 = vsel %vm276, %v9901, %v9908
      %v9911 = vshrl.u32 %v9577, 16
      %v9913 = vrot.slane %v9911, 7
      %v9914 = vrot.slane %v9913, 4
      %v9916 = vshrl.u32 %v9578, 16
      %v9918 = vrot.slane %v9916, 7
      %v9919 = vshll.u32 %v9578, 16
      %v9921 = vor.u32 %v9918, %v9919
      %v9922 = vsel %vm276, %v9914, %v9921
      %v9923 = vrot.slane %v9918, 4
      %v9925 = vshrl.u32 %v9579, 16
      %v9927 = vrot.slane %v9925, 7
      %v9928 = vshll.u32 %v9579, 16
      %v9930 = vor.u32 %v9927, %v9928
      %v9931 = vsel %vm276, %v9923, %v9930
      %s9932 = scalar_lea.vmem %s3, 384
      %v9933 = vld [vmem:[%s9932] sm:$0xf]
      %v9934 = vld [vmem:[%s9932 + $0x4] sm:$0xf]
      %v9935 = vld [vmem:[%s9932 + $0x8] sm:$0xf]
      %v9936 = vld [vmem:[%s9932 + $0xc] sm:$0xf]
      %v9937 = vld [vmem:[%s9932 + $0x10] sm:$0xf]
      %v9938 = vld [vmem:[%s9932 + $0x14] sm:$0xf]
      %v9939 = vld [vmem:[%s9932 + $0x18] sm:$0xf]
      %v9940 = vld [vmem:[%s9932 + $0x1c] sm:$0xf]
      %v9941 = vld [vmem:[%s9932 + $0x20] sm:$0xf]
      %v9942 = vld [vmem:[%s9932 + $0x24] sm:$0xf]
      %v9943 = vld [vmem:[%s9932 + $0x28] sm:$0xf]
      %v9944 = vld [vmem:[%s9932 + $0x2c] sm:$0xf]
      %v9945 = vld [vmem:[%s9932 + $0x30] sm:$0xf]
      %v9946 = vld [vmem:[%s9932 + $0x34] sm:$0xf]
      %v9947 = vld [vmem:[%s9932 + $0x38] sm:$0xf]
      %v9948 = vld [vmem:[%s9932 + $0x3c] sm:$0xf]
      %v9949 = vunpack.c.l.b16 %v9592
      %v9950 = vunpack.c.l.b16 %v9601
      %v9951 = vunpack.c.l.b16 %v9614
      %v9952 = vunpack.c.l.b16 %v9623
      %v9953 = vunpack.c.l.b16 %v9636
      %v9954 = vunpack.c.l.b16 %v9645
      %v9955 = vunpack.c.l.b16 %v9658
      %v9956 = vunpack.c.l.b16 %v9667
      %v9957 = vunpack.c.l.b16 %v9680
      %v9958 = vunpack.c.l.b16 %v9689
      %v9959 = vunpack.c.l.b16 %v9702
      %v9960 = vunpack.c.l.b16 %v9711
      %v9961 = vunpack.c.l.b16 %v9724
      %v9962 = vunpack.c.l.b16 %v9733
      %v9963 = vunpack.c.l.b16 %v9746
      %v9964 = vunpack.c.l.b16 %v9755
      %v9965 = vunpack.c.l.b16 %v9768
      %v9966 = vunpack.c.l.b16 %v9777
      %v9967 = vunpack.c.l.b16 %v9790
      %v9968 = vunpack.c.l.b16 %v9799
      %v9969 = vunpack.c.l.b16 %v9812
      %v9970 = vunpack.c.l.b16 %v9821
      %v9971 = vunpack.c.l.b16 %v9834
      %v9972 = vunpack.c.l.b16 %v9843
      %v9973 = vunpack.c.l.b16 %v9856
      %v9974 = vunpack.c.l.b16 %v9865
      %v9975 = vunpack.c.l.b16 %v9878
      %v9976 = vunpack.c.l.b16 %v9887
      %v9977 = vunpack.c.l.b16 %v9900
      %v9978 = vunpack.c.l.b16 %v9909
      %v9979 = vunpack.c.l.b16 %v9922
      %v9980 = vunpack.c.l.b16 %v9931
      %v9981 = vpack.c.b16 %v9950, %v9949
      %v9982 = vpack.c.b16 %v9952, %v9951
      %v9983 = vpack.c.b16 %v9954, %v9953
      %v9984 = vpack.c.b16 %v9956, %v9955
      %v9985 = vpack.c.b16 %v9958, %v9957
      %v9986 = vpack.c.b16 %v9960, %v9959
      %v9987 = vpack.c.b16 %v9962, %v9961
      %v9988 = vpack.c.b16 %v9964, %v9963
      %v9989 = vpack.c.b16 %v9966, %v9965
      %v9990 = vpack.c.b16 %v9968, %v9967
      %v9991 = vpack.c.b16 %v9970, %v9969
      %v9992 = vpack.c.b16 %v9972, %v9971
      %v9993 = vpack.c.b16 %v9974, %v9973
      %v9994 = vpack.c.b16 %v9976, %v9975
      %v9995 = vpack.c.b16 %v9978, %v9977
      %v9996 = vpack.c.b16 %v9980, %v9979
      %v10029 = vunpack.c.l.b16 %v9933
      %v10030 = vunpack.c.l.b16 %v9934
      %v10031 = vunpack.c.l.b16 %v9935
      %v10032 = vunpack.c.l.b16 %v9936
      %v10033 = vunpack.c.l.b16 %v9937
      %v10034 = vunpack.c.l.b16 %v9938
      %v10035 = vunpack.c.l.b16 %v9939
      %v10036 = vunpack.c.l.b16 %v9940
      %v10037 = vunpack.c.l.b16 %v9941
      %v10038 = vunpack.c.l.b16 %v9942
      %v10039 = vunpack.c.l.b16 %v9943
      %v10040 = vunpack.c.l.b16 %v9944
      %v10041 = vunpack.c.l.b16 %v9945
      %v10042 = vunpack.c.l.b16 %v9946
      %v10043 = vunpack.c.l.b16 %v9947
      %v10044 = vunpack.c.l.b16 %v9948
      %v10045 = vpack.c.b16 %v10030, %v10029
      %v10046 = vpack.c.b16 %v10032, %v10031
      %v10047 = vpack.c.b16 %v10034, %v10033
      %v10048 = vpack.c.b16 %v10036, %v10035
      %v10049 = vpack.c.b16 %v10038, %v10037
      %v10050 = vpack.c.b16 %v10040, %v10039
      %v10051 = vpack.c.b16 %v10042, %v10041
      %v10052 = vpack.c.b16 %v10044, %v10043
      %10061 = vmatprep.subr.bf16.mxu0 0
      %10062 = vmatpush1.bf16.msra.mxu0 %v10052
      %10063 = vmatprep.subr.bf16.mxu0 0
      %10064 = vmatpush1.bf16.msra.mxu0 %v10051
      %10065 = vmatprep.subr.bf16.mxu0 0
      %10066 = vmatpush1.bf16.msra.mxu0 %v10050
      %10067 = vmatprep.subr.bf16.mxu0 0
      %10068 = vmatpush1.bf16.msra.mxu0 %v10049
      %10069 = vmatprep.subr.bf16.mxu0 0
      %10070 = vmatpush1.bf16.msra.mxu0 %v10048
      %10071 = vmatprep.subr.bf16.mxu0 0
      %10072 = vmatpush1.bf16.msra.mxu0 %v10047
      %10073 = vmatprep.subr.bf16.mxu0 0
      %10074 = vmatpush1.bf16.msra.mxu0 %v10046
      %10075 = vmatprep.subr.bf16.mxu0 0
      %10076 = vmatpush1.bf16.msra.mxu0 %v10045
      %10077 = vmatprep.subr.bf16.mxu0 0
      %10078 = vmatpush2.bf16.msra.mxu0 0
      %10079 = vmatprep.subr.bf16.mxu0 0
      %10080 = vmatpush2.bf16.msra.mxu0 0
      %10081 = vmatprep.subr.bf16.mxu0 0
      %10082 = vmatpush2.bf16.msra.mxu0 0
      %10083 = vmatprep.subr.bf16.mxu0 0
      %10084 = vmatpush2.bf16.msra.mxu0 0
      %10085 = vmatprep.subr.bf16.mxu0 0
      %10086 = vmatpush2.bf16.msra.mxu0 0
      %10087 = vmatprep.subr.bf16.mxu0 0
      %10088 = vmatpush2.bf16.msra.mxu0 0
      %10089 = vmatprep.subr.bf16.mxu0 0
      %10090 = vmatpush2.bf16.msra.mxu0 0
      %10091 = vmatprep.subr.bf16.mxu0 0
      %10092 = vmatpush2.bf16.msra.mxu0 0
      %10093 = vmatprep.mubr.bf16.mxu0 0
      %10094 = vmatmul.mubr.bf16.gmra.mxu0 %v9981
      %v10095 = vpop.f32.mrf.mxu0
      %v10096 = vadd.f32 0.0, %v10095
      %v10097 = vpop.f32.mrf.mxu0
      %v10098 = vpop.f32.mrf.mxu0
      %v10099 = vadd.f32 0.0, %v10098
      %v10100 = vpop.f32.mrf.mxu0
      %10101 = vmatprep.mubr.bf16.mxu0 0
      %10102 = vmatmul.mubr.bf16.gmra.mxu0 %v9982
      %v10103 = vpop.f32.mrf.mxu0
      %v10104 = vadd.f32 0.0, %v10103
      %v10105 = vpop.f32.mrf.mxu0
      %v10106 = vpop.f32.mrf.mxu0
      %v10107 = vadd.f32 0.0, %v10106
      %v10108 = vpop.f32.mrf.mxu0
      %10109 = vmatprep.mubr.bf16.mxu0 0
      %10110 = vmatmul.mubr.bf16.gmra.mxu0 %v9983
      %v10111 = vpop.f32.mrf.mxu0
      %v10112 = vadd.f32 0.0, %v10111
      %v10113 = vpop.f32.mrf.mxu0
      %v10114 = vpop.f32.mrf.mxu0
      %v10115 = vadd.f32 0.0, %v10114
      %v10116 = vpop.f32.mrf.mxu0
      %10117 = vmatprep.mubr.bf16.mxu0 0
      %10118 = vmatmul.mubr.bf16.gmra.mxu0 %v9984
      %v10119 = vpop.f32.mrf.mxu0
      %v10120 = vadd.f32 0.0, %v10119
      %v10121 = vpop.f32.mrf.mxu0
      %v10122 = vpop.f32.mrf.mxu0
      %v10123 = vadd.f32 0.0, %v10122
      %v10124 = vpop.f32.mrf.mxu0
      %10125 = vmatprep.mubr.bf16.mxu0 0
      %10126 = vmatmul.mubr.bf16.gmra.mxu0 %v9985
      %v10127 = vpop.f32.mrf.mxu0
      %v10128 = vadd.f32 0.0, %v10127
      %v10129 = vpop.f32.mrf.mxu0
      %v10130 = vpop.f32.mrf.mxu0
      %v10131 = vadd.f32 0.0, %v10130
      %v10132 = vpop.f32.mrf.mxu0
      %10133 = vmatprep.mubr.bf16.mxu0 0
      %10134 = vmatmul.mubr.bf16.gmra.mxu0 %v9986
      %v10135 = vpop.f32.mrf.mxu0
      %v10136 = vadd.f32 0.0, %v10135
      %v10137 = vpop.f32.mrf.mxu0
      %v10138 = vpop.f32.mrf.mxu0
      %v10139 = vadd.f32 0.0, %v10138
      %v10140 = vpop.f32.mrf.mxu0
      %10141 = vmatprep.mubr.bf16.mxu0 0
      %10142 = vmatmul.mubr.bf16.gmra.mxu0 %v9987
      %v10143 = vpop.f32.mrf.mxu0
      %v10144 = vadd.f32 0.0, %v10143
      %v10145 = vpop.f32.mrf.mxu0
      %v10146 = vpop.f32.mrf.mxu0
      %v10147 = vadd.f32 0.0, %v10146
      %v10148 = vpop.f32.mrf.mxu0
      %10149 = vmatprep.mubr.bf16.mxu0 0
      %10150 = vmatmul.mubr.bf16.gmra.mxu0 %v9988
      %v10151 = vpop.f32.mrf.mxu0
      %v10152 = vadd.f32 0.0, %v10151
      %v10153 = vpop.f32.mrf.mxu0
      %v10154 = vpop.f32.mrf.mxu0
      %v10155 = vadd.f32 0.0, %v10154
      %v10156 = vpop.f32.mrf.mxu0
      %10157 = vmatprep.mubr.bf16.mxu0 0
      %10158 = vmatmul.mubr.bf16.gmra.mxu0 %v9989
      %v10159 = vpop.f32.mrf.mxu0
      %v10160 = vadd.f32 0.0, %v10159
      %v10161 = vpop.f32.mrf.mxu0
      %v10162 = vpop.f32.mrf.mxu0
      %v10163 = vadd.f32 0.0, %v10162
      %v10164 = vpop.f32.mrf.mxu0
      %10165 = vmatprep.mubr.bf16.mxu0 0
      %10166 = vmatmul.mubr.bf16.gmra.mxu0 %v9990
      %v10167 = vpop.f32.mrf.mxu0
      %v10168 = vadd.f32 0.0, %v10167
      %v10169 = vpop.f32.mrf.mxu0
      %v10170 = vpop.f32.mrf.mxu0
      %v10171 = vadd.f32 0.0, %v10170
      %v10172 = vpop.f32.mrf.mxu0
      %10173 = vmatprep.mubr.bf16.mxu0 0
      %10174 = vmatmul.mubr.bf16.gmra.mxu0 %v9991
      %v10175 = vpop.f32.mrf.mxu0
      %v10176 = vadd.f32 0.0, %v10175
      %v10177 = vpop.f32.mrf.mxu0
      %v10178 = vpop.f32.mrf.mxu0
      %v10179 = vadd.f32 0.0, %v10178
      %v10180 = vpop.f32.mrf.mxu0
      %10181 = vmatprep.mubr.bf16.mxu0 0
      %10182 = vmatmul.mubr.bf16.gmra.mxu0 %v9992
      %v10183 = vpop.f32.mrf.mxu0
      %v10184 = vadd.f32 0.0, %v10183
      %v10185 = vpop.f32.mrf.mxu0
      %v10186 = vpop.f32.mrf.mxu0
      %v10187 = vadd.f32 0.0, %v10186
      %v10188 = vpop.f32.mrf.mxu0
      %10189 = vmatprep.mubr.bf16.mxu0 0
      %10190 = vmatmul.mubr.bf16.gmra.mxu0 %v9993
      %v10191 = vpop.f32.mrf.mxu0
      %v10192 = vadd.f32 0.0, %v10191
      %v10193 = vpop.f32.mrf.mxu0
      %v10194 = vpop.f32.mrf.mxu0
      %v10195 = vadd.f32 0.0, %v10194
      %v10196 = vpop.f32.mrf.mxu0
      %10197 = vmatprep.mubr.bf16.mxu0 0
      %10198 = vmatmul.mubr.bf16.gmra.mxu0 %v9994
      %v10199 = vpop.f32.mrf.mxu0
      %v10200 = vadd.f32 0.0, %v10199
      %v10201 = vpop.f32.mrf.mxu0
      %v10202 = vpop.f32.mrf.mxu0
      %v10203 = vadd.f32 0.0, %v10202
      %v10204 = vpop.f32.mrf.mxu0
      %10205 = vmatprep.mubr.bf16.mxu0 0
      %10206 = vmatmul.mubr.bf16.gmra.mxu0 %v9995
      %v10207 = vpop.f32.mrf.mxu0
      %v10208 = vadd.f32 0.0, %v10207
      %v10209 = vpop.f32.mrf.mxu0
      %v10210 = vpop.f32.mrf.mxu0
      %v10211 = vadd.f32 0.0, %v10210
      %v10212 = vpop.f32.mrf.mxu0
      %10213 = vmatprep.mubr.bf16.mxu0 0
      %10214 = vmatmul.mubr.bf16.gmra.mxu0 %v9996
      %v10215 = vpop.f32.mrf.mxu0
      %v10216 = vadd.f32 0.0, %v10215
      %v10217 = vpop.f32.mrf.mxu0
      %v10218 = vpop.f32.mrf.mxu0
      %v10219 = vadd.f32 0.0, %v10218
      %v10220 = vpop.f32.mrf.mxu0
      %10221 = vdwg.mxu0
      %v10222 = vadd.f32 %v9499, %v10096
      %v10223 = vadd.f32 %v9500, %v10099
      %v10224 = vadd.f32 %v9501, %v10104
      %v10225 = vadd.f32 %v9502, %v10107
      %v10226 = vadd.f32 %v9503, %v10112
      %v10227 = vadd.f32 %v9504, %v10115
      %v10228 = vadd.f32 %v9505, %v10120
      %v10229 = vadd.f32 %v9506, %v10123
      %v10230 = vadd.f32 %v9507, %v10128
      %v10231 = vadd.f32 %v9508, %v10131
      %v10232 = vadd.f32 %v9509, %v10136
      %v10233 = vadd.f32 %v9510, %v10139
      %v10234 = vadd.f32 %v9511, %v10144
      %v10235 = vadd.f32 %v9512, %v10147
      %v10236 = vadd.f32 %v9513, %v10152
      %v10237 = vadd.f32 %v9514, %v10155
      %v10238 = vadd.f32 %v9515, %v10160
      %v10239 = vadd.f32 %v9516, %v10163
      %v10240 = vadd.f32 %v9517, %v10168
      %v10241 = vadd.f32 %v9518, %v10171
      %v10242 = vadd.f32 %v9519, %v10176
      %v10243 = vadd.f32 %v9520, %v10179
      %v10244 = vadd.f32 %v9521, %v10184
      %v10245 = vadd.f32 %v9522, %v10187
      %v10246 = vadd.f32 %v9523, %v10192
      %v10247 = vadd.f32 %v9524, %v10195
      %v10248 = vadd.f32 %v9525, %v10200
      %v10249 = vadd.f32 %v9526, %v10203
      %v10250 = vadd.f32 %v9527, %v10208
      %v10251 = vadd.f32 %v9528, %v10211
      %v10252 = vadd.f32 %v9529, %v10216
      %v10253 = vadd.f32 %v9530, %v10219
      %s10254 = scalar_lea.vmem %s3, 448
      %v10255 = vld [vmem:[%s10254] sm:$0xf]
      %v10256 = vld [vmem:[%s10254 + $0x4] sm:$0xf]
      %v10257 = vld [vmem:[%s10254 + $0x8] sm:$0xf]
      %v10258 = vld [vmem:[%s10254 + $0xc] sm:$0xf]
      %v10259 = vld [vmem:[%s10254 + $0x10] sm:$0xf]
      %v10260 = vld [vmem:[%s10254 + $0x14] sm:$0xf]
      %v10261 = vld [vmem:[%s10254 + $0x18] sm:$0xf]
      %v10262 = vld [vmem:[%s10254 + $0x1c] sm:$0xf]
      %v10263 = vld [vmem:[%s10254 + $0x20] sm:$0xf]
      %v10264 = vld [vmem:[%s10254 + $0x24] sm:$0xf]
      %v10265 = vld [vmem:[%s10254 + $0x28] sm:$0xf]
      %v10266 = vld [vmem:[%s10254 + $0x2c] sm:$0xf]
      %v10267 = vld [vmem:[%s10254 + $0x30] sm:$0xf]
      %v10268 = vld [vmem:[%s10254 + $0x34] sm:$0xf]
      %v10269 = vld [vmem:[%s10254 + $0x38] sm:$0xf]
      %v10270 = vld [vmem:[%s10254 + $0x3c] sm:$0xf]
      %v10303 = vunpack.c.l.b16 %v9533
      %v10304 = vunpack.c.l.b16 %v9534
      %v10305 = vunpack.c.l.b16 %v9536
      %v10306 = vunpack.c.l.b16 %v9537
      %v10307 = vunpack.c.l.b16 %v9539
      %v10308 = vunpack.c.l.b16 %v9540
      %v10309 = vunpack.c.l.b16 %v9542
      %v10310 = vunpack.c.l.b16 %v9543
      %v10311 = vunpack.c.l.b16 %v9545
      %v10312 = vunpack.c.l.b16 %v9546
      %v10313 = vunpack.c.l.b16 %v9548
      %v10314 = vunpack.c.l.b16 %v9549
      %v10315 = vunpack.c.l.b16 %v9551
      %v10316 = vunpack.c.l.b16 %v9552
      %v10317 = vunpack.c.l.b16 %v9554
      %v10318 = vunpack.c.l.b16 %v9555
      %v10319 = vunpack.c.l.b16 %v9557
      %v10320 = vunpack.c.l.b16 %v9558
      %v10321 = vunpack.c.l.b16 %v9560
      %v10322 = vunpack.c.l.b16 %v9561
      %v10323 = vunpack.c.l.b16 %v9563
      %v10324 = vunpack.c.l.b16 %v9564
      %v10325 = vunpack.c.l.b16 %v9566
      %v10326 = vunpack.c.l.b16 %v9567
      %v10327 = vunpack.c.l.b16 %v9569
      %v10328 = vunpack.c.l.b16 %v9570
      %v10329 = vunpack.c.l.b16 %v9572
      %v10330 = vunpack.c.l.b16 %v9573
      %v10331 = vunpack.c.l.b16 %v9575
      %v10332 = vunpack.c.l.b16 %v9576
      %v10333 = vunpack.c.l.b16 %v9578
      %v10334 = vunpack.c.l.b16 %v9579
      %v10335 = vpack.c.b16 %v10304, %v10303
      %v10336 = vpack.c.b16 %v10306, %v10305
      %v10337 = vpack.c.b16 %v10308, %v10307
      %v10338 = vpack.c.b16 %v10310, %v10309
      %v10339 = vpack.c.b16 %v10312, %v10311
      %v10340 = vpack.c.b16 %v10314, %v10313
      %v10341 = vpack.c.b16 %v10316, %v10315
      %v10342 = vpack.c.b16 %v10318, %v10317
      %v10343 = vpack.c.b16 %v10320, %v10319
      %v10344 = vpack.c.b16 %v10322, %v10321
      %v10345 = vpack.c.b16 %v10324, %v10323
      %v10346 = vpack.c.b16 %v10326, %v10325
      %v10347 = vpack.c.b16 %v10328, %v10327
      %v10348 = vpack.c.b16 %v10330, %v10329
      %v10349 = vpack.c.b16 %v10332, %v10331
      %v10350 = vpack.c.b16 %v10334, %v10333
      %v10383 = vunpack.c.l.b16 %v10255
      %v10384 = vunpack.c.l.b16 %v10256
      %v10385 = vunpack.c.l.b16 %v10257
      %v10386 = vunpack.c.l.b16 %v10258
      %v10387 = vunpack.c.l.b16 %v10259
      %v10388 = vunpack.c.l.b16 %v10260
      %v10389 = vunpack.c.l.b16 %v10261
      %v10390 = vunpack.c.l.b16 %v10262
      %v10391 = vunpack.c.l.b16 %v10263
      %v10392 = vunpack.c.l.b16 %v10264
      %v10393 = vunpack.c.l.b16 %v10265
      %v10394 = vunpack.c.l.b16 %v10266
      %v10395 = vunpack.c.l.b16 %v10267
      %v10396 = vunpack.c.l.b16 %v10268
      %v10397 = vunpack.c.l.b16 %v10269
      %v10398 = vunpack.c.l.b16 %v10270
      %v10399 = vpack.c.b16 %v10384, %v10383
      %v10400 = vpack.c.b16 %v10386, %v10385
      %v10401 = vpack.c.b16 %v10388, %v10387
      %v10402 = vpack.c.b16 %v10390, %v10389
      %v10403 = vpack.c.b16 %v10392, %v10391
      %v10404 = vpack.c.b16 %v10394, %v10393
      %v10405 = vpack.c.b16 %v10396, %v10395
      %v10406 = vpack.c.b16 %v10398, %v10397
      %10415 = vmatprep.subr.bf16.mxu0 0
      %10416 = vmatpush1.bf16.msra.mxu0 %v10406
      %10417 = vmatprep.subr.bf16.mxu0 0
      %10418 = vmatpush1.bf16.msra.mxu0 %v10405
      %10419 = vmatprep.subr.bf16.mxu0 0
      %10420 = vmatpush1.bf16.msra.mxu0 %v10404
      %10421 = vmatprep.subr.bf16.mxu0 0
      %10422 = vmatpush1.bf16.msra.mxu0 %v10403
      %10423 = vmatprep.subr.bf16.mxu0 0
      %10424 = vmatpush1.bf16.msra.mxu0 %v10402
      %10425 = vmatprep.subr.bf16.mxu0 0
      %10426 = vmatpush1.bf16.msra.mxu0 %v10401
      %10427 = vmatprep.subr.bf16.mxu0 0
      %10428 = vmatpush1.bf16.msra.mxu0 %v10400
      %10429 = vmatprep.subr.bf16.mxu0 0
      %10430 = vmatpush1.bf16.msra.mxu0 %v10399
      %10431 = vmatprep.subr.bf16.mxu0 0
      %10432 = vmatpush2.bf16.msra.mxu0 0
      %10433 = vmatprep.subr.bf16.mxu0 0
      %10434 = vmatpush2.bf16.msra.mxu0 0
      %10435 = vmatprep.subr.bf16.mxu0 0
      %10436 = vmatpush2.bf16.msra.mxu0 0
      %10437 = vmatprep.subr.bf16.mxu0 0
      %10438 = vmatpush2.bf16.msra.mxu0 0
      %10439 = vmatprep.subr.bf16.mxu0 0
      %10440 = vmatpush2.bf16.msra.mxu0 0
      %10441 = vmatprep.subr.bf16.mxu0 0
      %10442 = vmatpush2.bf16.msra.mxu0 0
      %10443 = vmatprep.subr.bf16.mxu0 0
      %10444 = vmatpush2.bf16.msra.mxu0 0
      %10445 = vmatprep.subr.bf16.mxu0 0
      %10446 = vmatpush2.bf16.msra.mxu0 0
      %10447 = vmatprep.mubr.bf16.mxu0 0
      %10448 = vmatmul.mubr.bf16.gmra.mxu0 %v10335
      %v10449 = vpop.f32.mrf.mxu0
      %v10450 = vadd.f32 0.0, %v10449
      %v10451 = vpop.f32.mrf.mxu0
      %v10452 = vpop.f32.mrf.mxu0
      %v10453 = vadd.f32 0.0, %v10452
      %v10454 = vpop.f32.mrf.mxu0
      %10455 = vmatprep.mubr.bf16.mxu0 0
      %10456 = vmatmul.mubr.bf16.gmra.mxu0 %v10336
      %v10457 = vpop.f32.mrf.mxu0
      %v10458 = vadd.f32 0.0, %v10457
      %v10459 = vpop.f32.mrf.mxu0
      %v10460 = vpop.f32.mrf.mxu0
      %v10461 = vadd.f32 0.0, %v10460
      %v10462 = vpop.f32.mrf.mxu0
      %10463 = vmatprep.mubr.bf16.mxu0 0
      %10464 = vmatmul.mubr.bf16.gmra.mxu0 %v10337
      %v10465 = vpop.f32.mrf.mxu0
      %v10466 = vadd.f32 0.0, %v10465
      %v10467 = vpop.f32.mrf.mxu0
      %v10468 = vpop.f32.mrf.mxu0
      %v10469 = vadd.f32 0.0, %v10468
      %v10470 = vpop.f32.mrf.mxu0
      %10471 = vmatprep.mubr.bf16.mxu0 0
      %10472 = vmatmul.mubr.bf16.gmra.mxu0 %v10338
      %v10473 = vpop.f32.mrf.mxu0
      %v10474 = vadd.f32 0.0, %v10473
      %v10475 = vpop.f32.mrf.mxu0
      %v10476 = vpop.f32.mrf.mxu0
      %v10477 = vadd.f32 0.0, %v10476
      %v10478 = vpop.f32.mrf.mxu0
      %10479 = vmatprep.mubr.bf16.mxu0 0
      %10480 = vmatmul.mubr.bf16.gmra.mxu0 %v10339
      %v10481 = vpop.f32.mrf.mxu0
      %v10482 = vadd.f32 0.0, %v10481
      %v10483 = vpop.f32.mrf.mxu0
      %v10484 = vpop.f32.mrf.mxu0
      %v10485 = vadd.f32 0.0, %v10484
      %v10486 = vpop.f32.mrf.mxu0
      %10487 = vmatprep.mubr.bf16.mxu0 0
      %10488 = vmatmul.mubr.bf16.gmra.mxu0 %v10340
      %v10489 = vpop.f32.mrf.mxu0
      %v10490 = vadd.f32 0.0, %v10489
      %v10491 = vpop.f32.mrf.mxu0
      %v10492 = vpop.f32.mrf.mxu0
      %v10493 = vadd.f32 0.0, %v10492
      %v10494 = vpop.f32.mrf.mxu0
      %10495 = vmatprep.mubr.bf16.mxu0 0
      %10496 = vmatmul.mubr.bf16.gmra.mxu0 %v10341
      %v10497 = vpop.f32.mrf.mxu0
      %v10498 = vadd.f32 0.0, %v10497
      %v10499 = vpop.f32.mrf.mxu0
      %v10500 = vpop.f32.mrf.mxu0
      %v10501 = vadd.f32 0.0, %v10500
      %v10502 = vpop.f32.mrf.mxu0
      %10503 = vmatprep.mubr.bf16.mxu0 0
      %10504 = vmatmul.mubr.bf16.gmra.mxu0 %v10342
      %v10505 = vpop.f32.mrf.mxu0
      %v10506 = vadd.f32 0.0, %v10505
      %v10507 = vpop.f32.mrf.mxu0
      %v10508 = vpop.f32.mrf.mxu0
      %v10509 = vadd.f32 0.0, %v10508
      %v10510 = vpop.f32.mrf.mxu0
      %10511 = vmatprep.mubr.bf16.mxu0 0
      %10512 = vmatmul.mubr.bf16.gmra.mxu0 %v10343
      %v10513 = vpop.f32.mrf.mxu0
      %v10514 = vadd.f32 0.0, %v10513
      %v10515 = vpop.f32.mrf.mxu0
      %v10516 = vpop.f32.mrf.mxu0
      %v10517 = vadd.f32 0.0, %v10516
      %v10518 = vpop.f32.mrf.mxu0
      %10519 = vmatprep.mubr.bf16.mxu0 0
      %10520 = vmatmul.mubr.bf16.gmra.mxu0 %v10344
      %v10521 = vpop.f32.mrf.mxu0
      %v10522 = vadd.f32 0.0, %v10521
      %v10523 = vpop.f32.mrf.mxu0
      %v10524 = vpop.f32.mrf.mxu0
      %v10525 = vadd.f32 0.0, %v10524
      %v10526 = vpop.f32.mrf.mxu0
      %10527 = vmatprep.mubr.bf16.mxu0 0
      %10528 = vmatmul.mubr.bf16.gmra.mxu0 %v10345
      %v10529 = vpop.f32.mrf.mxu0
      %v10530 = vadd.f32 0.0, %v10529
      %v10531 = vpop.f32.mrf.mxu0
      %v10532 = vpop.f32.mrf.mxu0
      %v10533 = vadd.f32 0.0, %v10532
      %v10534 = vpop.f32.mrf.mxu0
      %10535 = vmatprep.mubr.bf16.mxu0 0
      %10536 = vmatmul.mubr.bf16.gmra.mxu0 %v10346
      %v10537 = vpop.f32.mrf.mxu0
      %v10538 = vadd.f32 0.0, %v10537
      %v10539 = vpop.f32.mrf.mxu0
      %v10540 = vpop.f32.mrf.mxu0
      %v10541 = vadd.f32 0.0, %v10540
      %v10542 = vpop.f32.mrf.mxu0
      %10543 = vmatprep.mubr.bf16.mxu0 0
      %10544 = vmatmul.mubr.bf16.gmra.mxu0 %v10347
      %v10545 = vpop.f32.mrf.mxu0
      %v10546 = vadd.f32 0.0, %v10545
      %v10547 = vpop.f32.mrf.mxu0
      %v10548 = vpop.f32.mrf.mxu0
      %v10549 = vadd.f32 0.0, %v10548
      %v10550 = vpop.f32.mrf.mxu0
      %10551 = vmatprep.mubr.bf16.mxu0 0
      %10552 = vmatmul.mubr.bf16.gmra.mxu0 %v10348
      %v10553 = vpop.f32.mrf.mxu0
      %v10554 = vadd.f32 0.0, %v10553
      %v10555 = vpop.f32.mrf.mxu0
      %v10556 = vpop.f32.mrf.mxu0
      %v10557 = vadd.f32 0.0, %v10556
      %v10558 = vpop.f32.mrf.mxu0
      %10559 = vmatprep.mubr.bf16.mxu0 0
      %10560 = vmatmul.mubr.bf16.gmra.mxu0 %v10349
      %v10561 = vpop.f32.mrf.mxu0
      %v10562 = vadd.f32 0.0, %v10561
      %v10563 = vpop.f32.mrf.mxu0
      %v10564 = vpop.f32.mrf.mxu0
      %v10565 = vadd.f32 0.0, %v10564
      %v10566 = vpop.f32.mrf.mxu0
      %10567 = vmatprep.mubr.bf16.mxu0 0
      %10568 = vmatmul.mubr.bf16.gmra.mxu0 %v10350
      %v10569 = vpop.f32.mrf.mxu0
      %v10570 = vadd.f32 0.0, %v10569
      %v10571 = vpop.f32.mrf.mxu0
      %v10572 = vpop.f32.mrf.mxu0
      %v10573 = vadd.f32 0.0, %v10572
      %v10574 = vpop.f32.mrf.mxu0
      %10575 = vdwg.mxu0
      %v10576 = vadd.f32 %v10222, %v10450
      %v10577 = vadd.f32 %v10223, %v10453
      %v10578 = vadd.f32 %v10224, %v10458
      %v10579 = vadd.f32 %v10225, %v10461
      %v10580 = vadd.f32 %v10226, %v10466
      %v10581 = vadd.f32 %v10227, %v10469
      %v10582 = vadd.f32 %v10228, %v10474
      %v10583 = vadd.f32 %v10229, %v10477
      %v10584 = vadd.f32 %v10230, %v10482
      %v10585 = vadd.f32 %v10231, %v10485
      %v10586 = vadd.f32 %v10232, %v10490
      %v10587 = vadd.f32 %v10233, %v10493
      %v10588 = vadd.f32 %v10234, %v10498
      %v10589 = vadd.f32 %v10235, %v10501
      %v10590 = vadd.f32 %v10236, %v10506
      %v10591 = vadd.f32 %v10237, %v10509
      %v10592 = vadd.f32 %v10238, %v10514
      %v10593 = vadd.f32 %v10239, %v10517
      %v10594 = vadd.f32 %v10240, %v10522
      %v10595 = vadd.f32 %v10241, %v10525
      %v10596 = vadd.f32 %v10242, %v10530
      %v10597 = vadd.f32 %v10243, %v10533
      %v10598 = vadd.f32 %v10244, %v10538
      %v10599 = vadd.f32 %v10245, %v10541
      %v10600 = vadd.f32 %v10246, %v10546
      %v10601 = vadd.f32 %v10247, %v10549
      %v10602 = vadd.f32 %v10248, %v10554
      %v10603 = vadd.f32 %v10249, %v10557
      %v10604 = vadd.f32 %v10250, %v10562
      %v10605 = vadd.f32 %v10251, %v10565
      %v10606 = vadd.f32 %v10252, %v10570
      %v10607 = vadd.f32 %v10253, %v10573
      %v10608 = vld [vmem:[%s9531 + $0x4] sm:$0xf]
      %v10609 = vld [vmem:[%s9531 + $0x8] sm:$0xf]
      %v10610 = vld [vmem:[%s9531 + $0xc] sm:$0x1]
      %v10611 = vld [vmem:[%s9531 + $0x14] sm:$0xf]
      %v10612 = vld [vmem:[%s9531 + $0x18] sm:$0xf]
      %v10613 = vld [vmem:[%s9531 + $0x1c] sm:$0x1]
      %v10614 = vld [vmem:[%s9531 + $0x24] sm:$0xf]
      %v10615 = vld [vmem:[%s9531 + $0x28] sm:$0xf]
      %v10616 = vld [vmem:[%s9531 + $0x2c] sm:$0x1]
      %v10617 = vld [vmem:[%s9531 + $0x34] sm:$0xf]
      %v10618 = vld [vmem:[%s9531 + $0x38] sm:$0xf]
      %v10619 = vld [vmem:[%s9531 + $0x3c] sm:$0x1]
      %v10620 = vld [vmem:[%s9531 + $0x44] sm:$0xf]
      %v10621 = vld [vmem:[%s9531 + $0x48] sm:$0xf]
      %v10622 = vld [vmem:[%s9531 + $0x4c] sm:$0x1]
      %v10623 = vld [vmem:[%s9531 + $0x54] sm:$0xf]
      %v10624 = vld [vmem:[%s9531 + $0x58] sm:$0xf]
      %v10625 = vld [vmem:[%s9531 + $0x5c] sm:$0x1]
      %v10626 = vld [vmem:[%s9531 + $0x64] sm:$0xf]
      %v10627 = vld [vmem:[%s9531 + $0x68] sm:$0xf]
      %v10628 = vld [vmem:[%s9531 + $0x6c] sm:$0x1]
      %v10629 = vld [vmem:[%s9531 + $0x74] sm:$0xf]
      %v10630 = vld [vmem:[%s9531 + $0x78] sm:$0xf]
      %v10631 = vld [vmem:[%s9531 + $0x7c] sm:$0x1]
      %v10632 = vld [vmem:[%s9531 + $0x84] sm:$0xf]
      %v10633 = vld [vmem:[%s9531 + $0x88] sm:$0xf]
      %v10634 = vld [vmem:[%s9531 + $0x8c] sm:$0x1]
      %v10635 = vld [vmem:[%s9531 + $0x94] sm:$0xf]
      %v10636 = vld [vmem:[%s9531 + $0x98] sm:$0xf]
      %v10637 = vld [vmem:[%s9531 + $0x9c] sm:$0x1]
      %v10638 = vld [vmem:[%s9531 + $0xa4] sm:$0xf]
      %v10639 = vld [vmem:[%s9531 + $0xa8] sm:$0xf]
      %v10640 = vld [vmem:[%s9531 + $0xac] sm:$0x1]
      %v10641 = vld [vmem:[%s9531 + $0xb4] sm:$0xf]
      %v10642 = vld [vmem:[%s9531 + $0xb8] sm:$0xf]
      %v10643 = vld [vmem:[%s9531 + $0xbc] sm:$0x1]
      %v10644 = vld [vmem:[%s9531 + $0xc4] sm:$0xf]
      %v10645 = vld [vmem:[%s9531 + $0xc8] sm:$0xf]
      %v10646 = vld [vmem:[%s9531 + $0xcc] sm:$0x1]
      %v10647 = vld [vmem:[%s9531 + $0xd4] sm:$0xf]
      %v10648 = vld [vmem:[%s9531 + $0xd8] sm:$0xf]
      %v10649 = vld [vmem:[%s9531 + $0xdc] sm:$0x1]
      %v10650 = vld [vmem:[%s9531 + $0xe4] sm:$0xf]
      %v10651 = vld [vmem:[%s9531 + $0xe8] sm:$0xf]
      %v10652 = vld [vmem:[%s9531 + $0xec] sm:$0x1]
      %v10653 = vld [vmem:[%s9531 + $0xf4] sm:$0xf]
      %v10654 = vld [vmem:[%s9531 + $0xf8] sm:$0xf]
      %v10655 = vld [vmem:[%s9531 + $0xfc] sm:$0x1]
      %v10657 = vshrl.u32 %v10608, 16
      %v10659 = vrot.slane %v10657, 4
      %v10660 = vshll.u32 %v10608, 16
      %v10662 = vrot.slane %v10660, 5
      %v10663 = vor.u32 %v10659, %v10662
      %v10664 = vrot.slane %v10663, 4
      %v10666 = vshll.u32 %v10609, 16
      %v10668 = vrot.slane %v10666, 5
      %v10669 = vsel %vm1290, %v10664, %v10668
      %v10670 = vshrl.u32 %v10609, 16
      %v10672 = vrot.slane %v10670, 4
      %v10673 = vor.u32 %v10672, %v10668
      %v10674 = vrot.slane %v10673, 4
      %v10676 = vshll.u32 %v10610, 16
      %v10678 = vrot.slane %v10676, 5
      %v10679 = vsel %vm1290, %v10674, %v10678
      %v10681 = vshrl.u32 %v10611, 16
      %v10683 = vrot.slane %v10681, 4
      %v10684 = vshll.u32 %v10611, 16
      %v10686 = vrot.slane %v10684, 5
      %v10687 = vor.u32 %v10683, %v10686
      %v10688 = vrot.slane %v10687, 4
      %v10690 = vshll.u32 %v10612, 16
      %v10692 = vrot.slane %v10690, 5
      %v10693 = vsel %vm1290, %v10688, %v10692
      %v10694 = vshrl.u32 %v10612, 16
      %v10696 = vrot.slane %v10694, 4
      %v10697 = vor.u32 %v10696, %v10692
      %v10698 = vrot.slane %v10697, 4
      %v10700 = vshll.u32 %v10613, 16
      %v10702 = vrot.slane %v10700, 5
      %v10703 = vsel %vm1290, %v10698, %v10702
      %v10705 = vshrl.u32 %v10614, 16
      %v10707 = vrot.slane %v10705, 4
      %v10708 = vshll.u32 %v10614, 16
      %v10710 = vrot.slane %v10708, 5
      %v10711 = vor.u32 %v10707, %v10710
      %v10712 = vrot.slane %v10711, 4
      %v10714 = vshll.u32 %v10615, 16
      %v10716 = vrot.slane %v10714, 5
      %v10717 = vsel %vm1290, %v10712, %v10716
      %v10718 = vshrl.u32 %v10615, 16
      %v10720 = vrot.slane %v10718, 4
      %v10721 = vor.u32 %v10720, %v10716
      %v10722 = vrot.slane %v10721, 4
      %v10724 = vshll.u32 %v10616, 16
      %v10726 = vrot.slane %v10724, 5
      %v10727 = vsel %vm1290, %v10722, %v10726
      %v10729 = vshrl.u32 %v10617, 16
      %v10731 = vrot.slane %v10729, 4
      %v10732 = vshll.u32 %v10617, 16
      %v10734 = vrot.slane %v10732, 5
      %v10735 = vor.u32 %v10731, %v10734
      %v10736 = vrot.slane %v10735, 4
      %v10738 = vshll.u32 %v10618, 16
      %v10740 = vrot.slane %v10738, 5
      %v10741 = vsel %vm1290, %v10736, %v10740
      %v10742 = vshrl.u32 %v10618, 16
      %v10744 = vrot.slane %v10742, 4
      %v10745 = vor.u32 %v10744, %v10740
      %v10746 = vrot.slane %v10745, 4
      %v10748 = vshll.u32 %v10619, 16
      %v10750 = vrot.slane %v10748, 5
      %v10751 = vsel %vm1290, %v10746, %v10750
      %v10753 = vshrl.u32 %v10620, 16
      %v10755 = vrot.slane %v10753, 4
      %v10756 = vshll.u32 %v10620, 16
      %v10758 = vrot.slane %v10756, 5
      %v10759 = vor.u32 %v10755, %v10758
      %v10760 = vrot.slane %v10759, 4
      %v10762 = vshll.u32 %v10621, 16
      %v10764 = vrot.slane %v10762, 5
      %v10765 = vsel %vm1290, %v10760, %v10764
      %v10766 = vshrl.u32 %v10621, 16
      %v10768 = vrot.slane %v10766, 4
      %v10769 = vor.u32 %v10768, %v10764
      %v10770 = vrot.slane %v10769, 4
      %v10772 = vshll.u32 %v10622, 16
      %v10774 = vrot.slane %v10772, 5
      %v10775 = vsel %vm1290, %v10770, %v10774
      %v10777 = vshrl.u32 %v10623, 16
      %v10779 = vrot.slane %v10777, 4
      %v10780 = vshll.u32 %v10623, 16
      %v10782 = vrot.slane %v10780, 5
      %v10783 = vor.u32 %v10779, %v10782
      %v10784 = vrot.slane %v10783, 4
      %v10786 = vshll.u32 %v10624, 16
      %v10788 = vrot.slane %v10786, 5
      %v10789 = vsel %vm1290, %v10784, %v10788
      %v10790 = vshrl.u32 %v10624, 16
      %v10792 = vrot.slane %v10790, 4
      %v10793 = vor.u32 %v10792, %v10788
      %v10794 = vrot.slane %v10793, 4
      %v10796 = vshll.u32 %v10625, 16
      %v10798 = vrot.slane %v10796, 5
      %v10799 = vsel %vm1290, %v10794, %v10798
      %v10801 = vshrl.u32 %v10626, 16
      %v10803 = vrot.slane %v10801, 4
      %v10804 = vshll.u32 %v10626, 16
      %v10806 = vrot.slane %v10804, 5
      %v10807 = vor.u32 %v10803, %v10806
      %v10808 = vrot.slane %v10807, 4
      %v10810 = vshll.u32 %v10627, 16
      %v10812 = vrot.slane %v10810, 5
      %v10813 = vsel %vm1290, %v10808, %v10812
      %v10814 = vshrl.u32 %v10627, 16
      %v10816 = vrot.slane %v10814, 4
      %v10817 = vor.u32 %v10816, %v10812
      %v10818 = vrot.slane %v10817, 4
      %v10820 = vshll.u32 %v10628, 16
      %v10822 = vrot.slane %v10820, 5
      %v10823 = vsel %vm1290, %v10818, %v10822
      %v10825 = vshrl.u32 %v10629, 16
      %v10827 = vrot.slane %v10825, 4
      %v10828 = vshll.u32 %v10629, 16
      %v10830 = vrot.slane %v10828, 5
      %v10831 = vor.u32 %v10827, %v10830
      %v10832 = vrot.slane %v10831, 4
      %v10834 = vshll.u32 %v10630, 16
      %v10836 = vrot.slane %v10834, 5
      %v10837 = vsel %vm1290, %v10832, %v10836
      %v10838 = vshrl.u32 %v10630, 16
      %v10840 = vrot.slane %v10838, 4
      %v10841 = vor.u32 %v10840, %v10836
      %v10842 = vrot.slane %v10841, 4
      %v10844 = vshll.u32 %v10631, 16
      %v10846 = vrot.slane %v10844, 5
      %v10847 = vsel %vm1290, %v10842, %v10846
      %v10849 = vshrl.u32 %v10632, 16
      %v10851 = vrot.slane %v10849, 4
      %v10852 = vshll.u32 %v10632, 16
      %v10854 = vrot.slane %v10852, 5
      %v10855 = vor.u32 %v10851, %v10854
      %v10856 = vrot.slane %v10855, 4
      %v10858 = vshll.u32 %v10633, 16
      %v10860 = vrot.slane %v10858, 5
      %v10861 = vsel %vm1290, %v10856, %v10860
      %v10862 = vshrl.u32 %v10633, 16
      %v10864 = vrot.slane %v10862, 4
      %v10865 = vor.u32 %v10864, %v10860
      %v10866 = vrot.slane %v10865, 4
      %v10868 = vshll.u32 %v10634, 16
      %v10870 = vrot.slane %v10868, 5
      %v10871 = vsel %vm1290, %v10866, %v10870
      %v10873 = vshrl.u32 %v10635, 16
      %v10875 = vrot.slane %v10873, 4
      %v10876 = vshll.u32 %v10635, 16
      %v10878 = vrot.slane %v10876, 5
      %v10879 = vor.u32 %v10875, %v10878
      %v10880 = vrot.slane %v10879, 4
      %v10882 = vshll.u32 %v10636, 16
      %v10884 = vrot.slane %v10882, 5
      %v10885 = vsel %vm1290, %v10880, %v10884
      %v10886 = vshrl.u32 %v10636, 16
      %v10888 = vrot.slane %v10886, 4
      %v10889 = vor.u32 %v10888, %v10884
      %v10890 = vrot.slane %v10889, 4
      %v10892 = vshll.u32 %v10637, 16
      %v10894 = vrot.slane %v10892, 5
      %v10895 = vsel %vm1290, %v10890, %v10894
      %v10897 = vshrl.u32 %v10638, 16
      %v10899 = vrot.slane %v10897, 4
      %v10900 = vshll.u32 %v10638, 16
      %v10902 = vrot.slane %v10900, 5
      %v10903 = vor.u32 %v10899, %v10902
      %v10904 = vrot.slane %v10903, 4
      %v10906 = vshll.u32 %v10639, 16
      %v10908 = vrot.slane %v10906, 5
      %v10909 = vsel %vm1290, %v10904, %v10908
      %v10910 = vshrl.u32 %v10639, 16
      %v10912 = vrot.slane %v10910, 4
      %v10913 = vor.u32 %v10912, %v10908
      %v10914 = vrot.slane %v10913, 4
      %v10916 = vshll.u32 %v10640, 16
      %v10918 = vrot.slane %v10916, 5
      %v10919 = vsel %vm1290, %v10914, %v10918
      %v10921 = vshrl.u32 %v10641, 16
      %v10923 = vrot.slane %v10921, 4
      %v10924 = vshll.u32 %v10641, 16
      %v10926 = vrot.slane %v10924, 5
      %v10927 = vor.u32 %v10923, %v10926
      %v10928 = vrot.slane %v10927, 4
      %v10930 = vshll.u32 %v10642, 16
      %v10932 = vrot.slane %v10930, 5
      %v10933 = vsel %vm1290, %v10928, %v10932
      %v10934 = vshrl.u32 %v10642, 16
      %v10936 = vrot.slane %v10934, 4
      %v10937 = vor.u32 %v10936, %v10932
      %v10938 = vrot.slane %v10937, 4
      %v10940 = vshll.u32 %v10643, 16
      %v10942 = vrot.slane %v10940, 5
      %v10943 = vsel %vm1290, %v10938, %v10942
      %v10945 = vshrl.u32 %v10644, 16
      %v10947 = vrot.slane %v10945, 4
      %v10948 = vshll.u32 %v10644, 16
      %v10950 = vrot.slane %v10948, 5
      %v10951 = vor.u32 %v10947, %v10950
      %v10952 = vrot.slane %v10951, 4
      %v10954 = vshll.u32 %v10645, 16
      %v10956 = vrot.slane %v10954, 5
      %v10957 = vsel %vm1290, %v10952, %v10956
      %v10958 = vshrl.u32 %v10645, 16
      %v10960 = vrot.slane %v10958, 4
      %v10961 = vor.u32 %v10960, %v10956
      %v10962 = vrot.slane %v10961, 4
      %v10964 = vshll.u32 %v10646, 16
      %v10966 = vrot.slane %v10964, 5
      %v10967 = vsel %vm1290, %v10962, %v10966
      %v10969 = vshrl.u32 %v10647, 16
      %v10971 = vrot.slane %v10969, 4
      %v10972 = vshll.u32 %v10647, 16
      %v10974 = vrot.slane %v10972, 5
      %v10975 = vor.u32 %v10971, %v10974
      %v10976 = vrot.slane %v10975, 4
      %v10978 = vshll.u32 %v10648, 16
      %v10980 = vrot.slane %v10978, 5
      %v10981 = vsel %vm1290, %v10976, %v10980
      %v10982 = vshrl.u32 %v10648, 16
      %v10984 = vrot.slane %v10982, 4
      %v10985 = vor.u32 %v10984, %v10980
      %v10986 = vrot.slane %v10985, 4
      %v10988 = vshll.u32 %v10649, 16
      %v10990 = vrot.slane %v10988, 5
      %v10991 = vsel %vm1290, %v10986, %v10990
      %v10993 = vshrl.u32 %v10650, 16
      %v10995 = vrot.slane %v10993, 4
      %v10996 = vshll.u32 %v10650, 16
      %v10998 = vrot.slane %v10996, 5
      %v10999 = vor.u32 %v10995, %v10998
      %v11000 = vrot.slane %v10999, 4
      %v11002 = vshll.u32 %v10651, 16
      %v11004 = vrot.slane %v11002, 5
      %v11005 = vsel %vm1290, %v11000, %v11004
      %v11006 = vshrl.u32 %v10651, 16
      %v11008 = vrot.slane %v11006, 4
      %v11009 = vor.u32 %v11008, %v11004
      %v11010 = vrot.slane %v11009, 4
      %v11012 = vshll.u32 %v10652, 16
      %v11014 = vrot.slane %v11012, 5
      %v11015 = vsel %vm1290, %v11010, %v11014
      %v11017 = vshrl.u32 %v10653, 16
      %v11019 = vrot.slane %v11017, 4
      %v11020 = vshll.u32 %v10653, 16
      %v11022 = vrot.slane %v11020, 5
      %v11023 = vor.u32 %v11019, %v11022
      %v11024 = vrot.slane %v11023, 4
      %v11026 = vshll.u32 %v10654, 16
      %v11028 = vrot.slane %v11026, 5
      %v11029 = vsel %vm1290, %v11024, %v11028
      %v11030 = vshrl.u32 %v10654, 16
      %v11032 = vrot.slane %v11030, 4
      %v11033 = vor.u32 %v11032, %v11028
      %v11034 = vrot.slane %v11033, 4
      %v11036 = vshll.u32 %v10655, 16
      %v11038 = vrot.slane %v11036, 5
      %v11039 = vsel %vm1290, %v11034, %v11038
      %s11040 = scalar_lea.vmem %s3, 512
      %v11041 = vld [vmem:[%s11040] sm:$0xf]
      %v11042 = vld [vmem:[%s11040 + $0x4] sm:$0xf]
      %v11043 = vld [vmem:[%s11040 + $0x8] sm:$0xf]
      %v11044 = vld [vmem:[%s11040 + $0xc] sm:$0xf]
      %v11045 = vld [vmem:[%s11040 + $0x10] sm:$0xf]
      %v11046 = vld [vmem:[%s11040 + $0x14] sm:$0xf]
      %v11047 = vld [vmem:[%s11040 + $0x18] sm:$0xf]
      %v11048 = vld [vmem:[%s11040 + $0x1c] sm:$0xf]
      %v11049 = vld [vmem:[%s11040 + $0x20] sm:$0xf]
      %v11050 = vld [vmem:[%s11040 + $0x24] sm:$0xf]
      %v11051 = vld [vmem:[%s11040 + $0x28] sm:$0xf]
      %v11052 = vld [vmem:[%s11040 + $0x2c] sm:$0xf]
      %v11053 = vld [vmem:[%s11040 + $0x30] sm:$0xf]
      %v11054 = vld [vmem:[%s11040 + $0x34] sm:$0xf]
      %v11055 = vld [vmem:[%s11040 + $0x38] sm:$0xf]
      %v11056 = vld [vmem:[%s11040 + $0x3c] sm:$0xf]
      %v11057 = vunpack.c.l.b16 %v10669
      %v11058 = vunpack.c.l.b16 %v10679
      %v11059 = vunpack.c.l.b16 %v10693
      %v11060 = vunpack.c.l.b16 %v10703
      %v11061 = vunpack.c.l.b16 %v10717
      %v11062 = vunpack.c.l.b16 %v10727
      %v11063 = vunpack.c.l.b16 %v10741
      %v11064 = vunpack.c.l.b16 %v10751
      %v11065 = vunpack.c.l.b16 %v10765
      %v11066 = vunpack.c.l.b16 %v10775
      %v11067 = vunpack.c.l.b16 %v10789
      %v11068 = vunpack.c.l.b16 %v10799
      %v11069 = vunpack.c.l.b16 %v10813
      %v11070 = vunpack.c.l.b16 %v10823
      %v11071 = vunpack.c.l.b16 %v10837
      %v11072 = vunpack.c.l.b16 %v10847
      %v11073 = vunpack.c.l.b16 %v10861
      %v11074 = vunpack.c.l.b16 %v10871
      %v11075 = vunpack.c.l.b16 %v10885
      %v11076 = vunpack.c.l.b16 %v10895
      %v11077 = vunpack.c.l.b16 %v10909
      %v11078 = vunpack.c.l.b16 %v10919
      %v11079 = vunpack.c.l.b16 %v10933
      %v11080 = vunpack.c.l.b16 %v10943
      %v11081 = vunpack.c.l.b16 %v10957
      %v11082 = vunpack.c.l.b16 %v10967
      %v11083 = vunpack.c.l.b16 %v10981
      %v11084 = vunpack.c.l.b16 %v10991
      %v11085 = vunpack.c.l.b16 %v11005
      %v11086 = vunpack.c.l.b16 %v11015
      %v11087 = vunpack.c.l.b16 %v11029
      %v11088 = vunpack.c.l.b16 %v11039
      %v11089 = vpack.c.b16 %v11058, %v11057
      %v11090 = vpack.c.b16 %v11060, %v11059
      %v11091 = vpack.c.b16 %v11062, %v11061
      %v11092 = vpack.c.b16 %v11064, %v11063
      %v11093 = vpack.c.b16 %v11066, %v11065
      %v11094 = vpack.c.b16 %v11068, %v11067
      %v11095 = vpack.c.b16 %v11070, %v11069
      %v11096 = vpack.c.b16 %v11072, %v11071
      %v11097 = vpack.c.b16 %v11074, %v11073
      %v11098 = vpack.c.b16 %v11076, %v11075
      %v11099 = vpack.c.b16 %v11078, %v11077
      %v11100 = vpack.c.b16 %v11080, %v11079
      %v11101 = vpack.c.b16 %v11082, %v11081
      %v11102 = vpack.c.b16 %v11084, %v11083
      %v11103 = vpack.c.b16 %v11086, %v11085
      %v11104 = vpack.c.b16 %v11088, %v11087
      %v11137 = vunpack.c.l.b16 %v11041
      %v11138 = vunpack.c.l.b16 %v11042
      %v11139 = vunpack.c.l.b16 %v11043
      %v11140 = vunpack.c.l.b16 %v11044
      %v11141 = vunpack.c.l.b16 %v11045
      %v11142 = vunpack.c.l.b16 %v11046
      %v11143 = vunpack.c.l.b16 %v11047
      %v11144 = vunpack.c.l.b16 %v11048
      %v11145 = vunpack.c.l.b16 %v11049
      %v11146 = vunpack.c.l.b16 %v11050
      %v11147 = vunpack.c.l.b16 %v11051
      %v11148 = vunpack.c.l.b16 %v11052
      %v11149 = vunpack.c.l.b16 %v11053
      %v11150 = vunpack.c.l.b16 %v11054
      %v11151 = vunpack.c.l.b16 %v11055
      %v11152 = vunpack.c.l.b16 %v11056
      %v11153 = vpack.c.b16 %v11138, %v11137
      %v11154 = vpack.c.b16 %v11140, %v11139
      %v11155 = vpack.c.b16 %v11142, %v11141
      %v11156 = vpack.c.b16 %v11144, %v11143
      %v11157 = vpack.c.b16 %v11146, %v11145
      %v11158 = vpack.c.b16 %v11148, %v11147
      %v11159 = vpack.c.b16 %v11150, %v11149
      %v11160 = vpack.c.b16 %v11152, %v11151
      %11169 = vmatprep.subr.bf16.mxu0 0
      %11170 = vmatpush1.bf16.msra.mxu0 %v11160
      %11171 = vmatprep.subr.bf16.mxu0 0
      %11172 = vmatpush1.bf16.msra.mxu0 %v11159
      %11173 = vmatprep.subr.bf16.mxu0 0
      %11174 = vmatpush1.bf16.msra.mxu0 %v11158
      %11175 = vmatprep.subr.bf16.mxu0 0
      %11176 = vmatpush1.bf16.msra.mxu0 %v11157
      %11177 = vmatprep.subr.bf16.mxu0 0
      %11178 = vmatpush1.bf16.msra.mxu0 %v11156
      %11179 = vmatprep.subr.bf16.mxu0 0
      %11180 = vmatpush1.bf16.msra.mxu0 %v11155
      %11181 = vmatprep.subr.bf16.mxu0 0
      %11182 = vmatpush1.bf16.msra.mxu0 %v11154
      %11183 = vmatprep.subr.bf16.mxu0 0
      %11184 = vmatpush1.bf16.msra.mxu0 %v11153
      %11185 = vmatprep.subr.bf16.mxu0 0
      %11186 = vmatpush2.bf16.msra.mxu0 0
      %11187 = vmatprep.subr.bf16.mxu0 0
      %11188 = vmatpush2.bf16.msra.mxu0 0
      %11189 = vmatprep.subr.bf16.mxu0 0
      %11190 = vmatpush2.bf16.msra.mxu0 0
      %11191 = vmatprep.subr.bf16.mxu0 0
      %11192 = vmatpush2.bf16.msra.mxu0 0
      %11193 = vmatprep.subr.bf16.mxu0 0
      %11194 = vmatpush2.bf16.msra.mxu0 0
      %11195 = vmatprep.subr.bf16.mxu0 0
      %11196 = vmatpush2.bf16.msra.mxu0 0
      %11197 = vmatprep.subr.bf16.mxu0 0
      %11198 = vmatpush2.bf16.msra.mxu0 0
      %11199 = vmatprep.subr.bf16.mxu0 0
      %11200 = vmatpush2.bf16.msra.mxu0 0
      %11201 = vmatprep.mubr.bf16.mxu0 0
      %11202 = vmatmul.mubr.bf16.gmra.mxu0 %v11089
      %v11203 = vpop.f32.mrf.mxu0
      %v11204 = vadd.f32 0.0, %v11203
      %v11205 = vpop.f32.mrf.mxu0
      %v11206 = vpop.f32.mrf.mxu0
      %v11207 = vadd.f32 0.0, %v11206
      %v11208 = vpop.f32.mrf.mxu0
      %11209 = vmatprep.mubr.bf16.mxu0 0
      %11210 = vmatmul.mubr.bf16.gmra.mxu0 %v11090
      %v11211 = vpop.f32.mrf.mxu0
      %v11212 = vadd.f32 0.0, %v11211
      %v11213 = vpop.f32.mrf.mxu0
      %v11214 = vpop.f32.mrf.mxu0
      %v11215 = vadd.f32 0.0, %v11214
      %v11216 = vpop.f32.mrf.mxu0
      %11217 = vmatprep.mubr.bf16.mxu0 0
      %11218 = vmatmul.mubr.bf16.gmra.mxu0 %v11091
      %v11219 = vpop.f32.mrf.mxu0
      %v11220 = vadd.f32 0.0, %v11219
      %v11221 = vpop.f32.mrf.mxu0
      %v11222 = vpop.f32.mrf.mxu0
      %v11223 = vadd.f32 0.0, %v11222
      %v11224 = vpop.f32.mrf.mxu0
      %11225 = vmatprep.mubr.bf16.mxu0 0
      %11226 = vmatmul.mubr.bf16.gmra.mxu0 %v11092
      %v11227 = vpop.f32.mrf.mxu0
      %v11228 = vadd.f32 0.0, %v11227
      %v11229 = vpop.f32.mrf.mxu0
      %v11230 = vpop.f32.mrf.mxu0
      %v11231 = vadd.f32 0.0, %v11230
      %v11232 = vpop.f32.mrf.mxu0
      %11233 = vmatprep.mubr.bf16.mxu0 0
      %11234 = vmatmul.mubr.bf16.gmra.mxu0 %v11093
      %v11235 = vpop.f32.mrf.mxu0
      %v11236 = vadd.f32 0.0, %v11235
      %v11237 = vpop.f32.mrf.mxu0
      %v11238 = vpop.f32.mrf.mxu0
      %v11239 = vadd.f32 0.0, %v11238
      %v11240 = vpop.f32.mrf.mxu0
      %11241 = vmatprep.mubr.bf16.mxu0 0
      %11242 = vmatmul.mubr.bf16.gmra.mxu0 %v11094
      %v11243 = vpop.f32.mrf.mxu0
      %v11244 = vadd.f32 0.0, %v11243
      %v11245 = vpop.f32.mrf.mxu0
      %v11246 = vpop.f32.mrf.mxu0
      %v11247 = vadd.f32 0.0, %v11246
      %v11248 = vpop.f32.mrf.mxu0
      %11249 = vmatprep.mubr.bf16.mxu0 0
      %11250 = vmatmul.mubr.bf16.gmra.mxu0 %v11095
      %v11251 = vpop.f32.mrf.mxu0
      %v11252 = vadd.f32 0.0, %v11251
      %v11253 = vpop.f32.mrf.mxu0
      %v11254 = vpop.f32.mrf.mxu0
      %v11255 = vadd.f32 0.0, %v11254
      %v11256 = vpop.f32.mrf.mxu0
      %11257 = vmatprep.mubr.bf16.mxu0 0
      %11258 = vmatmul.mubr.bf16.gmra.mxu0 %v11096
      %v11259 = vpop.f32.mrf.mxu0
      %v11260 = vadd.f32 0.0, %v11259
      %v11261 = vpop.f32.mrf.mxu0
      %v11262 = vpop.f32.mrf.mxu0
      %v11263 = vadd.f32 0.0, %v11262
      %v11264 = vpop.f32.mrf.mxu0
      %11265 = vmatprep.mubr.bf16.mxu0 0
      %11266 = vmatmul.mubr.bf16.gmra.mxu0 %v11097
      %v11267 = vpop.f32.mrf.mxu0
      %v11268 = vadd.f32 0.0, %v11267
      %v11269 = vpop.f32.mrf.mxu0
      %v11270 = vpop.f32.mrf.mxu0
      %v11271 = vadd.f32 0.0, %v11270
      %v11272 = vpop.f32.mrf.mxu0
      %11273 = vmatprep.mubr.bf16.mxu0 0
      %11274 = vmatmul.mubr.bf16.gmra.mxu0 %v11098
      %v11275 = vpop.f32.mrf.mxu0
      %v11276 = vadd.f32 0.0, %v11275
      %v11277 = vpop.f32.mrf.mxu0
      %v11278 = vpop.f32.mrf.mxu0
      %v11279 = vadd.f32 0.0, %v11278
      %v11280 = vpop.f32.mrf.mxu0
      %11281 = vmatprep.mubr.bf16.mxu0 0
      %11282 = vmatmul.mubr.bf16.gmra.mxu0 %v11099
      %v11283 = vpop.f32.mrf.mxu0
      %v11284 = vadd.f32 0.0, %v11283
      %v11285 = vpop.f32.mrf.mxu0
      %v11286 = vpop.f32.mrf.mxu0
      %v11287 = vadd.f32 0.0, %v11286
      %v11288 = vpop.f32.mrf.mxu0
      %11289 = vmatprep.mubr.bf16.mxu0 0
      %11290 = vmatmul.mubr.bf16.gmra.mxu0 %v11100
      %v11291 = vpop.f32.mrf.mxu0
      %v11292 = vadd.f32 0.0, %v11291
      %v11293 = vpop.f32.mrf.mxu0
      %v11294 = vpop.f32.mrf.mxu0
      %v11295 = vadd.f32 0.0, %v11294
      %v11296 = vpop.f32.mrf.mxu0
      %11297 = vmatprep.mubr.bf16.mxu0 0
      %11298 = vmatmul.mubr.bf16.gmra.mxu0 %v11101
      %v11299 = vpop.f32.mrf.mxu0
      %v11300 = vadd.f32 0.0, %v11299
      %v11301 = vpop.f32.mrf.mxu0
      %v11302 = vpop.f32.mrf.mxu0
      %v11303 = vadd.f32 0.0, %v11302
      %v11304 = vpop.f32.mrf.mxu0
      %11305 = vmatprep.mubr.bf16.mxu0 0
      %11306 = vmatmul.mubr.bf16.gmra.mxu0 %v11102
      %v11307 = vpop.f32.mrf.mxu0
      %v11308 = vadd.f32 0.0, %v11307
      %v11309 = vpop.f32.mrf.mxu0
      %v11310 = vpop.f32.mrf.mxu0
      %v11311 = vadd.f32 0.0, %v11310
      %v11312 = vpop.f32.mrf.mxu0
      %11313 = vmatprep.mubr.bf16.mxu0 0
      %11314 = vmatmul.mubr.bf16.gmra.mxu0 %v11103
      %v11315 = vpop.f32.mrf.mxu0
      %v11316 = vadd.f32 0.0, %v11315
      %v11317 = vpop.f32.mrf.mxu0
      %v11318 = vpop.f32.mrf.mxu0
      %v11319 = vadd.f32 0.0, %v11318
      %v11320 = vpop.f32.mrf.mxu0
      %11321 = vmatprep.mubr.bf16.mxu0 0
      %11322 = vmatmul.mubr.bf16.gmra.mxu0 %v11104
      %v11323 = vpop.f32.mrf.mxu0
      %v11324 = vadd.f32 0.0, %v11323
      %v11325 = vpop.f32.mrf.mxu0
      %v11326 = vpop.f32.mrf.mxu0
      %v11327 = vadd.f32 0.0, %v11326
      %v11328 = vpop.f32.mrf.mxu0
      %11329 = vdwg.mxu0
      %v11330 = vadd.f32 %v10576, %v11204
      %v11331 = vadd.f32 %v10577, %v11207
      %v11332 = vadd.f32 %v10578, %v11212
      %v11333 = vadd.f32 %v10579, %v11215
      %v11334 = vadd.f32 %v10580, %v11220
      %v11335 = vadd.f32 %v10581, %v11223
      %v11336 = vadd.f32 %v10582, %v11228
      %v11337 = vadd.f32 %v10583, %v11231
      %v11338 = vadd.f32 %v10584, %v11236
      %v11339 = vadd.f32 %v10585, %v11239
      %v11340 = vadd.f32 %v10586, %v11244
      %v11341 = vadd.f32 %v10587, %v11247
      %v11342 = vadd.f32 %v10588, %v11252
      %v11343 = vadd.f32 %v10589, %v11255
      %v11344 = vadd.f32 %v10590, %v11260
      %v11345 = vadd.f32 %v10591, %v11263
      %v11346 = vadd.f32 %v10592, %v11268
      %v11347 = vadd.f32 %v10593, %v11271
      %v11348 = vadd.f32 %v10594, %v11276
      %v11349 = vadd.f32 %v10595, %v11279
      %v11350 = vadd.f32 %v10596, %v11284
      %v11351 = vadd.f32 %v10597, %v11287
      %v11352 = vadd.f32 %v10598, %v11292
      %v11353 = vadd.f32 %v10599, %v11295
      %v11354 = vadd.f32 %v10600, %v11300
      %v11355 = vadd.f32 %v10601, %v11303
      %v11356 = vadd.f32 %v10602, %v11308
      %v11357 = vadd.f32 %v10603, %v11311
      %v11358 = vadd.f32 %v10604, %v11316
      %v11359 = vadd.f32 %v10605, %v11319
      %v11360 = vadd.f32 %v10606, %v11324
      %v11361 = vadd.f32 %v10607, %v11327
      %v11362 = vld [vmem:[%s4] sm:$0x1]
      %v11364 = vlaneseq
      %v11365 = vshrl.u32 %v11364, 7
      %v11366 = vsub.s32 0, %v11365
      %v11367 = vrot.slane %v11362, %v11366
      %v11369 = vadd.f32 %v11330, %v11367
      %v11370 = vadd.f32 %v11331, %v11367
      %v11371 = vadd.f32 %v11332, %v11367
      %v11372 = vadd.f32 %v11333, %v11367
      %v11373 = vadd.f32 %v11334, %v11367
      %v11374 = vadd.f32 %v11335, %v11367
      %v11375 = vadd.f32 %v11336, %v11367
      %v11376 = vadd.f32 %v11337, %v11367
      %v11377 = vadd.f32 %v11338, %v11367
      %v11378 = vadd.f32 %v11339, %v11367
      %v11379 = vadd.f32 %v11340, %v11367
      %v11380 = vadd.f32 %v11341, %v11367
      %v11381 = vadd.f32 %v11342, %v11367
      %v11382 = vadd.f32 %v11343, %v11367
      %v11383 = vadd.f32 %v11344, %v11367
      %v11384 = vadd.f32 %v11345, %v11367
      %v11385 = vadd.f32 %v11346, %v11367
      %v11386 = vadd.f32 %v11347, %v11367
      %v11387 = vadd.f32 %v11348, %v11367
      %v11388 = vadd.f32 %v11349, %v11367
      %v11389 = vadd.f32 %v11350, %v11367
      %v11390 = vadd.f32 %v11351, %v11367
      %v11391 = vadd.f32 %v11352, %v11367
      %v11392 = vadd.f32 %v11353, %v11367
      %v11393 = vadd.f32 %v11354, %v11367
      %v11394 = vadd.f32 %v11355, %v11367
      %v11395 = vadd.f32 %v11356, %v11367
      %v11396 = vadd.f32 %v11357, %v11367
      %v11397 = vadd.f32 %v11358, %v11367
      %v11398 = vadd.f32 %v11359, %v11367
      %v11399 = vadd.f32 %v11360, %v11367
      %v11400 = vadd.f32 %v11361, %v11367
      %v11401 = vmax.f32 %v11369, 0.0
      %v11402 = vmax.f32 %v11370, 0.0
      %v11403 = vmax.f32 %v11371, 0.0
      %v11404 = vmax.f32 %v11372, 0.0
      %v11405 = vmax.f32 %v11373, 0.0
      %v11406 = vmax.f32 %v11374, 0.0
      %v11407 = vmax.f32 %v11375, 0.0
      %v11408 = vmax.f32 %v11376, 0.0
      %v11409 = vmax.f32 %v11377, 0.0
      %v11410 = vmax.f32 %v11378, 0.0
      %v11411 = vmax.f32 %v11379, 0.0
      %v11412 = vmax.f32 %v11380, 0.0
      %v11413 = vmax.f32 %v11381, 0.0
      %v11414 = vmax.f32 %v11382, 0.0
      %v11415 = vmax.f32 %v11383, 0.0
      %v11416 = vmax.f32 %v11384, 0.0
      %v11417 = vmax.f32 %v11385, 0.0
      %v11418 = vmax.f32 %v11386, 0.0
      %v11419 = vmax.f32 %v11387, 0.0
      %v11420 = vmax.f32 %v11388, 0.0
      %v11421 = vmax.f32 %v11389, 0.0
      %v11422 = vmax.f32 %v11390, 0.0
      %v11423 = vmax.f32 %v11391, 0.0
      %v11424 = vmax.f32 %v11392, 0.0
      %v11425 = vmax.f32 %v11393, 0.0
      %v11426 = vmax.f32 %v11394, 0.0
      %v11427 = vmax.f32 %v11395, 0.0
      %v11428 = vmax.f32 %v11396, 0.0
      %v11429 = vmax.f32 %v11397, 0.0
      %v11430 = vmax.f32 %v11398, 0.0
      %v11431 = vmax.f32 %v11399, 0.0
      %v11432 = vmax.f32 %v11400, 0.0
      %v11433 = vpack.c.bf16 %v11402, %v11401
      %v11434 = vpack.c.bf16 %v11404, %v11403
      %v11435 = vpack.c.bf16 %v11406, %v11405
      %v11436 = vpack.c.bf16 %v11408, %v11407
      %v11437 = vpack.c.bf16 %v11410, %v11409
      %v11438 = vpack.c.bf16 %v11412, %v11411
      %v11439 = vpack.c.bf16 %v11414, %v11413
      %v11440 = vpack.c.bf16 %v11416, %v11415
      %v11441 = vpack.c.bf16 %v11418, %v11417
      %v11442 = vpack.c.bf16 %v11420, %v11419
      %v11443 = vpack.c.bf16 %v11422, %v11421
      %v11444 = vpack.c.bf16 %v11424, %v11423
      %v11445 = vpack.c.bf16 %v11426, %v11425
      %v11446 = vpack.c.bf16 %v11428, %v11427
      %v11447 = vpack.c.bf16 %v11430, %v11429
      %v11448 = vpack.c.bf16 %v11432, %v11431
      %v11465 = vunpack.c.l.b16 %v11433
      %v11466 = vunpack.c.h.b16 %v11433
      %v11467 = vunpack.c.l.b16 %v11434
      %v11468 = vunpack.c.h.b16 %v11434
      %v11469 = vunpack.c.l.b16 %v11435
      %v11470 = vunpack.c.h.b16 %v11435
      %v11471 = vunpack.c.l.b16 %v11436
      %v11472 = vunpack.c.h.b16 %v11436
      %v11473 = vunpack.c.l.b16 %v11437
      %v11474 = vunpack.c.h.b16 %v11437
      %v11475 = vunpack.c.l.b16 %v11438
      %v11476 = vunpack.c.h.b16 %v11438
      %v11477 = vunpack.c.l.b16 %v11439
      %v11478 = vunpack.c.h.b16 %v11439
      %v11479 = vunpack.c.l.b16 %v11440
      %v11480 = vunpack.c.h.b16 %v11440
      %v11481 = vunpack.c.l.b16 %v11441
      %v11482 = vunpack.c.h.b16 %v11441
      %v11483 = vunpack.c.l.b16 %v11442
      %v11484 = vunpack.c.h.b16 %v11442
      %v11485 = vunpack.c.l.b16 %v11443
      %v11486 = vunpack.c.h.b16 %v11443
      %v11487 = vunpack.c.l.b16 %v11444
      %v11488 = vunpack.c.h.b16 %v11444
      %v11489 = vunpack.c.l.b16 %v11445
      %v11490 = vunpack.c.h.b16 %v11445
      %v11491 = vunpack.c.l.b16 %v11446
      %v11492 = vunpack.c.h.b16 %v11446
      %v11493 = vunpack.c.l.b16 %v11447
      %v11494 = vunpack.c.h.b16 %v11447
      %v11495 = vunpack.c.l.b16 %v11448
      %v11496 = vunpack.c.h.b16 %v11448
      %v11497 = vpack.c.b16 %v11465, %v11465
      %v11498 = vpack.c.b16 %v11466, %v11466
      %v11499 = vpack.c.b16 %v11467, %v11467
      %v11500 = vpack.c.b16 %v11468, %v11468
      %v11501 = vpack.c.b16 %v11469, %v11469
      %v11502 = vpack.c.b16 %v11470, %v11470
      %v11503 = vpack.c.b16 %v11471, %v11471
      %v11504 = vpack.c.b16 %v11472, %v11472
      %v11505 = vpack.c.b16 %v11473, %v11473
      %v11506 = vpack.c.b16 %v11474, %v11474
      %v11507 = vpack.c.b16 %v11475, %v11475
      %v11508 = vpack.c.b16 %v11476, %v11476
      %v11509 = vpack.c.b16 %v11477, %v11477
      %v11510 = vpack.c.b16 %v11478, %v11478
      %v11511 = vpack.c.b16 %v11479, %v11479
      %v11512 = vpack.c.b16 %v11480, %v11480
      %v11513 = vpack.c.b16 %v11481, %v11481
      %v11514 = vpack.c.b16 %v11482, %v11482
      %v11515 = vpack.c.b16 %v11483, %v11483
      %v11516 = vpack.c.b16 %v11484, %v11484
      %v11517 = vpack.c.b16 %v11485, %v11485
      %v11518 = vpack.c.b16 %v11486, %v11486
      %v11519 = vpack.c.b16 %v11487, %v11487
      %v11520 = vpack.c.b16 %v11488, %v11488
      %v11521 = vpack.c.b16 %v11489, %v11489
      %v11522 = vpack.c.b16 %v11490, %v11490
      %v11523 = vpack.c.b16 %v11491, %v11491
      %v11524 = vpack.c.b16 %v11492, %v11492
      %v11525 = vpack.c.b16 %v11493, %v11493
      %v11526 = vpack.c.b16 %v11494, %v11494
      %v11527 = vpack.c.b16 %v11495, %v11495
      %v11528 = vpack.c.b16 %v11496, %v11496
      %11561 = vst [vmem:[%s224] sm:$0xf] %v11497
      %11562 = vst [vmem:[%s224 + $0x4] sm:$0xf] %v11498
      %11563 = vst [vmem:[%s224 + $0x8] sm:$0xf] %v11499
      %11564 = vst [vmem:[%s224 + $0xc] sm:$0xf] %v11500
      %11565 = vst [vmem:[%s224 + $0x10] sm:$0xf] %v11501
      %11566 = vst [vmem:[%s224 + $0x14] sm:$0xf] %v11502
      %11567 = vst [vmem:[%s224 + $0x18] sm:$0xf] %v11503
      %11568 = vst [vmem:[%s224 + $0x1c] sm:$0xf] %v11504
      %11569 = vst [vmem:[%s224 + $0x20] sm:$0xf] %v11505
      %11570 = vst [vmem:[%s224 + $0x24] sm:$0xf] %v11506
      %11571 = vst [vmem:[%s224 + $0x28] sm:$0xf] %v11507
      %11572 = vst [vmem:[%s224 + $0x2c] sm:$0xf] %v11508
      %11573 = vst [vmem:[%s224 + $0x30] sm:$0xf] %v11509
      %11574 = vst [vmem:[%s224 + $0x34] sm:$0xf] %v11510
      %11575 = vst [vmem:[%s224 + $0x38] sm:$0xf] %v11511
      %11576 = vst [vmem:[%s224 + $0x3c] sm:$0xf] %v11512
      %11577 = vst [vmem:[%s224 + $0x40] sm:$0xf] %v11513
      %11578 = vst [vmem:[%s224 + $0x44] sm:$0xf] %v11514
      %11579 = vst [vmem:[%s224 + $0x48] sm:$0xf] %v11515
      %11580 = vst [vmem:[%s224 + $0x4c] sm:$0xf] %v11516
      %11581 = vst [vmem:[%s224 + $0x50] sm:$0xf] %v11517
      %11582 = vst [vmem:[%s224 + $0x54] sm:$0xf] %v11518
      %11583 = vst [vmem:[%s224 + $0x58] sm:$0xf] %v11519
      %11584 = vst [vmem:[%s224 + $0x5c] sm:$0xf] %v11520
      %11585 = vst [vmem:[%s224 + $0x60] sm:$0xf] %v11521
      %11586 = vst [vmem:[%s224 + $0x64] sm:$0xf] %v11522
      %11587 = vst [vmem:[%s224 + $0x68] sm:$0xf] %v11523
      %11588 = vst [vmem:[%s224 + $0x6c] sm:$0xf] %v11524
      %11589 = vst [vmem:[%s224 + $0x70] sm:$0xf] %v11525
      %11590 = vst [vmem:[%s224 + $0x74] sm:$0xf] %v11526
      %11591 = vst [vmem:[%s224 + $0x78] sm:$0xf] %v11527
      %11592 = vst [vmem:[%s224 + $0x7c] sm:$0xf] %v11528
      %p11593 = scmp.lt.s32.totalorder %s16, 1
      %s11594 = scalar_select %p11593, %s16, 1
      %s11595 = smul.addr %s11594, 32
      %s11596 = smul.addr %s11595, 4
      %s11597 = scalar_lea.vmem %s5, %s11596
      // Predicated region
      $region41: #{double_conv.1} parent=39 // pred_check
        %p11598 = pneg %p144
      $region42: #{double_conv.1} parent=39 // pred_check_branch
        %11600 = sbr.rel (%p11598) target = $region44
      $region43: #{double_conv.1} parent=39 // pred_region
        _
      $region44: #{double_conv.1} parent=39 // pred_fallthru
        _
    $region40: #{double_conv.1} parent=5 // pred_fallthru
      _
    %p11601 = scmp.le.s32.totalorder 2, %s11
    // Predicated region
    $region45: #{double_conv.1} parent=5 // pred_check
      %p11602 = pneg %p11601
    $region46: #{double_conv.1} parent=5 // pred_check_branch
      %11604 = sbr.rel (%p11602) target = $region48
    $region47: #{double_conv.1} parent=5 // pred_region
      %s11605 = ssub.s32 %s11, 2
      // Predicated region
      $region49: #{double_conv.1} parent=47 // pred_check
        %p11606 = pneg %p150
      $region50: #{double_conv.1} parent=47 // pred_check_branch
        %11608 = sbr.rel (%p11606) target = $region52
      $region51: #{double_conv.1} parent=47 // pred_region
        %p11609 = scmp.lt.s32.totalorder %s17, 1
        %s11610 = scalar_select %p11609, %s17, 1
        %s11611 = smul.addr %s11610, 32
        %s11612 = smul.addr %s11611, 4
        %s11613 = scalar_lea.vmem %s5, %s11612
      $region52: #{double_conv.1} parent=47 // pred_fallthru
        _
    $region48: #{double_conv.1} parent=5 // pred_fallthru
      _
  $region6: #{double_conv.1} parent=0 // loop_footer
    %s15 = sadd.s32 1, %s11
  $region7: #{double_conv.1} parent=0 // loop_footer_branch
    %10 = sbr.rel target = $region3
  $region8: #{double_conv.1} parent=0 // loop_exit
    _

</llo_original>
